<compile_context>
chip_gen: v7x
topology: tpu7x:2x2x1
jax: 0.10.0
libtpu: 0.0.40
codegen_flags: <defaults>
</compile_context>

<pallas_src>
import functools

import jax
import jax.numpy as jnp
from jax.experimental import pallas as pl
from jax.experimental.pallas import tpu as pltpu


# ----------------------------------------------------------------------------- kernels

def _matmul_fused_kernel(*refs, relu, has_residual):
    """o = act(a @ b + bias [+ residual]).  Single K block, grid only over M tiles.

    a: bf16 [tm, K], b: bf16 [K, N], bias: f32 [1, N], residual: f32 [tm, N]."""
    if has_residual:
        a_ref, b_ref, bias_ref, res_ref, o_ref = refs
    else:
        a_ref, b_ref, bias_ref, o_ref = refs
        res_ref = None
    acc = jnp.dot(a_ref[...], b_ref[...], preferred_element_type=jnp.float32)
    acc = acc + bias_ref[...]
    if has_residual:
        acc = acc + res_ref[...]
    if relu:
        acc = jnp.maximum(acc, 0.0)
    o_ref[...] = acc.astype(o_ref.dtype)


def _max9_kernel(*refs):
    """Elementwise max over 9 window slices (3x3 max-pool), row-tiled."""
    *in_refs, o_ref = refs
    out = in_refs[0][...]
    for r in in_refs[1:]:
        out = jnp.maximum(out, r[...])
    o_ref[...] = out


def _head_kernel(*refs, use_bottleneck, cos_dist, scale):
    """Fused head: global avg-pool -> [bottleneck] -> [l2-normalize] -> fc.

    x: f32 [N, HW, C]; weights bf16; biases f32.  Outputs (features, logits) in f32."""
    if use_bottleneck:
        x_ref, bw_ref, bb_ref, fw_ref, fb_ref, f_ref, y_ref = refs
    else:
        x_ref, fw_ref, fb_ref, f_ref, y_ref = refs

    feat = jnp.mean(x_ref[...], axis=1)                                  # [N, C] f32
    if use_bottleneck:
        feat = jnp.dot(feat.astype(jnp.bfloat16), bw_ref[...],
                       preferred_element_type=jnp.float32) + bb_ref[...]
    if cos_dist:
        nrm = jnp.sqrt(jnp.sum(feat * feat, axis=1, keepdims=True))
        feat = feat / (nrm + 1e-5)
        y = scale * jnp.dot(feat.astype(jnp.bfloat16), fw_ref[...],
                            preferred_element_type=jnp.float32)
    else:
        y = jnp.dot(feat.astype(jnp.bfloat16), fw_ref[...],
                    preferred_element_type=jnp.float32) + fb_ref[...]
    f_ref[...] = feat
    y_ref[...] = y


# ----------------------------------------------------------------------------- wrappers

def _round_up(x, m):
    return (x + m - 1) // m * m


def pallas_matmul(a, b, bias=None, residual=None, relu=False, tm=512):
    """act(a:[M,K] @ b:[K,N] + bias [+ residual]).  bf16 operands, f32 epilogue.

    K and N are taken as a single full-extent block (all layers of this network have
    K <= 1152, N <= 128); only M is tiled/padded."""
    M, K = a.shape
    K2, N = b.shape
    assert K == K2
    if bias is None:
        bias = jnp.zeros((N,), jnp.float32)

    tm_eff = min(tm, _round_up(M, 8))
    Mp = _round_up(M, tm_eff)

    a_p = a.astype(jnp.bfloat16)
    if Mp != M:
        a_p = jnp.pad(a_p, ((0, Mp - M), (0, 0)))
    b_p = b.astype(jnp.bfloat16)
    bias_p = bias.astype(jnp.float32).reshape(1, N)

    in_specs = [
        pl.BlockSpec((tm_eff, K), lambda i: (i, 0)),
        pl.BlockSpec((K, N), lambda i: (0, 0)),
        pl.BlockSpec((1, N), lambda i: (0, 0)),
    ]
    inputs = [a_p, b_p, bias_p]
    if residual is not None:
        res_p = residual.astype(jnp.float32)
        if Mp != M:
            res_p = jnp.pad(res_p, ((0, Mp - M), (0, 0)))
        in_specs.append(pl.BlockSpec((tm_eff, N), lambda i: (i, 0)))
        inputs.append(res_p)

    out = pl.pallas_call(
        functools.partial(_matmul_fused_kernel, relu=relu,
                          has_residual=residual is not None),
        out_shape=jax.ShapeDtypeStruct((Mp, N), jnp.float32),
        grid_spec=pltpu.PrefetchScalarGridSpec(
            num_scalar_prefetch=0,
            grid=(Mp // tm_eff,),
            in_specs=in_specs,
            out_specs=pl.BlockSpec((tm_eff, N), lambda i: (i, 0)),
        ),
        compiler_params=pltpu.CompilerParams(
            dimension_semantics=("parallel",)),
    )(*inputs)
    return out if Mp == M else out[:M]


def pallas_max9(windows, tr=512):
    """Row-tiled elementwise max over 9 [R, C] window arrays."""
    R, C = windows[0].shape
    tr_eff = min(tr, _round_up(R, 8))
    Rp = _round_up(R, tr_eff)
    if Rp != R:
        windows = [jnp.pad(w, ((0, Rp - R), (0, 0))) for w in windows]
    spec = pl.BlockSpec((tr_eff, C), lambda i: (i, 0))
    out = pl.pallas_call(
        _max9_kernel,
        out_shape=jax.ShapeDtypeStruct((Rp, C), windows[0].dtype),
        grid_spec=pltpu.PrefetchScalarGridSpec(
            num_scalar_prefetch=0,
            grid=(Rp // tr_eff,),
            in_specs=[spec] * 9,
            out_specs=spec,
        ),
        compiler_params=pltpu.CompilerParams(
            dimension_semantics=("parallel",)),
    )(*windows)
    return out if Rp == R else out[:R]


def pallas_head(x_nlc, fw, fb, bw=None, bb=None, cos_dist=False, scale=1.0):
    """Fused avgpool + bottleneck(+bias) + [l2norm] + fc as one pallas_call."""
    n, hw, c = x_nlc.shape
    feat_dim = bw.shape[1] if bw is not None else c
    class_num = fw.shape[1]

    inputs = [x_nlc.astype(jnp.float32)]
    if bw is not None:
        inputs += [bw.astype(jnp.bfloat16), bb.astype(jnp.float32).reshape(1, -1)]
    inputs += [fw.astype(jnp.bfloat16), fb.astype(jnp.float32).reshape(1, -1)]

    f, y = pl.pallas_call(
        functools.partial(_head_kernel, use_bottleneck=bw is not None,
                          cos_dist=cos_dist, scale=float(scale)),
        out_shape=(jax.ShapeDtypeStruct((n, feat_dim), jnp.float32),
                   jax.ShapeDtypeStruct((n, class_num), jnp.float32)),
    )(*inputs)
    return f, y


# ----------------------------------------------------------------------------- glue

def _im2col(x, kh, kw, stride, pad, pad_value=0.0):
    """x: [N,H,W,C] -> patches [N*OH*OW, kh*kw*C] (kh-major, kw, C-minor)."""
    n, h, w, c = x.shape
    xp = jnp.pad(x, ((0, 0), (pad, pad), (pad, pad), (0, 0)),
                 constant_values=pad_value)
    oh = (h + 2 * pad - kh) // stride + 1
    ow = (w + 2 * pad - kw) // stride + 1
    cols = []
    for i in range(kh):
        for j in range(kw):
            cols.append(xp[:, i:i + stride * oh:stride, j:j + stride * ow:stride, :])
    patches = jnp.concatenate(cols, axis=-1)
    return patches.reshape(n * oh * ow, kh * kw * c), (n, oh, ow)


def conv_bn(x, conv_w, bn, stride, pad, relu, residual=None):
    """Conv2d (no bias) + inference BatchNorm (+ optional residual + ReLU) as one
    Pallas matmul with fused epilogue.  Patches/weights fed to the MXU in bf16."""
    kh, kw, cin, cout = conv_w.shape
    gamma, beta, mean, var = bn
    scale = gamma / jnp.sqrt(var + 1e-5)
    shift = beta - mean * scale
    w_folded = (conv_w.reshape(kh * kw * cin, cout) * scale[None, :]).astype(jnp.bfloat16)
    patches, (n, oh, ow) = _im2col(x.astype(jnp.bfloat16), kh, kw, stride, pad)
    res2d = None
    if residual is not None:
        res2d = residual.reshape(n * oh * ow, cout)
    out = pallas_matmul(patches, w_folded, bias=shift, residual=res2d, relu=relu)
    return out.reshape(n, oh, ow, cout)


def maxpool_3x3_s2_p1(x):
    n, h, w, c = x.shape
    neg = float(jnp.finfo(x.dtype).min)
    xp = jnp.pad(x, ((0, 0), (1, 1), (1, 1), (0, 0)), constant_values=neg)
    oh = (h + 2 - 3) // 2 + 1
    ow = (w + 2 - 3) // 2 + 1
    windows = []
    for i in range(3):
        for j in range(3):
            win = xp[:, i:i + 2 * oh:2, j:j + 2 * ow:2, :]
            windows.append(win.reshape(n * oh * ow, c))
    out = pallas_max9(windows)
    return out.reshape(n, oh, ow, c)


def basic_block(x, blk, stride):
    out1 = conv_bn(x, blk['conv1_w'], blk['bn1'], stride, 1, relu=True)
    if 'down_w' in blk:
        shortcut = conv_bn(x, blk['down_w'], blk['down_bn'], stride, 0, relu=False)
    else:
        shortcut = x
    # conv2 + bn2 + residual add + ReLU fused into a single matmul epilogue.
    return conv_bn(out1, blk['conv2_w'], blk['bn2'], 1, 1, relu=True,
                   residual=shortcut)


# ----------------------------------------------------------------------------- params

def make_params(key, in_ch=3, stem=16, widths=(16, 32, 64, 128), blocks=(2, 2, 2, 2),
                bottleneck_dim=64, class_num=10):
    keys = iter(jax.random.split(key, 256))

    def nk():
        return next(keys)

    def conv_w(kh, kw, cin, cout):  # kaiming-uniform-ish
        bound = (6.0 / (kh * kw * cin)) ** 0.5
        return jax.random.uniform(nk(), (kh, kw, cin, cout), jnp.float32, -bound, bound)

    def bn_p(c):  # (gamma, beta, running_mean, running_var)
        gamma = 1.0 + 0.02 * jax.random.normal(nk(), (c,), jnp.float32)
        beta = jnp.zeros((c,), jnp.float32)
        mean = 0.05 * jax.random.normal(nk(), (c,), jnp.float32)
        var = 1.0 + 0.05 * jnp.abs(jax.random.normal(nk(), (c,), jnp.float32))
        return (gamma, beta, mean, var)

    def xavier(cin, cout):  # stored as [in, out] for x @ W
        std = (2.0 / (cin + cout)) ** 0.5
        return std * jax.random.normal(nk(), (cin, cout), jnp.float32)

    params = {'conv1_w': conv_w(7, 7, in_ch, stem), 'bn1': bn_p(stem)}
    layers = []
    cin = stem
    for li, (width, nb) in enumerate(zip(widths, blocks)):
        layer = []
        for bi in range(nb):
            stride = 2 if (li > 0 and bi == 0) else 1
            blk = {'conv1_w': conv_w(3, 3, cin, width), 'bn1': bn_p(width),
                   'conv2_w': conv_w(3, 3, width, width), 'bn2': bn_p(width)}
            if stride != 1 or cin != width:
                blk['down_w'] = conv_w(1, 1, cin, width)
                blk['down_bn'] = bn_p(width)
            layer.append(blk)
            cin = width
        layers.append(layer)
    params['layers'] = layers

    feat_dim = cin
    params['bottleneck_w'] = xavier(feat_dim, bottleneck_dim)
    params['bottleneck_b'] = jnp.zeros((bottleneck_dim,), jnp.float32)
    params['fc_w'] = xavier(bottleneck_dim, class_num)
    params['fc_b'] = jnp.zeros((class_num,), jnp.float32)
    # distLinear (cos_dist) params: weight-norm parameterization, per-class (column) norm
    params['fc_v'] = xavier(bottleneck_dim, class_num)
    params['fc_g'] = jnp.sqrt(jnp.sum(params['fc_v'] ** 2, axis=0))
    return params


# ----------------------------------------------------------------------------- forward

def resnetfc_forward(params, x_nchw, new_cls=True, use_bottleneck=True,
                     cos_dist=False, scale_factor=1.0):
    """Returns (features, logits), matching ResNetFc.forward."""
    x = jnp.transpose(x_nchw, (0, 2, 3, 1)).astype(jnp.float32)  # NCHW -> NHWC

    # stem: conv1 -> bn1 -> relu -> maxpool
    x = conv_bn(x, params['conv1_w'], params['bn1'], stride=2, pad=3, relu=True)
    x = maxpool_3x3_s2_p1(x)

    # layer1..layer4 (BasicBlocks)
    for li, layer in enumerate(params['layers']):
        for bi, blk in enumerate(layer):
            stride = 2 if (li > 0 and bi == 0) else 1
            x = basic_block(x, blk, stride)

    # fused head: global average pool (+ bottleneck) (+ l2norm) + fc
    n, h, w, c = x.shape
    x_nlc = x.reshape(n, h * w, c)

    apply_bottleneck = use_bottleneck and new_cls
    bw = params['bottleneck_w'] if apply_bottleneck else None
    bb = params['bottleneck_b'] if apply_bottleneck else None

    if cos_dist:
        v = params['fc_v']                                    # [in, out]
        col_norm = jnp.sqrt(jnp.sum(v * v, axis=0))           # per-class norm (dim=0)
        fw = v * (params['fc_g'] / col_norm)[None, :]         # weight-norm effective W
        fb = jnp.zeros((fw.shape[1],), jnp.float32)           # distLinear has no bias
    else:
        fw = params['fc_w']
        fb = params['fc_b']

    f, y = pallas_head(x_nlc, fw, fb, bw=bw, bb=bb,
                       cos_dist=cos_dist, scale=scale_factor)
    return f, y


# ----------------------------------------------------------------------------- main

if __name__ == "__main__":
    key = jax.random.PRNGKey(0)
    kx, kp = jax.random.split(key)

    # small synthetic config: batch=2, 3-channel 64x64 images, width-scaled ResNet18,
    # new_cls=True, use_bottleneck=True (bottleneck_dim=64), class_num=10, cos_dist=False
    x = jax.random.normal(kx, (2, 3, 64, 64), jnp.float32)   # NCHW (PyTorch convention)
    params = make_params(kp, bottleneck_dim=64, class_num=10)

    fwd = jax.jit(lambda p, inp: resnetfc_forward(
        p, inp, new_cls=True, use_bottleneck=True, cos_dist=False))

    feat, logits = fwd(params, x)
    feat = jax.block_until_ready(feat)
    logits = jax.block_until_ready(logits)

    assert feat.shape == (2, 64), feat.shape
    assert logits.shape == (2, 10), logits.shape
    assert bool(jnp.all(jnp.isfinite(feat))) and bool(jnp.all(jnp.isfinite(logits)))
    print("KERNEL_OK")
</pallas_src>

<mosaic_0001>
module attributes {stable_mosaic.version = 11 : i64} {
  func.func @_matmul_fused_kernel(%arg0: i32, %arg1: memref<512x147xbf16, #tpu.memory_space<vmem>>, %arg2: memref<147x16xbf16, #tpu.memory_space<vmem>>, %arg3: memref<1x16xf32, #tpu.memory_space<vmem>>, %arg4: memref<512x16xf32, #tpu.memory_space<vmem>>) attributes {dimension_semantics = [#tpu.dimension_semantics<parallel>], iteration_bounds = array<i64: 4>, scalar_prefetch = 0 : i64, scratch_operands = 0 : i64, tpu.core_type = #tpu.core_type<tc>, window_params = [{transform_indices = @transform_0, window_bounds = array<i64: 512, 147>}, {pipeline_mode = #tpu.pipeline_mode<synchronous>, transform_indices = @transform_1, window_bounds = array<i64: 147, 16>}, {pipeline_mode = #tpu.pipeline_mode<synchronous>, transform_indices = @transform_2, window_bounds = array<i64: 1, 16>}, {transform_indices = @transform_3, window_bounds = array<i64: 512, 16>}]} {
    %c0 = arith.constant 0 : index
    %c0_0 = arith.constant 0 : index
    %0 = vector.load %arg1[%c0, %c0_0] : memref<512x147xbf16, #tpu.memory_space<vmem>>, vector<512x147xbf16>
    %c0_1 = arith.constant 0 : index
    %c0_2 = arith.constant 0 : index
    %1 = vector.load %arg2[%c0_1, %c0_2] : memref<147x16xbf16, #tpu.memory_space<vmem>>, vector<147x16xbf16>
    %cst = arith.constant dense<0.000000e+00> : vector<512x16xf32>
    %2 = tpu.matmul %0, %1, %cst {dimension_numbers = #tpu.dot_dimension_numbers<[1], [0], [0], [1], [0, 0, 1, 1], [], []>} : vector<512x147xbf16>, vector<147x16xbf16>, vector<512x16xf32> -> vector<512x16xf32>
    %c0_3 = arith.constant 0 : index
    %c0_4 = arith.constant 0 : index
    %3 = vector.load %arg3[%c0_3, %c0_4] : memref<1x16xf32, #tpu.memory_space<vmem>>, vector<1x16xf32>
    %4 = vector.broadcast %3 : vector<1x16xf32> to vector<512x16xf32>
    %5 = arith.addf %2, %4 : vector<512x16xf32>
    %cst_5 = arith.constant 0.000000e+00 : f32
    %6 = vector.broadcast %cst_5 : f32 to vector<512x16xf32>
    %7 = arith.maximumf %5, %6 : vector<512x16xf32>
    %c0_6 = arith.constant 0 : index
    %c0_7 = arith.constant 0 : index
    %8 = vector.load %arg4[%c0_6, %c0_7] : memref<512x16xf32, #tpu.memory_space<vmem>>, vector<512x16xf32>
    tpu.vector_store %arg4[%c0_6, %c0_7], %7 {strides = array<i32>} : memref<512x16xf32, #tpu.memory_space<vmem>>, vector<512x16xf32>,
    return
  }
  func.func @transform_0(%arg0: i32) -> (i32, i32) {
    %c0_i32 = arith.constant 0 : i32
    %c0_i32_0 = arith.constant 0 : i32
    return %arg0, %c0_i32 : i32, i32
  }
  func.func @transform_1(%arg0: i32) -> (i32, i32) {
    %c0_i32 = arith.constant 0 : i32
    %c0_i32_0 = arith.constant 0 : i32
    %c0_i32_1 = arith.constant 0 : i32
    return %c0_i32, %c0_i32_0 : i32, i32
  }
  func.func @transform_2(%arg0: i32) -> (i32, i32) {
    %c0_i32 = arith.constant 0 : i32
    %c0_i32_0 = arith.constant 0 : i32
    %c0_i32_1 = arith.constant 0 : i32
    return %c0_i32, %c0_i32_0 : i32, i32
  }
  func.func @transform_3(%arg0: i32) -> (i32, i32) {
    %c0_i32 = arith.constant 0 : i32
    %c0_i32_0 = arith.constant 0 : i32
    return %arg0, %c0_i32 : i32, i32
  }
}

module attributes {stable_mosaic.version = 11 : i64} {
  func.func @_max9_kernel(%arg0: i32, %arg1: memref<512x16xf32, #tpu.memory_space<vmem>>, %arg2: memref<512x16xf32, #tpu.memory_space<vmem>>, %arg3: memref<512x16xf32, #tpu.memory_space<vmem>>, %arg4: memref<512x16xf32, #tpu.memory_space<vmem>>, %arg5: memref<512x16xf32, #tpu.memory_space<vmem>>, %arg6: memref<512x16xf32, #tpu.memory_space<vmem>>, %arg7: memref<512x16xf32, #tpu.memory_space<vmem>>, %arg8: memref<512x16xf32, #tpu.memory_space<vmem>>, %arg9: memref<512x16xf32, #tpu.memory_space<vmem>>, %arg10: memref<512x16xf32, #tpu.memory_space<vmem>>) attributes {dimension_semantics = [#tpu.dimension_semantics<parallel>], iteration_bounds = array<i64: 1>, scalar_prefetch = 0 : i64, scratch_operands = 0 : i64, tpu.core_type = #tpu.core_type<tc>, window_params = [{transform_indices = @transform_0, window_bounds = array<i64: 512, 16>}, {transform_indices = @transform_1, window_bounds = array<i64: 512, 16>}, {transform_indices = @transform_2, window_bounds = array<i64: 512, 16>}, {transform_indices = @transform_3, window_bounds = array<i64: 512, 16>}, {transform_indices = @transform_4, window_bounds = array<i64: 512, 16>}, {transform_indices = @transform_5, window_bounds = array<i64: 512, 16>}, {transform_indices = @transform_6, window_bounds = array<i64: 512, 16>}, {transform_indices = @transform_7, window_bounds = array<i64: 512, 16>}, {transform_indices = @transform_8, window_bounds = array<i64: 512, 16>}, {transform_indices = @transform_9, window_bounds = array<i64: 512, 16>}]} {
    %c0 = arith.constant 0 : index
    %c0_0 = arith.constant 0 : index
    %0 = vector.load %arg1[%c0, %c0_0] : memref<512x16xf32, #tpu.memory_space<vmem>>, vector<512x16xf32>
    %c0_1 = arith.constant 0 : index
    %c0_2 = arith.constant 0 : index
    %1 = vector.load %arg2[%c0_1, %c0_2] : memref<512x16xf32, #tpu.memory_space<vmem>>, vector<512x16xf32>
    %2 = arith.maximumf %0, %1 : vector<512x16xf32>
    %c0_3 = arith.constant 0 : index
    %c0_4 = arith.constant 0 : index
    %3 = vector.load %arg3[%c0_3, %c0_4] : memref<512x16xf32, #tpu.memory_space<vmem>>, vector<512x16xf32>
    %4 = arith.maximumf %2, %3 : vector<512x16xf32>
    %c0_5 = arith.constant 0 : index
    %c0_6 = arith.constant 0 : index
    %5 = vector.load %arg4[%c0_5, %c0_6] : memref<512x16xf32, #tpu.memory_space<vmem>>, vector<512x16xf32>
    %6 = arith.maximumf %4, %5 : vector<512x16xf32>
    %c0_7 = arith.constant 0 : index
    %c0_8 = arith.constant 0 : index
    %7 = vector.load %arg5[%c0_7, %c0_8] : memref<512x16xf32, #tpu.memory_space<vmem>>, vector<512x16xf32>
    %8 = arith.maximumf %6, %7 : vector<512x16xf32>
    %c0_9 = arith.constant 0 : index
    %c0_10 = arith.constant 0 : index
    %9 = vector.load %arg6[%c0_9, %c0_10] : memref<512x16xf32, #tpu.memory_space<vmem>>, vector<512x16xf32>
    %10 = arith.maximumf %8, %9 : vector<512x16xf32>
    %c0_11 = arith.constant 0 : index
    %c0_12 = arith.constant 0 : index
    %11 = vector.load %arg7[%c0_11, %c0_12] : memref<512x16xf32, #tpu.memory_space<vmem>>, vector<512x16xf32>
    %12 = arith.maximumf %10, %11 : vector<512x16xf32>
    %c0_13 = arith.constant 0 : index
    %c0_14 = arith.constant 0 : index
    %13 = vector.load %arg8[%c0_13, %c0_14] : memref<512x16xf32, #tpu.memory_space<vmem>>, vector<512x16xf32>
    %14 = arith.maximumf %12, %13 : vector<512x16xf32>
    %c0_15 = arith.constant 0 : index
    %c0_16 = arith.constant 0 : index
    %15 = vector.load %arg9[%c0_15, %c0_16] : memref<512x16xf32, #tpu.memory_space<vmem>>, vector<512x16xf32>
    %16 = arith.maximumf %14, %15 : vector<512x16xf32>
    %c0_17 = arith.constant 0 : index
    %c0_18 = arith.constant 0 : index
    %17 = vector.load %arg10[%c0_17, %c0_18] : memref<512x16xf32, #tpu.memory_space<vmem>>, vector<512x16xf32>
    tpu.vector_store %arg10[%c0_17, %c0_18], %16 {strides = array<i32>} : memref<512x16xf32, #tpu.memory_space<vmem>>, vector<512x16xf32>,
    return
  }
  func.func @transform_0(%arg0: i32) -> (i32, i32) {
    %c0_i32 = arith.constant 0 : i32
    %c0_i32_0 = arith.constant 0 : i32
    return %arg0, %c0_i32 : i32, i32
  }
  func.func @transform_1(%arg0: i32) -> (i32, i32) {
    %c0_i32 = arith.constant 0 : i32
    %c0_i32_0 = arith.constant 0 : i32
    return %arg0, %c0_i32 : i32, i32
  }
  func.func @transform_2(%arg0: i32) -> (i32, i32) {
    %c0_i32 = arith.constant 0 : i32
    %c0_i32_0 = arith.constant 0 : i32
    return %arg0, %c0_i32 : i32, i32
  }
  func.func @transform_3(%arg0: i32) -> (i32, i32) {
    %c0_i32 = arith.constant 0 : i32
    %c0_i32_0 = arith.constant 0 : i32
    return %arg0, %c0_i32 : i32, i32
  }
  func.func @transform_4(%arg0: i32) -> (i32, i32) {
    %c0_i32 = arith.constant 0 : i32
    %c0_i32_0 = arith.constant 0 : i32
    return %arg0, %c0_i32 : i32, i32
  }
  func.func @transform_5(%arg0: i32) -> (i32, i32) {
    %c0_i32 = arith.constant 0 : i32
    %c0_i32_0 = arith.constant 0 : i32
    return %arg0, %c0_i32 : i32, i32
  }
  func.func @transform_6(%arg0: i32) -> (i32, i32) {
    %c0_i32 = arith.constant 0 : i32
    %c0_i32_0 = arith.constant 0 : i32
    return %arg0, %c0_i32 : i32, i32
  }
  func.func @transform_7(%arg0: i32) -> (i32, i32) {
    %c0_i32 = arith.constant 0 : i32
    %c0_i32_0 = arith.constant 0 : i32
    return %arg0, %c0_i32 : i32, i32
  }
  func.func @transform_8(%arg0: i32) -> (i32, i32) {
    %c0_i32 = arith.constant 0 : i32
    %c0_i32_0 = arith.constant 0 : i32
    return %arg0, %c0_i32 : i32, i32
  }
  func.func @transform_9(%arg0: i32) -> (i32, i32) {
    %c0_i32 = arith.constant 0 : i32
    %c0_i32_0 = arith.constant 0 : i32
    return %arg0, %c0_i32 : i32, i32
  }
}

module attributes {stable_mosaic.version = 11 : i64} {
  func.func @_matmul_fused_kernel(%arg0: i32, %arg1: memref<512x144xbf16, #tpu.memory_space<vmem>>, %arg2: memref<144x16xbf16, #tpu.memory_space<vmem>>, %arg3: memref<1x16xf32, #tpu.memory_space<vmem>>, %arg4: memref<512x16xf32, #tpu.memory_space<vmem>>) attributes {dimension_semantics = [#tpu.dimension_semantics<parallel>], iteration_bounds = array<i64: 1>, scalar_prefetch = 0 : i64, scratch_operands = 0 : i64, tpu.core_type = #tpu.core_type<tc>, window_params = [{transform_indices = @transform_0, window_bounds = array<i64: 512, 144>}, {pipeline_mode = #tpu.pipeline_mode<synchronous>, transform_indices = @transform_1, window_bounds = array<i64: 144, 16>}, {pipeline_mode = #tpu.pipeline_mode<synchronous>, transform_indices = @transform_2, window_bounds = array<i64: 1, 16>}, {transform_indices = @transform_3, window_bounds = array<i64: 512, 16>}]} {
    %c0 = arith.constant 0 : index
    %c0_0 = arith.constant 0 : index
    %0 = vector.load %arg1[%c0, %c0_0] : memref<512x144xbf16, #tpu.memory_space<vmem>>, vector<512x144xbf16>
    %c0_1 = arith.constant 0 : index
    %c0_2 = arith.constant 0 : index
    %1 = vector.load %arg2[%c0_1, %c0_2] : memref<144x16xbf16, #tpu.memory_space<vmem>>, vector<144x16xbf16>
    %cst = arith.constant dense<0.000000e+00> : vector<512x16xf32>
    %2 = tpu.matmul %0, %1, %cst {dimension_numbers = #tpu.dot_dimension_numbers<[1], [0], [0], [1], [0, 0, 1, 1], [], []>} : vector<512x144xbf16>, vector<144x16xbf16>, vector<512x16xf32> -> vector<512x16xf32>
    %c0_3 = arith.constant 0 : index
    %c0_4 = arith.constant 0 : index
    %3 = vector.load %arg3[%c0_3, %c0_4] : memref<1x16xf32, #tpu.memory_space<vmem>>, vector<1x16xf32>
    %4 = vector.broadcast %3 : vector<1x16xf32> to vector<512x16xf32>
    %5 = arith.addf %2, %4 : vector<512x16xf32>
    %cst_5 = arith.constant 0.000000e+00 : f32
    %6 = vector.broadcast %cst_5 : f32 to vector<512x16xf32>
    %7 = arith.maximumf %5, %6 : vector<512x16xf32>
    %c0_6 = arith.constant 0 : index
    %c0_7 = arith.constant 0 : index
    %8 = vector.load %arg4[%c0_6, %c0_7] : memref<512x16xf32, #tpu.memory_space<vmem>>, vector<512x16xf32>
    tpu.vector_store %arg4[%c0_6, %c0_7], %7 {strides = array<i32>} : memref<512x16xf32, #tpu.memory_space<vmem>>, vector<512x16xf32>,
    return
  }
  func.func @transform_0(%arg0: i32) -> (i32, i32) {
    %c0_i32 = arith.constant 0 : i32
    %c0_i32_0 = arith.constant 0 : i32
    return %arg0, %c0_i32 : i32, i32
  }
  func.func @transform_1(%arg0: i32) -> (i32, i32) {
    %c0_i32 = arith.constant 0 : i32
    %c0_i32_0 = arith.constant 0 : i32
    %c0_i32_1 = arith.constant 0 : i32
    return %c0_i32, %c0_i32_0 : i32, i32
  }
  func.func @transform_2(%arg0: i32) -> (i32, i32) {
    %c0_i32 = arith.constant 0 : i32
    %c0_i32_0 = arith.constant 0 : i32
    %c0_i32_1 = arith.constant 0 : i32
    return %c0_i32, %c0_i32_0 : i32, i32
  }
  func.func @transform_3(%arg0: i32) -> (i32, i32) {
    %c0_i32 = arith.constant 0 : i32
    %c0_i32_0 = arith.constant 0 : i32
    return %arg0, %c0_i32 : i32, i32
  }
}

module attributes {stable_mosaic.version = 11 : i64} {
  func.func @_matmul_fused_kernel(%arg0: i32, %arg1: memref<512x144xbf16, #tpu.memory_space<vmem>>, %arg2: memref<144x16xbf16, #tpu.memory_space<vmem>>, %arg3: memref<1x16xf32, #tpu.memory_space<vmem>>, %arg4: memref<512x16xf32, #tpu.memory_space<vmem>>, %arg5: memref<512x16xf32, #tpu.memory_space<vmem>>) attributes {dimension_semantics = [#tpu.dimension_semantics<parallel>], iteration_bounds = array<i64: 1>, scalar_prefetch = 0 : i64, scratch_operands = 0 : i64, tpu.core_type = #tpu.core_type<tc>, window_params = [{transform_indices = @transform_0, window_bounds = array<i64: 512, 144>}, {pipeline_mode = #tpu.pipeline_mode<synchronous>, transform_indices = @transform_1, window_bounds = array<i64: 144, 16>}, {pipeline_mode = #tpu.pipeline_mode<synchronous>, transform_indices = @transform_2, window_bounds = array<i64: 1, 16>}, {transform_indices = @transform_3, window_bounds = array<i64: 512, 16>}, {transform_indices = @transform_4, window_bounds = array<i64: 512, 16>}]} {
    %c0 = arith.constant 0 : index
    %c0_0 = arith.constant 0 : index
    %0 = vector.load %arg1[%c0, %c0_0] : memref<512x144xbf16, #tpu.memory_space<vmem>>, vector<512x144xbf16>
    %c0_1 = arith.constant 0 : index
    %c0_2 = arith.constant 0 : index
    %1 = vector.load %arg2[%c0_1, %c0_2] : memref<144x16xbf16, #tpu.memory_space<vmem>>, vector<144x16xbf16>
    %cst = arith.constant dense<0.000000e+00> : vector<512x16xf32>
    %2 = tpu.matmul %0, %1, %cst {dimension_numbers = #tpu.dot_dimension_numbers<[1], [0], [0], [1], [0, 0, 1, 1], [], []>} : vector<512x144xbf16>, vector<144x16xbf16>, vector<512x16xf32> -> vector<512x16xf32>
    %c0_3 = arith.constant 0 : index
    %c0_4 = arith.constant 0 : index
    %3 = vector.load %arg3[%c0_3, %c0_4] : memref<1x16xf32, #tpu.memory_space<vmem>>, vector<1x16xf32>
    %4 = vector.broadcast %3 : vector<1x16xf32> to vector<512x16xf32>
    %5 = arith.addf %2, %4 : vector<512x16xf32>
    %c0_5 = arith.constant 0 : index
    %c0_6 = arith.constant 0 : index
    %6 = vector.load %arg4[%c0_5, %c0_6] : memref<512x16xf32, #tpu.memory_space<vmem>>, vector<512x16xf32>
    %7 = arith.addf %5, %6 : vector<512x16xf32>
    %cst_7 = arith.constant 0.000000e+00 : f32
    %8 = vector.broadcast %cst_7 : f32 to vector<512x16xf32>
    %9 = arith.maximumf %7, %8 : vector<512x16xf32>
    %c0_8 = arith.constant 0 : index
    %c0_9 = arith.constant 0 : index
    %10 = vector.load %arg5[%c0_8, %c0_9] : memref<512x16xf32, #tpu.memory_space<vmem>>, vector<512x16xf32>
    tpu.vector_store %arg5[%c0_8, %c0_9], %9 {strides = array<i32>} : memref<512x16xf32, #tpu.memory_space<vmem>>, vector<512x16xf32>,
    return
  }
  func.func @transform_0(%arg0: i32) -> (i32, i32) {
    %c0_i32 = arith.constant 0 : i32
    %c0_i32_0 = arith.constant 0 : i32
    return %arg0, %c0_i32 : i32, i32
  }
  func.func @transform_1(%arg0: i32) -> (i32, i32) {
    %c0_i32 = arith.constant 0 : i32
    %c0_i32_0 = arith.constant 0 : i32
    %c0_i32_1 = arith.constant 0 : i32
    return %c0_i32, %c0_i32_0 : i32, i32
  }
  func.func @transform_2(%arg0: i32) -> (i32, i32) {
    %c0_i32 = arith.constant 0 : i32
    %c0_i32_0 = arith.constant 0 : i32
    %c0_i32_1 = arith.constant 0 : i32
    return %c0_i32, %c0_i32_0 : i32, i32
  }
  func.func @transform_3(%arg0: i32) -> (i32, i32) {
    %c0_i32 = arith.constant 0 : i32
    %c0_i32_0 = arith.constant 0 : i32
    return %arg0, %c0_i32 : i32, i32
  }
  func.func @transform_4(%arg0: i32) -> (i32, i32) {
    %c0_i32 = arith.constant 0 : i32
    %c0_i32_0 = arith.constant 0 : i32
    return %arg0, %c0_i32 : i32, i32
  }
}

module attributes {stable_mosaic.version = 11 : i64} {
  func.func @_matmul_fused_kernel(%arg0: i32, %arg1: memref<128x144xbf16, #tpu.memory_space<vmem>>, %arg2: memref<144x32xbf16, #tpu.memory_space<vmem>>, %arg3: memref<1x32xf32, #tpu.memory_space<vmem>>, %arg4: memref<128x32xf32, #tpu.memory_space<vmem>>) attributes {dimension_semantics = [#tpu.dimension_semantics<parallel>], iteration_bounds = array<i64: 1>, scalar_prefetch = 0 : i64, scratch_operands = 0 : i64, tpu.core_type = #tpu.core_type<tc>, window_params = [{transform_indices = @transform_0, window_bounds = array<i64: 128, 144>}, {pipeline_mode = #tpu.pipeline_mode<synchronous>, transform_indices = @transform_1, window_bounds = array<i64: 144, 32>}, {pipeline_mode = #tpu.pipeline_mode<synchronous>, transform_indices = @transform_2, window_bounds = array<i64: 1, 32>}, {transform_indices = @transform_3, window_bounds = array<i64: 128, 32>}]} {
    %c0 = arith.constant 0 : index
    %c0_0 = arith.constant 0 : index
    %0 = vector.load %arg1[%c0, %c0_0] : memref<128x144xbf16, #tpu.memory_space<vmem>>, vector<128x144xbf16>
    %c0_1 = arith.constant 0 : index
    %c0_2 = arith.constant 0 : index
    %1 = vector.load %arg2[%c0_1, %c0_2] : memref<144x32xbf16, #tpu.memory_space<vmem>>, vector<144x32xbf16>
    %cst = arith.constant dense<0.000000e+00> : vector<128x32xf32>
    %2 = tpu.matmul %0, %1, %cst {dimension_numbers = #tpu.dot_dimension_numbers<[1], [0], [0], [1], [0, 0, 1, 1], [], []>} : vector<128x144xbf16>, vector<144x32xbf16>, vector<128x32xf32> -> vector<128x32xf32>
    %c0_3 = arith.constant 0 : index
    %c0_4 = arith.constant 0 : index
    %3 = vector.load %arg3[%c0_3, %c0_4] : memref<1x32xf32, #tpu.memory_space<vmem>>, vector<1x32xf32>
    %4 = vector.broadcast %3 : vector<1x32xf32> to vector<128x32xf32>
    %5 = arith.addf %2, %4 : vector<128x32xf32>
    %cst_5 = arith.constant 0.000000e+00 : f32
    %6 = vector.broadcast %cst_5 : f32 to vector<128x32xf32>
    %7 = arith.maximumf %5, %6 : vector<128x32xf32>
    %c0_6 = arith.constant 0 : index
    %c0_7 = arith.constant 0 : index
    %8 = vector.load %arg4[%c0_6, %c0_7] : memref<128x32xf32, #tpu.memory_space<vmem>>, vector<128x32xf32>
    tpu.vector_store %arg4[%c0_6, %c0_7], %7 {strides = array<i32>} : memref<128x32xf32, #tpu.memory_space<vmem>>, vector<128x32xf32>,
    return
  }
  func.func @transform_0(%arg0: i32) -> (i32, i32) {
    %c0_i32 = arith.constant 0 : i32
    %c0_i32_0 = arith.constant 0 : i32
    return %arg0, %c0_i32 : i32, i32
  }
  func.func @transform_1(%arg0: i32) -> (i32, i32) {
    %c0_i32 = arith.constant 0 : i32
    %c0_i32_0 = arith.constant 0 : i32
    %c0_i32_1 = arith.constant 0 : i32
    return %c0_i32, %c0_i32_0 : i32, i32
  }
  func.func @transform_2(%arg0: i32) -> (i32, i32) {
    %c0_i32 = arith.constant 0 : i32
    %c0_i32_0 = arith.constant 0 : i32
    %c0_i32_1 = arith.constant 0 : i32
    return %c0_i32, %c0_i32_0 : i32, i32
  }
  func.func @transform_3(%arg0: i32) -> (i32, i32) {
    %c0_i32 = arith.constant 0 : i32
    %c0_i32_0 = arith.constant 0 : i32
    return %arg0, %c0_i32 : i32, i32
  }
}

module attributes {stable_mosaic.version = 11 : i64} {
  func.func @_matmul_fused_kernel(%arg0: i32, %arg1: memref<128x16xbf16, #tpu.memory_space<vmem>>, %arg2: memref<16x32xbf16, #tpu.memory_space<vmem>>, %arg3: memref<1x32xf32, #tpu.memory_space<vmem>>, %arg4: memref<128x32xf32, #tpu.memory_space<vmem>>) attributes {dimension_semantics = [#tpu.dimension_semantics<parallel>], iteration_bounds = array<i64: 1>, scalar_prefetch = 0 : i64, scratch_operands = 0 : i64, tpu.core_type = #tpu.core_type<tc>, window_params = [{transform_indices = @transform_0, window_bounds = array<i64: 128, 16>}, {pipeline_mode = #tpu.pipeline_mode<synchronous>, transform_indices = @transform_1, window_bounds = array<i64: 16, 32>}, {pipeline_mode = #tpu.pipeline_mode<synchronous>, transform_indices = @transform_2, window_bounds = array<i64: 1, 32>}, {transform_indices = @transform_3, window_bounds = array<i64: 128, 32>}]} {
    %c0 = arith.constant 0 : index
    %c0_0 = arith.constant 0 : index
    %0 = vector.load %arg1[%c0, %c0_0] : memref<128x16xbf16, #tpu.memory_space<vmem>>, vector<128x16xbf16>
    %c0_1 = arith.constant 0 : index
    %c0_2 = arith.constant 0 : index
    %1 = vector.load %arg2[%c0_1, %c0_2] : memref<16x32xbf16, #tpu.memory_space<vmem>>, vector<16x32xbf16>
    %cst = arith.constant dense<0.000000e+00> : vector<128x32xf32>
    %2 = tpu.matmul %0, %1, %cst {dimension_numbers = #tpu.dot_dimension_numbers<[1], [0], [0], [1], [0, 0, 1, 1], [], []>} : vector<128x16xbf16>, vector<16x32xbf16>, vector<128x32xf32> -> vector<128x32xf32>
    %c0_3 = arith.constant 0 : index
    %c0_4 = arith.constant 0 : index
    %3 = vector.load %arg3[%c0_3, %c0_4] : memref<1x32xf32, #tpu.memory_space<vmem>>, vector<1x32xf32>
    %4 = vector.broadcast %3 : vector<1x32xf32> to vector<128x32xf32>
    %5 = arith.addf %2, %4 : vector<128x32xf32>
    %c0_5 = arith.constant 0 : index
    %c0_6 = arith.constant 0 : index
    %6 = vector.load %arg4[%c0_5, %c0_6] : memref<128x32xf32, #tpu.memory_space<vmem>>, vector<128x32xf32>
    tpu.vector_store %arg4[%c0_5, %c0_6], %5 {strides = array<i32>} : memref<128x32xf32, #tpu.memory_space<vmem>>, vector<128x32xf32>,
    return
  }
  func.func @transform_0(%arg0: i32) -> (i32, i32) {
    %c0_i32 = arith.constant 0 : i32
    %c0_i32_0 = arith.constant 0 : i32
    return %arg0, %c0_i32 : i32, i32
  }
  func.func @transform_1(%arg0: i32) -> (i32, i32) {
    %c0_i32 = arith.constant 0 : i32
    %c0_i32_0 = arith.constant 0 : i32
    %c0_i32_1 = arith.constant 0 : i32
    return %c0_i32, %c0_i32_0 : i32, i32
  }
  func.func @transform_2(%arg0: i32) -> (i32, i32) {
    %c0_i32 = arith.constant 0 : i32
    %c0_i32_0 = arith.constant 0 : i32
    %c0_i32_1 = arith.constant 0 : i32
    return %c0_i32, %c0_i32_0 : i32, i32
  }
  func.func @transform_3(%arg0: i32) -> (i32, i32) {
    %c0_i32 = arith.constant 0 : i32
    %c0_i32_0 = arith.constant 0 : i32
    return %arg0, %c0_i32 : i32, i32
  }
}

module attributes {stable_mosaic.version = 11 : i64} {
  func.func @_matmul_fused_kernel(%arg0: i32, %arg1: memref<128x288xbf16, #tpu.memory_space<vmem>>, %arg2: memref<288x32xbf16, #tpu.memory_space<vmem>>, %arg3: memref<1x32xf32, #tpu.memory_space<vmem>>, %arg4: memref<128x32xf32, #tpu.memory_space<vmem>>, %arg5: memref<128x32xf32, #tpu.memory_space<vmem>>) attributes {dimension_semantics = [#tpu.dimension_semantics<parallel>], iteration_bounds = array<i64: 1>, scalar_prefetch = 0 : i64, scratch_operands = 0 : i64, tpu.core_type = #tpu.core_type<tc>, window_params = [{transform_indices = @transform_0, window_bounds = array<i64: 128, 288>}, {pipeline_mode = #tpu.pipeline_mode<synchronous>, transform_indices = @transform_1, window_bounds = array<i64: 288, 32>}, {pipeline_mode = #tpu.pipeline_mode<synchronous>, transform_indices = @transform_2, window_bounds = array<i64: 1, 32>}, {transform_indices = @transform_3, window_bounds = array<i64: 128, 32>}, {transform_indices = @transform_4, window_bounds = array<i64: 128, 32>}]} {
    %c0 = arith.constant 0 : index
    %c0_0 = arith.constant 0 : index
    %0 = vector.load %arg1[%c0, %c0_0] : memref<128x288xbf16, #tpu.memory_space<vmem>>, vector<128x288xbf16>
    %c0_1 = arith.constant 0 : index
    %c0_2 = arith.constant 0 : index
    %1 = vector.load %arg2[%c0_1, %c0_2] : memref<288x32xbf16, #tpu.memory_space<vmem>>, vector<288x32xbf16>
    %cst = arith.constant dense<0.000000e+00> : vector<128x32xf32>
    %2 = tpu.matmul %0, %1, %cst {dimension_numbers = #tpu.dot_dimension_numbers<[1], [0], [0], [1], [0, 0, 1, 1], [], []>} : vector<128x288xbf16>, vector<288x32xbf16>, vector<128x32xf32> -> vector<128x32xf32>
    %c0_3 = arith.constant 0 : index
    %c0_4 = arith.constant 0 : index
    %3 = vector.load %arg3[%c0_3, %c0_4] : memref<1x32xf32, #tpu.memory_space<vmem>>, vector<1x32xf32>
    %4 = vector.broadcast %3 : vector<1x32xf32> to vector<128x32xf32>
    %5 = arith.addf %2, %4 : vector<128x32xf32>
    %c0_5 = arith.constant 0 : index
    %c0_6 = arith.constant 0 : index
    %6 = vector.load %arg4[%c0_5, %c0_6] : memref<128x32xf32, #tpu.memory_space<vmem>>, vector<128x32xf32>
    %7 = arith.addf %5, %6 : vector<128x32xf32>
    %cst_7 = arith.constant 0.000000e+00 : f32
    %8 = vector.broadcast %cst_7 : f32 to vector<128x32xf32>
    %9 = arith.maximumf %7, %8 : vector<128x32xf32>
    %c0_8 = arith.constant 0 : index
    %c0_9 = arith.constant 0 : index
    %10 = vector.load %arg5[%c0_8, %c0_9] : memref<128x32xf32, #tpu.memory_space<vmem>>, vector<128x32xf32>
    tpu.vector_store %arg5[%c0_8, %c0_9], %9 {strides = array<i32>} : memref<128x32xf32, #tpu.memory_space<vmem>>, vector<128x32xf32>,
    return
  }
  func.func @transform_0(%arg0: i32) -> (i32, i32) {
    %c0_i32 = arith.constant 0 : i32
    %c0_i32_0 = arith.constant 0 : i32
    return %arg0, %c0_i32 : i32, i32
  }
  func.func @transform_1(%arg0: i32) -> (i32, i32) {
    %c0_i32 = arith.constant 0 : i32
    %c0_i32_0 = arith.constant 0 : i32
    %c0_i32_1 = arith.constant 0 : i32
    return %c0_i32, %c0_i32_0 : i32, i32
  }
  func.func @transform_2(%arg0: i32) -> (i32, i32) {
    %c0_i32 = arith.constant 0 : i32
    %c0_i32_0 = arith.constant 0 : i32
    %c0_i32_1 = arith.constant 0 : i32
    return %c0_i32, %c0_i32_0 : i32, i32
  }
  func.func @transform_3(%arg0: i32) -> (i32, i32) {
    %c0_i32 = arith.constant 0 : i32
    %c0_i32_0 = arith.constant 0 : i32
    return %arg0, %c0_i32 : i32, i32
  }
  func.func @transform_4(%arg0: i32) -> (i32, i32) {
    %c0_i32 = arith.constant 0 : i32
    %c0_i32_0 = arith.constant 0 : i32
    return %arg0, %c0_i32 : i32, i32
  }
}

module attributes {stable_mosaic.version = 11 : i64} {
  func.func @_matmul_fused_kernel(%arg0: i32, %arg1: memref<128x288xbf16, #tpu.memory_space<vmem>>, %arg2: memref<288x32xbf16, #tpu.memory_space<vmem>>, %arg3: memref<1x32xf32, #tpu.memory_space<vmem>>, %arg4: memref<128x32xf32, #tpu.memory_space<vmem>>) attributes {dimension_semantics = [#tpu.dimension_semantics<parallel>], iteration_bounds = array<i64: 1>, scalar_prefetch = 0 : i64, scratch_operands = 0 : i64, tpu.core_type = #tpu.core_type<tc>, window_params = [{transform_indices = @transform_0, window_bounds = array<i64: 128, 288>}, {pipeline_mode = #tpu.pipeline_mode<synchronous>, transform_indices = @transform_1, window_bounds = array<i64: 288, 32>}, {pipeline_mode = #tpu.pipeline_mode<synchronous>, transform_indices = @transform_2, window_bounds = array<i64: 1, 32>}, {transform_indices = @transform_3, window_bounds = array<i64: 128, 32>}]} {
    %c0 = arith.constant 0 : index
    %c0_0 = arith.constant 0 : index
    %0 = vector.load %arg1[%c0, %c0_0] : memref<128x288xbf16, #tpu.memory_space<vmem>>, vector<128x288xbf16>
    %c0_1 = arith.constant 0 : index
    %c0_2 = arith.constant 0 : index
    %1 = vector.load %arg2[%c0_1, %c0_2] : memref<288x32xbf16, #tpu.memory_space<vmem>>, vector<288x32xbf16>
    %cst = arith.constant dense<0.000000e+00> : vector<128x32xf32>
    %2 = tpu.matmul %0, %1, %cst {dimension_numbers = #tpu.dot_dimension_numbers<[1], [0], [0], [1], [0, 0, 1, 1], [], []>} : vector<128x288xbf16>, vector<288x32xbf16>, vector<128x32xf32> -> vector<128x32xf32>
    %c0_3 = arith.constant 0 : index
    %c0_4 = arith.constant 0 : index
    %3 = vector.load %arg3[%c0_3, %c0_4] : memref<1x32xf32, #tpu.memory_space<vmem>>, vector<1x32xf32>
    %4 = vector.broadcast %3 : vector<1x32xf32> to vector<128x32xf32>
    %5 = arith.addf %2, %4 : vector<128x32xf32>
    %cst_5 = arith.constant 0.000000e+00 : f32
    %6 = vector.broadcast %cst_5 : f32 to vector<128x32xf32>
    %7 = arith.maximumf %5, %6 : vector<128x32xf32>
    %c0_6 = arith.constant 0 : index
    %c0_7 = arith.constant 0 : index
    %8 = vector.load %arg4[%c0_6, %c0_7] : memref<128x32xf32, #tpu.memory_space<vmem>>, vector<128x32xf32>
    tpu.vector_store %arg4[%c0_6, %c0_7], %7 {strides = array<i32>} : memref<128x32xf32, #tpu.memory_space<vmem>>, vector<128x32xf32>,
    return
  }
  func.func @transform_0(%arg0: i32) -> (i32, i32) {
    %c0_i32 = arith.constant 0 : i32
    %c0_i32_0 = arith.constant 0 : i32
    return %arg0, %c0_i32 : i32, i32
  }
  func.func @transform_1(%arg0: i32) -> (i32, i32) {
    %c0_i32 = arith.constant 0 : i32
    %c0_i32_0 = arith.constant 0 : i32
    %c0_i32_1 = arith.constant 0 : i32
    return %c0_i32, %c0_i32_0 : i32, i32
  }
  func.func @transform_2(%arg0: i32) -> (i32, i32) {
    %c0_i32 = arith.constant 0 : i32
    %c0_i32_0 = arith.constant 0 : i32
    %c0_i32_1 = arith.constant 0 : i32
    return %c0_i32, %c0_i32_0 : i32, i32
  }
  func.func @transform_3(%arg0: i32) -> (i32, i32) {
    %c0_i32 = arith.constant 0 : i32
    %c0_i32_0 = arith.constant 0 : i32
    return %arg0, %c0_i32 : i32, i32
  }
}

module attributes {stable_mosaic.version = 11 : i64} {
  func.func @_matmul_fused_kernel(%arg0: i32, %arg1: memref<32x288xbf16, #tpu.memory_space<vmem>>, %arg2: memref<288x64xbf16, #tpu.memory_space<vmem>>, %arg3: memref<1x64xf32, #tpu.memory_space<vmem>>, %arg4: memref<32x64xf32, #tpu.memory_space<vmem>>) attributes {dimension_semantics = [#tpu.dimension_semantics<parallel>], iteration_bounds = array<i64: 1>, scalar_prefetch = 0 : i64, scratch_operands = 0 : i64, tpu.core_type = #tpu.core_type<tc>, window_params = [{transform_indices = @transform_0, window_bounds = array<i64: 32, 288>}, {pipeline_mode = #tpu.pipeline_mode<synchronous>, transform_indices = @transform_1, window_bounds = array<i64: 288, 64>}, {pipeline_mode = #tpu.pipeline_mode<synchronous>, transform_indices = @transform_2, window_bounds = array<i64: 1, 64>}, {transform_indices = @transform_3, window_bounds = array<i64: 32, 64>}]} {
    %c0 = arith.constant 0 : index
    %c0_0 = arith.constant 0 : index
    %0 = vector.load %arg1[%c0, %c0_0] : memref<32x288xbf16, #tpu.memory_space<vmem>>, vector<32x288xbf16>
    %c0_1 = arith.constant 0 : index
    %c0_2 = arith.constant 0 : index
    %1 = vector.load %arg2[%c0_1, %c0_2] : memref<288x64xbf16, #tpu.memory_space<vmem>>, vector<288x64xbf16>
    %cst = arith.constant dense<0.000000e+00> : vector<32x64xf32>
    %2 = tpu.matmul %0, %1, %cst {dimension_numbers = #tpu.dot_dimension_numbers<[1], [0], [0], [1], [0, 0, 1, 1], [], []>} : vector<32x288xbf16>, vector<288x64xbf16>, vector<32x64xf32> -> vector<32x64xf32>
    %c0_3 = arith.constant 0 : index
    %c0_4 = arith.constant 0 : index
    %3 = vector.load %arg3[%c0_3, %c0_4] : memref<1x64xf32, #tpu.memory_space<vmem>>, vector<1x64xf32>
    %4 = vector.broadcast %3 : vector<1x64xf32> to vector<32x64xf32>
    %5 = arith.addf %2, %4 : vector<32x64xf32>
    %cst_5 = arith.constant 0.000000e+00 : f32
    %6 = vector.broadcast %cst_5 : f32 to vector<32x64xf32>
    %7 = arith.maximumf %5, %6 : vector<32x64xf32>
    %c0_6 = arith.constant 0 : index
    %c0_7 = arith.constant 0 : index
    %8 = vector.load %arg4[%c0_6, %c0_7] : memref<32x64xf32, #tpu.memory_space<vmem>>, vector<32x64xf32>
    tpu.vector_store %arg4[%c0_6, %c0_7], %7 {strides = array<i32>} : memref<32x64xf32, #tpu.memory_space<vmem>>, vector<32x64xf32>,
    return
  }
  func.func @transform_0(%arg0: i32) -> (i32, i32) {
    %c0_i32 = arith.constant 0 : i32
    %c0_i32_0 = arith.constant 0 : i32
    return %arg0, %c0_i32 : i32, i32
  }
  func.func @transform_1(%arg0: i32) -> (i32, i32) {
    %c0_i32 = arith.constant 0 : i32
    %c0_i32_0 = arith.constant 0 : i32
    %c0_i32_1 = arith.constant 0 : i32
    return %c0_i32, %c0_i32_0 : i32, i32
  }
  func.func @transform_2(%arg0: i32) -> (i32, i32) {
    %c0_i32 = arith.constant 0 : i32
    %c0_i32_0 = arith.constant 0 : i32
    %c0_i32_1 = arith.constant 0 : i32
    return %c0_i32, %c0_i32_0 : i32, i32
  }
  func.func @transform_3(%arg0: i32) -> (i32, i32) {
    %c0_i32 = arith.constant 0 : i32
    %c0_i32_0 = arith.constant 0 : i32
    return %arg0, %c0_i32 : i32, i32
  }
}

module attributes {stable_mosaic.version = 11 : i64} {
  func.func @_matmul_fused_kernel(%arg0: i32, %arg1: memref<32x32xbf16, #tpu.memory_space<vmem>>, %arg2: memref<32x64xbf16, #tpu.memory_space<vmem>>, %arg3: memref<1x64xf32, #tpu.memory_space<vmem>>, %arg4: memref<32x64xf32, #tpu.memory_space<vmem>>) attributes {dimension_semantics = [#tpu.dimension_semantics<parallel>], iteration_bounds = array<i64: 1>, scalar_prefetch = 0 : i64, scratch_operands = 0 : i64, tpu.core_type = #tpu.core_type<tc>, window_params = [{transform_indices = @transform_0, window_bounds = array<i64: 32, 32>}, {pipeline_mode = #tpu.pipeline_mode<synchronous>, transform_indices = @transform_1, window_bounds = array<i64: 32, 64>}, {pipeline_mode = #tpu.pipeline_mode<synchronous>, transform_indices = @transform_2, window_bounds = array<i64: 1, 64>}, {transform_indices = @transform_3, window_bounds = array<i64: 32, 64>}]} {
    %c0 = arith.constant 0 : index
    %c0_0 = arith.constant 0 : index
    %0 = vector.load %arg1[%c0, %c0_0] : memref<32x32xbf16, #tpu.memory_space<vmem>>, vector<32x32xbf16>
    %c0_1 = arith.constant 0 : index
    %c0_2 = arith.constant 0 : index
    %1 = vector.load %arg2[%c0_1, %c0_2] : memref<32x64xbf16, #tpu.memory_space<vmem>>, vector<32x64xbf16>
    %cst = arith.constant dense<0.000000e+00> : vector<32x64xf32>
    %2 = tpu.matmul %0, %1, %cst {dimension_numbers = #tpu.dot_dimension_numbers<[1], [0], [0], [1], [0, 0, 1, 1], [], []>} : vector<32x32xbf16>, vector<32x64xbf16>, vector<32x64xf32> -> vector<32x64xf32>
    %c0_3 = arith.constant 0 : index
    %c0_4 = arith.constant 0 : index
    %3 = vector.load %arg3[%c0_3, %c0_4] : memref<1x64xf32, #tpu.memory_space<vmem>>, vector<1x64xf32>
    %4 = vector.broadcast %3 : vector<1x64xf32> to vector<32x64xf32>
    %5 = arith.addf %2, %4 : vector<32x64xf32>
    %c0_5 = arith.constant 0 : index
    %c0_6 = arith.constant 0 : index
    %6 = vector.load %arg4[%c0_5, %c0_6] : memref<32x64xf32, #tpu.memory_space<vmem>>, vector<32x64xf32>
    tpu.vector_store %arg4[%c0_5, %c0_6], %5 {strides = array<i32>} : memref<32x64xf32, #tpu.memory_space<vmem>>, vector<32x64xf32>,
    return
  }
  func.func @transform_0(%arg0: i32) -> (i32, i32) {
    %c0_i32 = arith.constant 0 : i32
    %c0_i32_0 = arith.constant 0 : i32
    return %arg0, %c0_i32 : i32, i32
  }
  func.func @transform_1(%arg0: i32) -> (i32, i32) {
    %c0_i32 = arith.constant 0 : i32
    %c0_i32_0 = arith.constant 0 : i32
    %c0_i32_1 = arith.constant 0 : i32
    return %c0_i32, %c0_i32_0 : i32, i32
  }
  func.func @transform_2(%arg0: i32) -> (i32, i32) {
    %c0_i32 = arith.constant 0 : i32
    %c0_i32_0 = arith.constant 0 : i32
    %c0_i32_1 = arith.constant 0 : i32
    return %c0_i32, %c0_i32_0 : i32, i32
  }
  func.func @transform_3(%arg0: i32) -> (i32, i32) {
    %c0_i32 = arith.constant 0 : i32
    %c0_i32_0 = arith.constant 0 : i32
    return %arg0, %c0_i32 : i32, i32
  }
}

module attributes {stable_mosaic.version = 11 : i64} {
  func.func @_matmul_fused_kernel(%arg0: i32, %arg1: memref<32x576xbf16, #tpu.memory_space<vmem>>, %arg2: memref<576x64xbf16, #tpu.memory_space<vmem>>, %arg3: memref<1x64xf32, #tpu.memory_space<vmem>>, %arg4: memref<32x64xf32, #tpu.memory_space<vmem>>) attributes {dimension_semantics = [#tpu.dimension_semantics<parallel>], iteration_bounds = array<i64: 1>, scalar_prefetch = 0 : i64, scratch_operands = 0 : i64, tpu.core_type = #tpu.core_type<tc>, window_params = [{transform_indices = @transform_0, window_bounds = array<i64: 32, 576>}, {pipeline_mode = #tpu.pipeline_mode<synchronous>, transform_indices = @transform_1, window_bounds = array<i64: 576, 64>}, {pipeline_mode = #tpu.pipeline_mode<synchronous>, transform_indices = @transform_2, window_bounds = array<i64: 1, 64>}, {transform_indices = @transform_3, window_bounds = array<i64: 32, 64>}]} {
    %c0 = arith.constant 0 : index
    %c0_0 = arith.constant 0 : index
    %0 = vector.load %arg1[%c0, %c0_0] : memref<32x576xbf16, #tpu.memory_space<vmem>>, vector<32x576xbf16>
    %c0_1 = arith.constant 0 : index
    %c0_2 = arith.constant 0 : index
    %1 = vector.load %arg2[%c0_1, %c0_2] : memref<576x64xbf16, #tpu.memory_space<vmem>>, vector<576x64xbf16>
    %cst = arith.constant dense<0.000000e+00> : vector<32x64xf32>
    %2 = tpu.matmul %0, %1, %cst {dimension_numbers = #tpu.dot_dimension_numbers<[1], [0], [0], [1], [0, 0, 1, 1], [], []>} : vector<32x576xbf16>, vector<576x64xbf16>, vector<32x64xf32> -> vector<32x64xf32>
    %c0_3 = arith.constant 0 : index
    %c0_4 = arith.constant 0 : index
    %3 = vector.load %arg3[%c0_3, %c0_4] : memref<1x64xf32, #tpu.memory_space<vmem>>, vector<1x64xf32>
    %4 = vector.broadcast %3 : vector<1x64xf32> to vector<32x64xf32>
    %5 = arith.addf %2, %4 : vector<32x64xf32>
    %cst_5 = arith.constant 0.000000e+00 : f32
    %6 = vector.broadcast %cst_5 : f32 to vector<32x64xf32>
    %7 = arith.maximumf %5, %6 : vector<32x64xf32>
    %c0_6 = arith.constant 0 : index
    %c0_7 = arith.constant 0 : index
    %8 = vector.load %arg4[%c0_6, %c0_7] : memref<32x64xf32, #tpu.memory_space<vmem>>, vector<32x64xf32>
    tpu.vector_store %arg4[%c0_6, %c0_7], %7 {strides = array<i32>} : memref<32x64xf32, #tpu.memory_space<vmem>>, vector<32x64xf32>,
    return
  }
  func.func @transform_0(%arg0: i32) -> (i32, i32) {
    %c0_i32 = arith.constant 0 : i32
    %c0_i32_0 = arith.constant 0 : i32
    return %arg0, %c0_i32 : i32, i32
  }
  func.func @transform_1(%arg0: i32) -> (i32, i32) {
    %c0_i32 = arith.constant 0 : i32
    %c0_i32_0 = arith.constant 0 : i32
    %c0_i32_1 = arith.constant 0 : i32
    return %c0_i32, %c0_i32_0 : i32, i32
  }
  func.func @transform_2(%arg0: i32) -> (i32, i32) {
    %c0_i32 = arith.constant 0 : i32
    %c0_i32_0 = arith.constant 0 : i32
    %c0_i32_1 = arith.constant 0 : i32
    return %c0_i32, %c0_i32_0 : i32, i32
  }
  func.func @transform_3(%arg0: i32) -> (i32, i32) {
    %c0_i32 = arith.constant 0 : i32
    %c0_i32_0 = arith.constant 0 : i32
    return %arg0, %c0_i32 : i32, i32
  }
}

module attributes {stable_mosaic.version = 11 : i64} {
  func.func @_matmul_fused_kernel(%arg0: i32, %arg1: memref<32x576xbf16, #tpu.memory_space<vmem>>, %arg2: memref<576x64xbf16, #tpu.memory_space<vmem>>, %arg3: memref<1x64xf32, #tpu.memory_space<vmem>>, %arg4: memref<32x64xf32, #tpu.memory_space<vmem>>, %arg5: memref<32x64xf32, #tpu.memory_space<vmem>>) attributes {dimension_semantics = [#tpu.dimension_semantics<parallel>], iteration_bounds = array<i64: 1>, scalar_prefetch = 0 : i64, scratch_operands = 0 : i64, tpu.core_type = #tpu.core_type<tc>, window_params = [{transform_indices = @transform_0, window_bounds = array<i64: 32, 576>}, {pipeline_mode = #tpu.pipeline_mode<synchronous>, transform_indices = @transform_1, window_bounds = array<i64: 576, 64>}, {pipeline_mode = #tpu.pipeline_mode<synchronous>, transform_indices = @transform_2, window_bounds = array<i64: 1, 64>}, {transform_indices = @transform_3, window_bounds = array<i64: 32, 64>}, {transform_indices = @transform_4, window_bounds = array<i64: 32, 64>}]} {
    %c0 = arith.constant 0 : index
    %c0_0 = arith.constant 0 : index
    %0 = vector.load %arg1[%c0, %c0_0] : memref<32x576xbf16, #tpu.memory_space<vmem>>, vector<32x576xbf16>
    %c0_1 = arith.constant 0 : index
    %c0_2 = arith.constant 0 : index
    %1 = vector.load %arg2[%c0_1, %c0_2] : memref<576x64xbf16, #tpu.memory_space<vmem>>, vector<576x64xbf16>
    %cst = arith.constant dense<0.000000e+00> : vector<32x64xf32>
    %2 = tpu.matmul %0, %1, %cst {dimension_numbers = #tpu.dot_dimension_numbers<[1], [0], [0], [1], [0, 0, 1, 1], [], []>} : vector<32x576xbf16>, vector<576x64xbf16>, vector<32x64xf32> -> vector<32x64xf32>
    %c0_3 = arith.constant 0 : index
    %c0_4 = arith.constant 0 : index
    %3 = vector.load %arg3[%c0_3, %c0_4] : memref<1x64xf32, #tpu.memory_space<vmem>>, vector<1x64xf32>
    %4 = vector.broadcast %3 : vector<1x64xf32> to vector<32x64xf32>
    %5 = arith.addf %2, %4 : vector<32x64xf32>
    %c0_5 = arith.constant 0 : index
    %c0_6 = arith.constant 0 : index
    %6 = vector.load %arg4[%c0_5, %c0_6] : memref<32x64xf32, #tpu.memory_space<vmem>>, vector<32x64xf32>
    %7 = arith.addf %5, %6 : vector<32x64xf32>
    %cst_7 = arith.constant 0.000000e+00 : f32
    %8 = vector.broadcast %cst_7 : f32 to vector<32x64xf32>
    %9 = arith.maximumf %7, %8 : vector<32x64xf32>
    %c0_8 = arith.constant 0 : index
    %c0_9 = arith.constant 0 : index
    %10 = vector.load %arg5[%c0_8, %c0_9] : memref<32x64xf32, #tpu.memory_space<vmem>>, vector<32x64xf32>
    tpu.vector_store %arg5[%c0_8, %c0_9], %9 {strides = array<i32>} : memref<32x64xf32, #tpu.memory_space<vmem>>, vector<32x64xf32>,
    return
  }
  func.func @transform_0(%arg0: i32) -> (i32, i32) {
    %c0_i32 = arith.constant 0 : i32
    %c0_i32_0 = arith.constant 0 : i32
    return %arg0, %c0_i32 : i32, i32
  }
  func.func @transform_1(%arg0: i32) -> (i32, i32) {
    %c0_i32 = arith.constant 0 : i32
    %c0_i32_0 = arith.constant 0 : i32
    %c0_i32_1 = arith.constant 0 : i32
    return %c0_i32, %c0_i32_0 : i32, i32
  }
  func.func @transform_2(%arg0: i32) -> (i32, i32) {
    %c0_i32 = arith.constant 0 : i32
    %c0_i32_0 = arith.constant 0 : i32
    %c0_i32_1 = arith.constant 0 : i32
    return %c0_i32, %c0_i32_0 : i32, i32
  }
  func.func @transform_3(%arg0: i32) -> (i32, i32) {
    %c0_i32 = arith.constant 0 : i32
    %c0_i32_0 = arith.constant 0 : i32
    return %arg0, %c0_i32 : i32, i32
  }
  func.func @transform_4(%arg0: i32) -> (i32, i32) {
    %c0_i32 = arith.constant 0 : i32
    %c0_i32_0 = arith.constant 0 : i32
    return %arg0, %c0_i32 : i32, i32
  }
}

module attributes {stable_mosaic.version = 11 : i64} {
  func.func @_matmul_fused_kernel(%arg0: i32, %arg1: memref<8x576xbf16, #tpu.memory_space<vmem>>, %arg2: memref<576x128xbf16, #tpu.memory_space<vmem>>, %arg3: memref<1x128xf32, #tpu.memory_space<vmem>>, %arg4: memref<8x128xf32, #tpu.memory_space<vmem>>) attributes {dimension_semantics = [#tpu.dimension_semantics<parallel>], iteration_bounds = array<i64: 1>, scalar_prefetch = 0 : i64, scratch_operands = 0 : i64, tpu.core_type = #tpu.core_type<tc>, window_params = [{transform_indices = @transform_0, window_bounds = array<i64: 8, 576>}, {pipeline_mode = #tpu.pipeline_mode<synchronous>, transform_indices = @transform_1, window_bounds = array<i64: 576, 128>}, {pipeline_mode = #tpu.pipeline_mode<synchronous>, transform_indices = @transform_2, window_bounds = array<i64: 1, 128>}, {transform_indices = @transform_3, window_bounds = array<i64: 8, 128>}]} {
    %c0 = arith.constant 0 : index
    %c0_0 = arith.constant 0 : index
    %0 = vector.load %arg1[%c0, %c0_0] : memref<8x576xbf16, #tpu.memory_space<vmem>>, vector<8x576xbf16>
    %c0_1 = arith.constant 0 : index
    %c0_2 = arith.constant 0 : index
    %1 = vector.load %arg2[%c0_1, %c0_2] : memref<576x128xbf16, #tpu.memory_space<vmem>>, vector<576x128xbf16>
    %cst = arith.constant dense<0.000000e+00> : vector<8x128xf32>
    %2 = tpu.matmul %0, %1, %cst {dimension_numbers = #tpu.dot_dimension_numbers<[1], [0], [0], [1], [0, 0, 1, 1], [], []>} : vector<8x576xbf16>, vector<576x128xbf16>, vector<8x128xf32> -> vector<8x128xf32>
    %c0_3 = arith.constant 0 : index
    %c0_4 = arith.constant 0 : index
    %3 = vector.load %arg3[%c0_3, %c0_4] : memref<1x128xf32, #tpu.memory_space<vmem>>, vector<1x128xf32>
    %4 = vector.broadcast %3 : vector<1x128xf32> to vector<8x128xf32>
    %5 = arith.addf %2, %4 : vector<8x128xf32>
    %cst_5 = arith.constant 0.000000e+00 : f32
    %6 = vector.broadcast %cst_5 : f32 to vector<8x128xf32>
    %7 = arith.maximumf %5, %6 : vector<8x128xf32>
    %c0_6 = arith.constant 0 : index
    %c0_7 = arith.constant 0 : index
    %8 = vector.load %arg4[%c0_6, %c0_7] : memref<8x128xf32, #tpu.memory_space<vmem>>, vector<8x128xf32>
    tpu.vector_store %arg4[%c0_6, %c0_7], %7 {strides = array<i32>} : memref<8x128xf32, #tpu.memory_space<vmem>>, vector<8x128xf32>,
    return
  }
  func.func @transform_0(%arg0: i32) -> (i32, i32) {
    %c0_i32 = arith.constant 0 : i32
    %c0_i32_0 = arith.constant 0 : i32
    return %arg0, %c0_i32 : i32, i32
  }
  func.func @transform_1(%arg0: i32) -> (i32, i32) {
    %c0_i32 = arith.constant 0 : i32
    %c0_i32_0 = arith.constant 0 : i32
    %c0_i32_1 = arith.constant 0 : i32
    return %c0_i32, %c0_i32_0 : i32, i32
  }
  func.func @transform_2(%arg0: i32) -> (i32, i32) {
    %c0_i32 = arith.constant 0 : i32
    %c0_i32_0 = arith.constant 0 : i32
    %c0_i32_1 = arith.constant 0 : i32
    return %c0_i32, %c0_i32_0 : i32, i32
  }
  func.func @transform_3(%arg0: i32) -> (i32, i32) {
    %c0_i32 = arith.constant 0 : i32
    %c0_i32_0 = arith.constant 0 : i32
    return %arg0, %c0_i32 : i32, i32
  }
}

module attributes {stable_mosaic.version = 11 : i64} {
  func.func @_matmul_fused_kernel(%arg0: i32, %arg1: memref<8x64xbf16, #tpu.memory_space<vmem>>, %arg2: memref<64x128xbf16, #tpu.memory_space<vmem>>, %arg3: memref<1x128xf32, #tpu.memory_space<vmem>>, %arg4: memref<8x128xf32, #tpu.memory_space<vmem>>) attributes {dimension_semantics = [#tpu.dimension_semantics<parallel>], iteration_bounds = array<i64: 1>, scalar_prefetch = 0 : i64, scratch_operands = 0 : i64, tpu.core_type = #tpu.core_type<tc>, window_params = [{transform_indices = @transform_0, window_bounds = array<i64: 8, 64>}, {pipeline_mode = #tpu.pipeline_mode<synchronous>, transform_indices = @transform_1, window_bounds = array<i64: 64, 128>}, {pipeline_mode = #tpu.pipeline_mode<synchronous>, transform_indices = @transform_2, window_bounds = array<i64: 1, 128>}, {transform_indices = @transform_3, window_bounds = array<i64: 8, 128>}]} {
    %c0 = arith.constant 0 : index
    %c0_0 = arith.constant 0 : index
    %0 = vector.load %arg1[%c0, %c0_0] : memref<8x64xbf16, #tpu.memory_space<vmem>>, vector<8x64xbf16>
    %c0_1 = arith.constant 0 : index
    %c0_2 = arith.constant 0 : index
    %1 = vector.load %arg2[%c0_1, %c0_2] : memref<64x128xbf16, #tpu.memory_space<vmem>>, vector<64x128xbf16>
    %cst = arith.constant dense<0.000000e+00> : vector<8x128xf32>
    %2 = tpu.matmul %0, %1, %cst {dimension_numbers = #tpu.dot_dimension_numbers<[1], [0], [0], [1], [0, 0, 1, 1], [], []>} : vector<8x64xbf16>, vector<64x128xbf16>, vector<8x128xf32> -> vector<8x128xf32>
    %c0_3 = arith.constant 0 : index
    %c0_4 = arith.constant 0 : index
    %3 = vector.load %arg3[%c0_3, %c0_4] : memref<1x128xf32, #tpu.memory_space<vmem>>, vector<1x128xf32>
    %4 = vector.broadcast %3 : vector<1x128xf32> to vector<8x128xf32>
    %5 = arith.addf %2, %4 : vector<8x128xf32>
    %c0_5 = arith.constant 0 : index
    %c0_6 = arith.constant 0 : index
    %6 = vector.load %arg4[%c0_5, %c0_6] : memref<8x128xf32, #tpu.memory_space<vmem>>, vector<8x128xf32>
    tpu.vector_store %arg4[%c0_5, %c0_6], %5 {strides = array<i32>} : memref<8x128xf32, #tpu.memory_space<vmem>>, vector<8x128xf32>,
    return
  }
  func.func @transform_0(%arg0: i32) -> (i32, i32) {
    %c0_i32 = arith.constant 0 : i32
    %c0_i32_0 = arith.constant 0 : i32
    return %arg0, %c0_i32 : i32, i32
  }
  func.func @transform_1(%arg0: i32) -> (i32, i32) {
    %c0_i32 = arith.constant 0 : i32
    %c0_i32_0 = arith.constant 0 : i32
    %c0_i32_1 = arith.constant 0 : i32
    return %c0_i32, %c0_i32_0 : i32, i32
  }
  func.func @transform_2(%arg0: i32) -> (i32, i32) {
    %c0_i32 = arith.constant 0 : i32
    %c0_i32_0 = arith.constant 0 : i32
    %c0_i32_1 = arith.constant 0 : i32
    return %c0_i32, %c0_i32_0 : i32, i32
  }
  func.func @transform_3(%arg0: i32) -> (i32, i32) {
    %c0_i32 = arith.constant 0 : i32
    %c0_i32_0 = arith.constant 0 : i32
    return %arg0, %c0_i32 : i32, i32
  }
}

module attributes {stable_mosaic.version = 11 : i64} {
  func.func @_matmul_fused_kernel(%arg0: i32, %arg1: memref<8x1152xbf16, #tpu.memory_space<vmem>>, %arg2: memref<1152x128xbf16, #tpu.memory_space<vmem>>, %arg3: memref<1x128xf32, #tpu.memory_space<vmem>>, %arg4: memref<8x128xf32, #tpu.memory_space<vmem>>, %arg5: memref<8x128xf32, #tpu.memory_space<vmem>>) attributes {dimension_semantics = [#tpu.dimension_semantics<parallel>], iteration_bounds = array<i64: 1>, scalar_prefetch = 0 : i64, scratch_operands = 0 : i64, tpu.core_type = #tpu.core_type<tc>, window_params = [{transform_indices = @transform_0, window_bounds = array<i64: 8, 1152>}, {pipeline_mode = #tpu.pipeline_mode<synchronous>, transform_indices = @transform_1, window_bounds = array<i64: 1152, 128>}, {pipeline_mode = #tpu.pipeline_mode<synchronous>, transform_indices = @transform_2, window_bounds = array<i64: 1, 128>}, {transform_indices = @transform_3, window_bounds = array<i64: 8, 128>}, {transform_indices = @transform_4, window_bounds = array<i64: 8, 128>}]} {
    %c0 = arith.constant 0 : index
    %c0_0 = arith.constant 0 : index
    %0 = vector.load %arg1[%c0, %c0_0] : memref<8x1152xbf16, #tpu.memory_space<vmem>>, vector<8x1152xbf16>
    %c0_1 = arith.constant 0 : index
    %c0_2 = arith.constant 0 : index
    %1 = vector.load %arg2[%c0_1, %c0_2] : memref<1152x128xbf16, #tpu.memory_space<vmem>>, vector<1152x128xbf16>
    %cst = arith.constant dense<0.000000e+00> : vector<8x128xf32>
    %2 = tpu.matmul %0, %1, %cst {dimension_numbers = #tpu.dot_dimension_numbers<[1], [0], [0], [1], [0, 0, 1, 1], [], []>} : vector<8x1152xbf16>, vector<1152x128xbf16>, vector<8x128xf32> -> vector<8x128xf32>
    %c0_3 = arith.constant 0 : index
    %c0_4 = arith.constant 0 : index
    %3 = vector.load %arg3[%c0_3, %c0_4] : memref<1x128xf32, #tpu.memory_space<vmem>>, vector<1x128xf32>
    %4 = vector.broadcast %3 : vector<1x128xf32> to vector<8x128xf32>
    %5 = arith.addf %2, %4 : vector<8x128xf32>
    %c0_5 = arith.constant 0 : index
    %c0_6 = arith.constant 0 : index
    %6 = vector.load %arg4[%c0_5, %c0_6] : memref<8x128xf32, #tpu.memory_space<vmem>>, vector<8x128xf32>
    %7 = arith.addf %5, %6 : vector<8x128xf32>
    %cst_7 = arith.constant 0.000000e+00 : f32
    %8 = vector.broadcast %cst_7 : f32 to vector<8x128xf32>
    %9 = arith.maximumf %7, %8 : vector<8x128xf32>
    %c0_8 = arith.constant 0 : index
    %c0_9 = arith.constant 0 : index
    %10 = vector.load %arg5[%c0_8, %c0_9] : memref<8x128xf32, #tpu.memory_space<vmem>>, vector<8x128xf32>
    tpu.vector_store %arg5[%c0_8, %c0_9], %9 {strides = array<i32>} : memref<8x128xf32, #tpu.memory_space<vmem>>, vector<8x128xf32>,
    return
  }
  func.func @transform_0(%arg0: i32) -> (i32, i32) {
    %c0_i32 = arith.constant 0 : i32
    %c0_i32_0 = arith.constant 0 : i32
    return %arg0, %c0_i32 : i32, i32
  }
  func.func @transform_1(%arg0: i32) -> (i32, i32) {
    %c0_i32 = arith.constant 0 : i32
    %c0_i32_0 = arith.constant 0 : i32
    %c0_i32_1 = arith.constant 0 : i32
    return %c0_i32, %c0_i32_0 : i32, i32
  }
  func.func @transform_2(%arg0: i32) -> (i32, i32) {
    %c0_i32 = arith.constant 0 : i32
    %c0_i32_0 = arith.constant 0 : i32
    %c0_i32_1 = arith.constant 0 : i32
    return %c0_i32, %c0_i32_0 : i32, i32
  }
  func.func @transform_3(%arg0: i32) -> (i32, i32) {
    %c0_i32 = arith.constant 0 : i32
    %c0_i32_0 = arith.constant 0 : i32
    return %arg0, %c0_i32 : i32, i32
  }
  func.func @transform_4(%arg0: i32) -> (i32, i32) {
    %c0_i32 = arith.constant 0 : i32
    %c0_i32_0 = arith.constant 0 : i32
    return %arg0, %c0_i32 : i32, i32
  }
}

module attributes {stable_mosaic.version = 11 : i64} {
  func.func @_matmul_fused_kernel(%arg0: i32, %arg1: memref<8x1152xbf16, #tpu.memory_space<vmem>>, %arg2: memref<1152x128xbf16, #tpu.memory_space<vmem>>, %arg3: memref<1x128xf32, #tpu.memory_space<vmem>>, %arg4: memref<8x128xf32, #tpu.memory_space<vmem>>) attributes {dimension_semantics = [#tpu.dimension_semantics<parallel>], iteration_bounds = array<i64: 1>, scalar_prefetch = 0 : i64, scratch_operands = 0 : i64, tpu.core_type = #tpu.core_type<tc>, window_params = [{transform_indices = @transform_0, window_bounds = array<i64: 8, 1152>}, {pipeline_mode = #tpu.pipeline_mode<synchronous>, transform_indices = @transform_1, window_bounds = array<i64: 1152, 128>}, {pipeline_mode = #tpu.pipeline_mode<synchronous>, transform_indices = @transform_2, window_bounds = array<i64: 1, 128>}, {transform_indices = @transform_3, window_bounds = array<i64: 8, 128>}]} {
    %c0 = arith.constant 0 : index
    %c0_0 = arith.constant 0 : index
    %0 = vector.load %arg1[%c0, %c0_0] : memref<8x1152xbf16, #tpu.memory_space<vmem>>, vector<8x1152xbf16>
    %c0_1 = arith.constant 0 : index
    %c0_2 = arith.constant 0 : index
    %1 = vector.load %arg2[%c0_1, %c0_2] : memref<1152x128xbf16, #tpu.memory_space<vmem>>, vector<1152x128xbf16>
    %cst = arith.constant dense<0.000000e+00> : vector<8x128xf32>
    %2 = tpu.matmul %0, %1, %cst {dimension_numbers = #tpu.dot_dimension_numbers<[1], [0], [0], [1], [0, 0, 1, 1], [], []>} : vector<8x1152xbf16>, vector<1152x128xbf16>, vector<8x128xf32> -> vector<8x128xf32>
    %c0_3 = arith.constant 0 : index
    %c0_4 = arith.constant 0 : index
    %3 = vector.load %arg3[%c0_3, %c0_4] : memref<1x128xf32, #tpu.memory_space<vmem>>, vector<1x128xf32>
    %4 = vector.broadcast %3 : vector<1x128xf32> to vector<8x128xf32>
    %5 = arith.addf %2, %4 : vector<8x128xf32>
    %cst_5 = arith.constant 0.000000e+00 : f32
    %6 = vector.broadcast %cst_5 : f32 to vector<8x128xf32>
    %7 = arith.maximumf %5, %6 : vector<8x128xf32>
    %c0_6 = arith.constant 0 : index
    %c0_7 = arith.constant 0 : index
    %8 = vector.load %arg4[%c0_6, %c0_7] : memref<8x128xf32, #tpu.memory_space<vmem>>, vector<8x128xf32>
    tpu.vector_store %arg4[%c0_6, %c0_7], %7 {strides = array<i32>} : memref<8x128xf32, #tpu.memory_space<vmem>>, vector<8x128xf32>,
    return
  }
  func.func @transform_0(%arg0: i32) -> (i32, i32) {
    %c0_i32 = arith.constant 0 : i32
    %c0_i32_0 = arith.constant 0 : i32
    return %arg0, %c0_i32 : i32, i32
  }
  func.func @transform_1(%arg0: i32) -> (i32, i32) {
    %c0_i32 = arith.constant 0 : i32
    %c0_i32_0 = arith.constant 0 : i32
    %c0_i32_1 = arith.constant 0 : i32
    return %c0_i32, %c0_i32_0 : i32, i32
  }
  func.func @transform_2(%arg0: i32) -> (i32, i32) {
    %c0_i32 = arith.constant 0 : i32
    %c0_i32_0 = arith.constant 0 : i32
    %c0_i32_1 = arith.constant 0 : i32
    return %c0_i32, %c0_i32_0 : i32, i32
  }
  func.func @transform_3(%arg0: i32) -> (i32, i32) {
    %c0_i32 = arith.constant 0 : i32
    %c0_i32_0 = arith.constant 0 : i32
    return %arg0, %c0_i32 : i32, i32
  }
}

module attributes {stable_mosaic.version = 11 : i64} {
  func.func @_head_kernel(%arg0: memref<2x4x128xf32, #tpu.memory_space<vmem>>, %arg1: memref<128x64xbf16, #tpu.memory_space<vmem>>, %arg2: memref<1x64xf32, #tpu.memory_space<vmem>>, %arg3: memref<64x10xbf16, #tpu.memory_space<vmem>>, %arg4: memref<1x10xf32, #tpu.memory_space<vmem>>, %arg5: memref<2x64xf32, #tpu.memory_space<vmem>>, %arg6: memref<2x10xf32, #tpu.memory_space<vmem>>) attributes {dimension_semantics = [], scalar_prefetch = 0 : i64, scratch_operands = 0 : i64, tpu.core_type = #tpu.core_type<tc>} {
    %c0 = arith.constant 0 : index
    %c0_0 = arith.constant 0 : index
    %c0_1 = arith.constant 0 : index
    %0 = vector.load %arg0[%c0, %c0_0, %c0_1] : memref<2x4x128xf32, #tpu.memory_space<vmem>>, vector<2x4x128xf32>
    %cst = arith.constant dense<0.000000e+00> : vector<2x128xf32>
    %1 = vector.multi_reduction <add>, %0, %cst [1] : vector<2x4x128xf32> to vector<2x128xf32>
    %cst_2 = arith.constant 4.000000e+00 : f32
    %2 = vector.broadcast %cst_2 : f32 to vector<2x128xf32>
    %3 = arith.divf %1, %2 : vector<2x128xf32>
    %4 = arith.truncf %3 : vector<2x128xf32> to vector<2x128xbf16>
    %c0_3 = arith.constant 0 : index
    %c0_4 = arith.constant 0 : index
    %5 = vector.load %arg1[%c0_3, %c0_4] : memref<128x64xbf16, #tpu.memory_space<vmem>>, vector<128x64xbf16>
    %cst_5 = arith.constant dense<0.000000e+00> : vector<2x64xf32>
    %6 = tpu.matmul %4, %5, %cst_5 {dimension_numbers = #tpu.dot_dimension_numbers<[1], [0], [0], [1], [0, 0, 1, 1], [], []>} : vector<2x128xbf16>, vector<128x64xbf16>, vector<2x64xf32> -> vector<2x64xf32>
    %c0_6 = arith.constant 0 : index
    %c0_7 = arith.constant 0 : index
    %7 = vector.load %arg2[%c0_6, %c0_7] : memref<1x64xf32, #tpu.memory_space<vmem>>, vector<1x64xf32>
    %8 = vector.broadcast %7 : vector<1x64xf32> to vector<2x64xf32>
    %9 = arith.addf %6, %8 : vector<2x64xf32>
    %10 = arith.truncf %9 : vector<2x64xf32> to vector<2x64xbf16>
    %c0_8 = arith.constant 0 : index
    %c0_9 = arith.constant 0 : index
    %11 = vector.load %arg3[%c0_8, %c0_9] : memref<64x10xbf16, #tpu.memory_space<vmem>>, vector<64x10xbf16>
    %cst_10 = arith.constant dense<0.000000e+00> : vector<2x10xf32>
    %12 = tpu.matmul %10, %11, %cst_10 {dimension_numbers = #tpu.dot_dimension_numbers<[1], [0], [0], [1], [0, 0, 1, 1], [], []>} : vector<2x64xbf16>, vector<64x10xbf16>, vector<2x10xf32> -> vector<2x10xf32>
    %c0_11 = arith.constant 0 : index
    %c0_12 = arith.constant 0 : index
    %13 = vector.load %arg4[%c0_11, %c0_12] : memref<1x10xf32, #tpu.memory_space<vmem>>, vector<1x10xf32>
    %14 = vector.broadcast %13 : vector<1x10xf32> to vector<2x10xf32>
    %15 = arith.addf %12, %14 : vector<2x10xf32>
    %c0_13 = arith.constant 0 : index
    %c0_14 = arith.constant 0 : index
    %16 = vector.load %arg5[%c0_13, %c0_14] : memref<2x64xf32, #tpu.memory_space<vmem>>, vector<2x64xf32>
    tpu.vector_store %arg5[%c0_13, %c0_14], %9 {strides = array<i32>} : memref<2x64xf32, #tpu.memory_space<vmem>>, vector<2x64xf32>,
    %c0_15 = arith.constant 0 : index
    %c0_16 = arith.constant 0 : index
    %17 = vector.load %arg6[%c0_15, %c0_16] : memref<2x10xf32, #tpu.memory_space<vmem>>, vector<2x10xf32>
    tpu.vector_store %arg6[%c0_15, %c0_16], %15 {strides = array<i32>} : memref<2x10xf32, #tpu.memory_space<vmem>>, vector<2x10xf32>,
    return
  }
}

</mosaic_0001>

<llo_original>
// kernel: _lambda_.22
$region0: #{_lambda_.22}
  #allocation0 [shape = 'u32[]', space=smem, size = 0x4, offset = 0x4, fixed_abs, tag = 'smem constant byte address 0x4 - core index']
  #allocation1 [shape = 'u32[144,128]{1,0:T(1,128)}', space=vmem, size = 0x12000, scoped, tag = 'internal scratch']
  %s0 = inlined_call_operand.vmem [shape: bf16[2048,147], index: 0, kind: input, shape index: {}]
  %s1 = inlined_call_operand.vmem [shape: bf16[147,16], index: 1, kind: input, shape index: {}]
  %s2 = inlined_call_operand.vmem [shape: f32[1,16], index: 2, kind: input, shape index: {}]
  %s3 = inlined_call_operand.vmem [shape: f32[2048,16], index: 3, kind: output, shape index: {}]
  %s4 = sld [smem:[#allocation0]]
  $region45: #{_lambda_.22} parent=0
    _
  %s6 = ssub.s32 1, %s4
  %s7 = scalar_select 0, %s6, %s4
  loop: start=0, step=1, limit=6
  $region2: #{_lambda_.22} parent=0 // loop_pre_header
    _
  $region3: #{_lambda_.22} parent=0 // loop_header
    %s9 = sphi 0, %s13
    %p10 = scmp.ge.s32.totalorder %s9, 6
    %s19 = sphi 0, %s21
    %s22 = sphi 0, %s19
    %s23 = sphi 0, %s22
    %s39 = sphi 0, %s23
    %s43 = sphi 0, %s43
    %s45 = sphi 0, %s43
    %s46 = sphi 0, %s45
    %s60 = sphi 0, %s46
    %s64 = sphi 0, %s64
    %s66 = sphi 0, %s64
    %s67 = sphi 0, %s66
    %s81 = sphi 0, %s67
    %s87 = sphi 0, %s89
    %s90 = sphi 0, %s87
    %s91 = sphi 0, %s90
    %s107 = sphi 0, %s91
  $region4: #{_lambda_.22} parent=0 // loop_header_branch
    %12 = sbr.rel (%p10) target = $region8
  $region5: #{_lambda_.22} parent=0 // loop_body
    %s14 = ssub.s32 %s9, 1
    %s15 = ssub.s32 %s9, 2
    %s16 = sadd.s32 %s9, 1
    %s17 = ssub.s32 %s9, %s16
    %p18 = scmp.eq.s32.totalorder %s17, 0
    %s20 = sadd.s32 %s19, 1
    %s21 = scalar_select %p18, %s19, %s20
    %p24 = pneg %p18
    %p25 = scmp.eq.s32.totalorder %s9, 3
    %p26 = por %p24, %p25
    %p27 = scmp.ne.s32.totalorder %s19, %s22
    %p28 = scmp.eq.s32.totalorder %s9, 0
    %p29 = por %p27, %p28
    %p30 = scmp.ne.s32.totalorder %s19, %s22
    %p31 = scmp.eq.s32.totalorder %s14, 3
    %p32 = por %p30, %p31
    %p33 = scmp.ne.s32.totalorder %s22, %s23
    %p34 = scmp.eq.s32.totalorder %s14, 0
    %p35 = por %p33, %p34
    %p36 = scmp.ne.s32.totalorder %s22, %s23
    %p37 = scmp.eq.s32.totalorder %s15, 3
    %p38 = por %p36, %p37
    %p40 = scmp.ne.s32.totalorder %s23, %s39
    %p41 = scmp.eq.s32.totalorder %s15, 0
    %p42 = por %p40, %p41
    %s44 = sadd.s32 %s43, 1
    %p47 = scmp.eq.s32.totalorder %s9, 3
    %p48 = scmp.ne.s32.totalorder %s43, %s45
    %p49 = scmp.eq.s32.totalorder %s9, 0
    %p50 = por %p48, %p49
    %p51 = scmp.ne.s32.totalorder %s43, %s45
    %p52 = scmp.eq.s32.totalorder %s14, 3
    %p53 = por %p51, %p52
    %p54 = scmp.ne.s32.totalorder %s45, %s46
    %p55 = scmp.eq.s32.totalorder %s14, 0
    %p56 = por %p54, %p55
    %p57 = scmp.ne.s32.totalorder %s45, %s46
    %p58 = scmp.eq.s32.totalorder %s15, 3
    %p59 = por %p57, %p58
    %p61 = scmp.ne.s32.totalorder %s46, %s60
    %p62 = scmp.eq.s32.totalorder %s15, 0
    %p63 = por %p61, %p62
    %s65 = sadd.s32 %s64, 1
    %p68 = scmp.eq.s32.totalorder %s9, 3
    %p69 = scmp.ne.s32.totalorder %s64, %s66
    %p70 = scmp.eq.s32.totalorder %s9, 0
    %p71 = por %p69, %p70
    %p72 = scmp.ne.s32.totalorder %s64, %s66
    %p73 = scmp.eq.s32.totalorder %s14, 3
    %p74 = por %p72, %p73
    %p75 = scmp.ne.s32.totalorder %s66, %s67
    %p76 = scmp.eq.s32.totalorder %s14, 0
    %p77 = por %p75, %p76
    %p78 = scmp.ne.s32.totalorder %s66, %s67
    %p79 = scmp.eq.s32.totalorder %s15, 3
    %p80 = por %p78, %p79
    %p82 = scmp.ne.s32.totalorder %s67, %s81
    %p83 = scmp.eq.s32.totalorder %s15, 0
    %p84 = por %p82, %p83
    %s85 = ssub.s32 %s9, %s16
    %p86 = scmp.eq.s32.totalorder %s85, 0
    %s88 = sadd.s32 %s87, 1
    %s89 = scalar_select %p86, %s87, %s88
    %p92 = pneg %p86
    %p93 = scmp.eq.s32.totalorder %s9, 3
    %p94 = por %p92, %p93
    %p95 = scmp.ne.s32.totalorder %s87, %s90
    %p96 = scmp.eq.s32.totalorder %s9, 0
    %p97 = por %p95, %p96
    %p98 = scmp.ne.s32.totalorder %s87, %s90
    %p99 = scmp.eq.s32.totalorder %s14, 3
    %p100 = por %p98, %p99
    %p101 = scmp.ne.s32.totalorder %s90, %s91
    %p102 = scmp.eq.s32.totalorder %s14, 0
    %p103 = por %p101, %p102
    %p104 = scmp.ne.s32.totalorder %s90, %s91
    %p105 = scmp.eq.s32.totalorder %s15, 3
    %p106 = por %p104, %p105
    %p108 = scmp.ne.s32.totalorder %s91, %s107
    %p109 = scmp.eq.s32.totalorder %s15, 0
    %p110 = por %p108, %p109
    %p111 = scmp.le.s32.totalorder 1, %s9
    %p112 = scmp.lt.s32.totalorder %s9, 5
    %p113 = pnand %p111, %p112
    %p114 = pneg %p113
    // Predicated region
    $region9: #{_lambda_.22} parent=5 // pred_check
      _
    $region10: #{_lambda_.22} parent=5 // pred_check_branch
      %116 = sbr.rel (%p113) target = $region12
    $region11: #{_lambda_.22} parent=5 // pred_region
      %s117 = ssub.s32 %s9, 1
      // Predicated region
      $region13: #{_lambda_.22} parent=11 // pred_check
        %p118 = pneg %p56
      $region14: #{_lambda_.22} parent=11 // pred_check_branch
        %120 = sbr.rel (%p118) target = $region16
      $region15: #{_lambda_.22} parent=11 // pred_region
        _
      $region16: #{_lambda_.22} parent=11 // pred_fallthru
        _
      // Predicated region
      $region17: #{_lambda_.22} parent=11 // pred_check
        %p121 = pneg %p77
      $region18: #{_lambda_.22} parent=11 // pred_check_branch
        %123 = sbr.rel (%p121) target = $region20
      $region19: #{_lambda_.22} parent=11 // pred_region
        _
      $region20: #{_lambda_.22} parent=11 // pred_fallthru
        _
    $region12: #{_lambda_.22} parent=5 // pred_fallthru
      _
    %p124 = scmp.lt.s32.totalorder %s9, 4
    // Predicated region
    $region21: #{_lambda_.22} parent=5 // pred_check
      %p125 = pneg %p124
    $region22: #{_lambda_.22} parent=5 // pred_check_branch
      %127 = sbr.rel (%p125) target = $region24
    $region23: #{_lambda_.22} parent=5 // pred_region
      // Predicated region
      $region25: #{_lambda_.22} parent=23 // pred_check
        %p128 = pneg %p29
      $region26: #{_lambda_.22} parent=23 // pred_check_branch
        %130 = sbr.rel (%p128) target = $region28
      $region27: #{_lambda_.22} parent=23 // pred_region
        %s131 = smul.u32 64, %s9
        %p132 = scmp.lt.s32.totalorder %s131, 255
        %s133 = scalar_select %p132, %s131, 255
        %s134 = smul.addr %s133, 2
        %s135 = smul.addr %s134, 4
        %s136 = scalar_lea.vmem %s0, %s135
        %s137 = smul.u32 64, %s9
      $region28: #{_lambda_.22} parent=23 // pred_fallthru
        _
    $region24: #{_lambda_.22} parent=5 // pred_fallthru
      _
    %p138 = scmp.le.s32.totalorder 1, %s9
    %p139 = scmp.lt.s32.totalorder %s9, 5
    %p140 = pnand %p138, %p139
    %p141 = pneg %p140
    // Predicated region
    $region29: #{_lambda_.22} parent=5 // pred_check
      _
    $region30: #{_lambda_.22} parent=5 // pred_check_branch
      %143 = sbr.rel (%p140) target = $region32
    $region31: #{_lambda_.22} parent=5 // pred_region
      %s144 = ssub.s32 %s9, 1
      %s145 = smul.u32 64, %s14
      %p146 = scmp.lt.s32.totalorder %s145, 255
      %s147 = scalar_select %p146, %s145, 255
      %s148 = smul.addr %s147, 2
      %s149 = smul.addr %s148, 4
      %s150 = scalar_lea.vmem %s0, %s149
      %p151 = pneg %p35
      %p152 = pneg %p32
      %p153 = pneg %p56
      %p154 = pneg %p53
      %p155 = pneg %p77
      %p156 = pneg %p74
      %p157 = pneg %p103
      %p158 = pneg %p100
      %s159 = smul.u32 64, %s14
      %p160 = scmp.lt.s32.totalorder %s159, 255
      %s161 = scalar_select %p160, %s159, 255
      %s162 = smul.addr %s161, 8
      %s163 = scalar_lea.vmem %s3, %s162
      %s164 = smul.u32 64, %s14
      %p165 = scmp.lt.s32.totalorder %s164, 255
      %s166 = scalar_select %p165, %s164, 255
      %s167 = smul.addr %s166, 2
      %s168 = smul.addr %s167, 4
      %s169 = scalar_lea.vmem %s0, %s168
      %s170 = smul.u32 64, %s14
      %s171 = smul.u32 64, %s14
      %p172 = scmp.lt.s32.totalorder %s171, 255
      %s173 = scalar_select %p172, %s171, 255
      %s174 = smul.addr %s173, 8
      %s175 = scalar_lea.vmem %s3, %s174
      %s176 = smul.u32 64, %s14
      %v178 = vld [vmem:[%s169] sm:$0xff]
      %v179 = vld [vmem:[%s169 + $0x8] sm:$0xff]
      %v180 = vld [vmem:[%s169 + $0x10] sm:$0xff]
      %v181 = vld [vmem:[%s169 + $0x18] sm:$0xff]
      %v182 = vld [vmem:[%s169 + $0x20] sm:$0xff]
      %v183 = vld [vmem:[%s169 + $0x28] sm:$0xff]
      %v184 = vld [vmem:[%s169 + $0x30] sm:$0xff]
      %v185 = vld [vmem:[%s169 + $0x38] sm:$0xff]
      %v186 = vld [vmem:[%s169 + $0x40] sm:$0xff]
      %v187 = vld [vmem:[%s169 + $0x48] sm:$0xff]
      %v188 = vld [vmem:[%s169 + $0x50] sm:$0xff]
      %v189 = vld [vmem:[%s169 + $0x58] sm:$0xff]
      %v190 = vld [vmem:[%s169 + $0x60] sm:$0xff]
      %v191 = vld [vmem:[%s169 + $0x68] sm:$0xff]
      %v192 = vld [vmem:[%s169 + $0x70] sm:$0xff]
      %v193 = vld [vmem:[%s169 + $0x78] sm:$0xff]
      %v194 = vld [vmem:[%s169 + $0x80] sm:$0xff]
      %v195 = vld [vmem:[%s169 + $0x88] sm:$0xff]
      %v196 = vld [vmem:[%s169 + $0x90] sm:$0xff]
      %v197 = vld [vmem:[%s169 + $0x98] sm:$0xff]
      %v198 = vld [vmem:[%s169 + $0xa0] sm:$0xff]
      %v199 = vld [vmem:[%s169 + $0xa8] sm:$0xff]
      %v200 = vld [vmem:[%s169 + $0xb0] sm:$0xff]
      %v201 = vld [vmem:[%s169 + $0xb8] sm:$0xff]
      %v202 = vld [vmem:[%s169 + $0xc0] sm:$0xff]
      %v203 = vld [vmem:[%s169 + $0xc8] sm:$0xff]
      %v204 = vld [vmem:[%s169 + $0xd0] sm:$0xff]
      %v205 = vld [vmem:[%s169 + $0xd8] sm:$0xff]
      %v206 = vld [vmem:[%s169 + $0xe0] sm:$0xff]
      %v207 = vld [vmem:[%s169 + $0xe8] sm:$0xff]
      %v208 = vld [vmem:[%s169 + $0xf0] sm:$0xff]
      %v209 = vld [vmem:[%s169 + $0xf8] sm:$0xff]
      %v210 = vld [vmem:[%s169 + $0x100] sm:$0xff]
      %v211 = vld [vmem:[%s169 + $0x108] sm:$0xff]
      %v212 = vld [vmem:[%s169 + $0x110] sm:$0xff]
      %v213 = vld [vmem:[%s169 + $0x118] sm:$0xff]
      %v214 = vld [vmem:[%s169 + $0x120] sm:$0xff]
      %v215 = vld [vmem:[%s169 + $0x128] sm:$0xff]
      %v216 = vld [vmem:[%s169 + $0x130] sm:$0xff]
      %v217 = vld [vmem:[%s169 + $0x138] sm:$0xff]
      %v218 = vld [vmem:[%s169 + $0x140] sm:$0xff]
      %v219 = vld [vmem:[%s169 + $0x148] sm:$0xff]
      %v220 = vld [vmem:[%s169 + $0x150] sm:$0xff]
      %v221 = vld [vmem:[%s169 + $0x158] sm:$0xff]
      %v222 = vld [vmem:[%s169 + $0x160] sm:$0xff]
      %v223 = vld [vmem:[%s169 + $0x168] sm:$0xff]
      %v224 = vld [vmem:[%s169 + $0x170] sm:$0xff]
      %v225 = vld [vmem:[%s169 + $0x178] sm:$0xff]
      %v226 = vld [vmem:[%s169 + $0x180] sm:$0xff]
      %v227 = vld [vmem:[%s169 + $0x188] sm:$0xff]
      %v228 = vld [vmem:[%s169 + $0x190] sm:$0xff]
      %v229 = vld [vmem:[%s169 + $0x198] sm:$0xff]
      %v230 = vld [vmem:[%s169 + $0x1a0] sm:$0xff]
      %v231 = vld [vmem:[%s169 + $0x1a8] sm:$0xff]
      %v232 = vld [vmem:[%s169 + $0x1b0] sm:$0xff]
      %v233 = vld [vmem:[%s169 + $0x1b8] sm:$0xff]
      %v234 = vld [vmem:[%s169 + $0x1c0] sm:$0xff]
      %v235 = vld [vmem:[%s169 + $0x1c8] sm:$0xff]
      %v236 = vld [vmem:[%s169 + $0x1d0] sm:$0xff]
      %v237 = vld [vmem:[%s169 + $0x1d8] sm:$0xff]
      %v238 = vld [vmem:[%s169 + $0x1e0] sm:$0xff]
      %v239 = vld [vmem:[%s169 + $0x1e8] sm:$0xff]
      %v240 = vld [vmem:[%s169 + $0x1f0] sm:$0xff]
      %v241 = vld [vmem:[%s169 + $0x1f8] sm:$0xff]
      %v242 = vld [vmem:[%s1] sm:$0xf]
      %v243 = vld [vmem:[%s1 + $0x4] sm:$0xf]
      %v244 = vld [vmem:[%s1 + $0x8] sm:$0xf]
      %v245 = vld [vmem:[%s1 + $0xc] sm:$0xf]
      %v246 = vld [vmem:[%s1 + $0x10] sm:$0xf]
      %v247 = vld [vmem:[%s1 + $0x14] sm:$0xf]
      %v248 = vld [vmem:[%s1 + $0x18] sm:$0xf]
      %v249 = vld [vmem:[%s1 + $0x1c] sm:$0xf]
      %v250 = vld [vmem:[%s1 + $0x20] sm:$0xf]
      %v251 = vld [vmem:[%s1 + $0x24] sm:$0xf]
      %v252 = vld [vmem:[%s1 + $0x28] sm:$0xf]
      %v253 = vld [vmem:[%s1 + $0x2c] sm:$0xf]
      %v254 = vld [vmem:[%s1 + $0x30] sm:$0xf]
      %v255 = vld [vmem:[%s1 + $0x34] sm:$0xf]
      %v256 = vld [vmem:[%s1 + $0x38] sm:$0xf]
      %v257 = vld [vmem:[%s1 + $0x3c] sm:$0xf]
      %v258 = vld [vmem:[%s1 + $0x40] sm:$0xf]
      %v259 = vld [vmem:[%s1 + $0x44] sm:$0xf]
      %v260 = vld [vmem:[%s1 + $0x48] sm:$0x3]
      %v261 = vld [vmem:[%s2] sm:$0x1]
      %v263 = vlaneseq
      %v264 = vshrl.u32 %v263, 7
      %v265 = vsub.s32 0, %v264
      %v266 = vrot.slane %v261, %v265
      %v332 = vunpack.c.l.b16 %v178
      %v333 = vunpack.c.h.b16 %v178
      %v334 = vunpack.c.l.b16 %v179
      %v335 = vunpack.c.h.b16 %v179
      %v336 = vunpack.c.l.b16 %v180
      %v337 = vunpack.c.h.b16 %v180
      %v338 = vunpack.c.l.b16 %v181
      %v339 = vunpack.c.h.b16 %v181
      %v340 = vunpack.c.l.b16 %v182
      %v341 = vunpack.c.h.b16 %v182
      %v342 = vunpack.c.l.b16 %v183
      %v343 = vunpack.c.h.b16 %v183
      %v344 = vunpack.c.l.b16 %v184
      %v345 = vunpack.c.h.b16 %v184
      %v346 = vunpack.c.l.b16 %v185
      %v347 = vunpack.c.h.b16 %v185
      %v348 = vunpack.c.l.b16 %v186
      %v349 = vunpack.c.h.b16 %v186
      %v350 = vunpack.c.l.b16 %v187
      %v351 = vunpack.c.h.b16 %v187
      %v352 = vunpack.c.l.b16 %v188
      %v353 = vunpack.c.h.b16 %v188
      %v354 = vunpack.c.l.b16 %v189
      %v355 = vunpack.c.h.b16 %v189
      %v356 = vunpack.c.l.b16 %v190
      %v357 = vunpack.c.h.b16 %v190
      %v358 = vunpack.c.l.b16 %v191
      %v359 = vunpack.c.h.b16 %v191
      %v360 = vunpack.c.l.b16 %v192
      %v361 = vunpack.c.h.b16 %v192
      %v362 = vunpack.c.l.b16 %v193
      %v363 = vunpack.c.h.b16 %v193
      %v364 = vunpack.c.l.b16 %v194
      %v365 = vunpack.c.h.b16 %v194
      %v366 = vunpack.c.l.b16 %v195
      %v367 = vunpack.c.h.b16 %v195
      %v368 = vunpack.c.l.b16 %v196
      %v369 = vunpack.c.h.b16 %v196
      %v370 = vunpack.c.l.b16 %v197
      %v371 = vunpack.c.h.b16 %v197
      %v372 = vunpack.c.l.b16 %v198
      %v373 = vunpack.c.h.b16 %v198
      %v374 = vunpack.c.l.b16 %v199
      %v375 = vunpack.c.h.b16 %v199
      %v376 = vunpack.c.l.b16 %v200
      %v377 = vunpack.c.h.b16 %v200
      %v378 = vunpack.c.l.b16 %v201
      %v379 = vunpack.c.h.b16 %v201
      %v380 = vunpack.c.l.b16 %v202
      %v381 = vunpack.c.h.b16 %v202
      %v382 = vunpack.c.l.b16 %v203
      %v383 = vunpack.c.h.b16 %v203
      %v384 = vunpack.c.l.b16 %v204
      %v385 = vunpack.c.h.b16 %v204
      %v386 = vunpack.c.l.b16 %v205
      %v387 = vunpack.c.h.b16 %v205
      %v388 = vunpack.c.l.b16 %v206
      %v389 = vunpack.c.h.b16 %v206
      %v390 = vunpack.c.l.b16 %v207
      %v391 = vunpack.c.h.b16 %v207
      %v392 = vunpack.c.l.b16 %v208
      %v393 = vunpack.c.h.b16 %v208
      %v394 = vunpack.c.l.b16 %v209
      %v395 = vunpack.c.h.b16 %v209
      %v396 = vunpack.c.l.b16 %v210
      %v397 = vunpack.c.h.b16 %v210
      %v398 = vunpack.c.l.b16 %v211
      %v399 = vunpack.c.h.b16 %v211
      %v400 = vunpack.c.l.b16 %v212
      %v401 = vunpack.c.h.b16 %v212
      %v402 = vunpack.c.l.b16 %v213
      %v403 = vunpack.c.h.b16 %v213
      %v404 = vunpack.c.l.b16 %v214
      %v405 = vunpack.c.h.b16 %v214
      %v406 = vunpack.c.l.b16 %v215
      %v407 = vunpack.c.h.b16 %v215
      %v408 = vunpack.c.l.b16 %v216
      %v409 = vunpack.c.h.b16 %v216
      %v410 = vunpack.c.l.b16 %v217
      %v411 = vunpack.c.h.b16 %v217
      %v412 = vunpack.c.l.b16 %v218
      %v413 = vunpack.c.h.b16 %v218
      %v414 = vunpack.c.l.b16 %v219
      %v415 = vunpack.c.h.b16 %v219
      %v416 = vunpack.c.l.b16 %v220
      %v417 = vunpack.c.h.b16 %v220
      %v418 = vunpack.c.l.b16 %v221
      %v419 = vunpack.c.h.b16 %v221
      %v420 = vunpack.c.l.b16 %v222
      %v421 = vunpack.c.h.b16 %v222
      %v422 = vunpack.c.l.b16 %v223
      %v423 = vunpack.c.h.b16 %v223
      %v424 = vunpack.c.l.b16 %v224
      %v425 = vunpack.c.h.b16 %v224
      %v426 = vunpack.c.l.b16 %v225
      %v427 = vunpack.c.h.b16 %v225
      %v428 = vunpack.c.l.b16 %v226
      %v429 = vunpack.c.h.b16 %v226
      %v430 = vunpack.c.l.b16 %v227
      %v431 = vunpack.c.h.b16 %v227
      %v432 = vunpack.c.l.b16 %v228
      %v433 = vunpack.c.h.b16 %v228
      %v434 = vunpack.c.l.b16 %v229
      %v435 = vunpack.c.h.b16 %v229
      %v436 = vunpack.c.l.b16 %v230
      %v437 = vunpack.c.h.b16 %v230
      %v438 = vunpack.c.l.b16 %v231
      %v439 = vunpack.c.h.b16 %v231
      %v440 = vunpack.c.l.b16 %v232
      %v441 = vunpack.c.h.b16 %v232
      %v442 = vunpack.c.l.b16 %v233
      %v443 = vunpack.c.h.b16 %v233
      %v444 = vunpack.c.l.b16 %v234
      %v445 = vunpack.c.h.b16 %v234
      %v446 = vunpack.c.l.b16 %v235
      %v447 = vunpack.c.h.b16 %v235
      %v448 = vunpack.c.l.b16 %v236
      %v449 = vunpack.c.h.b16 %v236
      %v450 = vunpack.c.l.b16 %v237
      %v451 = vunpack.c.h.b16 %v237
      %v452 = vunpack.c.l.b16 %v238
      %v453 = vunpack.c.h.b16 %v238
      %v454 = vunpack.c.l.b16 %v239
      %v455 = vunpack.c.h.b16 %v239
      %v456 = vunpack.c.l.b16 %v240
      %v457 = vunpack.c.h.b16 %v240
      %v458 = vunpack.c.l.b16 %v241
      %v459 = vunpack.c.h.b16 %v241
      %v460 = vpack.c.b16 %v334, %v332
      %v461 = vpack.c.b16 %v335, %v333
      %v462 = vpack.c.b16 %v338, %v336
      %v463 = vpack.c.b16 %v339, %v337
      %v464 = vpack.c.b16 %v342, %v340
      %v465 = vpack.c.b16 %v343, %v341
      %v466 = vpack.c.b16 %v346, %v344
      %v467 = vpack.c.b16 %v347, %v345
      %v468 = vpack.c.b16 %v350, %v348
      %v469 = vpack.c.b16 %v351, %v349
      %v470 = vpack.c.b16 %v354, %v352
      %v471 = vpack.c.b16 %v355, %v353
      %v472 = vpack.c.b16 %v358, %v356
      %v473 = vpack.c.b16 %v359, %v357
      %v474 = vpack.c.b16 %v362, %v360
      %v475 = vpack.c.b16 %v363, %v361
      %v476 = vpack.c.b16 %v366, %v364
      %v477 = vpack.c.b16 %v367, %v365
      %v478 = vpack.c.b16 %v370, %v368
      %v479 = vpack.c.b16 %v371, %v369
      %v480 = vpack.c.b16 %v374, %v372
      %v481 = vpack.c.b16 %v375, %v373
      %v482 = vpack.c.b16 %v378, %v376
      %v483 = vpack.c.b16 %v379, %v377
      %v484 = vpack.c.b16 %v382, %v380
      %v485 = vpack.c.b16 %v383, %v381
      %v486 = vpack.c.b16 %v386, %v384
      %v487 = vpack.c.b16 %v387, %v385
      %v488 = vpack.c.b16 %v390, %v388
      %v489 = vpack.c.b16 %v391, %v389
      %v490 = vpack.c.b16 %v394, %v392
      %v491 = vpack.c.b16 %v395, %v393
      %v492 = vpack.c.b16 %v398, %v396
      %v493 = vpack.c.b16 %v399, %v397
      %v494 = vpack.c.b16 %v402, %v400
      %v495 = vpack.c.b16 %v403, %v401
      %v496 = vpack.c.b16 %v406, %v404
      %v497 = vpack.c.b16 %v407, %v405
      %v498 = vpack.c.b16 %v410, %v408
      %v499 = vpack.c.b16 %v411, %v409
      %v500 = vpack.c.b16 %v414, %v412
      %v501 = vpack.c.b16 %v415, %v413
      %v502 = vpack.c.b16 %v418, %v416
      %v503 = vpack.c.b16 %v419, %v417
      %v504 = vpack.c.b16 %v422, %v420
      %v505 = vpack.c.b16 %v423, %v421
      %v506 = vpack.c.b16 %v426, %v424
      %v507 = vpack.c.b16 %v427, %v425
      %v508 = vpack.c.b16 %v430, %v428
      %v509 = vpack.c.b16 %v431, %v429
      %v510 = vpack.c.b16 %v434, %v432
      %v511 = vpack.c.b16 %v435, %v433
      %v512 = vpack.c.b16 %v438, %v436
      %v513 = vpack.c.b16 %v439, %v437
      %v514 = vpack.c.b16 %v442, %v440
      %v515 = vpack.c.b16 %v443, %v441
      %v516 = vpack.c.b16 %v446, %v444
      %v517 = vpack.c.b16 %v447, %v445
      %v518 = vpack.c.b16 %v450, %v448
      %v519 = vpack.c.b16 %v451, %v449
      %v520 = vpack.c.b16 %v454, %v452
      %v521 = vpack.c.b16 %v455, %v453
      %v522 = vpack.c.b16 %v458, %v456
      %v523 = vpack.c.b16 %v459, %v457
      %v575 = vunpack.c.l.b16 %v242
      %v576 = vunpack.c.l.b16 %v243
      %v577 = vunpack.c.l.b16 %v244
      %v578 = vunpack.c.l.b16 %v245
      %v579 = vunpack.c.l.b16 %v246
      %v580 = vunpack.c.l.b16 %v247
      %v581 = vunpack.c.l.b16 %v248
      %v582 = vunpack.c.l.b16 %v249
      %v583 = vunpack.c.l.b16 %v250
      %v584 = vunpack.c.l.b16 %v251
      %v585 = vunpack.c.l.b16 %v252
      %v586 = vunpack.c.l.b16 %v253
      %v587 = vunpack.c.l.b16 %v254
      %v588 = vunpack.c.l.b16 %v255
      %v589 = vunpack.c.l.b16 %v256
      %v590 = vunpack.c.l.b16 %v257
      %v591 = vunpack.c.l.b16 %v258
      %v592 = vunpack.c.l.b16 %v259
      %v593 = vunpack.c.l.b16 %v260
      %v594 = vpack.c.b16 %v576, %v575
      %v595 = vpack.c.b16 %v578, %v577
      %v596 = vpack.c.b16 %v580, %v579
      %v597 = vpack.c.b16 %v582, %v581
      %v598 = vpack.c.b16 %v584, %v583
      %v599 = vpack.c.b16 %v586, %v585
      %v600 = vpack.c.b16 %v588, %v587
      %v601 = vpack.c.b16 %v590, %v589
      %v602 = vpack.c.b16 %v592, %v591
      %v603 = vpack.c.b16 %v593, %v593
      %vm613 = vcmask 154624
      %v615 = vsel %vm613, %v461, 0
      %v618 = vsel %vm613, %v463, 0
      %v621 = vsel %vm613, %v465, 0
      %v624 = vsel %vm613, %v467, 0
      %v627 = vsel %vm613, %v469, 0
      %v630 = vsel %vm613, %v471, 0
      %v633 = vsel %vm613, %v473, 0
      %v636 = vsel %vm613, %v475, 0
      %v639 = vsel %vm613, %v477, 0
      %v642 = vsel %vm613, %v479, 0
      %v645 = vsel %vm613, %v481, 0
      %v648 = vsel %vm613, %v483, 0
      %v651 = vsel %vm613, %v485, 0
      %v654 = vsel %vm613, %v487, 0
      %v657 = vsel %vm613, %v489, 0
      %v660 = vsel %vm613, %v491, 0
      %v663 = vsel %vm613, %v493, 0
      %v666 = vsel %vm613, %v495, 0
      %v669 = vsel %vm613, %v497, 0
      %v672 = vsel %vm613, %v499, 0
      %v675 = vsel %vm613, %v501, 0
      %v678 = vsel %vm613, %v503, 0
      %v681 = vsel %vm613, %v505, 0
      %v684 = vsel %vm613, %v507, 0
      %v687 = vsel %vm613, %v509, 0
      %v690 = vsel %vm613, %v511, 0
      %v693 = vsel %vm613, %v513, 0
      %v696 = vsel %vm613, %v515, 0
      %v699 = vsel %vm613, %v517, 0
      %v702 = vsel %vm613, %v519, 0
      %v705 = vsel %vm613, %v521, 0
      %v708 = vsel %vm613, %v523, 0
      %vm710 = vcmask 1040384
      %vm711 = vcmask 1041408
      %v712 = vsel %vm710, 4294967295, 65535
      %v713 = vsel %vm711, %v712, 0
      %v715 = vand.u32 %v603, %v713
      %717 = vmatprep.subr.bf16.mxu0 0
      %718 = vmatpush1.bf16.msra.mxu0 %v594
      %719 = vmatprep.subr.bf16.mxu0 0
      %720 = vmatpush1.bf16.msra.mxu0 %v595
      %721 = vmatprep.subr.bf16.mxu0 0
      %722 = vmatpush1.bf16.msra.mxu0 %v596
      %723 = vmatprep.subr.bf16.mxu0 0
      %724 = vmatpush1.bf16.msra.mxu0 %v597
      %725 = vmatprep.subr.bf16.mxu0 0
      %726 = vmatpush1.bf16.msra.mxu0 %v598
      %727 = vmatprep.subr.bf16.mxu0 0
      %728 = vmatpush1.bf16.msra.mxu0 %v599
      %729 = vmatprep.subr.bf16.mxu0 0
      %730 = vmatpush1.bf16.msra.mxu0 %v600
      %731 = vmatprep.subr.bf16.mxu0 0
      %732 = vmatpush1.bf16.msra.mxu0 %v601
      %733 = vmatprep.subr.bf16.mxu0 0
      %734 = vmatpush1.bf16.msra.mxu0 %v602
      %735 = vmatprep.subr.bf16.mxu0 0
      %736 = vmatpush1.bf16.msra.mxu0 %v715
      %737 = vmatprep.subr.bf16.mxu0 0
      %738 = vmatpush1.bf16.msra.mxu0 0
      %739 = vmatprep.subr.bf16.mxu0 0
      %740 = vmatpush1.bf16.msra.mxu0 0
      %741 = vmatprep.subr.bf16.mxu0 0
      %742 = vmatpush1.bf16.msra.mxu0 0
      %743 = vmatprep.subr.bf16.mxu0 0
      %744 = vmatpush1.bf16.msra.mxu0 0
      %745 = vmatprep.subr.bf16.mxu0 0
      %746 = vmatpush1.bf16.msra.mxu0 0
      %747 = vmatprep.subr.bf16.mxu0 0
      %748 = vmatpush1.bf16.msra.mxu0 0
      %749 = vmatprep.mubr.bf16.mxu0 %v615
      %750 = vmatmul.mubr.bf16.gmra.mrb[0].mxu0 %v460
      %v751 = vpop.f32.mrb[0].mxu0
      %v752 = vadd.f32 %v266, %v751
      %v753 = vpop.f32.mrb[0].mxu0
      %v754 = vpop.f32.mrb[0].mxu0
      %v755 = vadd.f32 %v266, %v754
      %v756 = vpop.f32.mrb[0].mxu0
      %757 = vmatprep.mubr.bf16.mxu0 %v618
      %758 = vmatmul.mubr.bf16.gmra.mrb[0].mxu0 %v462
      %v759 = vpop.f32.mrb[0].mxu0
      %v760 = vadd.f32 %v266, %v759
      %v761 = vpop.f32.mrb[0].mxu0
      %v762 = vpop.f32.mrb[0].mxu0
      %v763 = vadd.f32 %v266, %v762
      %v764 = vpop.f32.mrb[0].mxu0
      %765 = vmatprep.mubr.bf16.mxu0 %v621
      %766 = vmatmul.mubr.bf16.gmra.mrb[0].mxu0 %v464
      %v767 = vpop.f32.mrb[0].mxu0
      %v768 = vadd.f32 %v266, %v767
      %v769 = vpop.f32.mrb[0].mxu0
      %v770 = vpop.f32.mrb[0].mxu0
      %v771 = vadd.f32 %v266, %v770
      %v772 = vpop.f32.mrb[0].mxu0
      %773 = vmatprep.mubr.bf16.mxu0 %v624
      %774 = vmatmul.mubr.bf16.gmra.mrb[0].mxu0 %v466
      %v775 = vpop.f32.mrb[0].mxu0
      %v776 = vadd.f32 %v266, %v775
      %v777 = vpop.f32.mrb[0].mxu0
      %v778 = vpop.f32.mrb[0].mxu0
      %v779 = vadd.f32 %v266, %v778
      %v780 = vpop.f32.mrb[0].mxu0
      %781 = vmatprep.mubr.bf16.mxu0 %v627
      %782 = vmatmul.mubr.bf16.gmra.mrb[0].mxu0 %v468
      %v783 = vpop.f32.mrb[0].mxu0
      %v784 = vadd.f32 %v266, %v783
      %v785 = vpop.f32.mrb[0].mxu0
      %v786 = vpop.f32.mrb[0].mxu0
      %v787 = vadd.f32 %v266, %v786
      %v788 = vpop.f32.mrb[0].mxu0
      %789 = vmatprep.mubr.bf16.mxu0 %v630
      %790 = vmatmul.mubr.bf16.gmra.mrb[0].mxu0 %v470
      %v791 = vpop.f32.mrb[0].mxu0
      %v792 = vadd.f32 %v266, %v791
      %v793 = vpop.f32.mrb[0].mxu0
      %v794 = vpop.f32.mrb[0].mxu0
      %v795 = vadd.f32 %v266, %v794
      %v796 = vpop.f32.mrb[0].mxu0
      %797 = vmatprep.mubr.bf16.mxu0 %v633
      %798 = vmatmul.mubr.bf16.gmra.mrb[0].mxu0 %v472
      %v799 = vpop.f32.mrb[0].mxu0
      %v800 = vadd.f32 %v266, %v799
      %v801 = vpop.f32.mrb[0].mxu0
      %v802 = vpop.f32.mrb[0].mxu0
      %v803 = vadd.f32 %v266, %v802
      %v804 = vpop.f32.mrb[0].mxu0
      %805 = vmatprep.mubr.bf16.mxu0 %v636
      %806 = vmatmul.mubr.bf16.gmra.mrb[0].mxu0 %v474
      %v807 = vpop.f32.mrb[0].mxu0
      %v808 = vadd.f32 %v266, %v807
      %v809 = vpop.f32.mrb[0].mxu0
      %v810 = vpop.f32.mrb[0].mxu0
      %v811 = vadd.f32 %v266, %v810
      %v812 = vpop.f32.mrb[0].mxu0
      %813 = vmatprep.mubr.bf16.mxu0 %v639
      %814 = vmatmul.mubr.bf16.gmra.mrb[0].mxu0 %v476
      %v815 = vpop.f32.mrb[0].mxu0
      %v816 = vadd.f32 %v266, %v815
      %v817 = vpop.f32.mrb[0].mxu0
      %v818 = vpop.f32.mrb[0].mxu0
      %v819 = vadd.f32 %v266, %v818
      %v820 = vpop.f32.mrb[0].mxu0
      %821 = vmatprep.mubr.bf16.mxu0 %v642
      %822 = vmatmul.mubr.bf16.gmra.mrb[0].mxu0 %v478
      %v823 = vpop.f32.mrb[0].mxu0
      %v824 = vadd.f32 %v266, %v823
      %v825 = vpop.f32.mrb[0].mxu0
      %v826 = vpop.f32.mrb[0].mxu0
      %v827 = vadd.f32 %v266, %v826
      %v828 = vpop.f32.mrb[0].mxu0
      %829 = vmatprep.mubr.bf16.mxu0 %v645
      %830 = vmatmul.mubr.bf16.gmra.mrb[0].mxu0 %v480
      %v831 = vpop.f32.mrb[0].mxu0
      %v832 = vadd.f32 %v266, %v831
      %v833 = vpop.f32.mrb[0].mxu0
      %v834 = vpop.f32.mrb[0].mxu0
      %v835 = vadd.f32 %v266, %v834
      %v836 = vpop.f32.mrb[0].mxu0
      %837 = vmatprep.mubr.bf16.mxu0 %v648
      %838 = vmatmul.mubr.bf16.gmra.mrb[0].mxu0 %v482
      %v839 = vpop.f32.mrb[0].mxu0
      %v840 = vadd.f32 %v266, %v839
      %v841 = vpop.f32.mrb[0].mxu0
      %v842 = vpop.f32.mrb[0].mxu0
      %v843 = vadd.f32 %v266, %v842
      %v844 = vpop.f32.mrb[0].mxu0
      %845 = vmatprep.mubr.bf16.mxu0 %v651
      %846 = vmatmul.mubr.bf16.gmra.mrb[0].mxu0 %v484
      %v847 = vpop.f32.mrb[0].mxu0
      %v848 = vadd.f32 %v266, %v847
      %v849 = vpop.f32.mrb[0].mxu0
      %v850 = vpop.f32.mrb[0].mxu0
      %v851 = vadd.f32 %v266, %v850
      %v852 = vpop.f32.mrb[0].mxu0
      %853 = vmatprep.mubr.bf16.mxu0 %v654
      %854 = vmatmul.mubr.bf16.gmra.mrb[0].mxu0 %v486
      %v855 = vpop.f32.mrb[0].mxu0
      %v856 = vadd.f32 %v266, %v855
      %v857 = vpop.f32.mrb[0].mxu0
      %v858 = vpop.f32.mrb[0].mxu0
      %v859 = vadd.f32 %v266, %v858
      %v860 = vpop.f32.mrb[0].mxu0
      %861 = vmatprep.mubr.bf16.mxu0 %v657
      %862 = vmatmul.mubr.bf16.gmra.mrb[0].mxu0 %v488
      %v863 = vpop.f32.mrb[0].mxu0
      %v864 = vadd.f32 %v266, %v863
      %v865 = vpop.f32.mrb[0].mxu0
      %v866 = vpop.f32.mrb[0].mxu0
      %v867 = vadd.f32 %v266, %v866
      %v868 = vpop.f32.mrb[0].mxu0
      %869 = vmatprep.mubr.bf16.mxu0 %v660
      %870 = vmatmul.mubr.bf16.gmra.mrb[0].mxu0 %v490
      %v871 = vpop.f32.mrb[0].mxu0
      %v872 = vadd.f32 %v266, %v871
      %v873 = vpop.f32.mrb[0].mxu0
      %v874 = vpop.f32.mrb[0].mxu0
      %v875 = vadd.f32 %v266, %v874
      %v876 = vpop.f32.mrb[0].mxu0
      %877 = vmatprep.mubr.bf16.mxu0 %v663
      %878 = vmatmul.mubr.bf16.gmra.mrb[0].mxu0 %v492
      %v879 = vpop.f32.mrb[0].mxu0
      %v880 = vadd.f32 %v266, %v879
      %v881 = vpop.f32.mrb[0].mxu0
      %v882 = vpop.f32.mrb[0].mxu0
      %v883 = vadd.f32 %v266, %v882
      %v884 = vpop.f32.mrb[0].mxu0
      %885 = vmatprep.mubr.bf16.mxu0 %v666
      %886 = vmatmul.mubr.bf16.gmra.mrb[0].mxu0 %v494
      %v887 = vpop.f32.mrb[0].mxu0
      %v888 = vadd.f32 %v266, %v887
      %v889 = vpop.f32.mrb[0].mxu0
      %v890 = vpop.f32.mrb[0].mxu0
      %v891 = vadd.f32 %v266, %v890
      %v892 = vpop.f32.mrb[0].mxu0
      %893 = vmatprep.mubr.bf16.mxu0 %v669
      %894 = vmatmul.mubr.bf16.gmra.mrb[0].mxu0 %v496
      %v895 = vpop.f32.mrb[0].mxu0
      %v896 = vadd.f32 %v266, %v895
      %v897 = vpop.f32.mrb[0].mxu0
      %v898 = vpop.f32.mrb[0].mxu0
      %v899 = vadd.f32 %v266, %v898
      %v900 = vpop.f32.mrb[0].mxu0
      %901 = vmatprep.mubr.bf16.mxu0 %v672
      %902 = vmatmul.mubr.bf16.gmra.mrb[0].mxu0 %v498
      %v903 = vpop.f32.mrb[0].mxu0
      %v904 = vadd.f32 %v266, %v903
      %v905 = vpop.f32.mrb[0].mxu0
      %v906 = vpop.f32.mrb[0].mxu0
      %v907 = vadd.f32 %v266, %v906
      %v908 = vpop.f32.mrb[0].mxu0
      %909 = vmatprep.mubr.bf16.mxu0 %v675
      %910 = vmatmul.mubr.bf16.gmra.mrb[0].mxu0 %v500
      %v911 = vpop.f32.mrb[0].mxu0
      %v912 = vadd.f32 %v266, %v911
      %v913 = vpop.f32.mrb[0].mxu0
      %v914 = vpop.f32.mrb[0].mxu0
      %v915 = vadd.f32 %v266, %v914
      %v916 = vpop.f32.mrb[0].mxu0
      %917 = vmatprep.mubr.bf16.mxu0 %v678
      %918 = vmatmul.mubr.bf16.gmra.mrb[0].mxu0 %v502
      %v919 = vpop.f32.mrb[0].mxu0
      %v920 = vadd.f32 %v266, %v919
      %v921 = vpop.f32.mrb[0].mxu0
      %v922 = vpop.f32.mrb[0].mxu0
      %v923 = vadd.f32 %v266, %v922
      %v924 = vpop.f32.mrb[0].mxu0
      %925 = vmatprep.mubr.bf16.mxu0 %v681
      %926 = vmatmul.mubr.bf16.gmra.mrb[0].mxu0 %v504
      %v927 = vpop.f32.mrb[0].mxu0
      %v928 = vadd.f32 %v266, %v927
      %v929 = vpop.f32.mrb[0].mxu0
      %v930 = vpop.f32.mrb[0].mxu0
      %v931 = vadd.f32 %v266, %v930
      %v932 = vpop.f32.mrb[0].mxu0
      %933 = vmatprep.mubr.bf16.mxu0 %v684
      %934 = vmatmul.mubr.bf16.gmra.mrb[0].mxu0 %v506
      %v935 = vpop.f32.mrb[0].mxu0
      %v936 = vadd.f32 %v266, %v935
      %v937 = vpop.f32.mrb[0].mxu0
      %v938 = vpop.f32.mrb[0].mxu0
      %v939 = vadd.f32 %v266, %v938
      %v940 = vpop.f32.mrb[0].mxu0
      %941 = vmatprep.mubr.bf16.mxu0 %v687
      %942 = vmatmul.mubr.bf16.gmra.mrb[0].mxu0 %v508
      %v943 = vpop.f32.mrb[0].mxu0
      %v944 = vadd.f32 %v266, %v943
      %v945 = vpop.f32.mrb[0].mxu0
      %v946 = vpop.f32.mrb[0].mxu0
      %v947 = vadd.f32 %v266, %v946
      %v948 = vpop.f32.mrb[0].mxu0
      %949 = vmatprep.mubr.bf16.mxu0 %v690
      %950 = vmatmul.mubr.bf16.gmra.mrb[0].mxu0 %v510
      %v951 = vpop.f32.mrb[0].mxu0
      %v952 = vadd.f32 %v266, %v951
      %v953 = vpop.f32.mrb[0].mxu0
      %v954 = vpop.f32.mrb[0].mxu0
      %v955 = vadd.f32 %v266, %v954
      %v956 = vpop.f32.mrb[0].mxu0
      %957 = vmatprep.mubr.bf16.mxu0 %v693
      %958 = vmatmul.mubr.bf16.gmra.mrb[0].mxu0 %v512
      %v959 = vpop.f32.mrb[0].mxu0
      %v960 = vadd.f32 %v266, %v959
      %v961 = vpop.f32.mrb[0].mxu0
      %v962 = vpop.f32.mrb[0].mxu0
      %v963 = vadd.f32 %v266, %v962
      %v964 = vpop.f32.mrb[0].mxu0
      %965 = vmatprep.mubr.bf16.mxu0 %v696
      %966 = vmatmul.mubr.bf16.gmra.mrb[0].mxu0 %v514
      %v967 = vpop.f32.mrb[0].mxu0
      %v968 = vadd.f32 %v266, %v967
      %v969 = vpop.f32.mrb[0].mxu0
      %v970 = vpop.f32.mrb[0].mxu0
      %v971 = vadd.f32 %v266, %v970
      %v972 = vpop.f32.mrb[0].mxu0
      %973 = vmatprep.mubr.bf16.mxu0 %v699
      %974 = vmatmul.mubr.bf16.gmra.mrb[0].mxu0 %v516
      %v975 = vpop.f32.mrb[0].mxu0
      %v976 = vadd.f32 %v266, %v975
      %v977 = vpop.f32.mrb[0].mxu0
      %v978 = vpop.f32.mrb[0].mxu0
      %v979 = vadd.f32 %v266, %v978
      %v980 = vpop.f32.mrb[0].mxu0
      %981 = vmatprep.mubr.bf16.mxu0 %v702
      %982 = vmatmul.mubr.bf16.gmra.mrb[0].mxu0 %v518
      %v983 = vpop.f32.mrb[0].mxu0
      %v984 = vadd.f32 %v266, %v983
      %v985 = vpop.f32.mrb[0].mxu0
      %v986 = vpop.f32.mrb[0].mxu0
      %v987 = vadd.f32 %v266, %v986
      %v988 = vpop.f32.mrb[0].mxu0
      %989 = vmatprep.mubr.bf16.mxu0 %v705
      %990 = vmatmul.mubr.bf16.gmra.mrb[0].mxu0 %v520
      %v991 = vpop.f32.mrb[0].mxu0
      %v992 = vadd.f32 %v266, %v991
      %v993 = vpop.f32.mrb[0].mxu0
      %v994 = vpop.f32.mrb[0].mxu0
      %v995 = vadd.f32 %v266, %v994
      %v996 = vpop.f32.mrb[0].mxu0
      %997 = vmatprep.mubr.bf16.mxu0 %v708
      %998 = vmatmul.mubr.bf16.gmra.mrb[0].mxu0 %v522
      %v999 = vpop.f32.mrb[0].mxu0
      %v1000 = vadd.f32 %v266, %v999
      %v1001 = vpop.f32.mrb[0].mxu0
      %v1002 = vpop.f32.mrb[0].mxu0
      %v1003 = vadd.f32 %v266, %v1002
      %v1004 = vpop.f32.mrb[0].mxu0
      %1005 = vdwg.mxu0
      %v1006 = vmax.f32 %v752, 0.0
      %v1007 = vmax.f32 %v755, 0.0
      %v1008 = vmax.f32 %v760, 0.0
      %v1009 = vmax.f32 %v763, 0.0
      %v1010 = vmax.f32 %v768, 0.0
      %v1011 = vmax.f32 %v771, 0.0
      %v1012 = vmax.f32 %v776, 0.0
      %v1013 = vmax.f32 %v779, 0.0
      %v1014 = vmax.f32 %v784, 0.0
      %v1015 = vmax.f32 %v787, 0.0
      %v1016 = vmax.f32 %v792, 0.0
      %v1017 = vmax.f32 %v795, 0.0
      %v1018 = vmax.f32 %v800, 0.0
      %v1019 = vmax.f32 %v803, 0.0
      %v1020 = vmax.f32 %v808, 0.0
      %v1021 = vmax.f32 %v811, 0.0
      %v1022 = vmax.f32 %v816, 0.0
      %v1023 = vmax.f32 %v819, 0.0
      %v1024 = vmax.f32 %v824, 0.0
      %v1025 = vmax.f32 %v827, 0.0
      %v1026 = vmax.f32 %v832, 0.0
      %v1027 = vmax.f32 %v835, 0.0
      %v1028 = vmax.f32 %v840, 0.0
      %v1029 = vmax.f32 %v843, 0.0
      %v1030 = vmax.f32 %v848, 0.0
      %v1031 = vmax.f32 %v851, 0.0
      %v1032 = vmax.f32 %v856, 0.0
      %v1033 = vmax.f32 %v859, 0.0
      %v1034 = vmax.f32 %v864, 0.0
      %v1035 = vmax.f32 %v867, 0.0
      %v1036 = vmax.f32 %v872, 0.0
      %v1037 = vmax.f32 %v875, 0.0
      %v1038 = vmax.f32 %v880, 0.0
      %v1039 = vmax.f32 %v883, 0.0
      %v1040 = vmax.f32 %v888, 0.0
      %v1041 = vmax.f32 %v891, 0.0
      %v1042 = vmax.f32 %v896, 0.0
      %v1043 = vmax.f32 %v899, 0.0
      %v1044 = vmax.f32 %v904, 0.0
      %v1045 = vmax.f32 %v907, 0.0
      %v1046 = vmax.f32 %v912, 0.0
      %v1047 = vmax.f32 %v915, 0.0
      %v1048 = vmax.f32 %v920, 0.0
      %v1049 = vmax.f32 %v923, 0.0
      %v1050 = vmax.f32 %v928, 0.0
      %v1051 = vmax.f32 %v931, 0.0
      %v1052 = vmax.f32 %v936, 0.0
      %v1053 = vmax.f32 %v939, 0.0
      %v1054 = vmax.f32 %v944, 0.0
      %v1055 = vmax.f32 %v947, 0.0
      %v1056 = vmax.f32 %v952, 0.0
      %v1057 = vmax.f32 %v955, 0.0
      %v1058 = vmax.f32 %v960, 0.0
      %v1059 = vmax.f32 %v963, 0.0
      %v1060 = vmax.f32 %v968, 0.0
      %v1061 = vmax.f32 %v971, 0.0
      %v1062 = vmax.f32 %v976, 0.0
      %v1063 = vmax.f32 %v979, 0.0
      %v1064 = vmax.f32 %v984, 0.0
      %v1065 = vmax.f32 %v987, 0.0
      %v1066 = vmax.f32 %v992, 0.0
      %v1067 = vmax.f32 %v995, 0.0
      %v1068 = vmax.f32 %v1000, 0.0
      %v1069 = vmax.f32 %v1003, 0.0
      %vm1070 = vcmask 130048
      %1071 = vst.msk [vmem:[%s175] sm:$0xff] %vm1070, %v1006
      %1072 = vst.msk [vmem:[%s175 + $0x8] sm:$0xff] %vm1070, %v1007
      %1073 = vst.msk [vmem:[%s175 + $0x10] sm:$0xff] %vm1070, %v1008
      %1074 = vst.msk [vmem:[%s175 + $0x18] sm:$0xff] %vm1070, %v1009
      %1075 = vst.msk [vmem:[%s175 + $0x20] sm:$0xff] %vm1070, %v1010
      %1076 = vst.msk [vmem:[%s175 + $0x28] sm:$0xff] %vm1070, %v1011
      %1077 = vst.msk [vmem:[%s175 + $0x30] sm:$0xff] %vm1070, %v1012
      %1078 = vst.msk [vmem:[%s175 + $0x38] sm:$0xff] %vm1070, %v1013
      %1079 = vst.msk [vmem:[%s175 + $0x40] sm:$0xff] %vm1070, %v1014
      %1080 = vst.msk [vmem:[%s175 + $0x48] sm:$0xff] %vm1070, %v1015
      %1081 = vst.msk [vmem:[%s175 + $0x50] sm:$0xff] %vm1070, %v1016
      %1082 = vst.msk [vmem:[%s175 + $0x58] sm:$0xff] %vm1070, %v1017
      %1083 = vst.msk [vmem:[%s175 + $0x60] sm:$0xff] %vm1070, %v1018
      %1084 = vst.msk [vmem:[%s175 + $0x68] sm:$0xff] %vm1070, %v1019
      %1085 = vst.msk [vmem:[%s175 + $0x70] sm:$0xff] %vm1070, %v1020
      %1086 = vst.msk [vmem:[%s175 + $0x78] sm:$0xff] %vm1070, %v1021
      %1087 = vst.msk [vmem:[%s175 + $0x80] sm:$0xff] %vm1070, %v1022
      %1088 = vst.msk [vmem:[%s175 + $0x88] sm:$0xff] %vm1070, %v1023
      %1089 = vst.msk [vmem:[%s175 + $0x90] sm:$0xff] %vm1070, %v1024
      %1090 = vst.msk [vmem:[%s175 + $0x98] sm:$0xff] %vm1070, %v1025
      %1091 = vst.msk [vmem:[%s175 + $0xa0] sm:$0xff] %vm1070, %v1026
      %1092 = vst.msk [vmem:[%s175 + $0xa8] sm:$0xff] %vm1070, %v1027
      %1093 = vst.msk [vmem:[%s175 + $0xb0] sm:$0xff] %vm1070, %v1028
      %1094 = vst.msk [vmem:[%s175 + $0xb8] sm:$0xff] %vm1070, %v1029
      %1095 = vst.msk [vmem:[%s175 + $0xc0] sm:$0xff] %vm1070, %v1030
      %1096 = vst.msk [vmem:[%s175 + $0xc8] sm:$0xff] %vm1070, %v1031
      %1097 = vst.msk [vmem:[%s175 + $0xd0] sm:$0xff] %vm1070, %v1032
      %1098 = vst.msk [vmem:[%s175 + $0xd8] sm:$0xff] %vm1070, %v1033
      %1099 = vst.msk [vmem:[%s175 + $0xe0] sm:$0xff] %vm1070, %v1034
      %1100 = vst.msk [vmem:[%s175 + $0xe8] sm:$0xff] %vm1070, %v1035
      %1101 = vst.msk [vmem:[%s175 + $0xf0] sm:$0xff] %vm1070, %v1036
      %1102 = vst.msk [vmem:[%s175 + $0xf8] sm:$0xff] %vm1070, %v1037
      %1103 = vst.msk [vmem:[%s175 + $0x100] sm:$0xff] %vm1070, %v1038
      %1104 = vst.msk [vmem:[%s175 + $0x108] sm:$0xff] %vm1070, %v1039
      %1105 = vst.msk [vmem:[%s175 + $0x110] sm:$0xff] %vm1070, %v1040
      %1106 = vst.msk [vmem:[%s175 + $0x118] sm:$0xff] %vm1070, %v1041
      %1107 = vst.msk [vmem:[%s175 + $0x120] sm:$0xff] %vm1070, %v1042
      %1108 = vst.msk [vmem:[%s175 + $0x128] sm:$0xff] %vm1070, %v1043
      %1109 = vst.msk [vmem:[%s175 + $0x130] sm:$0xff] %vm1070, %v1044
      %1110 = vst.msk [vmem:[%s175 + $0x138] sm:$0xff] %vm1070, %v1045
      %1111 = vst.msk [vmem:[%s175 + $0x140] sm:$0xff] %vm1070, %v1046
      %1112 = vst.msk [vmem:[%s175 + $0x148] sm:$0xff] %vm1070, %v1047
      %1113 = vst.msk [vmem:[%s175 + $0x150] sm:$0xff] %vm1070, %v1048
      %1114 = vst.msk [vmem:[%s175 + $0x158] sm:$0xff] %vm1070, %v1049
      %1115 = vst.msk [vmem:[%s175 + $0x160] sm:$0xff] %vm1070, %v1050
      %1116 = vst.msk [vmem:[%s175 + $0x168] sm:$0xff] %vm1070, %v1051
      %1117 = vst.msk [vmem:[%s175 + $0x170] sm:$0xff] %vm1070, %v1052
      %1118 = vst.msk [vmem:[%s175 + $0x178] sm:$0xff] %vm1070, %v1053
      %1119 = vst.msk [vmem:[%s175 + $0x180] sm:$0xff] %vm1070, %v1054
      %1120 = vst.msk [vmem:[%s175 + $0x188] sm:$0xff] %vm1070, %v1055
      %1121 = vst.msk [vmem:[%s175 + $0x190] sm:$0xff] %vm1070, %v1056
      %1122 = vst.msk [vmem:[%s175 + $0x198] sm:$0xff] %vm1070, %v1057
      %1123 = vst.msk [vmem:[%s175 + $0x1a0] sm:$0xff] %vm1070, %v1058
      %1124 = vst.msk [vmem:[%s175 + $0x1a8] sm:$0xff] %vm1070, %v1059
      %1125 = vst.msk [vmem:[%s175 + $0x1b0] sm:$0xff] %vm1070, %v1060
      %1126 = vst.msk [vmem:[%s175 + $0x1b8] sm:$0xff] %vm1070, %v1061
      %1127 = vst.msk [vmem:[%s175 + $0x1c0] sm:$0xff] %vm1070, %v1062
      %1128 = vst.msk [vmem:[%s175 + $0x1c8] sm:$0xff] %vm1070, %v1063
      %1129 = vst.msk [vmem:[%s175 + $0x1d0] sm:$0xff] %vm1070, %v1064
      %1130 = vst.msk [vmem:[%s175 + $0x1d8] sm:$0xff] %vm1070, %v1065
      %1131 = vst.msk [vmem:[%s175 + $0x1e0] sm:$0xff] %vm1070, %v1066
      %1132 = vst.msk [vmem:[%s175 + $0x1e8] sm:$0xff] %vm1070, %v1067
      %1133 = vst.msk [vmem:[%s175 + $0x1f0] sm:$0xff] %vm1070, %v1068
      %1134 = vst.msk [vmem:[%s175 + $0x1f8] sm:$0xff] %vm1070, %v1069
      %s1135 = smul.u32 64, %s14
      %p1136 = scmp.lt.s32.totalorder %s1135, 255
      %s1137 = scalar_select %p1136, %s1135, 255
      %s1138 = smul.addr %s1137, 8
      %s1139 = scalar_lea.vmem %s3, %s1138
      // Predicated region
      $region33: #{_lambda_.22} parent=31 // pred_check
        %p1140 = pneg %p100
      $region34: #{_lambda_.22} parent=31 // pred_check_branch
        %1142 = sbr.rel (%p1140) target = $region36
      $region35: #{_lambda_.22} parent=31 // pred_region
        %s1143 = smul.u32 64, %s14
      $region36: #{_lambda_.22} parent=31 // pred_fallthru
        _
    $region32: #{_lambda_.22} parent=5 // pred_fallthru
      _
    %p1144 = scmp.le.s32.totalorder 2, %s9
    // Predicated region
    $region37: #{_lambda_.22} parent=5 // pred_check
      %p1145 = pneg %p1144
    $region38: #{_lambda_.22} parent=5 // pred_check_branch
      %1147 = sbr.rel (%p1145) target = $region40
    $region39: #{_lambda_.22} parent=5 // pred_region
      %s1148 = ssub.s32 %s9, 2
      // Predicated region
      $region41: #{_lambda_.22} parent=39 // pred_check
        %p1149 = pneg %p106
      $region42: #{_lambda_.22} parent=39 // pred_check_branch
        %1151 = sbr.rel (%p1149) target = $region44
      $region43: #{_lambda_.22} parent=39 // pred_region
        %s1152 = smul.u32 64, %s15
        %p1153 = scmp.lt.s32.totalorder %s1152, 255
        %s1154 = scalar_select %p1153, %s1152, 255
        %s1155 = smul.addr %s1154, 8
        %s1156 = scalar_lea.vmem %s3, %s1155
      $region44: #{_lambda_.22} parent=39 // pred_fallthru
        _
    $region40: #{_lambda_.22} parent=5 // pred_fallthru
      _
  $region6: #{_lambda_.22} parent=0 // loop_footer
    %s13 = sadd.s32 1, %s9
  $region7: #{_lambda_.22} parent=0 // loop_footer_branch
    %8 = sbr.rel target = $region3
  $region8: #{_lambda_.22} parent=0 // loop_exit
    _

// kernel: _lambda_.23
$region0: #{_lambda_.23}
  #allocation0 [shape = 'u32[]', space=smem, size = 0x4, offset = 0x4, fixed_abs, tag = 'smem constant byte address 0x4 - core index']
  #allocation1 [shape = 'u32[144,128]{1,0:T(1,128)}', space=vmem, size = 0x12000, scoped, tag = 'internal scratch']
  %s0 = inlined_call_operand.vmem [shape: f32[512,16], index: 0, kind: input, shape index: {}]
  %s1 = inlined_call_operand.vmem [shape: f32[512,16], index: 1, kind: input, shape index: {}]
  %s2 = inlined_call_operand.vmem [shape: f32[512,16], index: 2, kind: input, shape index: {}]
  %s3 = inlined_call_operand.vmem [shape: f32[512,16], index: 3, kind: input, shape index: {}]
  %s4 = inlined_call_operand.vmem [shape: f32[512,16], index: 4, kind: input, shape index: {}]
  %s5 = inlined_call_operand.vmem [shape: f32[512,16], index: 5, kind: input, shape index: {}]
  %s6 = inlined_call_operand.vmem [shape: f32[512,16], index: 6, kind: input, shape index: {}]
  %s7 = inlined_call_operand.vmem [shape: f32[512,16], index: 7, kind: input, shape index: {}]
  %s8 = inlined_call_operand.vmem [shape: f32[512,16], index: 8, kind: input, shape index: {}]
  %s9 = inlined_call_operand.vmem [shape: f32[512,16], index: 9, kind: output, shape index: {}]
  %s10 = sld [smem:[#allocation0]]
  $region46: #{_lambda_.23} parent=0
    _
  %s12 = ssub.s32 1, %s10
  %s13 = scalar_select 0, %s12, %s10
  // Predicated region
  $region2: #{_lambda_.23} parent=0 // pred_check
    _
  $region3: #{_lambda_.23} parent=0 // pred_check_branch
    %15 = sbr.rel (0) target = $region5
  $region4: #{_lambda_.23} parent=0 // pred_region
    _
  $region5: #{_lambda_.23} parent=0 // pred_fallthru
    _
  // Predicated region
  $region6: #{_lambda_.23} parent=0 // pred_check
    _
  $region7: #{_lambda_.23} parent=0 // pred_check_branch
    %17 = sbr.rel (0) target = $region9
  $region8: #{_lambda_.23} parent=0 // pred_region
    _
  $region9: #{_lambda_.23} parent=0 // pred_fallthru
    _
  // Predicated region
  $region10: #{_lambda_.23} parent=0 // pred_check
    _
  $region11: #{_lambda_.23} parent=0 // pred_check_branch
    %19 = sbr.rel (0) target = $region13
  $region12: #{_lambda_.23} parent=0 // pred_region
    _
  $region13: #{_lambda_.23} parent=0 // pred_fallthru
    _
  // Predicated region
  $region14: #{_lambda_.23} parent=0 // pred_check
    _
  $region15: #{_lambda_.23} parent=0 // pred_check_branch
    %21 = sbr.rel (0) target = $region17
  $region16: #{_lambda_.23} parent=0 // pred_region
    _
  $region17: #{_lambda_.23} parent=0 // pred_fallthru
    _
  // Predicated region
  $region18: #{_lambda_.23} parent=0 // pred_check
    _
  $region19: #{_lambda_.23} parent=0 // pred_check_branch
    %23 = sbr.rel (0) target = $region21
  $region20: #{_lambda_.23} parent=0 // pred_region
    _
  $region21: #{_lambda_.23} parent=0 // pred_fallthru
    _
  // Predicated region
  $region22: #{_lambda_.23} parent=0 // pred_check
    _
  $region23: #{_lambda_.23} parent=0 // pred_check_branch
    %25 = sbr.rel (0) target = $region25
  $region24: #{_lambda_.23} parent=0 // pred_region
    _
  $region25: #{_lambda_.23} parent=0 // pred_fallthru
    _
  // Predicated region
  $region26: #{_lambda_.23} parent=0 // pred_check
    _
  $region27: #{_lambda_.23} parent=0 // pred_check_branch
    %27 = sbr.rel (0) target = $region29
  $region28: #{_lambda_.23} parent=0 // pred_region
    _
  $region29: #{_lambda_.23} parent=0 // pred_fallthru
    _
  // Predicated region
  $region30: #{_lambda_.23} parent=0 // pred_check
    _
  $region31: #{_lambda_.23} parent=0 // pred_check_branch
    %29 = sbr.rel (0) target = $region33
  $region32: #{_lambda_.23} parent=0 // pred_region
    _
  $region33: #{_lambda_.23} parent=0 // pred_fallthru
    _
  // Predicated region
  $region34: #{_lambda_.23} parent=0 // pred_check
    _
  $region35: #{_lambda_.23} parent=0 // pred_check_branch
    %31 = sbr.rel (0) target = $region37
  $region36: #{_lambda_.23} parent=0 // pred_region
    _
  $region37: #{_lambda_.23} parent=0 // pred_fallthru
    _
  %v32 = vld [vmem:[%s0] sm:$0xff]
  %v33 = vld [vmem:[%s0 + $0x8] sm:$0xff]
  %v34 = vld [vmem:[%s0 + $0x10] sm:$0xff]
  %v35 = vld [vmem:[%s0 + $0x18] sm:$0xff]
  %v36 = vld [vmem:[%s0 + $0x20] sm:$0xff]
  %v37 = vld [vmem:[%s0 + $0x28] sm:$0xff]
  %v38 = vld [vmem:[%s0 + $0x30] sm:$0xff]
  %v39 = vld [vmem:[%s0 + $0x38] sm:$0xff]
  %v40 = vld [vmem:[%s0 + $0x40] sm:$0xff]
  %v41 = vld [vmem:[%s0 + $0x48] sm:$0xff]
  %v42 = vld [vmem:[%s0 + $0x50] sm:$0xff]
  %v43 = vld [vmem:[%s0 + $0x58] sm:$0xff]
  %v44 = vld [vmem:[%s0 + $0x60] sm:$0xff]
  %v45 = vld [vmem:[%s0 + $0x68] sm:$0xff]
  %v46 = vld [vmem:[%s0 + $0x70] sm:$0xff]
  %v47 = vld [vmem:[%s0 + $0x78] sm:$0xff]
  %v48 = vld [vmem:[%s0 + $0x80] sm:$0xff]
  %v49 = vld [vmem:[%s0 + $0x88] sm:$0xff]
  %v50 = vld [vmem:[%s0 + $0x90] sm:$0xff]
  %v51 = vld [vmem:[%s0 + $0x98] sm:$0xff]
  %v52 = vld [vmem:[%s0 + $0xa0] sm:$0xff]
  %v53 = vld [vmem:[%s0 + $0xa8] sm:$0xff]
  %v54 = vld [vmem:[%s0 + $0xb0] sm:$0xff]
  %v55 = vld [vmem:[%s0 + $0xb8] sm:$0xff]
  %v56 = vld [vmem:[%s0 + $0xc0] sm:$0xff]
  %v57 = vld [vmem:[%s0 + $0xc8] sm:$0xff]
  %v58 = vld [vmem:[%s0 + $0xd0] sm:$0xff]
  %v59 = vld [vmem:[%s0 + $0xd8] sm:$0xff]
  %v60 = vld [vmem:[%s0 + $0xe0] sm:$0xff]
  %v61 = vld [vmem:[%s0 + $0xe8] sm:$0xff]
  %v62 = vld [vmem:[%s0 + $0xf0] sm:$0xff]
  %v63 = vld [vmem:[%s0 + $0xf8] sm:$0xff]
  %v64 = vld [vmem:[%s0 + $0x100] sm:$0xff]
  %v65 = vld [vmem:[%s0 + $0x108] sm:$0xff]
  %v66 = vld [vmem:[%s0 + $0x110] sm:$0xff]
  %v67 = vld [vmem:[%s0 + $0x118] sm:$0xff]
  %v68 = vld [vmem:[%s0 + $0x120] sm:$0xff]
  %v69 = vld [vmem:[%s0 + $0x128] sm:$0xff]
  %v70 = vld [vmem:[%s0 + $0x130] sm:$0xff]
  %v71 = vld [vmem:[%s0 + $0x138] sm:$0xff]
  %v72 = vld [vmem:[%s0 + $0x140] sm:$0xff]
  %v73 = vld [vmem:[%s0 + $0x148] sm:$0xff]
  %v74 = vld [vmem:[%s0 + $0x150] sm:$0xff]
  %v75 = vld [vmem:[%s0 + $0x158] sm:$0xff]
  %v76 = vld [vmem:[%s0 + $0x160] sm:$0xff]
  %v77 = vld [vmem:[%s0 + $0x168] sm:$0xff]
  %v78 = vld [vmem:[%s0 + $0x170] sm:$0xff]
  %v79 = vld [vmem:[%s0 + $0x178] sm:$0xff]
  %v80 = vld [vmem:[%s0 + $0x180] sm:$0xff]
  %v81 = vld [vmem:[%s0 + $0x188] sm:$0xff]
  %v82 = vld [vmem:[%s0 + $0x190] sm:$0xff]
  %v83 = vld [vmem:[%s0 + $0x198] sm:$0xff]
  %v84 = vld [vmem:[%s0 + $0x1a0] sm:$0xff]
  %v85 = vld [vmem:[%s0 + $0x1a8] sm:$0xff]
  %v86 = vld [vmem:[%s0 + $0x1b0] sm:$0xff]
  %v87 = vld [vmem:[%s0 + $0x1b8] sm:$0xff]
  %v88 = vld [vmem:[%s0 + $0x1c0] sm:$0xff]
  %v89 = vld [vmem:[%s0 + $0x1c8] sm:$0xff]
  %v90 = vld [vmem:[%s0 + $0x1d0] sm:$0xff]
  %v91 = vld [vmem:[%s0 + $0x1d8] sm:$0xff]
  %v92 = vld [vmem:[%s0 + $0x1e0] sm:$0xff]
  %v93 = vld [vmem:[%s0 + $0x1e8] sm:$0xff]
  %v94 = vld [vmem:[%s0 + $0x1f0] sm:$0xff]
  %v95 = vld [vmem:[%s0 + $0x1f8] sm:$0xff]
  %v96 = vld [vmem:[%s1] sm:$0xff]
  %v97 = vld [vmem:[%s1 + $0x8] sm:$0xff]
  %v98 = vld [vmem:[%s1 + $0x10] sm:$0xff]
  %v99 = vld [vmem:[%s1 + $0x18] sm:$0xff]
  %v100 = vld [vmem:[%s1 + $0x20] sm:$0xff]
  %v101 = vld [vmem:[%s1 + $0x28] sm:$0xff]
  %v102 = vld [vmem:[%s1 + $0x30] sm:$0xff]
  %v103 = vld [vmem:[%s1 + $0x38] sm:$0xff]
  %v104 = vld [vmem:[%s1 + $0x40] sm:$0xff]
  %v105 = vld [vmem:[%s1 + $0x48] sm:$0xff]
  %v106 = vld [vmem:[%s1 + $0x50] sm:$0xff]
  %v107 = vld [vmem:[%s1 + $0x58] sm:$0xff]
  %v108 = vld [vmem:[%s1 + $0x60] sm:$0xff]
  %v109 = vld [vmem:[%s1 + $0x68] sm:$0xff]
  %v110 = vld [vmem:[%s1 + $0x70] sm:$0xff]
  %v111 = vld [vmem:[%s1 + $0x78] sm:$0xff]
  %v112 = vld [vmem:[%s1 + $0x80] sm:$0xff]
  %v113 = vld [vmem:[%s1 + $0x88] sm:$0xff]
  %v114 = vld [vmem:[%s1 + $0x90] sm:$0xff]
  %v115 = vld [vmem:[%s1 + $0x98] sm:$0xff]
  %v116 = vld [vmem:[%s1 + $0xa0] sm:$0xff]
  %v117 = vld [vmem:[%s1 + $0xa8] sm:$0xff]
  %v118 = vld [vmem:[%s1 + $0xb0] sm:$0xff]
  %v119 = vld [vmem:[%s1 + $0xb8] sm:$0xff]
  %v120 = vld [vmem:[%s1 + $0xc0] sm:$0xff]
  %v121 = vld [vmem:[%s1 + $0xc8] sm:$0xff]
  %v122 = vld [vmem:[%s1 + $0xd0] sm:$0xff]
  %v123 = vld [vmem:[%s1 + $0xd8] sm:$0xff]
  %v124 = vld [vmem:[%s1 + $0xe0] sm:$0xff]
  %v125 = vld [vmem:[%s1 + $0xe8] sm:$0xff]
  %v126 = vld [vmem:[%s1 + $0xf0] sm:$0xff]
  %v127 = vld [vmem:[%s1 + $0xf8] sm:$0xff]
  %v128 = vld [vmem:[%s1 + $0x100] sm:$0xff]
  %v129 = vld [vmem:[%s1 + $0x108] sm:$0xff]
  %v130 = vld [vmem:[%s1 + $0x110] sm:$0xff]
  %v131 = vld [vmem:[%s1 + $0x118] sm:$0xff]
  %v132 = vld [vmem:[%s1 + $0x120] sm:$0xff]
  %v133 = vld [vmem:[%s1 + $0x128] sm:$0xff]
  %v134 = vld [vmem:[%s1 + $0x130] sm:$0xff]
  %v135 = vld [vmem:[%s1 + $0x138] sm:$0xff]
  %v136 = vld [vmem:[%s1 + $0x140] sm:$0xff]
  %v137 = vld [vmem:[%s1 + $0x148] sm:$0xff]
  %v138 = vld [vmem:[%s1 + $0x150] sm:$0xff]
  %v139 = vld [vmem:[%s1 + $0x158] sm:$0xff]
  %v140 = vld [vmem:[%s1 + $0x160] sm:$0xff]
  %v141 = vld [vmem:[%s1 + $0x168] sm:$0xff]
  %v142 = vld [vmem:[%s1 + $0x170] sm:$0xff]
  %v143 = vld [vmem:[%s1 + $0x178] sm:$0xff]
  %v144 = vld [vmem:[%s1 + $0x180] sm:$0xff]
  %v145 = vld [vmem:[%s1 + $0x188] sm:$0xff]
  %v146 = vld [vmem:[%s1 + $0x190] sm:$0xff]
  %v147 = vld [vmem:[%s1 + $0x198] sm:$0xff]
  %v148 = vld [vmem:[%s1 + $0x1a0] sm:$0xff]
  %v149 = vld [vmem:[%s1 + $0x1a8] sm:$0xff]
  %v150 = vld [vmem:[%s1 + $0x1b0] sm:$0xff]
  %v151 = vld [vmem:[%s1 + $0x1b8] sm:$0xff]
  %v152 = vld [vmem:[%s1 + $0x1c0] sm:$0xff]
  %v153 = vld [vmem:[%s1 + $0x1c8] sm:$0xff]
  %v154 = vld [vmem:[%s1 + $0x1d0] sm:$0xff]
  %v155 = vld [vmem:[%s1 + $0x1d8] sm:$0xff]
  %v156 = vld [vmem:[%s1 + $0x1e0] sm:$0xff]
  %v157 = vld [vmem:[%s1 + $0x1e8] sm:$0xff]
  %v158 = vld [vmem:[%s1 + $0x1f0] sm:$0xff]
  %v159 = vld [vmem:[%s1 + $0x1f8] sm:$0xff]
  %v160 = vmax.f32 %v32, %v96
  %v161 = vmax.f32 %v33, %v97
  %v162 = vmax.f32 %v34, %v98
  %v163 = vmax.f32 %v35, %v99
  %v164 = vmax.f32 %v36, %v100
  %v165 = vmax.f32 %v37, %v101
  %v166 = vmax.f32 %v38, %v102
  %v167 = vmax.f32 %v39, %v103
  %v168 = vmax.f32 %v40, %v104
  %v169 = vmax.f32 %v41, %v105
  %v170 = vmax.f32 %v42, %v106
  %v171 = vmax.f32 %v43, %v107
  %v172 = vmax.f32 %v44, %v108
  %v173 = vmax.f32 %v45, %v109
  %v174 = vmax.f32 %v46, %v110
  %v175 = vmax.f32 %v47, %v111
  %v176 = vmax.f32 %v48, %v112
  %v177 = vmax.f32 %v49, %v113
  %v178 = vmax.f32 %v50, %v114
  %v179 = vmax.f32 %v51, %v115
  %v180 = vmax.f32 %v52, %v116
  %v181 = vmax.f32 %v53, %v117
  %v182 = vmax.f32 %v54, %v118
  %v183 = vmax.f32 %v55, %v119
  %v184 = vmax.f32 %v56, %v120
  %v185 = vmax.f32 %v57, %v121
  %v186 = vmax.f32 %v58, %v122
  %v187 = vmax.f32 %v59, %v123
  %v188 = vmax.f32 %v60, %v124
  %v189 = vmax.f32 %v61, %v125
  %v190 = vmax.f32 %v62, %v126
  %v191 = vmax.f32 %v63, %v127
  %v192 = vmax.f32 %v64, %v128
  %v193 = vmax.f32 %v65, %v129
  %v194 = vmax.f32 %v66, %v130
  %v195 = vmax.f32 %v67, %v131
  %v196 = vmax.f32 %v68, %v132
  %v197 = vmax.f32 %v69, %v133
  %v198 = vmax.f32 %v70, %v134
  %v199 = vmax.f32 %v71, %v135
  %v200 = vmax.f32 %v72, %v136
  %v201 = vmax.f32 %v73, %v137
  %v202 = vmax.f32 %v74, %v138
  %v203 = vmax.f32 %v75, %v139
  %v204 = vmax.f32 %v76, %v140
  %v205 = vmax.f32 %v77, %v141
  %v206 = vmax.f32 %v78, %v142
  %v207 = vmax.f32 %v79, %v143
  %v208 = vmax.f32 %v80, %v144
  %v209 = vmax.f32 %v81, %v145
  %v210 = vmax.f32 %v82, %v146
  %v211 = vmax.f32 %v83, %v147
  %v212 = vmax.f32 %v84, %v148
  %v213 = vmax.f32 %v85, %v149
  %v214 = vmax.f32 %v86, %v150
  %v215 = vmax.f32 %v87, %v151
  %v216 = vmax.f32 %v88, %v152
  %v217 = vmax.f32 %v89, %v153
  %v218 = vmax.f32 %v90, %v154
  %v219 = vmax.f32 %v91, %v155
  %v220 = vmax.f32 %v92, %v156
  %v221 = vmax.f32 %v93, %v157
  %v222 = vmax.f32 %v94, %v158
  %v223 = vmax.f32 %v95, %v159
  %v224 = vld [vmem:[%s2] sm:$0xff]
  %v225 = vld [vmem:[%s2 + $0x8] sm:$0xff]
  %v226 = vld [vmem:[%s2 + $0x10] sm:$0xff]
  %v227 = vld [vmem:[%s2 + $0x18] sm:$0xff]
  %v228 = vld [vmem:[%s2 + $0x20] sm:$0xff]
  %v229 = vld [vmem:[%s2 + $0x28] sm:$0xff]
  %v230 = vld [vmem:[%s2 + $0x30] sm:$0xff]
  %v231 = vld [vmem:[%s2 + $0x38] sm:$0xff]
  %v232 = vld [vmem:[%s2 + $0x40] sm:$0xff]
  %v233 = vld [vmem:[%s2 + $0x48] sm:$0xff]
  %v234 = vld [vmem:[%s2 + $0x50] sm:$0xff]
  %v235 = vld [vmem:[%s2 + $0x58] sm:$0xff]
  %v236 = vld [vmem:[%s2 + $0x60] sm:$0xff]
  %v237 = vld [vmem:[%s2 + $0x68] sm:$0xff]
  %v238 = vld [vmem:[%s2 + $0x70] sm:$0xff]
  %v239 = vld [vmem:[%s2 + $0x78] sm:$0xff]
  %v240 = vld [vmem:[%s2 + $0x80] sm:$0xff]
  %v241 = vld [vmem:[%s2 + $0x88] sm:$0xff]
  %v242 = vld [vmem:[%s2 + $0x90] sm:$0xff]
  %v243 = vld [vmem:[%s2 + $0x98] sm:$0xff]
  %v244 = vld [vmem:[%s2 + $0xa0] sm:$0xff]
  %v245 = vld [vmem:[%s2 + $0xa8] sm:$0xff]
  %v246 = vld [vmem:[%s2 + $0xb0] sm:$0xff]
  %v247 = vld [vmem:[%s2 + $0xb8] sm:$0xff]
  %v248 = vld [vmem:[%s2 + $0xc0] sm:$0xff]
  %v249 = vld [vmem:[%s2 + $0xc8] sm:$0xff]
  %v250 = vld [vmem:[%s2 + $0xd0] sm:$0xff]
  %v251 = vld [vmem:[%s2 + $0xd8] sm:$0xff]
  %v252 = vld [vmem:[%s2 + $0xe0] sm:$0xff]
  %v253 = vld [vmem:[%s2 + $0xe8] sm:$0xff]
  %v254 = vld [vmem:[%s2 + $0xf0] sm:$0xff]
  %v255 = vld [vmem:[%s2 + $0xf8] sm:$0xff]
  %v256 = vld [vmem:[%s2 + $0x100] sm:$0xff]
  %v257 = vld [vmem:[%s2 + $0x108] sm:$0xff]
  %v258 = vld [vmem:[%s2 + $0x110] sm:$0xff]
  %v259 = vld [vmem:[%s2 + $0x118] sm:$0xff]
  %v260 = vld [vmem:[%s2 + $0x120] sm:$0xff]
  %v261 = vld [vmem:[%s2 + $0x128] sm:$0xff]
  %v262 = vld [vmem:[%s2 + $0x130] sm:$0xff]
  %v263 = vld [vmem:[%s2 + $0x138] sm:$0xff]
  %v264 = vld [vmem:[%s2 + $0x140] sm:$0xff]
  %v265 = vld [vmem:[%s2 + $0x148] sm:$0xff]
  %v266 = vld [vmem:[%s2 + $0x150] sm:$0xff]
  %v267 = vld [vmem:[%s2 + $0x158] sm:$0xff]
  %v268 = vld [vmem:[%s2 + $0x160] sm:$0xff]
  %v269 = vld [vmem:[%s2 + $0x168] sm:$0xff]
  %v270 = vld [vmem:[%s2 + $0x170] sm:$0xff]
  %v271 = vld [vmem:[%s2 + $0x178] sm:$0xff]
  %v272 = vld [vmem:[%s2 + $0x180] sm:$0xff]
  %v273 = vld [vmem:[%s2 + $0x188] sm:$0xff]
  %v274 = vld [vmem:[%s2 + $0x190] sm:$0xff]
  %v275 = vld [vmem:[%s2 + $0x198] sm:$0xff]
  %v276 = vld [vmem:[%s2 + $0x1a0] sm:$0xff]
  %v277 = vld [vmem:[%s2 + $0x1a8] sm:$0xff]
  %v278 = vld [vmem:[%s2 + $0x1b0] sm:$0xff]
  %v279 = vld [vmem:[%s2 + $0x1b8] sm:$0xff]
  %v280 = vld [vmem:[%s2 + $0x1c0] sm:$0xff]
  %v281 = vld [vmem:[%s2 + $0x1c8] sm:$0xff]
  %v282 = vld [vmem:[%s2 + $0x1d0] sm:$0xff]
  %v283 = vld [vmem:[%s2 + $0x1d8] sm:$0xff]
  %v284 = vld [vmem:[%s2 + $0x1e0] sm:$0xff]
  %v285 = vld [vmem:[%s2 + $0x1e8] sm:$0xff]
  %v286 = vld [vmem:[%s2 + $0x1f0] sm:$0xff]
  %v287 = vld [vmem:[%s2 + $0x1f8] sm:$0xff]
  %v288 = vmax.f32 %v160, %v224
  %v289 = vmax.f32 %v161, %v225
  %v290 = vmax.f32 %v162, %v226
  %v291 = vmax.f32 %v163, %v227
  %v292 = vmax.f32 %v164, %v228
  %v293 = vmax.f32 %v165, %v229
  %v294 = vmax.f32 %v166, %v230
  %v295 = vmax.f32 %v167, %v231
  %v296 = vmax.f32 %v168, %v232
  %v297 = vmax.f32 %v169, %v233
  %v298 = vmax.f32 %v170, %v234
  %v299 = vmax.f32 %v171, %v235
  %v300 = vmax.f32 %v172, %v236
  %v301 = vmax.f32 %v173, %v237
  %v302 = vmax.f32 %v174, %v238
  %v303 = vmax.f32 %v175, %v239
  %v304 = vmax.f32 %v176, %v240
  %v305 = vmax.f32 %v177, %v241
  %v306 = vmax.f32 %v178, %v242
  %v307 = vmax.f32 %v179, %v243
  %v308 = vmax.f32 %v180, %v244
  %v309 = vmax.f32 %v181, %v245
  %v310 = vmax.f32 %v182, %v246
  %v311 = vmax.f32 %v183, %v247
  %v312 = vmax.f32 %v184, %v248
  %v313 = vmax.f32 %v185, %v249
  %v314 = vmax.f32 %v186, %v250
  %v315 = vmax.f32 %v187, %v251
  %v316 = vmax.f32 %v188, %v252
  %v317 = vmax.f32 %v189, %v253
  %v318 = vmax.f32 %v190, %v254
  %v319 = vmax.f32 %v191, %v255
  %v320 = vmax.f32 %v192, %v256
  %v321 = vmax.f32 %v193, %v257
  %v322 = vmax.f32 %v194, %v258
  %v323 = vmax.f32 %v195, %v259
  %v324 = vmax.f32 %v196, %v260
  %v325 = vmax.f32 %v197, %v261
  %v326 = vmax.f32 %v198, %v262
  %v327 = vmax.f32 %v199, %v263
  %v328 = vmax.f32 %v200, %v264
  %v329 = vmax.f32 %v201, %v265
  %v330 = vmax.f32 %v202, %v266
  %v331 = vmax.f32 %v203, %v267
  %v332 = vmax.f32 %v204, %v268
  %v333 = vmax.f32 %v205, %v269
  %v334 = vmax.f32 %v206, %v270
  %v335 = vmax.f32 %v207, %v271
  %v336 = vmax.f32 %v208, %v272
  %v337 = vmax.f32 %v209, %v273
  %v338 = vmax.f32 %v210, %v274
  %v339 = vmax.f32 %v211, %v275
  %v340 = vmax.f32 %v212, %v276
  %v341 = vmax.f32 %v213, %v277
  %v342 = vmax.f32 %v214, %v278
  %v343 = vmax.f32 %v215, %v279
  %v344 = vmax.f32 %v216, %v280
  %v345 = vmax.f32 %v217, %v281
  %v346 = vmax.f32 %v218, %v282
  %v347 = vmax.f32 %v219, %v283
  %v348 = vmax.f32 %v220, %v284
  %v349 = vmax.f32 %v221, %v285
  %v350 = vmax.f32 %v222, %v286
  %v351 = vmax.f32 %v223, %v287
  %v352 = vld [vmem:[%s3] sm:$0xff]
  %v353 = vld [vmem:[%s3 + $0x8] sm:$0xff]
  %v354 = vld [vmem:[%s3 + $0x10] sm:$0xff]
  %v355 = vld [vmem:[%s3 + $0x18] sm:$0xff]
  %v356 = vld [vmem:[%s3 + $0x20] sm:$0xff]
  %v357 = vld [vmem:[%s3 + $0x28] sm:$0xff]
  %v358 = vld [vmem:[%s3 + $0x30] sm:$0xff]
  %v359 = vld [vmem:[%s3 + $0x38] sm:$0xff]
  %v360 = vld [vmem:[%s3 + $0x40] sm:$0xff]
  %v361 = vld [vmem:[%s3 + $0x48] sm:$0xff]
  %v362 = vld [vmem:[%s3 + $0x50] sm:$0xff]
  %v363 = vld [vmem:[%s3 + $0x58] sm:$0xff]
  %v364 = vld [vmem:[%s3 + $0x60] sm:$0xff]
  %v365 = vld [vmem:[%s3 + $0x68] sm:$0xff]
  %v366 = vld [vmem:[%s3 + $0x70] sm:$0xff]
  %v367 = vld [vmem:[%s3 + $0x78] sm:$0xff]
  %v368 = vld [vmem:[%s3 + $0x80] sm:$0xff]
  %v369 = vld [vmem:[%s3 + $0x88] sm:$0xff]
  %v370 = vld [vmem:[%s3 + $0x90] sm:$0xff]
  %v371 = vld [vmem:[%s3 + $0x98] sm:$0xff]
  %v372 = vld [vmem:[%s3 + $0xa0] sm:$0xff]
  %v373 = vld [vmem:[%s3 + $0xa8] sm:$0xff]
  %v374 = vld [vmem:[%s3 + $0xb0] sm:$0xff]
  %v375 = vld [vmem:[%s3 + $0xb8] sm:$0xff]
  %v376 = vld [vmem:[%s3 + $0xc0] sm:$0xff]
  %v377 = vld [vmem:[%s3 + $0xc8] sm:$0xff]
  %v378 = vld [vmem:[%s3 + $0xd0] sm:$0xff]
  %v379 = vld [vmem:[%s3 + $0xd8] sm:$0xff]
  %v380 = vld [vmem:[%s3 + $0xe0] sm:$0xff]
  %v381 = vld [vmem:[%s3 + $0xe8] sm:$0xff]
  %v382 = vld [vmem:[%s3 + $0xf0] sm:$0xff]
  %v383 = vld [vmem:[%s3 + $0xf8] sm:$0xff]
  %v384 = vld [vmem:[%s3 + $0x100] sm:$0xff]
  %v385 = vld [vmem:[%s3 + $0x108] sm:$0xff]
  %v386 = vld [vmem:[%s3 + $0x110] sm:$0xff]
  %v387 = vld [vmem:[%s3 + $0x118] sm:$0xff]
  %v388 = vld [vmem:[%s3 + $0x120] sm:$0xff]
  %v389 = vld [vmem:[%s3 + $0x128] sm:$0xff]
  %v390 = vld [vmem:[%s3 + $0x130] sm:$0xff]
  %v391 = vld [vmem:[%s3 + $0x138] sm:$0xff]
  %v392 = vld [vmem:[%s3 + $0x140] sm:$0xff]
  %v393 = vld [vmem:[%s3 + $0x148] sm:$0xff]
  %v394 = vld [vmem:[%s3 + $0x150] sm:$0xff]
  %v395 = vld [vmem:[%s3 + $0x158] sm:$0xff]
  %v396 = vld [vmem:[%s3 + $0x160] sm:$0xff]
  %v397 = vld [vmem:[%s3 + $0x168] sm:$0xff]
  %v398 = vld [vmem:[%s3 + $0x170] sm:$0xff]
  %v399 = vld [vmem:[%s3 + $0x178] sm:$0xff]
  %v400 = vld [vmem:[%s3 + $0x180] sm:$0xff]
  %v401 = vld [vmem:[%s3 + $0x188] sm:$0xff]
  %v402 = vld [vmem:[%s3 + $0x190] sm:$0xff]
  %v403 = vld [vmem:[%s3 + $0x198] sm:$0xff]
  %v404 = vld [vmem:[%s3 + $0x1a0] sm:$0xff]
  %v405 = vld [vmem:[%s3 + $0x1a8] sm:$0xff]
  %v406 = vld [vmem:[%s3 + $0x1b0] sm:$0xff]
  %v407 = vld [vmem:[%s3 + $0x1b8] sm:$0xff]
  %v408 = vld [vmem:[%s3 + $0x1c0] sm:$0xff]
  %v409 = vld [vmem:[%s3 + $0x1c8] sm:$0xff]
  %v410 = vld [vmem:[%s3 + $0x1d0] sm:$0xff]
  %v411 = vld [vmem:[%s3 + $0x1d8] sm:$0xff]
  %v412 = vld [vmem:[%s3 + $0x1e0] sm:$0xff]
  %v413 = vld [vmem:[%s3 + $0x1e8] sm:$0xff]
  %v414 = vld [vmem:[%s3 + $0x1f0] sm:$0xff]
  %v415 = vld [vmem:[%s3 + $0x1f8] sm:$0xff]
  %v416 = vmax.f32 %v288, %v352
  %v417 = vmax.f32 %v289, %v353
  %v418 = vmax.f32 %v290, %v354
  %v419 = vmax.f32 %v291, %v355
  %v420 = vmax.f32 %v292, %v356
  %v421 = vmax.f32 %v293, %v357
  %v422 = vmax.f32 %v294, %v358
  %v423 = vmax.f32 %v295, %v359
  %v424 = vmax.f32 %v296, %v360
  %v425 = vmax.f32 %v297, %v361
  %v426 = vmax.f32 %v298, %v362
  %v427 = vmax.f32 %v299, %v363
  %v428 = vmax.f32 %v300, %v364
  %v429 = vmax.f32 %v301, %v365
  %v430 = vmax.f32 %v302, %v366
  %v431 = vmax.f32 %v303, %v367
  %v432 = vmax.f32 %v304, %v368
  %v433 = vmax.f32 %v305, %v369
  %v434 = vmax.f32 %v306, %v370
  %v435 = vmax.f32 %v307, %v371
  %v436 = vmax.f32 %v308, %v372
  %v437 = vmax.f32 %v309, %v373
  %v438 = vmax.f32 %v310, %v374
  %v439 = vmax.f32 %v311, %v375
  %v440 = vmax.f32 %v312, %v376
  %v441 = vmax.f32 %v313, %v377
  %v442 = vmax.f32 %v314, %v378
  %v443 = vmax.f32 %v315, %v379
  %v444 = vmax.f32 %v316, %v380
  %v445 = vmax.f32 %v317, %v381
  %v446 = vmax.f32 %v318, %v382
  %v447 = vmax.f32 %v319, %v383
  %v448 = vmax.f32 %v320, %v384
  %v449 = vmax.f32 %v321, %v385
  %v450 = vmax.f32 %v322, %v386
  %v451 = vmax.f32 %v323, %v387
  %v452 = vmax.f32 %v324, %v388
  %v453 = vmax.f32 %v325, %v389
  %v454 = vmax.f32 %v326, %v390
  %v455 = vmax.f32 %v327, %v391
  %v456 = vmax.f32 %v328, %v392
  %v457 = vmax.f32 %v329, %v393
  %v458 = vmax.f32 %v330, %v394
  %v459 = vmax.f32 %v331, %v395
  %v460 = vmax.f32 %v332, %v396
  %v461 = vmax.f32 %v333, %v397
  %v462 = vmax.f32 %v334, %v398
  %v463 = vmax.f32 %v335, %v399
  %v464 = vmax.f32 %v336, %v400
  %v465 = vmax.f32 %v337, %v401
  %v466 = vmax.f32 %v338, %v402
  %v467 = vmax.f32 %v339, %v403
  %v468 = vmax.f32 %v340, %v404
  %v469 = vmax.f32 %v341, %v405
  %v470 = vmax.f32 %v342, %v406
  %v471 = vmax.f32 %v343, %v407
  %v472 = vmax.f32 %v344, %v408
  %v473 = vmax.f32 %v345, %v409
  %v474 = vmax.f32 %v346, %v410
  %v475 = vmax.f32 %v347, %v411
  %v476 = vmax.f32 %v348, %v412
  %v477 = vmax.f32 %v349, %v413
  %v478 = vmax.f32 %v350, %v414
  %v479 = vmax.f32 %v351, %v415
  %v480 = vld [vmem:[%s4] sm:$0xff]
  %v481 = vld [vmem:[%s4 + $0x8] sm:$0xff]
  %v482 = vld [vmem:[%s4 + $0x10] sm:$0xff]
  %v483 = vld [vmem:[%s4 + $0x18] sm:$0xff]
  %v484 = vld [vmem:[%s4 + $0x20] sm:$0xff]
  %v485 = vld [vmem:[%s4 + $0x28] sm:$0xff]
  %v486 = vld [vmem:[%s4 + $0x30] sm:$0xff]
  %v487 = vld [vmem:[%s4 + $0x38] sm:$0xff]
  %v488 = vld [vmem:[%s4 + $0x40] sm:$0xff]
  %v489 = vld [vmem:[%s4 + $0x48] sm:$0xff]
  %v490 = vld [vmem:[%s4 + $0x50] sm:$0xff]
  %v491 = vld [vmem:[%s4 + $0x58] sm:$0xff]
  %v492 = vld [vmem:[%s4 + $0x60] sm:$0xff]
  %v493 = vld [vmem:[%s4 + $0x68] sm:$0xff]
  %v494 = vld [vmem:[%s4 + $0x70] sm:$0xff]
  %v495 = vld [vmem:[%s4 + $0x78] sm:$0xff]
  %v496 = vld [vmem:[%s4 + $0x80] sm:$0xff]
  %v497 = vld [vmem:[%s4 + $0x88] sm:$0xff]
  %v498 = vld [vmem:[%s4 + $0x90] sm:$0xff]
  %v499 = vld [vmem:[%s4 + $0x98] sm:$0xff]
  %v500 = vld [vmem:[%s4 + $0xa0] sm:$0xff]
  %v501 = vld [vmem:[%s4 + $0xa8] sm:$0xff]
  %v502 = vld [vmem:[%s4 + $0xb0] sm:$0xff]
  %v503 = vld [vmem:[%s4 + $0xb8] sm:$0xff]
  %v504 = vld [vmem:[%s4 + $0xc0] sm:$0xff]
  %v505 = vld [vmem:[%s4 + $0xc8] sm:$0xff]
  %v506 = vld [vmem:[%s4 + $0xd0] sm:$0xff]
  %v507 = vld [vmem:[%s4 + $0xd8] sm:$0xff]
  %v508 = vld [vmem:[%s4 + $0xe0] sm:$0xff]
  %v509 = vld [vmem:[%s4 + $0xe8] sm:$0xff]
  %v510 = vld [vmem:[%s4 + $0xf0] sm:$0xff]
  %v511 = vld [vmem:[%s4 + $0xf8] sm:$0xff]
  %v512 = vld [vmem:[%s4 + $0x100] sm:$0xff]
  %v513 = vld [vmem:[%s4 + $0x108] sm:$0xff]
  %v514 = vld [vmem:[%s4 + $0x110] sm:$0xff]
  %v515 = vld [vmem:[%s4 + $0x118] sm:$0xff]
  %v516 = vld [vmem:[%s4 + $0x120] sm:$0xff]
  %v517 = vld [vmem:[%s4 + $0x128] sm:$0xff]
  %v518 = vld [vmem:[%s4 + $0x130] sm:$0xff]
  %v519 = vld [vmem:[%s4 + $0x138] sm:$0xff]
  %v520 = vld [vmem:[%s4 + $0x140] sm:$0xff]
  %v521 = vld [vmem:[%s4 + $0x148] sm:$0xff]
  %v522 = vld [vmem:[%s4 + $0x150] sm:$0xff]
  %v523 = vld [vmem:[%s4 + $0x158] sm:$0xff]
  %v524 = vld [vmem:[%s4 + $0x160] sm:$0xff]
  %v525 = vld [vmem:[%s4 + $0x168] sm:$0xff]
  %v526 = vld [vmem:[%s4 + $0x170] sm:$0xff]
  %v527 = vld [vmem:[%s4 + $0x178] sm:$0xff]
  %v528 = vld [vmem:[%s4 + $0x180] sm:$0xff]
  %v529 = vld [vmem:[%s4 + $0x188] sm:$0xff]
  %v530 = vld [vmem:[%s4 + $0x190] sm:$0xff]
  %v531 = vld [vmem:[%s4 + $0x198] sm:$0xff]
  %v532 = vld [vmem:[%s4 + $0x1a0] sm:$0xff]
  %v533 = vld [vmem:[%s4 + $0x1a8] sm:$0xff]
  %v534 = vld [vmem:[%s4 + $0x1b0] sm:$0xff]
  %v535 = vld [vmem:[%s4 + $0x1b8] sm:$0xff]
  %v536 = vld [vmem:[%s4 + $0x1c0] sm:$0xff]
  %v537 = vld [vmem:[%s4 + $0x1c8] sm:$0xff]
  %v538 = vld [vmem:[%s4 + $0x1d0] sm:$0xff]
  %v539 = vld [vmem:[%s4 + $0x1d8] sm:$0xff]
  %v540 = vld [vmem:[%s4 + $0x1e0] sm:$0xff]
  %v541 = vld [vmem:[%s4 + $0x1e8] sm:$0xff]
  %v542 = vld [vmem:[%s4 + $0x1f0] sm:$0xff]
  %v543 = vld [vmem:[%s4 + $0x1f8] sm:$0xff]
  %v544 = vmax.f32 %v416, %v480
  %v545 = vmax.f32 %v417, %v481
  %v546 = vmax.f32 %v418, %v482
  %v547 = vmax.f32 %v419, %v483
  %v548 = vmax.f32 %v420, %v484
  %v549 = vmax.f32 %v421, %v485
  %v550 = vmax.f32 %v422, %v486
  %v551 = vmax.f32 %v423, %v487
  %v552 = vmax.f32 %v424, %v488
  %v553 = vmax.f32 %v425, %v489
  %v554 = vmax.f32 %v426, %v490
  %v555 = vmax.f32 %v427, %v491
  %v556 = vmax.f32 %v428, %v492
  %v557 = vmax.f32 %v429, %v493
  %v558 = vmax.f32 %v430, %v494
  %v559 = vmax.f32 %v431, %v495
  %v560 = vmax.f32 %v432, %v496
  %v561 = vmax.f32 %v433, %v497
  %v562 = vmax.f32 %v434, %v498
  %v563 = vmax.f32 %v435, %v499
  %v564 = vmax.f32 %v436, %v500
  %v565 = vmax.f32 %v437, %v501
  %v566 = vmax.f32 %v438, %v502
  %v567 = vmax.f32 %v439, %v503
  %v568 = vmax.f32 %v440, %v504
  %v569 = vmax.f32 %v441, %v505
  %v570 = vmax.f32 %v442, %v506
  %v571 = vmax.f32 %v443, %v507
  %v572 = vmax.f32 %v444, %v508
  %v573 = vmax.f32 %v445, %v509
  %v574 = vmax.f32 %v446, %v510
  %v575 = vmax.f32 %v447, %v511
  %v576 = vmax.f32 %v448, %v512
  %v577 = vmax.f32 %v449, %v513
  %v578 = vmax.f32 %v450, %v514
  %v579 = vmax.f32 %v451, %v515
  %v580 = vmax.f32 %v452, %v516
  %v581 = vmax.f32 %v453, %v517
  %v582 = vmax.f32 %v454, %v518
  %v583 = vmax.f32 %v455, %v519
  %v584 = vmax.f32 %v456, %v520
  %v585 = vmax.f32 %v457, %v521
  %v586 = vmax.f32 %v458, %v522
  %v587 = vmax.f32 %v459, %v523
  %v588 = vmax.f32 %v460, %v524
  %v589 = vmax.f32 %v461, %v525
  %v590 = vmax.f32 %v462, %v526
  %v591 = vmax.f32 %v463, %v527
  %v592 = vmax.f32 %v464, %v528
  %v593 = vmax.f32 %v465, %v529
  %v594 = vmax.f32 %v466, %v530
  %v595 = vmax.f32 %v467, %v531
  %v596 = vmax.f32 %v468, %v532
  %v597 = vmax.f32 %v469, %v533
  %v598 = vmax.f32 %v470, %v534
  %v599 = vmax.f32 %v471, %v535
  %v600 = vmax.f32 %v472, %v536
  %v601 = vmax.f32 %v473, %v537
  %v602 = vmax.f32 %v474, %v538
  %v603 = vmax.f32 %v475, %v539
  %v604 = vmax.f32 %v476, %v540
  %v605 = vmax.f32 %v477, %v541
  %v606 = vmax.f32 %v478, %v542
  %v607 = vmax.f32 %v479, %v543
  %v608 = vld [vmem:[%s5] sm:$0xff]
  %v609 = vld [vmem:[%s5 + $0x8] sm:$0xff]
  %v610 = vld [vmem:[%s5 + $0x10] sm:$0xff]
  %v611 = vld [vmem:[%s5 + $0x18] sm:$0xff]
  %v612 = vld [vmem:[%s5 + $0x20] sm:$0xff]
  %v613 = vld [vmem:[%s5 + $0x28] sm:$0xff]
  %v614 = vld [vmem:[%s5 + $0x30] sm:$0xff]
  %v615 = vld [vmem:[%s5 + $0x38] sm:$0xff]
  %v616 = vld [vmem:[%s5 + $0x40] sm:$0xff]
  %v617 = vld [vmem:[%s5 + $0x48] sm:$0xff]
  %v618 = vld [vmem:[%s5 + $0x50] sm:$0xff]
  %v619 = vld [vmem:[%s5 + $0x58] sm:$0xff]
  %v620 = vld [vmem:[%s5 + $0x60] sm:$0xff]
  %v621 = vld [vmem:[%s5 + $0x68] sm:$0xff]
  %v622 = vld [vmem:[%s5 + $0x70] sm:$0xff]
  %v623 = vld [vmem:[%s5 + $0x78] sm:$0xff]
  %v624 = vld [vmem:[%s5 + $0x80] sm:$0xff]
  %v625 = vld [vmem:[%s5 + $0x88] sm:$0xff]
  %v626 = vld [vmem:[%s5 + $0x90] sm:$0xff]
  %v627 = vld [vmem:[%s5 + $0x98] sm:$0xff]
  %v628 = vld [vmem:[%s5 + $0xa0] sm:$0xff]
  %v629 = vld [vmem:[%s5 + $0xa8] sm:$0xff]
  %v630 = vld [vmem:[%s5 + $0xb0] sm:$0xff]
  %v631 = vld [vmem:[%s5 + $0xb8] sm:$0xff]
  %v632 = vld [vmem:[%s5 + $0xc0] sm:$0xff]
  %v633 = vld [vmem:[%s5 + $0xc8] sm:$0xff]
  %v634 = vld [vmem:[%s5 + $0xd0] sm:$0xff]
  %v635 = vld [vmem:[%s5 + $0xd8] sm:$0xff]
  %v636 = vld [vmem:[%s5 + $0xe0] sm:$0xff]
  %v637 = vld [vmem:[%s5 + $0xe8] sm:$0xff]
  %v638 = vld [vmem:[%s5 + $0xf0] sm:$0xff]
  %v639 = vld [vmem:[%s5 + $0xf8] sm:$0xff]
  %v640 = vld [vmem:[%s5 + $0x100] sm:$0xff]
  %v641 = vld [vmem:[%s5 + $0x108] sm:$0xff]
  %v642 = vld [vmem:[%s5 + $0x110] sm:$0xff]
  %v643 = vld [vmem:[%s5 + $0x118] sm:$0xff]
  %v644 = vld [vmem:[%s5 + $0x120] sm:$0xff]
  %v645 = vld [vmem:[%s5 + $0x128] sm:$0xff]
  %v646 = vld [vmem:[%s5 + $0x130] sm:$0xff]
  %v647 = vld [vmem:[%s5 + $0x138] sm:$0xff]
  %v648 = vld [vmem:[%s5 + $0x140] sm:$0xff]
  %v649 = vld [vmem:[%s5 + $0x148] sm:$0xff]
  %v650 = vld [vmem:[%s5 + $0x150] sm:$0xff]
  %v651 = vld [vmem:[%s5 + $0x158] sm:$0xff]
  %v652 = vld [vmem:[%s5 + $0x160] sm:$0xff]
  %v653 = vld [vmem:[%s5 + $0x168] sm:$0xff]
  %v654 = vld [vmem:[%s5 + $0x170] sm:$0xff]
  %v655 = vld [vmem:[%s5 + $0x178] sm:$0xff]
  %v656 = vld [vmem:[%s5 + $0x180] sm:$0xff]
  %v657 = vld [vmem:[%s5 + $0x188] sm:$0xff]
  %v658 = vld [vmem:[%s5 + $0x190] sm:$0xff]
  %v659 = vld [vmem:[%s5 + $0x198] sm:$0xff]
  %v660 = vld [vmem:[%s5 + $0x1a0] sm:$0xff]
  %v661 = vld [vmem:[%s5 + $0x1a8] sm:$0xff]
  %v662 = vld [vmem:[%s5 + $0x1b0] sm:$0xff]
  %v663 = vld [vmem:[%s5 + $0x1b8] sm:$0xff]
  %v664 = vld [vmem:[%s5 + $0x1c0] sm:$0xff]
  %v665 = vld [vmem:[%s5 + $0x1c8] sm:$0xff]
  %v666 = vld [vmem:[%s5 + $0x1d0] sm:$0xff]
  %v667 = vld [vmem:[%s5 + $0x1d8] sm:$0xff]
  %v668 = vld [vmem:[%s5 + $0x1e0] sm:$0xff]
  %v669 = vld [vmem:[%s5 + $0x1e8] sm:$0xff]
  %v670 = vld [vmem:[%s5 + $0x1f0] sm:$0xff]
  %v671 = vld [vmem:[%s5 + $0x1f8] sm:$0xff]
  %v672 = vmax.f32 %v544, %v608
  %v673 = vmax.f32 %v545, %v609
  %v674 = vmax.f32 %v546, %v610
  %v675 = vmax.f32 %v547, %v611
  %v676 = vmax.f32 %v548, %v612
  %v677 = vmax.f32 %v549, %v613
  %v678 = vmax.f32 %v550, %v614
  %v679 = vmax.f32 %v551, %v615
  %v680 = vmax.f32 %v552, %v616
  %v681 = vmax.f32 %v553, %v617
  %v682 = vmax.f32 %v554, %v618
  %v683 = vmax.f32 %v555, %v619
  %v684 = vmax.f32 %v556, %v620
  %v685 = vmax.f32 %v557, %v621
  %v686 = vmax.f32 %v558, %v622
  %v687 = vmax.f32 %v559, %v623
  %v688 = vmax.f32 %v560, %v624
  %v689 = vmax.f32 %v561, %v625
  %v690 = vmax.f32 %v562, %v626
  %v691 = vmax.f32 %v563, %v627
  %v692 = vmax.f32 %v564, %v628
  %v693 = vmax.f32 %v565, %v629
  %v694 = vmax.f32 %v566, %v630
  %v695 = vmax.f32 %v567, %v631
  %v696 = vmax.f32 %v568, %v632
  %v697 = vmax.f32 %v569, %v633
  %v698 = vmax.f32 %v570, %v634
  %v699 = vmax.f32 %v571, %v635
  %v700 = vmax.f32 %v572, %v636
  %v701 = vmax.f32 %v573, %v637
  %v702 = vmax.f32 %v574, %v638
  %v703 = vmax.f32 %v575, %v639
  %v704 = vmax.f32 %v576, %v640
  %v705 = vmax.f32 %v577, %v641
  %v706 = vmax.f32 %v578, %v642
  %v707 = vmax.f32 %v579, %v643
  %v708 = vmax.f32 %v580, %v644
  %v709 = vmax.f32 %v581, %v645
  %v710 = vmax.f32 %v582, %v646
  %v711 = vmax.f32 %v583, %v647
  %v712 = vmax.f32 %v584, %v648
  %v713 = vmax.f32 %v585, %v649
  %v714 = vmax.f32 %v586, %v650
  %v715 = vmax.f32 %v587, %v651
  %v716 = vmax.f32 %v588, %v652
  %v717 = vmax.f32 %v589, %v653
  %v718 = vmax.f32 %v590, %v654
  %v719 = vmax.f32 %v591, %v655
  %v720 = vmax.f32 %v592, %v656
  %v721 = vmax.f32 %v593, %v657
  %v722 = vmax.f32 %v594, %v658
  %v723 = vmax.f32 %v595, %v659
  %v724 = vmax.f32 %v596, %v660
  %v725 = vmax.f32 %v597, %v661
  %v726 = vmax.f32 %v598, %v662
  %v727 = vmax.f32 %v599, %v663
  %v728 = vmax.f32 %v600, %v664
  %v729 = vmax.f32 %v601, %v665
  %v730 = vmax.f32 %v602, %v666
  %v731 = vmax.f32 %v603, %v667
  %v732 = vmax.f32 %v604, %v668
  %v733 = vmax.f32 %v605, %v669
  %v734 = vmax.f32 %v606, %v670
  %v735 = vmax.f32 %v607, %v671
  %v736 = vld [vmem:[%s6] sm:$0xff]
  %v737 = vld [vmem:[%s6 + $0x8] sm:$0xff]
  %v738 = vld [vmem:[%s6 + $0x10] sm:$0xff]
  %v739 = vld [vmem:[%s6 + $0x18] sm:$0xff]
  %v740 = vld [vmem:[%s6 + $0x20] sm:$0xff]
  %v741 = vld [vmem:[%s6 + $0x28] sm:$0xff]
  %v742 = vld [vmem:[%s6 + $0x30] sm:$0xff]
  %v743 = vld [vmem:[%s6 + $0x38] sm:$0xff]
  %v744 = vld [vmem:[%s6 + $0x40] sm:$0xff]
  %v745 = vld [vmem:[%s6 + $0x48] sm:$0xff]
  %v746 = vld [vmem:[%s6 + $0x50] sm:$0xff]
  %v747 = vld [vmem:[%s6 + $0x58] sm:$0xff]
  %v748 = vld [vmem:[%s6 + $0x60] sm:$0xff]
  %v749 = vld [vmem:[%s6 + $0x68] sm:$0xff]
  %v750 = vld [vmem:[%s6 + $0x70] sm:$0xff]
  %v751 = vld [vmem:[%s6 + $0x78] sm:$0xff]
  %v752 = vld [vmem:[%s6 + $0x80] sm:$0xff]
  %v753 = vld [vmem:[%s6 + $0x88] sm:$0xff]
  %v754 = vld [vmem:[%s6 + $0x90] sm:$0xff]
  %v755 = vld [vmem:[%s6 + $0x98] sm:$0xff]
  %v756 = vld [vmem:[%s6 + $0xa0] sm:$0xff]
  %v757 = vld [vmem:[%s6 + $0xa8] sm:$0xff]
  %v758 = vld [vmem:[%s6 + $0xb0] sm:$0xff]
  %v759 = vld [vmem:[%s6 + $0xb8] sm:$0xff]
  %v760 = vld [vmem:[%s6 + $0xc0] sm:$0xff]
  %v761 = vld [vmem:[%s6 + $0xc8] sm:$0xff]
  %v762 = vld [vmem:[%s6 + $0xd0] sm:$0xff]
  %v763 = vld [vmem:[%s6 + $0xd8] sm:$0xff]
  %v764 = vld [vmem:[%s6 + $0xe0] sm:$0xff]
  %v765 = vld [vmem:[%s6 + $0xe8] sm:$0xff]
  %v766 = vld [vmem:[%s6 + $0xf0] sm:$0xff]
  %v767 = vld [vmem:[%s6 + $0xf8] sm:$0xff]
  %v768 = vld [vmem:[%s6 + $0x100] sm:$0xff]
  %v769 = vld [vmem:[%s6 + $0x108] sm:$0xff]
  %v770 = vld [vmem:[%s6 + $0x110] sm:$0xff]
  %v771 = vld [vmem:[%s6 + $0x118] sm:$0xff]
  %v772 = vld [vmem:[%s6 + $0x120] sm:$0xff]
  %v773 = vld [vmem:[%s6 + $0x128] sm:$0xff]
  %v774 = vld [vmem:[%s6 + $0x130] sm:$0xff]
  %v775 = vld [vmem:[%s6 + $0x138] sm:$0xff]
  %v776 = vld [vmem:[%s6 + $0x140] sm:$0xff]
  %v777 = vld [vmem:[%s6 + $0x148] sm:$0xff]
  %v778 = vld [vmem:[%s6 + $0x150] sm:$0xff]
  %v779 = vld [vmem:[%s6 + $0x158] sm:$0xff]
  %v780 = vld [vmem:[%s6 + $0x160] sm:$0xff]
  %v781 = vld [vmem:[%s6 + $0x168] sm:$0xff]
  %v782 = vld [vmem:[%s6 + $0x170] sm:$0xff]
  %v783 = vld [vmem:[%s6 + $0x178] sm:$0xff]
  %v784 = vld [vmem:[%s6 + $0x180] sm:$0xff]
  %v785 = vld [vmem:[%s6 + $0x188] sm:$0xff]
  %v786 = vld [vmem:[%s6 + $0x190] sm:$0xff]
  %v787 = vld [vmem:[%s6 + $0x198] sm:$0xff]
  %v788 = vld [vmem:[%s6 + $0x1a0] sm:$0xff]
  %v789 = vld [vmem:[%s6 + $0x1a8] sm:$0xff]
  %v790 = vld [vmem:[%s6 + $0x1b0] sm:$0xff]
  %v791 = vld [vmem:[%s6 + $0x1b8] sm:$0xff]
  %v792 = vld [vmem:[%s6 + $0x1c0] sm:$0xff]
  %v793 = vld [vmem:[%s6 + $0x1c8] sm:$0xff]
  %v794 = vld [vmem:[%s6 + $0x1d0] sm:$0xff]
  %v795 = vld [vmem:[%s6 + $0x1d8] sm:$0xff]
  %v796 = vld [vmem:[%s6 + $0x1e0] sm:$0xff]
  %v797 = vld [vmem:[%s6 + $0x1e8] sm:$0xff]
  %v798 = vld [vmem:[%s6 + $0x1f0] sm:$0xff]
  %v799 = vld [vmem:[%s6 + $0x1f8] sm:$0xff]
  %v800 = vmax.f32 %v672, %v736
  %v801 = vmax.f32 %v673, %v737
  %v802 = vmax.f32 %v674, %v738
  %v803 = vmax.f32 %v675, %v739
  %v804 = vmax.f32 %v676, %v740
  %v805 = vmax.f32 %v677, %v741
  %v806 = vmax.f32 %v678, %v742
  %v807 = vmax.f32 %v679, %v743
  %v808 = vmax.f32 %v680, %v744
  %v809 = vmax.f32 %v681, %v745
  %v810 = vmax.f32 %v682, %v746
  %v811 = vmax.f32 %v683, %v747
  %v812 = vmax.f32 %v684, %v748
  %v813 = vmax.f32 %v685, %v749
  %v814 = vmax.f32 %v686, %v750
  %v815 = vmax.f32 %v687, %v751
  %v816 = vmax.f32 %v688, %v752
  %v817 = vmax.f32 %v689, %v753
  %v818 = vmax.f32 %v690, %v754
  %v819 = vmax.f32 %v691, %v755
  %v820 = vmax.f32 %v692, %v756
  %v821 = vmax.f32 %v693, %v757
  %v822 = vmax.f32 %v694, %v758
  %v823 = vmax.f32 %v695, %v759
  %v824 = vmax.f32 %v696, %v760
  %v825 = vmax.f32 %v697, %v761
  %v826 = vmax.f32 %v698, %v762
  %v827 = vmax.f32 %v699, %v763
  %v828 = vmax.f32 %v700, %v764
  %v829 = vmax.f32 %v701, %v765
  %v830 = vmax.f32 %v702, %v766
  %v831 = vmax.f32 %v703, %v767
  %v832 = vmax.f32 %v704, %v768
  %v833 = vmax.f32 %v705, %v769
  %v834 = vmax.f32 %v706, %v770
  %v835 = vmax.f32 %v707, %v771
  %v836 = vmax.f32 %v708, %v772
  %v837 = vmax.f32 %v709, %v773
  %v838 = vmax.f32 %v710, %v774
  %v839 = vmax.f32 %v711, %v775
  %v840 = vmax.f32 %v712, %v776
  %v841 = vmax.f32 %v713, %v777
  %v842 = vmax.f32 %v714, %v778
  %v843 = vmax.f32 %v715, %v779
  %v844 = vmax.f32 %v716, %v780
  %v845 = vmax.f32 %v717, %v781
  %v846 = vmax.f32 %v718, %v782
  %v847 = vmax.f32 %v719, %v783
  %v848 = vmax.f32 %v720, %v784
  %v849 = vmax.f32 %v721, %v785
  %v850 = vmax.f32 %v722, %v786
  %v851 = vmax.f32 %v723, %v787
  %v852 = vmax.f32 %v724, %v788
  %v853 = vmax.f32 %v725, %v789
  %v854 = vmax.f32 %v726, %v790
  %v855 = vmax.f32 %v727, %v791
  %v856 = vmax.f32 %v728, %v792
  %v857 = vmax.f32 %v729, %v793
  %v858 = vmax.f32 %v730, %v794
  %v859 = vmax.f32 %v731, %v795
  %v860 = vmax.f32 %v732, %v796
  %v861 = vmax.f32 %v733, %v797
  %v862 = vmax.f32 %v734, %v798
  %v863 = vmax.f32 %v735, %v799
  %v864 = vld [vmem:[%s7] sm:$0xff]
  %v865 = vld [vmem:[%s7 + $0x8] sm:$0xff]
  %v866 = vld [vmem:[%s7 + $0x10] sm:$0xff]
  %v867 = vld [vmem:[%s7 + $0x18] sm:$0xff]
  %v868 = vld [vmem:[%s7 + $0x20] sm:$0xff]
  %v869 = vld [vmem:[%s7 + $0x28] sm:$0xff]
  %v870 = vld [vmem:[%s7 + $0x30] sm:$0xff]
  %v871 = vld [vmem:[%s7 + $0x38] sm:$0xff]
  %v872 = vld [vmem:[%s7 + $0x40] sm:$0xff]
  %v873 = vld [vmem:[%s7 + $0x48] sm:$0xff]
  %v874 = vld [vmem:[%s7 + $0x50] sm:$0xff]
  %v875 = vld [vmem:[%s7 + $0x58] sm:$0xff]
  %v876 = vld [vmem:[%s7 + $0x60] sm:$0xff]
  %v877 = vld [vmem:[%s7 + $0x68] sm:$0xff]
  %v878 = vld [vmem:[%s7 + $0x70] sm:$0xff]
  %v879 = vld [vmem:[%s7 + $0x78] sm:$0xff]
  %v880 = vld [vmem:[%s7 + $0x80] sm:$0xff]
  %v881 = vld [vmem:[%s7 + $0x88] sm:$0xff]
  %v882 = vld [vmem:[%s7 + $0x90] sm:$0xff]
  %v883 = vld [vmem:[%s7 + $0x98] sm:$0xff]
  %v884 = vld [vmem:[%s7 + $0xa0] sm:$0xff]
  %v885 = vld [vmem:[%s7 + $0xa8] sm:$0xff]
  %v886 = vld [vmem:[%s7 + $0xb0] sm:$0xff]
  %v887 = vld [vmem:[%s7 + $0xb8] sm:$0xff]
  %v888 = vld [vmem:[%s7 + $0xc0] sm:$0xff]
  %v889 = vld [vmem:[%s7 + $0xc8] sm:$0xff]
  %v890 = vld [vmem:[%s7 + $0xd0] sm:$0xff]
  %v891 = vld [vmem:[%s7 + $0xd8] sm:$0xff]
  %v892 = vld [vmem:[%s7 + $0xe0] sm:$0xff]
  %v893 = vld [vmem:[%s7 + $0xe8] sm:$0xff]
  %v894 = vld [vmem:[%s7 + $0xf0] sm:$0xff]
  %v895 = vld [vmem:[%s7 + $0xf8] sm:$0xff]
  %v896 = vld [vmem:[%s7 + $0x100] sm:$0xff]
  %v897 = vld [vmem:[%s7 + $0x108] sm:$0xff]
  %v898 = vld [vmem:[%s7 + $0x110] sm:$0xff]
  %v899 = vld [vmem:[%s7 + $0x118] sm:$0xff]
  %v900 = vld [vmem:[%s7 + $0x120] sm:$0xff]
  %v901 = vld [vmem:[%s7 + $0x128] sm:$0xff]
  %v902 = vld [vmem:[%s7 + $0x130] sm:$0xff]
  %v903 = vld [vmem:[%s7 + $0x138] sm:$0xff]
  %v904 = vld [vmem:[%s7 + $0x140] sm:$0xff]
  %v905 = vld [vmem:[%s7 + $0x148] sm:$0xff]
  %v906 = vld [vmem:[%s7 + $0x150] sm:$0xff]
  %v907 = vld [vmem:[%s7 + $0x158] sm:$0xff]
  %v908 = vld [vmem:[%s7 + $0x160] sm:$0xff]
  %v909 = vld [vmem:[%s7 + $0x168] sm:$0xff]
  %v910 = vld [vmem:[%s7 + $0x170] sm:$0xff]
  %v911 = vld [vmem:[%s7 + $0x178] sm:$0xff]
  %v912 = vld [vmem:[%s7 + $0x180] sm:$0xff]
  %v913 = vld [vmem:[%s7 + $0x188] sm:$0xff]
  %v914 = vld [vmem:[%s7 + $0x190] sm:$0xff]
  %v915 = vld [vmem:[%s7 + $0x198] sm:$0xff]
  %v916 = vld [vmem:[%s7 + $0x1a0] sm:$0xff]
  %v917 = vld [vmem:[%s7 + $0x1a8] sm:$0xff]
  %v918 = vld [vmem:[%s7 + $0x1b0] sm:$0xff]
  %v919 = vld [vmem:[%s7 + $0x1b8] sm:$0xff]
  %v920 = vld [vmem:[%s7 + $0x1c0] sm:$0xff]
  %v921 = vld [vmem:[%s7 + $0x1c8] sm:$0xff]
  %v922 = vld [vmem:[%s7 + $0x1d0] sm:$0xff]
  %v923 = vld [vmem:[%s7 + $0x1d8] sm:$0xff]
  %v924 = vld [vmem:[%s7 + $0x1e0] sm:$0xff]
  %v925 = vld [vmem:[%s7 + $0x1e8] sm:$0xff]
  %v926 = vld [vmem:[%s7 + $0x1f0] sm:$0xff]
  %v927 = vld [vmem:[%s7 + $0x1f8] sm:$0xff]
  %v928 = vmax.f32 %v800, %v864
  %v929 = vmax.f32 %v801, %v865
  %v930 = vmax.f32 %v802, %v866
  %v931 = vmax.f32 %v803, %v867
  %v932 = vmax.f32 %v804, %v868
  %v933 = vmax.f32 %v805, %v869
  %v934 = vmax.f32 %v806, %v870
  %v935 = vmax.f32 %v807, %v871
  %v936 = vmax.f32 %v808, %v872
  %v937 = vmax.f32 %v809, %v873
  %v938 = vmax.f32 %v810, %v874
  %v939 = vmax.f32 %v811, %v875
  %v940 = vmax.f32 %v812, %v876
  %v941 = vmax.f32 %v813, %v877
  %v942 = vmax.f32 %v814, %v878
  %v943 = vmax.f32 %v815, %v879
  %v944 = vmax.f32 %v816, %v880
  %v945 = vmax.f32 %v817, %v881
  %v946 = vmax.f32 %v818, %v882
  %v947 = vmax.f32 %v819, %v883
  %v948 = vmax.f32 %v820, %v884
  %v949 = vmax.f32 %v821, %v885
  %v950 = vmax.f32 %v822, %v886
  %v951 = vmax.f32 %v823, %v887
  %v952 = vmax.f32 %v824, %v888
  %v953 = vmax.f32 %v825, %v889
  %v954 = vmax.f32 %v826, %v890
  %v955 = vmax.f32 %v827, %v891
  %v956 = vmax.f32 %v828, %v892
  %v957 = vmax.f32 %v829, %v893
  %v958 = vmax.f32 %v830, %v894
  %v959 = vmax.f32 %v831, %v895
  %v960 = vmax.f32 %v832, %v896
  %v961 = vmax.f32 %v833, %v897
  %v962 = vmax.f32 %v834, %v898
  %v963 = vmax.f32 %v835, %v899
  %v964 = vmax.f32 %v836, %v900
  %v965 = vmax.f32 %v837, %v901
  %v966 = vmax.f32 %v838, %v902
  %v967 = vmax.f32 %v839, %v903
  %v968 = vmax.f32 %v840, %v904
  %v969 = vmax.f32 %v841, %v905
  %v970 = vmax.f32 %v842, %v906
  %v971 = vmax.f32 %v843, %v907
  %v972 = vmax.f32 %v844, %v908
  %v973 = vmax.f32 %v845, %v909
  %v974 = vmax.f32 %v846, %v910
  %v975 = vmax.f32 %v847, %v911
  %v976 = vmax.f32 %v848, %v912
  %v977 = vmax.f32 %v849, %v913
  %v978 = vmax.f32 %v850, %v914
  %v979 = vmax.f32 %v851, %v915
  %v980 = vmax.f32 %v852, %v916
  %v981 = vmax.f32 %v853, %v917
  %v982 = vmax.f32 %v854, %v918
  %v983 = vmax.f32 %v855, %v919
  %v984 = vmax.f32 %v856, %v920
  %v985 = vmax.f32 %v857, %v921
  %v986 = vmax.f32 %v858, %v922
  %v987 = vmax.f32 %v859, %v923
  %v988 = vmax.f32 %v860, %v924
  %v989 = vmax.f32 %v861, %v925
  %v990 = vmax.f32 %v862, %v926
  %v991 = vmax.f32 %v863, %v927
  %v992 = vld [vmem:[%s8] sm:$0xff]
  %v993 = vld [vmem:[%s8 + $0x8] sm:$0xff]
  %v994 = vld [vmem:[%s8 + $0x10] sm:$0xff]
  %v995 = vld [vmem:[%s8 + $0x18] sm:$0xff]
  %v996 = vld [vmem:[%s8 + $0x20] sm:$0xff]
  %v997 = vld [vmem:[%s8 + $0x28] sm:$0xff]
  %v998 = vld [vmem:[%s8 + $0x30] sm:$0xff]
  %v999 = vld [vmem:[%s8 + $0x38] sm:$0xff]
  %v1000 = vld [vmem:[%s8 + $0x40] sm:$0xff]
  %v1001 = vld [vmem:[%s8 + $0x48] sm:$0xff]
  %v1002 = vld [vmem:[%s8 + $0x50] sm:$0xff]
  %v1003 = vld [vmem:[%s8 + $0x58] sm:$0xff]
  %v1004 = vld [vmem:[%s8 + $0x60] sm:$0xff]
  %v1005 = vld [vmem:[%s8 + $0x68] sm:$0xff]
  %v1006 = vld [vmem:[%s8 + $0x70] sm:$0xff]
  %v1007 = vld [vmem:[%s8 + $0x78] sm:$0xff]
  %v1008 = vld [vmem:[%s8 + $0x80] sm:$0xff]
  %v1009 = vld [vmem:[%s8 + $0x88] sm:$0xff]
  %v1010 = vld [vmem:[%s8 + $0x90] sm:$0xff]
  %v1011 = vld [vmem:[%s8 + $0x98] sm:$0xff]
  %v1012 = vld [vmem:[%s8 + $0xa0] sm:$0xff]
  %v1013 = vld [vmem:[%s8 + $0xa8] sm:$0xff]
  %v1014 = vld [vmem:[%s8 + $0xb0] sm:$0xff]
  %v1015 = vld [vmem:[%s8 + $0xb8] sm:$0xff]
  %v1016 = vld [vmem:[%s8 + $0xc0] sm:$0xff]
  %v1017 = vld [vmem:[%s8 + $0xc8] sm:$0xff]
  %v1018 = vld [vmem:[%s8 + $0xd0] sm:$0xff]
  %v1019 = vld [vmem:[%s8 + $0xd8] sm:$0xff]
  %v1020 = vld [vmem:[%s8 + $0xe0] sm:$0xff]
  %v1021 = vld [vmem:[%s8 + $0xe8] sm:$0xff]
  %v1022 = vld [vmem:[%s8 + $0xf0] sm:$0xff]
  %v1023 = vld [vmem:[%s8 + $0xf8] sm:$0xff]
  %v1024 = vld [vmem:[%s8 + $0x100] sm:$0xff]
  %v1025 = vld [vmem:[%s8 + $0x108] sm:$0xff]
  %v1026 = vld [vmem:[%s8 + $0x110] sm:$0xff]
  %v1027 = vld [vmem:[%s8 + $0x118] sm:$0xff]
  %v1028 = vld [vmem:[%s8 + $0x120] sm:$0xff]
  %v1029 = vld [vmem:[%s8 + $0x128] sm:$0xff]
  %v1030 = vld [vmem:[%s8 + $0x130] sm:$0xff]
  %v1031 = vld [vmem:[%s8 + $0x138] sm:$0xff]
  %v1032 = vld [vmem:[%s8 + $0x140] sm:$0xff]
  %v1033 = vld [vmem:[%s8 + $0x148] sm:$0xff]
  %v1034 = vld [vmem:[%s8 + $0x150] sm:$0xff]
  %v1035 = vld [vmem:[%s8 + $0x158] sm:$0xff]
  %v1036 = vld [vmem:[%s8 + $0x160] sm:$0xff]
  %v1037 = vld [vmem:[%s8 + $0x168] sm:$0xff]
  %v1038 = vld [vmem:[%s8 + $0x170] sm:$0xff]
  %v1039 = vld [vmem:[%s8 + $0x178] sm:$0xff]
  %v1040 = vld [vmem:[%s8 + $0x180] sm:$0xff]
  %v1041 = vld [vmem:[%s8 + $0x188] sm:$0xff]
  %v1042 = vld [vmem:[%s8 + $0x190] sm:$0xff]
  %v1043 = vld [vmem:[%s8 + $0x198] sm:$0xff]
  %v1044 = vld [vmem:[%s8 + $0x1a0] sm:$0xff]
  %v1045 = vld [vmem:[%s8 + $0x1a8] sm:$0xff]
  %v1046 = vld [vmem:[%s8 + $0x1b0] sm:$0xff]
  %v1047 = vld [vmem:[%s8 + $0x1b8] sm:$0xff]
  %v1048 = vld [vmem:[%s8 + $0x1c0] sm:$0xff]
  %v1049 = vld [vmem:[%s8 + $0x1c8] sm:$0xff]
  %v1050 = vld [vmem:[%s8 + $0x1d0] sm:$0xff]
  %v1051 = vld [vmem:[%s8 + $0x1d8] sm:$0xff]
  %v1052 = vld [vmem:[%s8 + $0x1e0] sm:$0xff]
  %v1053 = vld [vmem:[%s8 + $0x1e8] sm:$0xff]
  %v1054 = vld [vmem:[%s8 + $0x1f0] sm:$0xff]
  %v1055 = vld [vmem:[%s8 + $0x1f8] sm:$0xff]
  %v1056 = vmax.f32 %v928, %v992
  %v1057 = vmax.f32 %v929, %v993
  %v1058 = vmax.f32 %v930, %v994
  %v1059 = vmax.f32 %v931, %v995
  %v1060 = vmax.f32 %v932, %v996
  %v1061 = vmax.f32 %v933, %v997
  %v1062 = vmax.f32 %v934, %v998
  %v1063 = vmax.f32 %v935, %v999
  %v1064 = vmax.f32 %v936, %v1000
  %v1065 = vmax.f32 %v937, %v1001
  %v1066 = vmax.f32 %v938, %v1002
  %v1067 = vmax.f32 %v939, %v1003
  %v1068 = vmax.f32 %v940, %v1004
  %v1069 = vmax.f32 %v941, %v1005
  %v1070 = vmax.f32 %v942, %v1006
  %v1071 = vmax.f32 %v943, %v1007
  %v1072 = vmax.f32 %v944, %v1008
  %v1073 = vmax.f32 %v945, %v1009
  %v1074 = vmax.f32 %v946, %v1010
  %v1075 = vmax.f32 %v947, %v1011
  %v1076 = vmax.f32 %v948, %v1012
  %v1077 = vmax.f32 %v949, %v1013
  %v1078 = vmax.f32 %v950, %v1014
  %v1079 = vmax.f32 %v951, %v1015
  %v1080 = vmax.f32 %v952, %v1016
  %v1081 = vmax.f32 %v953, %v1017
  %v1082 = vmax.f32 %v954, %v1018
  %v1083 = vmax.f32 %v955, %v1019
  %v1084 = vmax.f32 %v956, %v1020
  %v1085 = vmax.f32 %v957, %v1021
  %v1086 = vmax.f32 %v958, %v1022
  %v1087 = vmax.f32 %v959, %v1023
  %v1088 = vmax.f32 %v960, %v1024
  %v1089 = vmax.f32 %v961, %v1025
  %v1090 = vmax.f32 %v962, %v1026
  %v1091 = vmax.f32 %v963, %v1027
  %v1092 = vmax.f32 %v964, %v1028
  %v1093 = vmax.f32 %v965, %v1029
  %v1094 = vmax.f32 %v966, %v1030
  %v1095 = vmax.f32 %v967, %v1031
  %v1096 = vmax.f32 %v968, %v1032
  %v1097 = vmax.f32 %v969, %v1033
  %v1098 = vmax.f32 %v970, %v1034
  %v1099 = vmax.f32 %v971, %v1035
  %v1100 = vmax.f32 %v972, %v1036
  %v1101 = vmax.f32 %v973, %v1037
  %v1102 = vmax.f32 %v974, %v1038
  %v1103 = vmax.f32 %v975, %v1039
  %v1104 = vmax.f32 %v976, %v1040
  %v1105 = vmax.f32 %v977, %v1041
  %v1106 = vmax.f32 %v978, %v1042
  %v1107 = vmax.f32 %v979, %v1043
  %v1108 = vmax.f32 %v980, %v1044
  %v1109 = vmax.f32 %v981, %v1045
  %v1110 = vmax.f32 %v982, %v1046
  %v1111 = vmax.f32 %v983, %v1047
  %v1112 = vmax.f32 %v984, %v1048
  %v1113 = vmax.f32 %v985, %v1049
  %v1114 = vmax.f32 %v986, %v1050
  %v1115 = vmax.f32 %v987, %v1051
  %v1116 = vmax.f32 %v988, %v1052
  %v1117 = vmax.f32 %v989, %v1053
  %v1118 = vmax.f32 %v990, %v1054
  %v1119 = vmax.f32 %v991, %v1055
  %vm1120 = vcmask 130048
  %1121 = vst.msk [vmem:[%s9] sm:$0xff] %vm1120, %v1056
  %1122 = vst.msk [vmem:[%s9 + $0x8] sm:$0xff] %vm1120, %v1057
  %1123 = vst.msk [vmem:[%s9 + $0x10] sm:$0xff] %vm1120, %v1058
  %1124 = vst.msk [vmem:[%s9 + $0x18] sm:$0xff] %vm1120, %v1059
  %1125 = vst.msk [vmem:[%s9 + $0x20] sm:$0xff] %vm1120, %v1060
  %1126 = vst.msk [vmem:[%s9 + $0x28] sm:$0xff] %vm1120, %v1061
  %1127 = vst.msk [vmem:[%s9 + $0x30] sm:$0xff] %vm1120, %v1062
  %1128 = vst.msk [vmem:[%s9 + $0x38] sm:$0xff] %vm1120, %v1063
  %1129 = vst.msk [vmem:[%s9 + $0x40] sm:$0xff] %vm1120, %v1064
  %1130 = vst.msk [vmem:[%s9 + $0x48] sm:$0xff] %vm1120, %v1065
  %1131 = vst.msk [vmem:[%s9 + $0x50] sm:$0xff] %vm1120, %v1066
  %1132 = vst.msk [vmem:[%s9 + $0x58] sm:$0xff] %vm1120, %v1067
  %1133 = vst.msk [vmem:[%s9 + $0x60] sm:$0xff] %vm1120, %v1068
  %1134 = vst.msk [vmem:[%s9 + $0x68] sm:$0xff] %vm1120, %v1069
  %1135 = vst.msk [vmem:[%s9 + $0x70] sm:$0xff] %vm1120, %v1070
  %1136 = vst.msk [vmem:[%s9 + $0x78] sm:$0xff] %vm1120, %v1071
  %1137 = vst.msk [vmem:[%s9 + $0x80] sm:$0xff] %vm1120, %v1072
  %1138 = vst.msk [vmem:[%s9 + $0x88] sm:$0xff] %vm1120, %v1073
  %1139 = vst.msk [vmem:[%s9 + $0x90] sm:$0xff] %vm1120, %v1074
  %1140 = vst.msk [vmem:[%s9 + $0x98] sm:$0xff] %vm1120, %v1075
  %1141 = vst.msk [vmem:[%s9 + $0xa0] sm:$0xff] %vm1120, %v1076
  %1142 = vst.msk [vmem:[%s9 + $0xa8] sm:$0xff] %vm1120, %v1077
  %1143 = vst.msk [vmem:[%s9 + $0xb0] sm:$0xff] %vm1120, %v1078
  %1144 = vst.msk [vmem:[%s9 + $0xb8] sm:$0xff] %vm1120, %v1079
  %1145 = vst.msk [vmem:[%s9 + $0xc0] sm:$0xff] %vm1120, %v1080
  %1146 = vst.msk [vmem:[%s9 + $0xc8] sm:$0xff] %vm1120, %v1081
  %1147 = vst.msk [vmem:[%s9 + $0xd0] sm:$0xff] %vm1120, %v1082
  %1148 = vst.msk [vmem:[%s9 + $0xd8] sm:$0xff] %vm1120, %v1083
  %1149 = vst.msk [vmem:[%s9 + $0xe0] sm:$0xff] %vm1120, %v1084
  %1150 = vst.msk [vmem:[%s9 + $0xe8] sm:$0xff] %vm1120, %v1085
  %1151 = vst.msk [vmem:[%s9 + $0xf0] sm:$0xff] %vm1120, %v1086
  %1152 = vst.msk [vmem:[%s9 + $0xf8] sm:$0xff] %vm1120, %v1087
  %1153 = vst.msk [vmem:[%s9 + $0x100] sm:$0xff] %vm1120, %v1088
  %1154 = vst.msk [vmem:[%s9 + $0x108] sm:$0xff] %vm1120, %v1089
  %1155 = vst.msk [vmem:[%s9 + $0x110] sm:$0xff] %vm1120, %v1090
  %1156 = vst.msk [vmem:[%s9 + $0x118] sm:$0xff] %vm1120, %v1091
  %1157 = vst.msk [vmem:[%s9 + $0x120] sm:$0xff] %vm1120, %v1092
  %1158 = vst.msk [vmem:[%s9 + $0x128] sm:$0xff] %vm1120, %v1093
  %1159 = vst.msk [vmem:[%s9 + $0x130] sm:$0xff] %vm1120, %v1094
  %1160 = vst.msk [vmem:[%s9 + $0x138] sm:$0xff] %vm1120, %v1095
  %1161 = vst.msk [vmem:[%s9 + $0x140] sm:$0xff] %vm1120, %v1096
  %1162 = vst.msk [vmem:[%s9 + $0x148] sm:$0xff] %vm1120, %v1097
  %1163 = vst.msk [vmem:[%s9 + $0x150] sm:$0xff] %vm1120, %v1098
  %1164 = vst.msk [vmem:[%s9 + $0x158] sm:$0xff] %vm1120, %v1099
  %1165 = vst.msk [vmem:[%s9 + $0x160] sm:$0xff] %vm1120, %v1100
  %1166 = vst.msk [vmem:[%s9 + $0x168] sm:$0xff] %vm1120, %v1101
  %1167 = vst.msk [vmem:[%s9 + $0x170] sm:$0xff] %vm1120, %v1102
  %1168 = vst.msk [vmem:[%s9 + $0x178] sm:$0xff] %vm1120, %v1103
  %1169 = vst.msk [vmem:[%s9 + $0x180] sm:$0xff] %vm1120, %v1104
  %1170 = vst.msk [vmem:[%s9 + $0x188] sm:$0xff] %vm1120, %v1105
  %1171 = vst.msk [vmem:[%s9 + $0x190] sm:$0xff] %vm1120, %v1106
  %1172 = vst.msk [vmem:[%s9 + $0x198] sm:$0xff] %vm1120, %v1107
  %1173 = vst.msk [vmem:[%s9 + $0x1a0] sm:$0xff] %vm1120, %v1108
  %1174 = vst.msk [vmem:[%s9 + $0x1a8] sm:$0xff] %vm1120, %v1109
  %1175 = vst.msk [vmem:[%s9 + $0x1b0] sm:$0xff] %vm1120, %v1110
  %1176 = vst.msk [vmem:[%s9 + $0x1b8] sm:$0xff] %vm1120, %v1111
  %1177 = vst.msk [vmem:[%s9 + $0x1c0] sm:$0xff] %vm1120, %v1112
  %1178 = vst.msk [vmem:[%s9 + $0x1c8] sm:$0xff] %vm1120, %v1113
  %1179 = vst.msk [vmem:[%s9 + $0x1d0] sm:$0xff] %vm1120, %v1114
  %1180 = vst.msk [vmem:[%s9 + $0x1d8] sm:$0xff] %vm1120, %v1115
  %1181 = vst.msk [vmem:[%s9 + $0x1e0] sm:$0xff] %vm1120, %v1116
  %1182 = vst.msk [vmem:[%s9 + $0x1e8] sm:$0xff] %vm1120, %v1117
  %1183 = vst.msk [vmem:[%s9 + $0x1f0] sm:$0xff] %vm1120, %v1118
  %1184 = vst.msk [vmem:[%s9 + $0x1f8] sm:$0xff] %vm1120, %v1119
  // Predicated region
  $region38: #{_lambda_.23} parent=0 // pred_check
    _
  $region39: #{_lambda_.23} parent=0 // pred_check_branch
    %1186 = sbr.rel (0) target = $region41
  $region40: #{_lambda_.23} parent=0 // pred_region
    _
  $region41: #{_lambda_.23} parent=0 // pred_fallthru
    _
  // Predicated region
  $region42: #{_lambda_.23} parent=0 // pred_check
    _
  $region43: #{_lambda_.23} parent=0 // pred_check_branch
    %1188 = sbr.rel (0) target = $region45
  $region44: #{_lambda_.23} parent=0 // pred_region
    _
  $region45: #{_lambda_.23} parent=0 // pred_fallthru
    _

// kernel: _lambda_.24
$region0: #{_lambda_.24}
  #allocation0 [shape = 'u32[]', space=smem, size = 0x4, offset = 0x4, fixed_abs, tag = 'smem constant byte address 0x4 - core index']
  #allocation1 [shape = 'u32[144,128]{1,0:T(1,128)}', space=vmem, size = 0x12000, scoped, tag = 'internal scratch']
  %s0 = inlined_call_operand.vmem [shape: bf16[512,144], index: 0, kind: input, shape index: {}]
  %s1 = inlined_call_operand.vmem [shape: bf16[144,16], index: 1, kind: input, shape index: {}]
  %s2 = inlined_call_operand.vmem [shape: f32[1,16], index: 2, kind: input, shape index: {}]
  %s3 = inlined_call_operand.vmem [shape: f32[512,16], index: 3, kind: output, shape index: {}]
  %s4 = sld [smem:[#allocation0]]
  $region22: #{_lambda_.24} parent=0
    _
  %s6 = ssub.s32 1, %s4
  %s7 = scalar_select 0, %s6, %s4
  // Predicated region
  $region2: #{_lambda_.24} parent=0 // pred_check
    _
  $region3: #{_lambda_.24} parent=0 // pred_check_branch
    %9 = sbr.rel (0) target = $region5
  $region4: #{_lambda_.24} parent=0 // pred_region
    _
  $region5: #{_lambda_.24} parent=0 // pred_fallthru
    _
  // Predicated region
  $region6: #{_lambda_.24} parent=0 // pred_check
    _
  $region7: #{_lambda_.24} parent=0 // pred_check_branch
    %11 = sbr.rel (0) target = $region9
  $region8: #{_lambda_.24} parent=0 // pred_region
    _
  $region9: #{_lambda_.24} parent=0 // pred_fallthru
    _
  // Predicated region
  $region10: #{_lambda_.24} parent=0 // pred_check
    _
  $region11: #{_lambda_.24} parent=0 // pred_check_branch
    %13 = sbr.rel (0) target = $region13
  $region12: #{_lambda_.24} parent=0 // pred_region
    _
  $region13: #{_lambda_.24} parent=0 // pred_fallthru
    _
  %v15 = vld [vmem:[%s0] sm:$0xff]
  %v16 = vld [vmem:[%s0 + $0x8] sm:$0xff]
  %v17 = vld [vmem:[%s0 + $0x10] sm:$0xff]
  %v18 = vld [vmem:[%s0 + $0x18] sm:$0xff]
  %v19 = vld [vmem:[%s0 + $0x20] sm:$0xff]
  %v20 = vld [vmem:[%s0 + $0x28] sm:$0xff]
  %v21 = vld [vmem:[%s0 + $0x30] sm:$0xff]
  %v22 = vld [vmem:[%s0 + $0x38] sm:$0xff]
  %v23 = vld [vmem:[%s0 + $0x40] sm:$0xff]
  %v24 = vld [vmem:[%s0 + $0x48] sm:$0xff]
  %v25 = vld [vmem:[%s0 + $0x50] sm:$0xff]
  %v26 = vld [vmem:[%s0 + $0x58] sm:$0xff]
  %v27 = vld [vmem:[%s0 + $0x60] sm:$0xff]
  %v28 = vld [vmem:[%s0 + $0x68] sm:$0xff]
  %v29 = vld [vmem:[%s0 + $0x70] sm:$0xff]
  %v30 = vld [vmem:[%s0 + $0x78] sm:$0xff]
  %v31 = vld [vmem:[%s0 + $0x80] sm:$0xff]
  %v32 = vld [vmem:[%s0 + $0x88] sm:$0xff]
  %v33 = vld [vmem:[%s0 + $0x90] sm:$0xff]
  %v34 = vld [vmem:[%s0 + $0x98] sm:$0xff]
  %v35 = vld [vmem:[%s0 + $0xa0] sm:$0xff]
  %v36 = vld [vmem:[%s0 + $0xa8] sm:$0xff]
  %v37 = vld [vmem:[%s0 + $0xb0] sm:$0xff]
  %v38 = vld [vmem:[%s0 + $0xb8] sm:$0xff]
  %v39 = vld [vmem:[%s0 + $0xc0] sm:$0xff]
  %v40 = vld [vmem:[%s0 + $0xc8] sm:$0xff]
  %v41 = vld [vmem:[%s0 + $0xd0] sm:$0xff]
  %v42 = vld [vmem:[%s0 + $0xd8] sm:$0xff]
  %v43 = vld [vmem:[%s0 + $0xe0] sm:$0xff]
  %v44 = vld [vmem:[%s0 + $0xe8] sm:$0xff]
  %v45 = vld [vmem:[%s0 + $0xf0] sm:$0xff]
  %v46 = vld [vmem:[%s0 + $0xf8] sm:$0xff]
  %v47 = vld [vmem:[%s0 + $0x100] sm:$0xff]
  %v48 = vld [vmem:[%s0 + $0x108] sm:$0xff]
  %v49 = vld [vmem:[%s0 + $0x110] sm:$0xff]
  %v50 = vld [vmem:[%s0 + $0x118] sm:$0xff]
  %v51 = vld [vmem:[%s0 + $0x120] sm:$0xff]
  %v52 = vld [vmem:[%s0 + $0x128] sm:$0xff]
  %v53 = vld [vmem:[%s0 + $0x130] sm:$0xff]
  %v54 = vld [vmem:[%s0 + $0x138] sm:$0xff]
  %v55 = vld [vmem:[%s0 + $0x140] sm:$0xff]
  %v56 = vld [vmem:[%s0 + $0x148] sm:$0xff]
  %v57 = vld [vmem:[%s0 + $0x150] sm:$0xff]
  %v58 = vld [vmem:[%s0 + $0x158] sm:$0xff]
  %v59 = vld [vmem:[%s0 + $0x160] sm:$0xff]
  %v60 = vld [vmem:[%s0 + $0x168] sm:$0xff]
  %v61 = vld [vmem:[%s0 + $0x170] sm:$0xff]
  %v62 = vld [vmem:[%s0 + $0x178] sm:$0xff]
  %v63 = vld [vmem:[%s0 + $0x180] sm:$0xff]
  %v64 = vld [vmem:[%s0 + $0x188] sm:$0xff]
  %v65 = vld [vmem:[%s0 + $0x190] sm:$0xff]
  %v66 = vld [vmem:[%s0 + $0x198] sm:$0xff]
  %v67 = vld [vmem:[%s0 + $0x1a0] sm:$0xff]
  %v68 = vld [vmem:[%s0 + $0x1a8] sm:$0xff]
  %v69 = vld [vmem:[%s0 + $0x1b0] sm:$0xff]
  %v70 = vld [vmem:[%s0 + $0x1b8] sm:$0xff]
  %v71 = vld [vmem:[%s0 + $0x1c0] sm:$0xff]
  %v72 = vld [vmem:[%s0 + $0x1c8] sm:$0xff]
  %v73 = vld [vmem:[%s0 + $0x1d0] sm:$0xff]
  %v74 = vld [vmem:[%s0 + $0x1d8] sm:$0xff]
  %v75 = vld [vmem:[%s0 + $0x1e0] sm:$0xff]
  %v76 = vld [vmem:[%s0 + $0x1e8] sm:$0xff]
  %v77 = vld [vmem:[%s0 + $0x1f0] sm:$0xff]
  %v78 = vld [vmem:[%s0 + $0x1f8] sm:$0xff]
  %v79 = vld [vmem:[%s1] sm:$0xf]
  %v80 = vld [vmem:[%s1 + $0x4] sm:$0xf]
  %v81 = vld [vmem:[%s1 + $0x8] sm:$0xf]
  %v82 = vld [vmem:[%s1 + $0xc] sm:$0xf]
  %v83 = vld [vmem:[%s1 + $0x10] sm:$0xf]
  %v84 = vld [vmem:[%s1 + $0x14] sm:$0xf]
  %v85 = vld [vmem:[%s1 + $0x18] sm:$0xf]
  %v86 = vld [vmem:[%s1 + $0x1c] sm:$0xf]
  %v87 = vld [vmem:[%s1 + $0x20] sm:$0xf]
  %v88 = vld [vmem:[%s1 + $0x24] sm:$0xf]
  %v89 = vld [vmem:[%s1 + $0x28] sm:$0xf]
  %v90 = vld [vmem:[%s1 + $0x2c] sm:$0xf]
  %v91 = vld [vmem:[%s1 + $0x30] sm:$0xf]
  %v92 = vld [vmem:[%s1 + $0x34] sm:$0xf]
  %v93 = vld [vmem:[%s1 + $0x38] sm:$0xf]
  %v94 = vld [vmem:[%s1 + $0x3c] sm:$0xf]
  %v95 = vld [vmem:[%s1 + $0x40] sm:$0xf]
  %v96 = vld [vmem:[%s1 + $0x44] sm:$0xf]
  %v97 = vld [vmem:[%s2] sm:$0x1]
  %v99 = vlaneseq
  %v100 = vshrl.u32 %v99, 7
  %v101 = vsub.s32 0, %v100
  %v102 = vrot.slane %v97, %v101
  %v168 = vunpack.c.l.b16 %v15
  %v169 = vunpack.c.h.b16 %v15
  %v170 = vunpack.c.l.b16 %v16
  %v171 = vunpack.c.h.b16 %v16
  %v172 = vunpack.c.l.b16 %v17
  %v173 = vunpack.c.h.b16 %v17
  %v174 = vunpack.c.l.b16 %v18
  %v175 = vunpack.c.h.b16 %v18
  %v176 = vunpack.c.l.b16 %v19
  %v177 = vunpack.c.h.b16 %v19
  %v178 = vunpack.c.l.b16 %v20
  %v179 = vunpack.c.h.b16 %v20
  %v180 = vunpack.c.l.b16 %v21
  %v181 = vunpack.c.h.b16 %v21
  %v182 = vunpack.c.l.b16 %v22
  %v183 = vunpack.c.h.b16 %v22
  %v184 = vunpack.c.l.b16 %v23
  %v185 = vunpack.c.h.b16 %v23
  %v186 = vunpack.c.l.b16 %v24
  %v187 = vunpack.c.h.b16 %v24
  %v188 = vunpack.c.l.b16 %v25
  %v189 = vunpack.c.h.b16 %v25
  %v190 = vunpack.c.l.b16 %v26
  %v191 = vunpack.c.h.b16 %v26
  %v192 = vunpack.c.l.b16 %v27
  %v193 = vunpack.c.h.b16 %v27
  %v194 = vunpack.c.l.b16 %v28
  %v195 = vunpack.c.h.b16 %v28
  %v196 = vunpack.c.l.b16 %v29
  %v197 = vunpack.c.h.b16 %v29
  %v198 = vunpack.c.l.b16 %v30
  %v199 = vunpack.c.h.b16 %v30
  %v200 = vunpack.c.l.b16 %v31
  %v201 = vunpack.c.h.b16 %v31
  %v202 = vunpack.c.l.b16 %v32
  %v203 = vunpack.c.h.b16 %v32
  %v204 = vunpack.c.l.b16 %v33
  %v205 = vunpack.c.h.b16 %v33
  %v206 = vunpack.c.l.b16 %v34
  %v207 = vunpack.c.h.b16 %v34
  %v208 = vunpack.c.l.b16 %v35
  %v209 = vunpack.c.h.b16 %v35
  %v210 = vunpack.c.l.b16 %v36
  %v211 = vunpack.c.h.b16 %v36
  %v212 = vunpack.c.l.b16 %v37
  %v213 = vunpack.c.h.b16 %v37
  %v214 = vunpack.c.l.b16 %v38
  %v215 = vunpack.c.h.b16 %v38
  %v216 = vunpack.c.l.b16 %v39
  %v217 = vunpack.c.h.b16 %v39
  %v218 = vunpack.c.l.b16 %v40
  %v219 = vunpack.c.h.b16 %v40
  %v220 = vunpack.c.l.b16 %v41
  %v221 = vunpack.c.h.b16 %v41
  %v222 = vunpack.c.l.b16 %v42
  %v223 = vunpack.c.h.b16 %v42
  %v224 = vunpack.c.l.b16 %v43
  %v225 = vunpack.c.h.b16 %v43
  %v226 = vunpack.c.l.b16 %v44
  %v227 = vunpack.c.h.b16 %v44
  %v228 = vunpack.c.l.b16 %v45
  %v229 = vunpack.c.h.b16 %v45
  %v230 = vunpack.c.l.b16 %v46
  %v231 = vunpack.c.h.b16 %v46
  %v232 = vunpack.c.l.b16 %v47
  %v233 = vunpack.c.h.b16 %v47
  %v234 = vunpack.c.l.b16 %v48
  %v235 = vunpack.c.h.b16 %v48
  %v236 = vunpack.c.l.b16 %v49
  %v237 = vunpack.c.h.b16 %v49
  %v238 = vunpack.c.l.b16 %v50
  %v239 = vunpack.c.h.b16 %v50
  %v240 = vunpack.c.l.b16 %v51
  %v241 = vunpack.c.h.b16 %v51
  %v242 = vunpack.c.l.b16 %v52
  %v243 = vunpack.c.h.b16 %v52
  %v244 = vunpack.c.l.b16 %v53
  %v245 = vunpack.c.h.b16 %v53
  %v246 = vunpack.c.l.b16 %v54
  %v247 = vunpack.c.h.b16 %v54
  %v248 = vunpack.c.l.b16 %v55
  %v249 = vunpack.c.h.b16 %v55
  %v250 = vunpack.c.l.b16 %v56
  %v251 = vunpack.c.h.b16 %v56
  %v252 = vunpack.c.l.b16 %v57
  %v253 = vunpack.c.h.b16 %v57
  %v254 = vunpack.c.l.b16 %v58
  %v255 = vunpack.c.h.b16 %v58
  %v256 = vunpack.c.l.b16 %v59
  %v257 = vunpack.c.h.b16 %v59
  %v258 = vunpack.c.l.b16 %v60
  %v259 = vunpack.c.h.b16 %v60
  %v260 = vunpack.c.l.b16 %v61
  %v261 = vunpack.c.h.b16 %v61
  %v262 = vunpack.c.l.b16 %v62
  %v263 = vunpack.c.h.b16 %v62
  %v264 = vunpack.c.l.b16 %v63
  %v265 = vunpack.c.h.b16 %v63
  %v266 = vunpack.c.l.b16 %v64
  %v267 = vunpack.c.h.b16 %v64
  %v268 = vunpack.c.l.b16 %v65
  %v269 = vunpack.c.h.b16 %v65
  %v270 = vunpack.c.l.b16 %v66
  %v271 = vunpack.c.h.b16 %v66
  %v272 = vunpack.c.l.b16 %v67
  %v273 = vunpack.c.h.b16 %v67
  %v274 = vunpack.c.l.b16 %v68
  %v275 = vunpack.c.h.b16 %v68
  %v276 = vunpack.c.l.b16 %v69
  %v277 = vunpack.c.h.b16 %v69
  %v278 = vunpack.c.l.b16 %v70
  %v279 = vunpack.c.h.b16 %v70
  %v280 = vunpack.c.l.b16 %v71
  %v281 = vunpack.c.h.b16 %v71
  %v282 = vunpack.c.l.b16 %v72
  %v283 = vunpack.c.h.b16 %v72
  %v284 = vunpack.c.l.b16 %v73
  %v285 = vunpack.c.h.b16 %v73
  %v286 = vunpack.c.l.b16 %v74
  %v287 = vunpack.c.h.b16 %v74
  %v288 = vunpack.c.l.b16 %v75
  %v289 = vunpack.c.h.b16 %v75
  %v290 = vunpack.c.l.b16 %v76
  %v291 = vunpack.c.h.b16 %v76
  %v292 = vunpack.c.l.b16 %v77
  %v293 = vunpack.c.h.b16 %v77
  %v294 = vunpack.c.l.b16 %v78
  %v295 = vunpack.c.h.b16 %v78
  %v296 = vpack.c.b16 %v170, %v168
  %v297 = vpack.c.b16 %v171, %v169
  %v298 = vpack.c.b16 %v174, %v172
  %v299 = vpack.c.b16 %v175, %v173
  %v300 = vpack.c.b16 %v178, %v176
  %v301 = vpack.c.b16 %v179, %v177
  %v302 = vpack.c.b16 %v182, %v180
  %v303 = vpack.c.b16 %v183, %v181
  %v304 = vpack.c.b16 %v186, %v184
  %v305 = vpack.c.b16 %v187, %v185
  %v306 = vpack.c.b16 %v190, %v188
  %v307 = vpack.c.b16 %v191, %v189
  %v308 = vpack.c.b16 %v194, %v192
  %v309 = vpack.c.b16 %v195, %v193
  %v310 = vpack.c.b16 %v198, %v196
  %v311 = vpack.c.b16 %v199, %v197
  %v312 = vpack.c.b16 %v202, %v200
  %v313 = vpack.c.b16 %v203, %v201
  %v314 = vpack.c.b16 %v206, %v204
  %v315 = vpack.c.b16 %v207, %v205
  %v316 = vpack.c.b16 %v210, %v208
  %v317 = vpack.c.b16 %v211, %v209
  %v318 = vpack.c.b16 %v214, %v212
  %v319 = vpack.c.b16 %v215, %v213
  %v320 = vpack.c.b16 %v218, %v216
  %v321 = vpack.c.b16 %v219, %v217
  %v322 = vpack.c.b16 %v222, %v220
  %v323 = vpack.c.b16 %v223, %v221
  %v324 = vpack.c.b16 %v226, %v224
  %v325 = vpack.c.b16 %v227, %v225
  %v326 = vpack.c.b16 %v230, %v228
  %v327 = vpack.c.b16 %v231, %v229
  %v328 = vpack.c.b16 %v234, %v232
  %v329 = vpack.c.b16 %v235, %v233
  %v330 = vpack.c.b16 %v238, %v236
  %v331 = vpack.c.b16 %v239, %v237
  %v332 = vpack.c.b16 %v242, %v240
  %v333 = vpack.c.b16 %v243, %v241
  %v334 = vpack.c.b16 %v246, %v244
  %v335 = vpack.c.b16 %v247, %v245
  %v336 = vpack.c.b16 %v250, %v248
  %v337 = vpack.c.b16 %v251, %v249
  %v338 = vpack.c.b16 %v254, %v252
  %v339 = vpack.c.b16 %v255, %v253
  %v340 = vpack.c.b16 %v258, %v256
  %v341 = vpack.c.b16 %v259, %v257
  %v342 = vpack.c.b16 %v262, %v260
  %v343 = vpack.c.b16 %v263, %v261
  %v344 = vpack.c.b16 %v266, %v264
  %v345 = vpack.c.b16 %v267, %v265
  %v346 = vpack.c.b16 %v270, %v268
  %v347 = vpack.c.b16 %v271, %v269
  %v348 = vpack.c.b16 %v274, %v272
  %v349 = vpack.c.b16 %v275, %v273
  %v350 = vpack.c.b16 %v278, %v276
  %v351 = vpack.c.b16 %v279, %v277
  %v352 = vpack.c.b16 %v282, %v280
  %v353 = vpack.c.b16 %v283, %v281
  %v354 = vpack.c.b16 %v286, %v284
  %v355 = vpack.c.b16 %v287, %v285
  %v356 = vpack.c.b16 %v290, %v288
  %v357 = vpack.c.b16 %v291, %v289
  %v358 = vpack.c.b16 %v294, %v292
  %v359 = vpack.c.b16 %v295, %v293
  %v410 = vunpack.c.l.b16 %v79
  %v411 = vunpack.c.l.b16 %v80
  %v412 = vunpack.c.l.b16 %v81
  %v413 = vunpack.c.l.b16 %v82
  %v414 = vunpack.c.l.b16 %v83
  %v415 = vunpack.c.l.b16 %v84
  %v416 = vunpack.c.l.b16 %v85
  %v417 = vunpack.c.l.b16 %v86
  %v418 = vunpack.c.l.b16 %v87
  %v419 = vunpack.c.l.b16 %v88
  %v420 = vunpack.c.l.b16 %v89
  %v421 = vunpack.c.l.b16 %v90
  %v422 = vunpack.c.l.b16 %v91
  %v423 = vunpack.c.l.b16 %v92
  %v424 = vunpack.c.l.b16 %v93
  %v425 = vunpack.c.l.b16 %v94
  %v426 = vunpack.c.l.b16 %v95
  %v427 = vunpack.c.l.b16 %v96
  %v428 = vpack.c.b16 %v411, %v410
  %v429 = vpack.c.b16 %v413, %v412
  %v430 = vpack.c.b16 %v415, %v414
  %v431 = vpack.c.b16 %v417, %v416
  %v432 = vpack.c.b16 %v419, %v418
  %v433 = vpack.c.b16 %v421, %v420
  %v434 = vpack.c.b16 %v423, %v422
  %v435 = vpack.c.b16 %v425, %v424
  %v436 = vpack.c.b16 %v427, %v426
  %vm446 = vcmask 130048
  %v448 = vsel %vm446, %v297, 0
  %v451 = vsel %vm446, %v299, 0
  %v454 = vsel %vm446, %v301, 0
  %v457 = vsel %vm446, %v303, 0
  %v460 = vsel %vm446, %v305, 0
  %v463 = vsel %vm446, %v307, 0
  %v466 = vsel %vm446, %v309, 0
  %v469 = vsel %vm446, %v311, 0
  %v472 = vsel %vm446, %v313, 0
  %v475 = vsel %vm446, %v315, 0
  %v478 = vsel %vm446, %v317, 0
  %v481 = vsel %vm446, %v319, 0
  %v484 = vsel %vm446, %v321, 0
  %v487 = vsel %vm446, %v323, 0
  %v490 = vsel %vm446, %v325, 0
  %v493 = vsel %vm446, %v327, 0
  %v496 = vsel %vm446, %v329, 0
  %v499 = vsel %vm446, %v331, 0
  %v502 = vsel %vm446, %v333, 0
  %v505 = vsel %vm446, %v335, 0
  %v508 = vsel %vm446, %v337, 0
  %v511 = vsel %vm446, %v339, 0
  %v514 = vsel %vm446, %v341, 0
  %v517 = vsel %vm446, %v343, 0
  %v520 = vsel %vm446, %v345, 0
  %v523 = vsel %vm446, %v347, 0
  %v526 = vsel %vm446, %v349, 0
  %v529 = vsel %vm446, %v351, 0
  %v532 = vsel %vm446, %v353, 0
  %v535 = vsel %vm446, %v355, 0
  %v538 = vsel %vm446, %v357, 0
  %v541 = vsel %vm446, %v359, 0
  %543 = vmatprep.subr.bf16.mxu0 0
  %544 = vmatpush1.bf16.msra.mxu0 %v428
  %545 = vmatprep.subr.bf16.mxu0 0
  %546 = vmatpush1.bf16.msra.mxu0 %v429
  %547 = vmatprep.subr.bf16.mxu0 0
  %548 = vmatpush1.bf16.msra.mxu0 %v430
  %549 = vmatprep.subr.bf16.mxu0 0
  %550 = vmatpush1.bf16.msra.mxu0 %v431
  %551 = vmatprep.subr.bf16.mxu0 0
  %552 = vmatpush1.bf16.msra.mxu0 %v432
  %553 = vmatprep.subr.bf16.mxu0 0
  %554 = vmatpush1.bf16.msra.mxu0 %v433
  %555 = vmatprep.subr.bf16.mxu0 0
  %556 = vmatpush1.bf16.msra.mxu0 %v434
  %557 = vmatprep.subr.bf16.mxu0 0
  %558 = vmatpush1.bf16.msra.mxu0 %v435
  %559 = vmatprep.subr.bf16.mxu0 0
  %560 = vmatpush1.bf16.msra.mxu0 %v436
  %561 = vmatprep.subr.bf16.mxu0 0
  %562 = vmatpush1.bf16.msra.mxu0 0
  %563 = vmatprep.subr.bf16.mxu0 0
  %564 = vmatpush1.bf16.msra.mxu0 0
  %565 = vmatprep.subr.bf16.mxu0 0
  %566 = vmatpush1.bf16.msra.mxu0 0
  %567 = vmatprep.subr.bf16.mxu0 0
  %568 = vmatpush1.bf16.msra.mxu0 0
  %569 = vmatprep.subr.bf16.mxu0 0
  %570 = vmatpush1.bf16.msra.mxu0 0
  %571 = vmatprep.subr.bf16.mxu0 0
  %572 = vmatpush1.bf16.msra.mxu0 0
  %573 = vmatprep.subr.bf16.mxu0 0
  %574 = vmatpush1.bf16.msra.mxu0 0
  %575 = vmatprep.mubr.bf16.mxu0 %v448
  %576 = vmatmul.mubr.bf16.gmra.mrb[0].mxu0 %v296
  %v577 = vpop.f32.mrb[0].mxu0
  %v578 = vadd.f32 %v102, %v577
  %v579 = vpop.f32.mrb[0].mxu0
  %v580 = vpop.f32.mrb[0].mxu0
  %v581 = vadd.f32 %v102, %v580
  %v582 = vpop.f32.mrb[0].mxu0
  %583 = vmatprep.mubr.bf16.mxu0 %v451
  %584 = vmatmul.mubr.bf16.gmra.mrb[0].mxu0 %v298
  %v585 = vpop.f32.mrb[0].mxu0
  %v586 = vadd.f32 %v102, %v585
  %v587 = vpop.f32.mrb[0].mxu0
  %v588 = vpop.f32.mrb[0].mxu0
  %v589 = vadd.f32 %v102, %v588
  %v590 = vpop.f32.mrb[0].mxu0
  %591 = vmatprep.mubr.bf16.mxu0 %v454
  %592 = vmatmul.mubr.bf16.gmra.mrb[0].mxu0 %v300
  %v593 = vpop.f32.mrb[0].mxu0
  %v594 = vadd.f32 %v102, %v593
  %v595 = vpop.f32.mrb[0].mxu0
  %v596 = vpop.f32.mrb[0].mxu0
  %v597 = vadd.f32 %v102, %v596
  %v598 = vpop.f32.mrb[0].mxu0
  %599 = vmatprep.mubr.bf16.mxu0 %v457
  %600 = vmatmul.mubr.bf16.gmra.mrb[0].mxu0 %v302
  %v601 = vpop.f32.mrb[0].mxu0
  %v602 = vadd.f32 %v102, %v601
  %v603 = vpop.f32.mrb[0].mxu0
  %v604 = vpop.f32.mrb[0].mxu0
  %v605 = vadd.f32 %v102, %v604
  %v606 = vpop.f32.mrb[0].mxu0
  %607 = vmatprep.mubr.bf16.mxu0 %v460
  %608 = vmatmul.mubr.bf16.gmra.mrb[0].mxu0 %v304
  %v609 = vpop.f32.mrb[0].mxu0
  %v610 = vadd.f32 %v102, %v609
  %v611 = vpop.f32.mrb[0].mxu0
  %v612 = vpop.f32.mrb[0].mxu0
  %v613 = vadd.f32 %v102, %v612
  %v614 = vpop.f32.mrb[0].mxu0
  %615 = vmatprep.mubr.bf16.mxu0 %v463
  %616 = vmatmul.mubr.bf16.gmra.mrb[0].mxu0 %v306
  %v617 = vpop.f32.mrb[0].mxu0
  %v618 = vadd.f32 %v102, %v617
  %v619 = vpop.f32.mrb[0].mxu0
  %v620 = vpop.f32.mrb[0].mxu0
  %v621 = vadd.f32 %v102, %v620
  %v622 = vpop.f32.mrb[0].mxu0
  %623 = vmatprep.mubr.bf16.mxu0 %v466
  %624 = vmatmul.mubr.bf16.gmra.mrb[0].mxu0 %v308
  %v625 = vpop.f32.mrb[0].mxu0
  %v626 = vadd.f32 %v102, %v625
  %v627 = vpop.f32.mrb[0].mxu0
  %v628 = vpop.f32.mrb[0].mxu0
  %v629 = vadd.f32 %v102, %v628
  %v630 = vpop.f32.mrb[0].mxu0
  %631 = vmatprep.mubr.bf16.mxu0 %v469
  %632 = vmatmul.mubr.bf16.gmra.mrb[0].mxu0 %v310
  %v633 = vpop.f32.mrb[0].mxu0
  %v634 = vadd.f32 %v102, %v633
  %v635 = vpop.f32.mrb[0].mxu0
  %v636 = vpop.f32.mrb[0].mxu0
  %v637 = vadd.f32 %v102, %v636
  %v638 = vpop.f32.mrb[0].mxu0
  %639 = vmatprep.mubr.bf16.mxu0 %v472
  %640 = vmatmul.mubr.bf16.gmra.mrb[0].mxu0 %v312
  %v641 = vpop.f32.mrb[0].mxu0
  %v642 = vadd.f32 %v102, %v641
  %v643 = vpop.f32.mrb[0].mxu0
  %v644 = vpop.f32.mrb[0].mxu0
  %v645 = vadd.f32 %v102, %v644
  %v646 = vpop.f32.mrb[0].mxu0
  %647 = vmatprep.mubr.bf16.mxu0 %v475
  %648 = vmatmul.mubr.bf16.gmra.mrb[0].mxu0 %v314
  %v649 = vpop.f32.mrb[0].mxu0
  %v650 = vadd.f32 %v102, %v649
  %v651 = vpop.f32.mrb[0].mxu0
  %v652 = vpop.f32.mrb[0].mxu0
  %v653 = vadd.f32 %v102, %v652
  %v654 = vpop.f32.mrb[0].mxu0
  %655 = vmatprep.mubr.bf16.mxu0 %v478
  %656 = vmatmul.mubr.bf16.gmra.mrb[0].mxu0 %v316
  %v657 = vpop.f32.mrb[0].mxu0
  %v658 = vadd.f32 %v102, %v657
  %v659 = vpop.f32.mrb[0].mxu0
  %v660 = vpop.f32.mrb[0].mxu0
  %v661 = vadd.f32 %v102, %v660
  %v662 = vpop.f32.mrb[0].mxu0
  %663 = vmatprep.mubr.bf16.mxu0 %v481
  %664 = vmatmul.mubr.bf16.gmra.mrb[0].mxu0 %v318
  %v665 = vpop.f32.mrb[0].mxu0
  %v666 = vadd.f32 %v102, %v665
  %v667 = vpop.f32.mrb[0].mxu0
  %v668 = vpop.f32.mrb[0].mxu0
  %v669 = vadd.f32 %v102, %v668
  %v670 = vpop.f32.mrb[0].mxu0
  %671 = vmatprep.mubr.bf16.mxu0 %v484
  %672 = vmatmul.mubr.bf16.gmra.mrb[0].mxu0 %v320
  %v673 = vpop.f32.mrb[0].mxu0
  %v674 = vadd.f32 %v102, %v673
  %v675 = vpop.f32.mrb[0].mxu0
  %v676 = vpop.f32.mrb[0].mxu0
  %v677 = vadd.f32 %v102, %v676
  %v678 = vpop.f32.mrb[0].mxu0
  %679 = vmatprep.mubr.bf16.mxu0 %v487
  %680 = vmatmul.mubr.bf16.gmra.mrb[0].mxu0 %v322
  %v681 = vpop.f32.mrb[0].mxu0
  %v682 = vadd.f32 %v102, %v681
  %v683 = vpop.f32.mrb[0].mxu0
  %v684 = vpop.f32.mrb[0].mxu0
  %v685 = vadd.f32 %v102, %v684
  %v686 = vpop.f32.mrb[0].mxu0
  %687 = vmatprep.mubr.bf16.mxu0 %v490
  %688 = vmatmul.mubr.bf16.gmra.mrb[0].mxu0 %v324
  %v689 = vpop.f32.mrb[0].mxu0
  %v690 = vadd.f32 %v102, %v689
  %v691 = vpop.f32.mrb[0].mxu0
  %v692 = vpop.f32.mrb[0].mxu0
  %v693 = vadd.f32 %v102, %v692
  %v694 = vpop.f32.mrb[0].mxu0
  %695 = vmatprep.mubr.bf16.mxu0 %v493
  %696 = vmatmul.mubr.bf16.gmra.mrb[0].mxu0 %v326
  %v697 = vpop.f32.mrb[0].mxu0
  %v698 = vadd.f32 %v102, %v697
  %v699 = vpop.f32.mrb[0].mxu0
  %v700 = vpop.f32.mrb[0].mxu0
  %v701 = vadd.f32 %v102, %v700
  %v702 = vpop.f32.mrb[0].mxu0
  %703 = vmatprep.mubr.bf16.mxu0 %v496
  %704 = vmatmul.mubr.bf16.gmra.mrb[0].mxu0 %v328
  %v705 = vpop.f32.mrb[0].mxu0
  %v706 = vadd.f32 %v102, %v705
  %v707 = vpop.f32.mrb[0].mxu0
  %v708 = vpop.f32.mrb[0].mxu0
  %v709 = vadd.f32 %v102, %v708
  %v710 = vpop.f32.mrb[0].mxu0
  %711 = vmatprep.mubr.bf16.mxu0 %v499
  %712 = vmatmul.mubr.bf16.gmra.mrb[0].mxu0 %v330
  %v713 = vpop.f32.mrb[0].mxu0
  %v714 = vadd.f32 %v102, %v713
  %v715 = vpop.f32.mrb[0].mxu0
  %v716 = vpop.f32.mrb[0].mxu0
  %v717 = vadd.f32 %v102, %v716
  %v718 = vpop.f32.mrb[0].mxu0
  %719 = vmatprep.mubr.bf16.mxu0 %v502
  %720 = vmatmul.mubr.bf16.gmra.mrb[0].mxu0 %v332
  %v721 = vpop.f32.mrb[0].mxu0
  %v722 = vadd.f32 %v102, %v721
  %v723 = vpop.f32.mrb[0].mxu0
  %v724 = vpop.f32.mrb[0].mxu0
  %v725 = vadd.f32 %v102, %v724
  %v726 = vpop.f32.mrb[0].mxu0
  %727 = vmatprep.mubr.bf16.mxu0 %v505
  %728 = vmatmul.mubr.bf16.gmra.mrb[0].mxu0 %v334
  %v729 = vpop.f32.mrb[0].mxu0
  %v730 = vadd.f32 %v102, %v729
  %v731 = vpop.f32.mrb[0].mxu0
  %v732 = vpop.f32.mrb[0].mxu0
  %v733 = vadd.f32 %v102, %v732
  %v734 = vpop.f32.mrb[0].mxu0
  %735 = vmatprep.mubr.bf16.mxu0 %v508
  %736 = vmatmul.mubr.bf16.gmra.mrb[0].mxu0 %v336
  %v737 = vpop.f32.mrb[0].mxu0
  %v738 = vadd.f32 %v102, %v737
  %v739 = vpop.f32.mrb[0].mxu0
  %v740 = vpop.f32.mrb[0].mxu0
  %v741 = vadd.f32 %v102, %v740
  %v742 = vpop.f32.mrb[0].mxu0
  %743 = vmatprep.mubr.bf16.mxu0 %v511
  %744 = vmatmul.mubr.bf16.gmra.mrb[0].mxu0 %v338
  %v745 = vpop.f32.mrb[0].mxu0
  %v746 = vadd.f32 %v102, %v745
  %v747 = vpop.f32.mrb[0].mxu0
  %v748 = vpop.f32.mrb[0].mxu0
  %v749 = vadd.f32 %v102, %v748
  %v750 = vpop.f32.mrb[0].mxu0
  %751 = vmatprep.mubr.bf16.mxu0 %v514
  %752 = vmatmul.mubr.bf16.gmra.mrb[0].mxu0 %v340
  %v753 = vpop.f32.mrb[0].mxu0
  %v754 = vadd.f32 %v102, %v753
  %v755 = vpop.f32.mrb[0].mxu0
  %v756 = vpop.f32.mrb[0].mxu0
  %v757 = vadd.f32 %v102, %v756
  %v758 = vpop.f32.mrb[0].mxu0
  %759 = vmatprep.mubr.bf16.mxu0 %v517
  %760 = vmatmul.mubr.bf16.gmra.mrb[0].mxu0 %v342
  %v761 = vpop.f32.mrb[0].mxu0
  %v762 = vadd.f32 %v102, %v761
  %v763 = vpop.f32.mrb[0].mxu0
  %v764 = vpop.f32.mrb[0].mxu0
  %v765 = vadd.f32 %v102, %v764
  %v766 = vpop.f32.mrb[0].mxu0
  %767 = vmatprep.mubr.bf16.mxu0 %v520
  %768 = vmatmul.mubr.bf16.gmra.mrb[0].mxu0 %v344
  %v769 = vpop.f32.mrb[0].mxu0
  %v770 = vadd.f32 %v102, %v769
  %v771 = vpop.f32.mrb[0].mxu0
  %v772 = vpop.f32.mrb[0].mxu0
  %v773 = vadd.f32 %v102, %v772
  %v774 = vpop.f32.mrb[0].mxu0
  %775 = vmatprep.mubr.bf16.mxu0 %v523
  %776 = vmatmul.mubr.bf16.gmra.mrb[0].mxu0 %v346
  %v777 = vpop.f32.mrb[0].mxu0
  %v778 = vadd.f32 %v102, %v777
  %v779 = vpop.f32.mrb[0].mxu0
  %v780 = vpop.f32.mrb[0].mxu0
  %v781 = vadd.f32 %v102, %v780
  %v782 = vpop.f32.mrb[0].mxu0
  %783 = vmatprep.mubr.bf16.mxu0 %v526
  %784 = vmatmul.mubr.bf16.gmra.mrb[0].mxu0 %v348
  %v785 = vpop.f32.mrb[0].mxu0
  %v786 = vadd.f32 %v102, %v785
  %v787 = vpop.f32.mrb[0].mxu0
  %v788 = vpop.f32.mrb[0].mxu0
  %v789 = vadd.f32 %v102, %v788
  %v790 = vpop.f32.mrb[0].mxu0
  %791 = vmatprep.mubr.bf16.mxu0 %v529
  %792 = vmatmul.mubr.bf16.gmra.mrb[0].mxu0 %v350
  %v793 = vpop.f32.mrb[0].mxu0
  %v794 = vadd.f32 %v102, %v793
  %v795 = vpop.f32.mrb[0].mxu0
  %v796 = vpop.f32.mrb[0].mxu0
  %v797 = vadd.f32 %v102, %v796
  %v798 = vpop.f32.mrb[0].mxu0
  %799 = vmatprep.mubr.bf16.mxu0 %v532
  %800 = vmatmul.mubr.bf16.gmra.mrb[0].mxu0 %v352
  %v801 = vpop.f32.mrb[0].mxu0
  %v802 = vadd.f32 %v102, %v801
  %v803 = vpop.f32.mrb[0].mxu0
  %v804 = vpop.f32.mrb[0].mxu0
  %v805 = vadd.f32 %v102, %v804
  %v806 = vpop.f32.mrb[0].mxu0
  %807 = vmatprep.mubr.bf16.mxu0 %v535
  %808 = vmatmul.mubr.bf16.gmra.mrb[0].mxu0 %v354
  %v809 = vpop.f32.mrb[0].mxu0
  %v810 = vadd.f32 %v102, %v809
  %v811 = vpop.f32.mrb[0].mxu0
  %v812 = vpop.f32.mrb[0].mxu0
  %v813 = vadd.f32 %v102, %v812
  %v814 = vpop.f32.mrb[0].mxu0
  %815 = vmatprep.mubr.bf16.mxu0 %v538
  %816 = vmatmul.mubr.bf16.gmra.mrb[0].mxu0 %v356
  %v817 = vpop.f32.mrb[0].mxu0
  %v818 = vadd.f32 %v102, %v817
  %v819 = vpop.f32.mrb[0].mxu0
  %v820 = vpop.f32.mrb[0].mxu0
  %v821 = vadd.f32 %v102, %v820
  %v822 = vpop.f32.mrb[0].mxu0
  %823 = vmatprep.mubr.bf16.mxu0 %v541
  %824 = vmatmul.mubr.bf16.gmra.mrb[0].mxu0 %v358
  %v825 = vpop.f32.mrb[0].mxu0
  %v826 = vadd.f32 %v102, %v825
  %v827 = vpop.f32.mrb[0].mxu0
  %v828 = vpop.f32.mrb[0].mxu0
  %v829 = vadd.f32 %v102, %v828
  %v830 = vpop.f32.mrb[0].mxu0
  %831 = vdwg.mxu0
  %v832 = vmax.f32 %v578, 0.0
  %v833 = vmax.f32 %v581, 0.0
  %v834 = vmax.f32 %v586, 0.0
  %v835 = vmax.f32 %v589, 0.0
  %v836 = vmax.f32 %v594, 0.0
  %v837 = vmax.f32 %v597, 0.0
  %v838 = vmax.f32 %v602, 0.0
  %v839 = vmax.f32 %v605, 0.0
  %v840 = vmax.f32 %v610, 0.0
  %v841 = vmax.f32 %v613, 0.0
  %v842 = vmax.f32 %v618, 0.0
  %v843 = vmax.f32 %v621, 0.0
  %v844 = vmax.f32 %v626, 0.0
  %v845 = vmax.f32 %v629, 0.0
  %v846 = vmax.f32 %v634, 0.0
  %v847 = vmax.f32 %v637, 0.0
  %v848 = vmax.f32 %v642, 0.0
  %v849 = vmax.f32 %v645, 0.0
  %v850 = vmax.f32 %v650, 0.0
  %v851 = vmax.f32 %v653, 0.0
  %v852 = vmax.f32 %v658, 0.0
  %v853 = vmax.f32 %v661, 0.0
  %v854 = vmax.f32 %v666, 0.0
  %v855 = vmax.f32 %v669, 0.0
  %v856 = vmax.f32 %v674, 0.0
  %v857 = vmax.f32 %v677, 0.0
  %v858 = vmax.f32 %v682, 0.0
  %v859 = vmax.f32 %v685, 0.0
  %v860 = vmax.f32 %v690, 0.0
  %v861 = vmax.f32 %v693, 0.0
  %v862 = vmax.f32 %v698, 0.0
  %v863 = vmax.f32 %v701, 0.0
  %v864 = vmax.f32 %v706, 0.0
  %v865 = vmax.f32 %v709, 0.0
  %v866 = vmax.f32 %v714, 0.0
  %v867 = vmax.f32 %v717, 0.0
  %v868 = vmax.f32 %v722, 0.0
  %v869 = vmax.f32 %v725, 0.0
  %v870 = vmax.f32 %v730, 0.0
  %v871 = vmax.f32 %v733, 0.0
  %v872 = vmax.f32 %v738, 0.0
  %v873 = vmax.f32 %v741, 0.0
  %v874 = vmax.f32 %v746, 0.0
  %v875 = vmax.f32 %v749, 0.0
  %v876 = vmax.f32 %v754, 0.0
  %v877 = vmax.f32 %v757, 0.0
  %v878 = vmax.f32 %v762, 0.0
  %v879 = vmax.f32 %v765, 0.0
  %v880 = vmax.f32 %v770, 0.0
  %v881 = vmax.f32 %v773, 0.0
  %v882 = vmax.f32 %v778, 0.0
  %v883 = vmax.f32 %v781, 0.0
  %v884 = vmax.f32 %v786, 0.0
  %v885 = vmax.f32 %v789, 0.0
  %v886 = vmax.f32 %v794, 0.0
  %v887 = vmax.f32 %v797, 0.0
  %v888 = vmax.f32 %v802, 0.0
  %v889 = vmax.f32 %v805, 0.0
  %v890 = vmax.f32 %v810, 0.0
  %v891 = vmax.f32 %v813, 0.0
  %v892 = vmax.f32 %v818, 0.0
  %v893 = vmax.f32 %v821, 0.0
  %v894 = vmax.f32 %v826, 0.0
  %v895 = vmax.f32 %v829, 0.0
  %896 = vst.msk [vmem:[%s3] sm:$0xff] %vm446, %v832
  %897 = vst.msk [vmem:[%s3 + $0x8] sm:$0xff] %vm446, %v833
  %898 = vst.msk [vmem:[%s3 + $0x10] sm:$0xff] %vm446, %v834
  %899 = vst.msk [vmem:[%s3 + $0x18] sm:$0xff] %vm446, %v835
  %900 = vst.msk [vmem:[%s3 + $0x20] sm:$0xff] %vm446, %v836
  %901 = vst.msk [vmem:[%s3 + $0x28] sm:$0xff] %vm446, %v837
  %902 = vst.msk [vmem:[%s3 + $0x30] sm:$0xff] %vm446, %v838
  %903 = vst.msk [vmem:[%s3 + $0x38] sm:$0xff] %vm446, %v839
  %904 = vst.msk [vmem:[%s3 + $0x40] sm:$0xff] %vm446, %v840
  %905 = vst.msk [vmem:[%s3 + $0x48] sm:$0xff] %vm446, %v841
  %906 = vst.msk [vmem:[%s3 + $0x50] sm:$0xff] %vm446, %v842
  %907 = vst.msk [vmem:[%s3 + $0x58] sm:$0xff] %vm446, %v843
  %908 = vst.msk [vmem:[%s3 + $0x60] sm:$0xff] %vm446, %v844
  %909 = vst.msk [vmem:[%s3 + $0x68] sm:$0xff] %vm446, %v845
  %910 = vst.msk [vmem:[%s3 + $0x70] sm:$0xff] %vm446, %v846
  %911 = vst.msk [vmem:[%s3 + $0x78] sm:$0xff] %vm446, %v847
  %912 = vst.msk [vmem:[%s3 + $0x80] sm:$0xff] %vm446, %v848
  %913 = vst.msk [vmem:[%s3 + $0x88] sm:$0xff] %vm446, %v849
  %914 = vst.msk [vmem:[%s3 + $0x90] sm:$0xff] %vm446, %v850
  %915 = vst.msk [vmem:[%s3 + $0x98] sm:$0xff] %vm446, %v851
  %916 = vst.msk [vmem:[%s3 + $0xa0] sm:$0xff] %vm446, %v852
  %917 = vst.msk [vmem:[%s3 + $0xa8] sm:$0xff] %vm446, %v853
  %918 = vst.msk [vmem:[%s3 + $0xb0] sm:$0xff] %vm446, %v854
  %919 = vst.msk [vmem:[%s3 + $0xb8] sm:$0xff] %vm446, %v855
  %920 = vst.msk [vmem:[%s3 + $0xc0] sm:$0xff] %vm446, %v856
  %921 = vst.msk [vmem:[%s3 + $0xc8] sm:$0xff] %vm446, %v857
  %922 = vst.msk [vmem:[%s3 + $0xd0] sm:$0xff] %vm446, %v858
  %923 = vst.msk [vmem:[%s3 + $0xd8] sm:$0xff] %vm446, %v859
  %924 = vst.msk [vmem:[%s3 + $0xe0] sm:$0xff] %vm446, %v860
  %925 = vst.msk [vmem:[%s3 + $0xe8] sm:$0xff] %vm446, %v861
  %926 = vst.msk [vmem:[%s3 + $0xf0] sm:$0xff] %vm446, %v862
  %927 = vst.msk [vmem:[%s3 + $0xf8] sm:$0xff] %vm446, %v863
  %928 = vst.msk [vmem:[%s3 + $0x100] sm:$0xff] %vm446, %v864
  %929 = vst.msk [vmem:[%s3 + $0x108] sm:$0xff] %vm446, %v865
  %930 = vst.msk [vmem:[%s3 + $0x110] sm:$0xff] %vm446, %v866
  %931 = vst.msk [vmem:[%s3 + $0x118] sm:$0xff] %vm446, %v867
  %932 = vst.msk [vmem:[%s3 + $0x120] sm:$0xff] %vm446, %v868
  %933 = vst.msk [vmem:[%s3 + $0x128] sm:$0xff] %vm446, %v869
  %934 = vst.msk [vmem:[%s3 + $0x130] sm:$0xff] %vm446, %v870
  %935 = vst.msk [vmem:[%s3 + $0x138] sm:$0xff] %vm446, %v871
  %936 = vst.msk [vmem:[%s3 + $0x140] sm:$0xff] %vm446, %v872
  %937 = vst.msk [vmem:[%s3 + $0x148] sm:$0xff] %vm446, %v873
  %938 = vst.msk [vmem:[%s3 + $0x150] sm:$0xff] %vm446, %v874
  %939 = vst.msk [vmem:[%s3 + $0x158] sm:$0xff] %vm446, %v875
  %940 = vst.msk [vmem:[%s3 + $0x160] sm:$0xff] %vm446, %v876
  %941 = vst.msk [vmem:[%s3 + $0x168] sm:$0xff] %vm446, %v877
  %942 = vst.msk [vmem:[%s3 + $0x170] sm:$0xff] %vm446, %v878
  %943 = vst.msk [vmem:[%s3 + $0x178] sm:$0xff] %vm446, %v879
  %944 = vst.msk [vmem:[%s3 + $0x180] sm:$0xff] %vm446, %v880
  %945 = vst.msk [vmem:[%s3 + $0x188] sm:$0xff] %vm446, %v881
  %946 = vst.msk [vmem:[%s3 + $0x190] sm:$0xff] %vm446, %v882
  %947 = vst.msk [vmem:[%s3 + $0x198] sm:$0xff] %vm446, %v883
  %948 = vst.msk [vmem:[%s3 + $0x1a0] sm:$0xff] %vm446, %v884
  %949 = vst.msk [vmem:[%s3 + $0x1a8] sm:$0xff] %vm446, %v885
  %950 = vst.msk [vmem:[%s3 + $0x1b0] sm:$0xff] %vm446, %v886
  %951 = vst.msk [vmem:[%s3 + $0x1b8] sm:$0xff] %vm446, %v887
  %952 = vst.msk [vmem:[%s3 + $0x1c0] sm:$0xff] %vm446, %v888
  %953 = vst.msk [vmem:[%s3 + $0x1c8] sm:$0xff] %vm446, %v889
  %954 = vst.msk [vmem:[%s3 + $0x1d0] sm:$0xff] %vm446, %v890
  %955 = vst.msk [vmem:[%s3 + $0x1d8] sm:$0xff] %vm446, %v891
  %956 = vst.msk [vmem:[%s3 + $0x1e0] sm:$0xff] %vm446, %v892
  %957 = vst.msk [vmem:[%s3 + $0x1e8] sm:$0xff] %vm446, %v893
  %958 = vst.msk [vmem:[%s3 + $0x1f0] sm:$0xff] %vm446, %v894
  %959 = vst.msk [vmem:[%s3 + $0x1f8] sm:$0xff] %vm446, %v895
  // Predicated region
  $region14: #{_lambda_.24} parent=0 // pred_check
    _
  $region15: #{_lambda_.24} parent=0 // pred_check_branch
    %961 = sbr.rel (0) target = $region17
  $region16: #{_lambda_.24} parent=0 // pred_region
    _
  $region17: #{_lambda_.24} parent=0 // pred_fallthru
    _
  // Predicated region
  $region18: #{_lambda_.24} parent=0 // pred_check
    _
  $region19: #{_lambda_.24} parent=0 // pred_check_branch
    %963 = sbr.rel (0) target = $region21
  $region20: #{_lambda_.24} parent=0 // pred_region
    _
  $region21: #{_lambda_.24} parent=0 // pred_fallthru
    _

// kernel: _lambda_.25
$region0: #{_lambda_.25}
  #allocation0 [shape = 'u32[]', space=smem, size = 0x4, offset = 0x4, fixed_abs, tag = 'smem constant byte address 0x4 - core index']
  #allocation1 [shape = 'u32[144,128]{1,0:T(1,128)}', space=vmem, size = 0x12000, scoped, tag = 'internal scratch']
  %s0 = inlined_call_operand.vmem [shape: bf16[512,144], index: 0, kind: input, shape index: {}]
  %s1 = inlined_call_operand.vmem [shape: bf16[144,16], index: 1, kind: input, shape index: {}]
  %s2 = inlined_call_operand.vmem [shape: f32[1,16], index: 2, kind: input, shape index: {}]
  %s3 = inlined_call_operand.vmem [shape: f32[512,16], index: 3, kind: input, shape index: {}]
  %s4 = inlined_call_operand.vmem [shape: f32[512,16], index: 4, kind: output, shape index: {}]
  %s5 = sld [smem:[#allocation0]]
  $region26: #{_lambda_.25} parent=0
    _
  %s7 = ssub.s32 1, %s5
  %s8 = scalar_select 0, %s7, %s5
  // Predicated region
  $region2: #{_lambda_.25} parent=0 // pred_check
    _
  $region3: #{_lambda_.25} parent=0 // pred_check_branch
    %10 = sbr.rel (0) target = $region5
  $region4: #{_lambda_.25} parent=0 // pred_region
    _
  $region5: #{_lambda_.25} parent=0 // pred_fallthru
    _
  // Predicated region
  $region6: #{_lambda_.25} parent=0 // pred_check
    _
  $region7: #{_lambda_.25} parent=0 // pred_check_branch
    %12 = sbr.rel (0) target = $region9
  $region8: #{_lambda_.25} parent=0 // pred_region
    _
  $region9: #{_lambda_.25} parent=0 // pred_fallthru
    _
  // Predicated region
  $region10: #{_lambda_.25} parent=0 // pred_check
    _
  $region11: #{_lambda_.25} parent=0 // pred_check_branch
    %14 = sbr.rel (0) target = $region13
  $region12: #{_lambda_.25} parent=0 // pred_region
    _
  $region13: #{_lambda_.25} parent=0 // pred_fallthru
    _
  // Predicated region
  $region14: #{_lambda_.25} parent=0 // pred_check
    _
  $region15: #{_lambda_.25} parent=0 // pred_check_branch
    %16 = sbr.rel (0) target = $region17
  $region16: #{_lambda_.25} parent=0 // pred_region
    _
  $region17: #{_lambda_.25} parent=0 // pred_fallthru
    _
  %v18 = vld [vmem:[%s0] sm:$0xff]
  %v19 = vld [vmem:[%s0 + $0x8] sm:$0xff]
  %v20 = vld [vmem:[%s0 + $0x10] sm:$0xff]
  %v21 = vld [vmem:[%s0 + $0x18] sm:$0xff]
  %v22 = vld [vmem:[%s0 + $0x20] sm:$0xff]
  %v23 = vld [vmem:[%s0 + $0x28] sm:$0xff]
  %v24 = vld [vmem:[%s0 + $0x30] sm:$0xff]
  %v25 = vld [vmem:[%s0 + $0x38] sm:$0xff]
  %v26 = vld [vmem:[%s0 + $0x40] sm:$0xff]
  %v27 = vld [vmem:[%s0 + $0x48] sm:$0xff]
  %v28 = vld [vmem:[%s0 + $0x50] sm:$0xff]
  %v29 = vld [vmem:[%s0 + $0x58] sm:$0xff]
  %v30 = vld [vmem:[%s0 + $0x60] sm:$0xff]
  %v31 = vld [vmem:[%s0 + $0x68] sm:$0xff]
  %v32 = vld [vmem:[%s0 + $0x70] sm:$0xff]
  %v33 = vld [vmem:[%s0 + $0x78] sm:$0xff]
  %v34 = vld [vmem:[%s0 + $0x80] sm:$0xff]
  %v35 = vld [vmem:[%s0 + $0x88] sm:$0xff]
  %v36 = vld [vmem:[%s0 + $0x90] sm:$0xff]
  %v37 = vld [vmem:[%s0 + $0x98] sm:$0xff]
  %v38 = vld [vmem:[%s0 + $0xa0] sm:$0xff]
  %v39 = vld [vmem:[%s0 + $0xa8] sm:$0xff]
  %v40 = vld [vmem:[%s0 + $0xb0] sm:$0xff]
  %v41 = vld [vmem:[%s0 + $0xb8] sm:$0xff]
  %v42 = vld [vmem:[%s0 + $0xc0] sm:$0xff]
  %v43 = vld [vmem:[%s0 + $0xc8] sm:$0xff]
  %v44 = vld [vmem:[%s0 + $0xd0] sm:$0xff]
  %v45 = vld [vmem:[%s0 + $0xd8] sm:$0xff]
  %v46 = vld [vmem:[%s0 + $0xe0] sm:$0xff]
  %v47 = vld [vmem:[%s0 + $0xe8] sm:$0xff]
  %v48 = vld [vmem:[%s0 + $0xf0] sm:$0xff]
  %v49 = vld [vmem:[%s0 + $0xf8] sm:$0xff]
  %v50 = vld [vmem:[%s0 + $0x100] sm:$0xff]
  %v51 = vld [vmem:[%s0 + $0x108] sm:$0xff]
  %v52 = vld [vmem:[%s0 + $0x110] sm:$0xff]
  %v53 = vld [vmem:[%s0 + $0x118] sm:$0xff]
  %v54 = vld [vmem:[%s0 + $0x120] sm:$0xff]
  %v55 = vld [vmem:[%s0 + $0x128] sm:$0xff]
  %v56 = vld [vmem:[%s0 + $0x130] sm:$0xff]
  %v57 = vld [vmem:[%s0 + $0x138] sm:$0xff]
  %v58 = vld [vmem:[%s0 + $0x140] sm:$0xff]
  %v59 = vld [vmem:[%s0 + $0x148] sm:$0xff]
  %v60 = vld [vmem:[%s0 + $0x150] sm:$0xff]
  %v61 = vld [vmem:[%s0 + $0x158] sm:$0xff]
  %v62 = vld [vmem:[%s0 + $0x160] sm:$0xff]
  %v63 = vld [vmem:[%s0 + $0x168] sm:$0xff]
  %v64 = vld [vmem:[%s0 + $0x170] sm:$0xff]
  %v65 = vld [vmem:[%s0 + $0x178] sm:$0xff]
  %v66 = vld [vmem:[%s0 + $0x180] sm:$0xff]
  %v67 = vld [vmem:[%s0 + $0x188] sm:$0xff]
  %v68 = vld [vmem:[%s0 + $0x190] sm:$0xff]
  %v69 = vld [vmem:[%s0 + $0x198] sm:$0xff]
  %v70 = vld [vmem:[%s0 + $0x1a0] sm:$0xff]
  %v71 = vld [vmem:[%s0 + $0x1a8] sm:$0xff]
  %v72 = vld [vmem:[%s0 + $0x1b0] sm:$0xff]
  %v73 = vld [vmem:[%s0 + $0x1b8] sm:$0xff]
  %v74 = vld [vmem:[%s0 + $0x1c0] sm:$0xff]
  %v75 = vld [vmem:[%s0 + $0x1c8] sm:$0xff]
  %v76 = vld [vmem:[%s0 + $0x1d0] sm:$0xff]
  %v77 = vld [vmem:[%s0 + $0x1d8] sm:$0xff]
  %v78 = vld [vmem:[%s0 + $0x1e0] sm:$0xff]
  %v79 = vld [vmem:[%s0 + $0x1e8] sm:$0xff]
  %v80 = vld [vmem:[%s0 + $0x1f0] sm:$0xff]
  %v81 = vld [vmem:[%s0 + $0x1f8] sm:$0xff]
  %v82 = vld [vmem:[%s1] sm:$0xf]
  %v83 = vld [vmem:[%s1 + $0x4] sm:$0xf]
  %v84 = vld [vmem:[%s1 + $0x8] sm:$0xf]
  %v85 = vld [vmem:[%s1 + $0xc] sm:$0xf]
  %v86 = vld [vmem:[%s1 + $0x10] sm:$0xf]
  %v87 = vld [vmem:[%s1 + $0x14] sm:$0xf]
  %v88 = vld [vmem:[%s1 + $0x18] sm:$0xf]
  %v89 = vld [vmem:[%s1 + $0x1c] sm:$0xf]
  %v90 = vld [vmem:[%s1 + $0x20] sm:$0xf]
  %v91 = vld [vmem:[%s1 + $0x24] sm:$0xf]
  %v92 = vld [vmem:[%s1 + $0x28] sm:$0xf]
  %v93 = vld [vmem:[%s1 + $0x2c] sm:$0xf]
  %v94 = vld [vmem:[%s1 + $0x30] sm:$0xf]
  %v95 = vld [vmem:[%s1 + $0x34] sm:$0xf]
  %v96 = vld [vmem:[%s1 + $0x38] sm:$0xf]
  %v97 = vld [vmem:[%s1 + $0x3c] sm:$0xf]
  %v98 = vld [vmem:[%s1 + $0x40] sm:$0xf]
  %v99 = vld [vmem:[%s1 + $0x44] sm:$0xf]
  %v100 = vld [vmem:[%s2] sm:$0x1]
  %v102 = vlaneseq
  %v103 = vshrl.u32 %v102, 7
  %v104 = vsub.s32 0, %v103
  %v105 = vrot.slane %v100, %v104
  %v171 = vunpack.c.l.b16 %v18
  %v172 = vunpack.c.h.b16 %v18
  %v173 = vunpack.c.l.b16 %v19
  %v174 = vunpack.c.h.b16 %v19
  %v175 = vunpack.c.l.b16 %v20
  %v176 = vunpack.c.h.b16 %v20
  %v177 = vunpack.c.l.b16 %v21
  %v178 = vunpack.c.h.b16 %v21
  %v179 = vunpack.c.l.b16 %v22
  %v180 = vunpack.c.h.b16 %v22
  %v181 = vunpack.c.l.b16 %v23
  %v182 = vunpack.c.h.b16 %v23
  %v183 = vunpack.c.l.b16 %v24
  %v184 = vunpack.c.h.b16 %v24
  %v185 = vunpack.c.l.b16 %v25
  %v186 = vunpack.c.h.b16 %v25
  %v187 = vunpack.c.l.b16 %v26
  %v188 = vunpack.c.h.b16 %v26
  %v189 = vunpack.c.l.b16 %v27
  %v190 = vunpack.c.h.b16 %v27
  %v191 = vunpack.c.l.b16 %v28
  %v192 = vunpack.c.h.b16 %v28
  %v193 = vunpack.c.l.b16 %v29
  %v194 = vunpack.c.h.b16 %v29
  %v195 = vunpack.c.l.b16 %v30
  %v196 = vunpack.c.h.b16 %v30
  %v197 = vunpack.c.l.b16 %v31
  %v198 = vunpack.c.h.b16 %v31
  %v199 = vunpack.c.l.b16 %v32
  %v200 = vunpack.c.h.b16 %v32
  %v201 = vunpack.c.l.b16 %v33
  %v202 = vunpack.c.h.b16 %v33
  %v203 = vunpack.c.l.b16 %v34
  %v204 = vunpack.c.h.b16 %v34
  %v205 = vunpack.c.l.b16 %v35
  %v206 = vunpack.c.h.b16 %v35
  %v207 = vunpack.c.l.b16 %v36
  %v208 = vunpack.c.h.b16 %v36
  %v209 = vunpack.c.l.b16 %v37
  %v210 = vunpack.c.h.b16 %v37
  %v211 = vunpack.c.l.b16 %v38
  %v212 = vunpack.c.h.b16 %v38
  %v213 = vunpack.c.l.b16 %v39
  %v214 = vunpack.c.h.b16 %v39
  %v215 = vunpack.c.l.b16 %v40
  %v216 = vunpack.c.h.b16 %v40
  %v217 = vunpack.c.l.b16 %v41
  %v218 = vunpack.c.h.b16 %v41
  %v219 = vunpack.c.l.b16 %v42
  %v220 = vunpack.c.h.b16 %v42
  %v221 = vunpack.c.l.b16 %v43
  %v222 = vunpack.c.h.b16 %v43
  %v223 = vunpack.c.l.b16 %v44
  %v224 = vunpack.c.h.b16 %v44
  %v225 = vunpack.c.l.b16 %v45
  %v226 = vunpack.c.h.b16 %v45
  %v227 = vunpack.c.l.b16 %v46
  %v228 = vunpack.c.h.b16 %v46
  %v229 = vunpack.c.l.b16 %v47
  %v230 = vunpack.c.h.b16 %v47
  %v231 = vunpack.c.l.b16 %v48
  %v232 = vunpack.c.h.b16 %v48
  %v233 = vunpack.c.l.b16 %v49
  %v234 = vunpack.c.h.b16 %v49
  %v235 = vunpack.c.l.b16 %v50
  %v236 = vunpack.c.h.b16 %v50
  %v237 = vunpack.c.l.b16 %v51
  %v238 = vunpack.c.h.b16 %v51
  %v239 = vunpack.c.l.b16 %v52
  %v240 = vunpack.c.h.b16 %v52
  %v241 = vunpack.c.l.b16 %v53
  %v242 = vunpack.c.h.b16 %v53
  %v243 = vunpack.c.l.b16 %v54
  %v244 = vunpack.c.h.b16 %v54
  %v245 = vunpack.c.l.b16 %v55
  %v246 = vunpack.c.h.b16 %v55
  %v247 = vunpack.c.l.b16 %v56
  %v248 = vunpack.c.h.b16 %v56
  %v249 = vunpack.c.l.b16 %v57
  %v250 = vunpack.c.h.b16 %v57
  %v251 = vunpack.c.l.b16 %v58
  %v252 = vunpack.c.h.b16 %v58
  %v253 = vunpack.c.l.b16 %v59
  %v254 = vunpack.c.h.b16 %v59
  %v255 = vunpack.c.l.b16 %v60
  %v256 = vunpack.c.h.b16 %v60
  %v257 = vunpack.c.l.b16 %v61
  %v258 = vunpack.c.h.b16 %v61
  %v259 = vunpack.c.l.b16 %v62
  %v260 = vunpack.c.h.b16 %v62
  %v261 = vunpack.c.l.b16 %v63
  %v262 = vunpack.c.h.b16 %v63
  %v263 = vunpack.c.l.b16 %v64
  %v264 = vunpack.c.h.b16 %v64
  %v265 = vunpack.c.l.b16 %v65
  %v266 = vunpack.c.h.b16 %v65
  %v267 = vunpack.c.l.b16 %v66
  %v268 = vunpack.c.h.b16 %v66
  %v269 = vunpack.c.l.b16 %v67
  %v270 = vunpack.c.h.b16 %v67
  %v271 = vunpack.c.l.b16 %v68
  %v272 = vunpack.c.h.b16 %v68
  %v273 = vunpack.c.l.b16 %v69
  %v274 = vunpack.c.h.b16 %v69
  %v275 = vunpack.c.l.b16 %v70
  %v276 = vunpack.c.h.b16 %v70
  %v277 = vunpack.c.l.b16 %v71
  %v278 = vunpack.c.h.b16 %v71
  %v279 = vunpack.c.l.b16 %v72
  %v280 = vunpack.c.h.b16 %v72
  %v281 = vunpack.c.l.b16 %v73
  %v282 = vunpack.c.h.b16 %v73
  %v283 = vunpack.c.l.b16 %v74
  %v284 = vunpack.c.h.b16 %v74
  %v285 = vunpack.c.l.b16 %v75
  %v286 = vunpack.c.h.b16 %v75
  %v287 = vunpack.c.l.b16 %v76
  %v288 = vunpack.c.h.b16 %v76
  %v289 = vunpack.c.l.b16 %v77
  %v290 = vunpack.c.h.b16 %v77
  %v291 = vunpack.c.l.b16 %v78
  %v292 = vunpack.c.h.b16 %v78
  %v293 = vunpack.c.l.b16 %v79
  %v294 = vunpack.c.h.b16 %v79
  %v295 = vunpack.c.l.b16 %v80
  %v296 = vunpack.c.h.b16 %v80
  %v297 = vunpack.c.l.b16 %v81
  %v298 = vunpack.c.h.b16 %v81
  %v299 = vpack.c.b16 %v173, %v171
  %v300 = vpack.c.b16 %v174, %v172
  %v301 = vpack.c.b16 %v177, %v175
  %v302 = vpack.c.b16 %v178, %v176
  %v303 = vpack.c.b16 %v181, %v179
  %v304 = vpack.c.b16 %v182, %v180
  %v305 = vpack.c.b16 %v185, %v183
  %v306 = vpack.c.b16 %v186, %v184
  %v307 = vpack.c.b16 %v189, %v187
  %v308 = vpack.c.b16 %v190, %v188
  %v309 = vpack.c.b16 %v193, %v191
  %v310 = vpack.c.b16 %v194, %v192
  %v311 = vpack.c.b16 %v197, %v195
  %v312 = vpack.c.b16 %v198, %v196
  %v313 = vpack.c.b16 %v201, %v199
  %v314 = vpack.c.b16 %v202, %v200
  %v315 = vpack.c.b16 %v205, %v203
  %v316 = vpack.c.b16 %v206, %v204
  %v317 = vpack.c.b16 %v209, %v207
  %v318 = vpack.c.b16 %v210, %v208
  %v319 = vpack.c.b16 %v213, %v211
  %v320 = vpack.c.b16 %v214, %v212
  %v321 = vpack.c.b16 %v217, %v215
  %v322 = vpack.c.b16 %v218, %v216
  %v323 = vpack.c.b16 %v221, %v219
  %v324 = vpack.c.b16 %v222, %v220
  %v325 = vpack.c.b16 %v225, %v223
  %v326 = vpack.c.b16 %v226, %v224
  %v327 = vpack.c.b16 %v229, %v227
  %v328 = vpack.c.b16 %v230, %v228
  %v329 = vpack.c.b16 %v233, %v231
  %v330 = vpack.c.b16 %v234, %v232
  %v331 = vpack.c.b16 %v237, %v235
  %v332 = vpack.c.b16 %v238, %v236
  %v333 = vpack.c.b16 %v241, %v239
  %v334 = vpack.c.b16 %v242, %v240
  %v335 = vpack.c.b16 %v245, %v243
  %v336 = vpack.c.b16 %v246, %v244
  %v337 = vpack.c.b16 %v249, %v247
  %v338 = vpack.c.b16 %v250, %v248
  %v339 = vpack.c.b16 %v253, %v251
  %v340 = vpack.c.b16 %v254, %v252
  %v341 = vpack.c.b16 %v257, %v255
  %v342 = vpack.c.b16 %v258, %v256
  %v343 = vpack.c.b16 %v261, %v259
  %v344 = vpack.c.b16 %v262, %v260
  %v345 = vpack.c.b16 %v265, %v263
  %v346 = vpack.c.b16 %v266, %v264
  %v347 = vpack.c.b16 %v269, %v267
  %v348 = vpack.c.b16 %v270, %v268
  %v349 = vpack.c.b16 %v273, %v271
  %v350 = vpack.c.b16 %v274, %v272
  %v351 = vpack.c.b16 %v277, %v275
  %v352 = vpack.c.b16 %v278, %v276
  %v353 = vpack.c.b16 %v281, %v279
  %v354 = vpack.c.b16 %v282, %v280
  %v355 = vpack.c.b16 %v285, %v283
  %v356 = vpack.c.b16 %v286, %v284
  %v357 = vpack.c.b16 %v289, %v287
  %v358 = vpack.c.b16 %v290, %v288
  %v359 = vpack.c.b16 %v293, %v291
  %v360 = vpack.c.b16 %v294, %v292
  %v361 = vpack.c.b16 %v297, %v295
  %v362 = vpack.c.b16 %v298, %v296
  %v413 = vunpack.c.l.b16 %v82
  %v414 = vunpack.c.l.b16 %v83
  %v415 = vunpack.c.l.b16 %v84
  %v416 = vunpack.c.l.b16 %v85
  %v417 = vunpack.c.l.b16 %v86
  %v418 = vunpack.c.l.b16 %v87
  %v419 = vunpack.c.l.b16 %v88
  %v420 = vunpack.c.l.b16 %v89
  %v421 = vunpack.c.l.b16 %v90
  %v422 = vunpack.c.l.b16 %v91
  %v423 = vunpack.c.l.b16 %v92
  %v424 = vunpack.c.l.b16 %v93
  %v425 = vunpack.c.l.b16 %v94
  %v426 = vunpack.c.l.b16 %v95
  %v427 = vunpack.c.l.b16 %v96
  %v428 = vunpack.c.l.b16 %v97
  %v429 = vunpack.c.l.b16 %v98
  %v430 = vunpack.c.l.b16 %v99
  %v431 = vpack.c.b16 %v414, %v413
  %v432 = vpack.c.b16 %v416, %v415
  %v433 = vpack.c.b16 %v418, %v417
  %v434 = vpack.c.b16 %v420, %v419
  %v435 = vpack.c.b16 %v422, %v421
  %v436 = vpack.c.b16 %v424, %v423
  %v437 = vpack.c.b16 %v426, %v425
  %v438 = vpack.c.b16 %v428, %v427
  %v439 = vpack.c.b16 %v430, %v429
  %vm449 = vcmask 130048
  %v451 = vsel %vm449, %v300, 0
  %v454 = vsel %vm449, %v302, 0
  %v457 = vsel %vm449, %v304, 0
  %v460 = vsel %vm449, %v306, 0
  %v463 = vsel %vm449, %v308, 0
  %v466 = vsel %vm449, %v310, 0
  %v469 = vsel %vm449, %v312, 0
  %v472 = vsel %vm449, %v314, 0
  %v475 = vsel %vm449, %v316, 0
  %v478 = vsel %vm449, %v318, 0
  %v481 = vsel %vm449, %v320, 0
  %v484 = vsel %vm449, %v322, 0
  %v487 = vsel %vm449, %v324, 0
  %v490 = vsel %vm449, %v326, 0
  %v493 = vsel %vm449, %v328, 0
  %v496 = vsel %vm449, %v330, 0
  %v499 = vsel %vm449, %v332, 0
  %v502 = vsel %vm449, %v334, 0
  %v505 = vsel %vm449, %v336, 0
  %v508 = vsel %vm449, %v338, 0
  %v511 = vsel %vm449, %v340, 0
  %v514 = vsel %vm449, %v342, 0
  %v517 = vsel %vm449, %v344, 0
  %v520 = vsel %vm449, %v346, 0
  %v523 = vsel %vm449, %v348, 0
  %v526 = vsel %vm449, %v350, 0
  %v529 = vsel %vm449, %v352, 0
  %v532 = vsel %vm449, %v354, 0
  %v535 = vsel %vm449, %v356, 0
  %v538 = vsel %vm449, %v358, 0
  %v541 = vsel %vm449, %v360, 0
  %v544 = vsel %vm449, %v362, 0
  %546 = vmatprep.subr.bf16.mxu0 0
  %547 = vmatpush1.bf16.msra.mxu0 %v431
  %548 = vmatprep.subr.bf16.mxu0 0
  %549 = vmatpush1.bf16.msra.mxu0 %v432
  %550 = vmatprep.subr.bf16.mxu0 0
  %551 = vmatpush1.bf16.msra.mxu0 %v433
  %552 = vmatprep.subr.bf16.mxu0 0
  %553 = vmatpush1.bf16.msra.mxu0 %v434
  %554 = vmatprep.subr.bf16.mxu0 0
  %555 = vmatpush1.bf16.msra.mxu0 %v435
  %556 = vmatprep.subr.bf16.mxu0 0
  %557 = vmatpush1.bf16.msra.mxu0 %v436
  %558 = vmatprep.subr.bf16.mxu0 0
  %559 = vmatpush1.bf16.msra.mxu0 %v437
  %560 = vmatprep.subr.bf16.mxu0 0
  %561 = vmatpush1.bf16.msra.mxu0 %v438
  %562 = vmatprep.subr.bf16.mxu0 0
  %563 = vmatpush1.bf16.msra.mxu0 %v439
  %564 = vmatprep.subr.bf16.mxu0 0
  %565 = vmatpush1.bf16.msra.mxu0 0
  %566 = vmatprep.subr.bf16.mxu0 0
  %567 = vmatpush1.bf16.msra.mxu0 0
  %568 = vmatprep.subr.bf16.mxu0 0
  %569 = vmatpush1.bf16.msra.mxu0 0
  %570 = vmatprep.subr.bf16.mxu0 0
  %571 = vmatpush1.bf16.msra.mxu0 0
  %572 = vmatprep.subr.bf16.mxu0 0
  %573 = vmatpush1.bf16.msra.mxu0 0
  %574 = vmatprep.subr.bf16.mxu0 0
  %575 = vmatpush1.bf16.msra.mxu0 0
  %576 = vmatprep.subr.bf16.mxu0 0
  %577 = vmatpush1.bf16.msra.mxu0 0
  %578 = vmatprep.mubr.bf16.mxu0 %v451
  %579 = vmatmul.mubr.bf16.gmra.mrb[0].mxu0 %v299
  %v580 = vpop.f32.mrb[0].mxu0
  %v581 = vadd.f32 %v105, %v580
  %v582 = vpop.f32.mrb[0].mxu0
  %v583 = vpop.f32.mrb[0].mxu0
  %v584 = vadd.f32 %v105, %v583
  %v585 = vpop.f32.mrb[0].mxu0
  %586 = vmatprep.mubr.bf16.mxu0 %v454
  %587 = vmatmul.mubr.bf16.gmra.mrb[0].mxu0 %v301
  %v588 = vpop.f32.mrb[0].mxu0
  %v589 = vadd.f32 %v105, %v588
  %v590 = vpop.f32.mrb[0].mxu0
  %v591 = vpop.f32.mrb[0].mxu0
  %v592 = vadd.f32 %v105, %v591
  %v593 = vpop.f32.mrb[0].mxu0
  %594 = vmatprep.mubr.bf16.mxu0 %v457
  %595 = vmatmul.mubr.bf16.gmra.mrb[0].mxu0 %v303
  %v596 = vpop.f32.mrb[0].mxu0
  %v597 = vadd.f32 %v105, %v596
  %v598 = vpop.f32.mrb[0].mxu0
  %v599 = vpop.f32.mrb[0].mxu0
  %v600 = vadd.f32 %v105, %v599
  %v601 = vpop.f32.mrb[0].mxu0
  %602 = vmatprep.mubr.bf16.mxu0 %v460
  %603 = vmatmul.mubr.bf16.gmra.mrb[0].mxu0 %v305
  %v604 = vpop.f32.mrb[0].mxu0
  %v605 = vadd.f32 %v105, %v604
  %v606 = vpop.f32.mrb[0].mxu0
  %v607 = vpop.f32.mrb[0].mxu0
  %v608 = vadd.f32 %v105, %v607
  %v609 = vpop.f32.mrb[0].mxu0
  %610 = vmatprep.mubr.bf16.mxu0 %v463
  %611 = vmatmul.mubr.bf16.gmra.mrb[0].mxu0 %v307
  %v612 = vpop.f32.mrb[0].mxu0
  %v613 = vadd.f32 %v105, %v612
  %v614 = vpop.f32.mrb[0].mxu0
  %v615 = vpop.f32.mrb[0].mxu0
  %v616 = vadd.f32 %v105, %v615
  %v617 = vpop.f32.mrb[0].mxu0
  %618 = vmatprep.mubr.bf16.mxu0 %v466
  %619 = vmatmul.mubr.bf16.gmra.mrb[0].mxu0 %v309
  %v620 = vpop.f32.mrb[0].mxu0
  %v621 = vadd.f32 %v105, %v620
  %v622 = vpop.f32.mrb[0].mxu0
  %v623 = vpop.f32.mrb[0].mxu0
  %v624 = vadd.f32 %v105, %v623
  %v625 = vpop.f32.mrb[0].mxu0
  %626 = vmatprep.mubr.bf16.mxu0 %v469
  %627 = vmatmul.mubr.bf16.gmra.mrb[0].mxu0 %v311
  %v628 = vpop.f32.mrb[0].mxu0
  %v629 = vadd.f32 %v105, %v628
  %v630 = vpop.f32.mrb[0].mxu0
  %v631 = vpop.f32.mrb[0].mxu0
  %v632 = vadd.f32 %v105, %v631
  %v633 = vpop.f32.mrb[0].mxu0
  %634 = vmatprep.mubr.bf16.mxu0 %v472
  %635 = vmatmul.mubr.bf16.gmra.mrb[0].mxu0 %v313
  %v636 = vpop.f32.mrb[0].mxu0
  %v637 = vadd.f32 %v105, %v636
  %v638 = vpop.f32.mrb[0].mxu0
  %v639 = vpop.f32.mrb[0].mxu0
  %v640 = vadd.f32 %v105, %v639
  %v641 = vpop.f32.mrb[0].mxu0
  %642 = vmatprep.mubr.bf16.mxu0 %v475
  %643 = vmatmul.mubr.bf16.gmra.mrb[0].mxu0 %v315
  %v644 = vpop.f32.mrb[0].mxu0
  %v645 = vadd.f32 %v105, %v644
  %v646 = vpop.f32.mrb[0].mxu0
  %v647 = vpop.f32.mrb[0].mxu0
  %v648 = vadd.f32 %v105, %v647
  %v649 = vpop.f32.mrb[0].mxu0
  %650 = vmatprep.mubr.bf16.mxu0 %v478
  %651 = vmatmul.mubr.bf16.gmra.mrb[0].mxu0 %v317
  %v652 = vpop.f32.mrb[0].mxu0
  %v653 = vadd.f32 %v105, %v652
  %v654 = vpop.f32.mrb[0].mxu0
  %v655 = vpop.f32.mrb[0].mxu0
  %v656 = vadd.f32 %v105, %v655
  %v657 = vpop.f32.mrb[0].mxu0
  %658 = vmatprep.mubr.bf16.mxu0 %v481
  %659 = vmatmul.mubr.bf16.gmra.mrb[0].mxu0 %v319
  %v660 = vpop.f32.mrb[0].mxu0
  %v661 = vadd.f32 %v105, %v660
  %v662 = vpop.f32.mrb[0].mxu0
  %v663 = vpop.f32.mrb[0].mxu0
  %v664 = vadd.f32 %v105, %v663
  %v665 = vpop.f32.mrb[0].mxu0
  %666 = vmatprep.mubr.bf16.mxu0 %v484
  %667 = vmatmul.mubr.bf16.gmra.mrb[0].mxu0 %v321
  %v668 = vpop.f32.mrb[0].mxu0
  %v669 = vadd.f32 %v105, %v668
  %v670 = vpop.f32.mrb[0].mxu0
  %v671 = vpop.f32.mrb[0].mxu0
  %v672 = vadd.f32 %v105, %v671
  %v673 = vpop.f32.mrb[0].mxu0
  %674 = vmatprep.mubr.bf16.mxu0 %v487
  %675 = vmatmul.mubr.bf16.gmra.mrb[0].mxu0 %v323
  %v676 = vpop.f32.mrb[0].mxu0
  %v677 = vadd.f32 %v105, %v676
  %v678 = vpop.f32.mrb[0].mxu0
  %v679 = vpop.f32.mrb[0].mxu0
  %v680 = vadd.f32 %v105, %v679
  %v681 = vpop.f32.mrb[0].mxu0
  %682 = vmatprep.mubr.bf16.mxu0 %v490
  %683 = vmatmul.mubr.bf16.gmra.mrb[0].mxu0 %v325
  %v684 = vpop.f32.mrb[0].mxu0
  %v685 = vadd.f32 %v105, %v684
  %v686 = vpop.f32.mrb[0].mxu0
  %v687 = vpop.f32.mrb[0].mxu0
  %v688 = vadd.f32 %v105, %v687
  %v689 = vpop.f32.mrb[0].mxu0
  %690 = vmatprep.mubr.bf16.mxu0 %v493
  %691 = vmatmul.mubr.bf16.gmra.mrb[0].mxu0 %v327
  %v692 = vpop.f32.mrb[0].mxu0
  %v693 = vadd.f32 %v105, %v692
  %v694 = vpop.f32.mrb[0].mxu0
  %v695 = vpop.f32.mrb[0].mxu0
  %v696 = vadd.f32 %v105, %v695
  %v697 = vpop.f32.mrb[0].mxu0
  %698 = vmatprep.mubr.bf16.mxu0 %v496
  %699 = vmatmul.mubr.bf16.gmra.mrb[0].mxu0 %v329
  %v700 = vpop.f32.mrb[0].mxu0
  %v701 = vadd.f32 %v105, %v700
  %v702 = vpop.f32.mrb[0].mxu0
  %v703 = vpop.f32.mrb[0].mxu0
  %v704 = vadd.f32 %v105, %v703
  %v705 = vpop.f32.mrb[0].mxu0
  %706 = vmatprep.mubr.bf16.mxu0 %v499
  %707 = vmatmul.mubr.bf16.gmra.mrb[0].mxu0 %v331
  %v708 = vpop.f32.mrb[0].mxu0
  %v709 = vadd.f32 %v105, %v708
  %v710 = vpop.f32.mrb[0].mxu0
  %v711 = vpop.f32.mrb[0].mxu0
  %v712 = vadd.f32 %v105, %v711
  %v713 = vpop.f32.mrb[0].mxu0
  %714 = vmatprep.mubr.bf16.mxu0 %v502
  %715 = vmatmul.mubr.bf16.gmra.mrb[0].mxu0 %v333
  %v716 = vpop.f32.mrb[0].mxu0
  %v717 = vadd.f32 %v105, %v716
  %v718 = vpop.f32.mrb[0].mxu0
  %v719 = vpop.f32.mrb[0].mxu0
  %v720 = vadd.f32 %v105, %v719
  %v721 = vpop.f32.mrb[0].mxu0
  %722 = vmatprep.mubr.bf16.mxu0 %v505
  %723 = vmatmul.mubr.bf16.gmra.mrb[0].mxu0 %v335
  %v724 = vpop.f32.mrb[0].mxu0
  %v725 = vadd.f32 %v105, %v724
  %v726 = vpop.f32.mrb[0].mxu0
  %v727 = vpop.f32.mrb[0].mxu0
  %v728 = vadd.f32 %v105, %v727
  %v729 = vpop.f32.mrb[0].mxu0
  %730 = vmatprep.mubr.bf16.mxu0 %v508
  %731 = vmatmul.mubr.bf16.gmra.mrb[0].mxu0 %v337
  %v732 = vpop.f32.mrb[0].mxu0
  %v733 = vadd.f32 %v105, %v732
  %v734 = vpop.f32.mrb[0].mxu0
  %v735 = vpop.f32.mrb[0].mxu0
  %v736 = vadd.f32 %v105, %v735
  %v737 = vpop.f32.mrb[0].mxu0
  %738 = vmatprep.mubr.bf16.mxu0 %v511
  %739 = vmatmul.mubr.bf16.gmra.mrb[0].mxu0 %v339
  %v740 = vpop.f32.mrb[0].mxu0
  %v741 = vadd.f32 %v105, %v740
  %v742 = vpop.f32.mrb[0].mxu0
  %v743 = vpop.f32.mrb[0].mxu0
  %v744 = vadd.f32 %v105, %v743
  %v745 = vpop.f32.mrb[0].mxu0
  %746 = vmatprep.mubr.bf16.mxu0 %v514
  %747 = vmatmul.mubr.bf16.gmra.mrb[0].mxu0 %v341
  %v748 = vpop.f32.mrb[0].mxu0
  %v749 = vadd.f32 %v105, %v748
  %v750 = vpop.f32.mrb[0].mxu0
  %v751 = vpop.f32.mrb[0].mxu0
  %v752 = vadd.f32 %v105, %v751
  %v753 = vpop.f32.mrb[0].mxu0
  %754 = vmatprep.mubr.bf16.mxu0 %v517
  %755 = vmatmul.mubr.bf16.gmra.mrb[0].mxu0 %v343
  %v756 = vpop.f32.mrb[0].mxu0
  %v757 = vadd.f32 %v105, %v756
  %v758 = vpop.f32.mrb[0].mxu0
  %v759 = vpop.f32.mrb[0].mxu0
  %v760 = vadd.f32 %v105, %v759
  %v761 = vpop.f32.mrb[0].mxu0
  %762 = vmatprep.mubr.bf16.mxu0 %v520
  %763 = vmatmul.mubr.bf16.gmra.mrb[0].mxu0 %v345
  %v764 = vpop.f32.mrb[0].mxu0
  %v765 = vadd.f32 %v105, %v764
  %v766 = vpop.f32.mrb[0].mxu0
  %v767 = vpop.f32.mrb[0].mxu0
  %v768 = vadd.f32 %v105, %v767
  %v769 = vpop.f32.mrb[0].mxu0
  %770 = vmatprep.mubr.bf16.mxu0 %v523
  %771 = vmatmul.mubr.bf16.gmra.mrb[0].mxu0 %v347
  %v772 = vpop.f32.mrb[0].mxu0
  %v773 = vadd.f32 %v105, %v772
  %v774 = vpop.f32.mrb[0].mxu0
  %v775 = vpop.f32.mrb[0].mxu0
  %v776 = vadd.f32 %v105, %v775
  %v777 = vpop.f32.mrb[0].mxu0
  %778 = vmatprep.mubr.bf16.mxu0 %v526
  %779 = vmatmul.mubr.bf16.gmra.mrb[0].mxu0 %v349
  %v780 = vpop.f32.mrb[0].mxu0
  %v781 = vadd.f32 %v105, %v780
  %v782 = vpop.f32.mrb[0].mxu0
  %v783 = vpop.f32.mrb[0].mxu0
  %v784 = vadd.f32 %v105, %v783
  %v785 = vpop.f32.mrb[0].mxu0
  %786 = vmatprep.mubr.bf16.mxu0 %v529
  %787 = vmatmul.mubr.bf16.gmra.mrb[0].mxu0 %v351
  %v788 = vpop.f32.mrb[0].mxu0
  %v789 = vadd.f32 %v105, %v788
  %v790 = vpop.f32.mrb[0].mxu0
  %v791 = vpop.f32.mrb[0].mxu0
  %v792 = vadd.f32 %v105, %v791
  %v793 = vpop.f32.mrb[0].mxu0
  %794 = vmatprep.mubr.bf16.mxu0 %v532
  %795 = vmatmul.mubr.bf16.gmra.mrb[0].mxu0 %v353
  %v796 = vpop.f32.mrb[0].mxu0
  %v797 = vadd.f32 %v105, %v796
  %v798 = vpop.f32.mrb[0].mxu0
  %v799 = vpop.f32.mrb[0].mxu0
  %v800 = vadd.f32 %v105, %v799
  %v801 = vpop.f32.mrb[0].mxu0
  %802 = vmatprep.mubr.bf16.mxu0 %v535
  %803 = vmatmul.mubr.bf16.gmra.mrb[0].mxu0 %v355
  %v804 = vpop.f32.mrb[0].mxu0
  %v805 = vadd.f32 %v105, %v804
  %v806 = vpop.f32.mrb[0].mxu0
  %v807 = vpop.f32.mrb[0].mxu0
  %v808 = vadd.f32 %v105, %v807
  %v809 = vpop.f32.mrb[0].mxu0
  %810 = vmatprep.mubr.bf16.mxu0 %v538
  %811 = vmatmul.mubr.bf16.gmra.mrb[0].mxu0 %v357
  %v812 = vpop.f32.mrb[0].mxu0
  %v813 = vadd.f32 %v105, %v812
  %v814 = vpop.f32.mrb[0].mxu0
  %v815 = vpop.f32.mrb[0].mxu0
  %v816 = vadd.f32 %v105, %v815
  %v817 = vpop.f32.mrb[0].mxu0
  %818 = vmatprep.mubr.bf16.mxu0 %v541
  %819 = vmatmul.mubr.bf16.gmra.mrb[0].mxu0 %v359
  %v820 = vpop.f32.mrb[0].mxu0
  %v821 = vadd.f32 %v105, %v820
  %v822 = vpop.f32.mrb[0].mxu0
  %v823 = vpop.f32.mrb[0].mxu0
  %v824 = vadd.f32 %v105, %v823
  %v825 = vpop.f32.mrb[0].mxu0
  %826 = vmatprep.mubr.bf16.mxu0 %v544
  %827 = vmatmul.mubr.bf16.gmra.mrb[0].mxu0 %v361
  %v828 = vpop.f32.mrb[0].mxu0
  %v829 = vadd.f32 %v105, %v828
  %v830 = vpop.f32.mrb[0].mxu0
  %v831 = vpop.f32.mrb[0].mxu0
  %v832 = vadd.f32 %v105, %v831
  %v833 = vpop.f32.mrb[0].mxu0
  %834 = vdwg.mxu0
  %v835 = vld [vmem:[%s3] sm:$0xff]
  %v836 = vld [vmem:[%s3 + $0x8] sm:$0xff]
  %v837 = vld [vmem:[%s3 + $0x10] sm:$0xff]
  %v838 = vld [vmem:[%s3 + $0x18] sm:$0xff]
  %v839 = vld [vmem:[%s3 + $0x20] sm:$0xff]
  %v840 = vld [vmem:[%s3 + $0x28] sm:$0xff]
  %v841 = vld [vmem:[%s3 + $0x30] sm:$0xff]
  %v842 = vld [vmem:[%s3 + $0x38] sm:$0xff]
  %v843 = vld [vmem:[%s3 + $0x40] sm:$0xff]
  %v844 = vld [vmem:[%s3 + $0x48] sm:$0xff]
  %v845 = vld [vmem:[%s3 + $0x50] sm:$0xff]
  %v846 = vld [vmem:[%s3 + $0x58] sm:$0xff]
  %v847 = vld [vmem:[%s3 + $0x60] sm:$0xff]
  %v848 = vld [vmem:[%s3 + $0x68] sm:$0xff]
  %v849 = vld [vmem:[%s3 + $0x70] sm:$0xff]
  %v850 = vld [vmem:[%s3 + $0x78] sm:$0xff]
  %v851 = vld [vmem:[%s3 + $0x80] sm:$0xff]
  %v852 = vld [vmem:[%s3 + $0x88] sm:$0xff]
  %v853 = vld [vmem:[%s3 + $0x90] sm:$0xff]
  %v854 = vld [vmem:[%s3 + $0x98] sm:$0xff]
  %v855 = vld [vmem:[%s3 + $0xa0] sm:$0xff]
  %v856 = vld [vmem:[%s3 + $0xa8] sm:$0xff]
  %v857 = vld [vmem:[%s3 + $0xb0] sm:$0xff]
  %v858 = vld [vmem:[%s3 + $0xb8] sm:$0xff]
  %v859 = vld [vmem:[%s3 + $0xc0] sm:$0xff]
  %v860 = vld [vmem:[%s3 + $0xc8] sm:$0xff]
  %v861 = vld [vmem:[%s3 + $0xd0] sm:$0xff]
  %v862 = vld [vmem:[%s3 + $0xd8] sm:$0xff]
  %v863 = vld [vmem:[%s3 + $0xe0] sm:$0xff]
  %v864 = vld [vmem:[%s3 + $0xe8] sm:$0xff]
  %v865 = vld [vmem:[%s3 + $0xf0] sm:$0xff]
  %v866 = vld [vmem:[%s3 + $0xf8] sm:$0xff]
  %v867 = vld [vmem:[%s3 + $0x100] sm:$0xff]
  %v868 = vld [vmem:[%s3 + $0x108] sm:$0xff]
  %v869 = vld [vmem:[%s3 + $0x110] sm:$0xff]
  %v870 = vld [vmem:[%s3 + $0x118] sm:$0xff]
  %v871 = vld [vmem:[%s3 + $0x120] sm:$0xff]
  %v872 = vld [vmem:[%s3 + $0x128] sm:$0xff]
  %v873 = vld [vmem:[%s3 + $0x130] sm:$0xff]
  %v874 = vld [vmem:[%s3 + $0x138] sm:$0xff]
  %v875 = vld [vmem:[%s3 + $0x140] sm:$0xff]
  %v876 = vld [vmem:[%s3 + $0x148] sm:$0xff]
  %v877 = vld [vmem:[%s3 + $0x150] sm:$0xff]
  %v878 = vld [vmem:[%s3 + $0x158] sm:$0xff]
  %v879 = vld [vmem:[%s3 + $0x160] sm:$0xff]
  %v880 = vld [vmem:[%s3 + $0x168] sm:$0xff]
  %v881 = vld [vmem:[%s3 + $0x170] sm:$0xff]
  %v882 = vld [vmem:[%s3 + $0x178] sm:$0xff]
  %v883 = vld [vmem:[%s3 + $0x180] sm:$0xff]
  %v884 = vld [vmem:[%s3 + $0x188] sm:$0xff]
  %v885 = vld [vmem:[%s3 + $0x190] sm:$0xff]
  %v886 = vld [vmem:[%s3 + $0x198] sm:$0xff]
  %v887 = vld [vmem:[%s3 + $0x1a0] sm:$0xff]
  %v888 = vld [vmem:[%s3 + $0x1a8] sm:$0xff]
  %v889 = vld [vmem:[%s3 + $0x1b0] sm:$0xff]
  %v890 = vld [vmem:[%s3 + $0x1b8] sm:$0xff]
  %v891 = vld [vmem:[%s3 + $0x1c0] sm:$0xff]
  %v892 = vld [vmem:[%s3 + $0x1c8] sm:$0xff]
  %v893 = vld [vmem:[%s3 + $0x1d0] sm:$0xff]
  %v894 = vld [vmem:[%s3 + $0x1d8] sm:$0xff]
  %v895 = vld [vmem:[%s3 + $0x1e0] sm:$0xff]
  %v896 = vld [vmem:[%s3 + $0x1e8] sm:$0xff]
  %v897 = vld [vmem:[%s3 + $0x1f0] sm:$0xff]
  %v898 = vld [vmem:[%s3 + $0x1f8] sm:$0xff]
  %v899 = vadd.f32 %v581, %v835
  %v900 = vadd.f32 %v584, %v836
  %v901 = vadd.f32 %v589, %v837
  %v902 = vadd.f32 %v592, %v838
  %v903 = vadd.f32 %v597, %v839
  %v904 = vadd.f32 %v600, %v840
  %v905 = vadd.f32 %v605, %v841
  %v906 = vadd.f32 %v608, %v842
  %v907 = vadd.f32 %v613, %v843
  %v908 = vadd.f32 %v616, %v844
  %v909 = vadd.f32 %v621, %v845
  %v910 = vadd.f32 %v624, %v846
  %v911 = vadd.f32 %v629, %v847
  %v912 = vadd.f32 %v632, %v848
  %v913 = vadd.f32 %v637, %v849
  %v914 = vadd.f32 %v640, %v850
  %v915 = vadd.f32 %v645, %v851
  %v916 = vadd.f32 %v648, %v852
  %v917 = vadd.f32 %v653, %v853
  %v918 = vadd.f32 %v656, %v854
  %v919 = vadd.f32 %v661, %v855
  %v920 = vadd.f32 %v664, %v856
  %v921 = vadd.f32 %v669, %v857
  %v922 = vadd.f32 %v672, %v858
  %v923 = vadd.f32 %v677, %v859
  %v924 = vadd.f32 %v680, %v860
  %v925 = vadd.f32 %v685, %v861
  %v926 = vadd.f32 %v688, %v862
  %v927 = vadd.f32 %v693, %v863
  %v928 = vadd.f32 %v696, %v864
  %v929 = vadd.f32 %v701, %v865
  %v930 = vadd.f32 %v704, %v866
  %v931 = vadd.f32 %v709, %v867
  %v932 = vadd.f32 %v712, %v868
  %v933 = vadd.f32 %v717, %v869
  %v934 = vadd.f32 %v720, %v870
  %v935 = vadd.f32 %v725, %v871
  %v936 = vadd.f32 %v728, %v872
  %v937 = vadd.f32 %v733, %v873
  %v938 = vadd.f32 %v736, %v874
  %v939 = vadd.f32 %v741, %v875
  %v940 = vadd.f32 %v744, %v876
  %v941 = vadd.f32 %v749, %v877
  %v942 = vadd.f32 %v752, %v878
  %v943 = vadd.f32 %v757, %v879
  %v944 = vadd.f32 %v760, %v880
  %v945 = vadd.f32 %v765, %v881
  %v946 = vadd.f32 %v768, %v882
  %v947 = vadd.f32 %v773, %v883
  %v948 = vadd.f32 %v776, %v884
  %v949 = vadd.f32 %v781, %v885
  %v950 = vadd.f32 %v784, %v886
  %v951 = vadd.f32 %v789, %v887
  %v952 = vadd.f32 %v792, %v888
  %v953 = vadd.f32 %v797, %v889
  %v954 = vadd.f32 %v800, %v890
  %v955 = vadd.f32 %v805, %v891
  %v956 = vadd.f32 %v808, %v892
  %v957 = vadd.f32 %v813, %v893
  %v958 = vadd.f32 %v816, %v894
  %v959 = vadd.f32 %v821, %v895
  %v960 = vadd.f32 %v824, %v896
  %v961 = vadd.f32 %v829, %v897
  %v962 = vadd.f32 %v832, %v898
  %v963 = vmax.f32 %v899, 0.0
  %v964 = vmax.f32 %v900, 0.0
  %v965 = vmax.f32 %v901, 0.0
  %v966 = vmax.f32 %v902, 0.0
  %v967 = vmax.f32 %v903, 0.0
  %v968 = vmax.f32 %v904, 0.0
  %v969 = vmax.f32 %v905, 0.0
  %v970 = vmax.f32 %v906, 0.0
  %v971 = vmax.f32 %v907, 0.0
  %v972 = vmax.f32 %v908, 0.0
  %v973 = vmax.f32 %v909, 0.0
  %v974 = vmax.f32 %v910, 0.0
  %v975 = vmax.f32 %v911, 0.0
  %v976 = vmax.f32 %v912, 0.0
  %v977 = vmax.f32 %v913, 0.0
  %v978 = vmax.f32 %v914, 0.0
  %v979 = vmax.f32 %v915, 0.0
  %v980 = vmax.f32 %v916, 0.0
  %v981 = vmax.f32 %v917, 0.0
  %v982 = vmax.f32 %v918, 0.0
  %v983 = vmax.f32 %v919, 0.0
  %v984 = vmax.f32 %v920, 0.0
  %v985 = vmax.f32 %v921, 0.0
  %v986 = vmax.f32 %v922, 0.0
  %v987 = vmax.f32 %v923, 0.0
  %v988 = vmax.f32 %v924, 0.0
  %v989 = vmax.f32 %v925, 0.0
  %v990 = vmax.f32 %v926, 0.0
  %v991 = vmax.f32 %v927, 0.0
  %v992 = vmax.f32 %v928, 0.0
  %v993 = vmax.f32 %v929, 0.0
  %v994 = vmax.f32 %v930, 0.0
  %v995 = vmax.f32 %v931, 0.0
  %v996 = vmax.f32 %v932, 0.0
  %v997 = vmax.f32 %v933, 0.0
  %v998 = vmax.f32 %v934, 0.0
  %v999 = vmax.f32 %v935, 0.0
  %v1000 = vmax.f32 %v936, 0.0
  %v1001 = vmax.f32 %v937, 0.0
  %v1002 = vmax.f32 %v938, 0.0
  %v1003 = vmax.f32 %v939, 0.0
  %v1004 = vmax.f32 %v940, 0.0
  %v1005 = vmax.f32 %v941, 0.0
  %v1006 = vmax.f32 %v942, 0.0
  %v1007 = vmax.f32 %v943, 0.0
  %v1008 = vmax.f32 %v944, 0.0
  %v1009 = vmax.f32 %v945, 0.0
  %v1010 = vmax.f32 %v946, 0.0
  %v1011 = vmax.f32 %v947, 0.0
  %v1012 = vmax.f32 %v948, 0.0
  %v1013 = vmax.f32 %v949, 0.0
  %v1014 = vmax.f32 %v950, 0.0
  %v1015 = vmax.f32 %v951, 0.0
  %v1016 = vmax.f32 %v952, 0.0
  %v1017 = vmax.f32 %v953, 0.0
  %v1018 = vmax.f32 %v954, 0.0
  %v1019 = vmax.f32 %v955, 0.0
  %v1020 = vmax.f32 %v956, 0.0
  %v1021 = vmax.f32 %v957, 0.0
  %v1022 = vmax.f32 %v958, 0.0
  %v1023 = vmax.f32 %v959, 0.0
  %v1024 = vmax.f32 %v960, 0.0
  %v1025 = vmax.f32 %v961, 0.0
  %v1026 = vmax.f32 %v962, 0.0
  %1027 = vst.msk [vmem:[%s4] sm:$0xff] %vm449, %v963
  %1028 = vst.msk [vmem:[%s4 + $0x8] sm:$0xff] %vm449, %v964
  %1029 = vst.msk [vmem:[%s4 + $0x10] sm:$0xff] %vm449, %v965
  %1030 = vst.msk [vmem:[%s4 + $0x18] sm:$0xff] %vm449, %v966
  %1031 = vst.msk [vmem:[%s4 + $0x20] sm:$0xff] %vm449, %v967
  %1032 = vst.msk [vmem:[%s4 + $0x28] sm:$0xff] %vm449, %v968
  %1033 = vst.msk [vmem:[%s4 + $0x30] sm:$0xff] %vm449, %v969
  %1034 = vst.msk [vmem:[%s4 + $0x38] sm:$0xff] %vm449, %v970
  %1035 = vst.msk [vmem:[%s4 + $0x40] sm:$0xff] %vm449, %v971
  %1036 = vst.msk [vmem:[%s4 + $0x48] sm:$0xff] %vm449, %v972
  %1037 = vst.msk [vmem:[%s4 + $0x50] sm:$0xff] %vm449, %v973
  %1038 = vst.msk [vmem:[%s4 + $0x58] sm:$0xff] %vm449, %v974
  %1039 = vst.msk [vmem:[%s4 + $0x60] sm:$0xff] %vm449, %v975
  %1040 = vst.msk [vmem:[%s4 + $0x68] sm:$0xff] %vm449, %v976
  %1041 = vst.msk [vmem:[%s4 + $0x70] sm:$0xff] %vm449, %v977
  %1042 = vst.msk [vmem:[%s4 + $0x78] sm:$0xff] %vm449, %v978
  %1043 = vst.msk [vmem:[%s4 + $0x80] sm:$0xff] %vm449, %v979
  %1044 = vst.msk [vmem:[%s4 + $0x88] sm:$0xff] %vm449, %v980
  %1045 = vst.msk [vmem:[%s4 + $0x90] sm:$0xff] %vm449, %v981
  %1046 = vst.msk [vmem:[%s4 + $0x98] sm:$0xff] %vm449, %v982
  %1047 = vst.msk [vmem:[%s4 + $0xa0] sm:$0xff] %vm449, %v983
  %1048 = vst.msk [vmem:[%s4 + $0xa8] sm:$0xff] %vm449, %v984
  %1049 = vst.msk [vmem:[%s4 + $0xb0] sm:$0xff] %vm449, %v985
  %1050 = vst.msk [vmem:[%s4 + $0xb8] sm:$0xff] %vm449, %v986
  %1051 = vst.msk [vmem:[%s4 + $0xc0] sm:$0xff] %vm449, %v987
  %1052 = vst.msk [vmem:[%s4 + $0xc8] sm:$0xff] %vm449, %v988
  %1053 = vst.msk [vmem:[%s4 + $0xd0] sm:$0xff] %vm449, %v989
  %1054 = vst.msk [vmem:[%s4 + $0xd8] sm:$0xff] %vm449, %v990
  %1055 = vst.msk [vmem:[%s4 + $0xe0] sm:$0xff] %vm449, %v991
  %1056 = vst.msk [vmem:[%s4 + $0xe8] sm:$0xff] %vm449, %v992
  %1057 = vst.msk [vmem:[%s4 + $0xf0] sm:$0xff] %vm449, %v993
  %1058 = vst.msk [vmem:[%s4 + $0xf8] sm:$0xff] %vm449, %v994
  %1059 = vst.msk [vmem:[%s4 + $0x100] sm:$0xff] %vm449, %v995
  %1060 = vst.msk [vmem:[%s4 + $0x108] sm:$0xff] %vm449, %v996
  %1061 = vst.msk [vmem:[%s4 + $0x110] sm:$0xff] %vm449, %v997
  %1062 = vst.msk [vmem:[%s4 + $0x118] sm:$0xff] %vm449, %v998
  %1063 = vst.msk [vmem:[%s4 + $0x120] sm:$0xff] %vm449, %v999
  %1064 = vst.msk [vmem:[%s4 + $0x128] sm:$0xff] %vm449, %v1000
  %1065 = vst.msk [vmem:[%s4 + $0x130] sm:$0xff] %vm449, %v1001
  %1066 = vst.msk [vmem:[%s4 + $0x138] sm:$0xff] %vm449, %v1002
  %1067 = vst.msk [vmem:[%s4 + $0x140] sm:$0xff] %vm449, %v1003
  %1068 = vst.msk [vmem:[%s4 + $0x148] sm:$0xff] %vm449, %v1004
  %1069 = vst.msk [vmem:[%s4 + $0x150] sm:$0xff] %vm449, %v1005
  %1070 = vst.msk [vmem:[%s4 + $0x158] sm:$0xff] %vm449, %v1006
  %1071 = vst.msk [vmem:[%s4 + $0x160] sm:$0xff] %vm449, %v1007
  %1072 = vst.msk [vmem:[%s4 + $0x168] sm:$0xff] %vm449, %v1008
  %1073 = vst.msk [vmem:[%s4 + $0x170] sm:$0xff] %vm449, %v1009
  %1074 = vst.msk [vmem:[%s4 + $0x178] sm:$0xff] %vm449, %v1010
  %1075 = vst.msk [vmem:[%s4 + $0x180] sm:$0xff] %vm449, %v1011
  %1076 = vst.msk [vmem:[%s4 + $0x188] sm:$0xff] %vm449, %v1012
  %1077 = vst.msk [vmem:[%s4 + $0x190] sm:$0xff] %vm449, %v1013
  %1078 = vst.msk [vmem:[%s4 + $0x198] sm:$0xff] %vm449, %v1014
  %1079 = vst.msk [vmem:[%s4 + $0x1a0] sm:$0xff] %vm449, %v1015
  %1080 = vst.msk [vmem:[%s4 + $0x1a8] sm:$0xff] %vm449, %v1016
  %1081 = vst.msk [vmem:[%s4 + $0x1b0] sm:$0xff] %vm449, %v1017
  %1082 = vst.msk [vmem:[%s4 + $0x1b8] sm:$0xff] %vm449, %v1018
  %1083 = vst.msk [vmem:[%s4 + $0x1c0] sm:$0xff] %vm449, %v1019
  %1084 = vst.msk [vmem:[%s4 + $0x1c8] sm:$0xff] %vm449, %v1020
  %1085 = vst.msk [vmem:[%s4 + $0x1d0] sm:$0xff] %vm449, %v1021
  %1086 = vst.msk [vmem:[%s4 + $0x1d8] sm:$0xff] %vm449, %v1022
  %1087 = vst.msk [vmem:[%s4 + $0x1e0] sm:$0xff] %vm449, %v1023
  %1088 = vst.msk [vmem:[%s4 + $0x1e8] sm:$0xff] %vm449, %v1024
  %1089 = vst.msk [vmem:[%s4 + $0x1f0] sm:$0xff] %vm449, %v1025
  %1090 = vst.msk [vmem:[%s4 + $0x1f8] sm:$0xff] %vm449, %v1026
  // Predicated region
  $region18: #{_lambda_.25} parent=0 // pred_check
    _
  $region19: #{_lambda_.25} parent=0 // pred_check_branch
    %1092 = sbr.rel (0) target = $region21
  $region20: #{_lambda_.25} parent=0 // pred_region
    _
  $region21: #{_lambda_.25} parent=0 // pred_fallthru
    _
  // Predicated region
  $region22: #{_lambda_.25} parent=0 // pred_check
    _
  $region23: #{_lambda_.25} parent=0 // pred_check_branch
    %1094 = sbr.rel (0) target = $region25
  $region24: #{_lambda_.25} parent=0 // pred_region
    _
  $region25: #{_lambda_.25} parent=0 // pred_fallthru
    _

// kernel: _lambda_.28
$region0: #{_lambda_.28}
  #allocation0 [shape = 'u32[]', space=smem, size = 0x4, offset = 0x4, fixed_abs, tag = 'smem constant byte address 0x4 - core index']
  #allocation1 [shape = 'u32[144,128]{1,0:T(1,128)}', space=vmem, size = 0x12000, scoped, tag = 'internal scratch']
  %s0 = inlined_call_operand.vmem [shape: bf16[128,144], index: 0, kind: input, shape index: {}]
  %s1 = inlined_call_operand.vmem [shape: bf16[144,32], index: 1, kind: input, shape index: {}]
  %s2 = inlined_call_operand.vmem [shape: f32[1,32], index: 2, kind: input, shape index: {}]
  %s3 = inlined_call_operand.vmem [shape: f32[128,32], index: 3, kind: output, shape index: {}]
  %s4 = sld [smem:[#allocation0]]
  $region22: #{_lambda_.28} parent=0
    _
  %s6 = ssub.s32 1, %s4
  %s7 = scalar_select 0, %s6, %s4
  // Predicated region
  $region2: #{_lambda_.28} parent=0 // pred_check
    _
  $region3: #{_lambda_.28} parent=0 // pred_check_branch
    %9 = sbr.rel (0) target = $region5
  $region4: #{_lambda_.28} parent=0 // pred_region
    _
  $region5: #{_lambda_.28} parent=0 // pred_fallthru
    _
  // Predicated region
  $region6: #{_lambda_.28} parent=0 // pred_check
    _
  $region7: #{_lambda_.28} parent=0 // pred_check_branch
    %11 = sbr.rel (0) target = $region9
  $region8: #{_lambda_.28} parent=0 // pred_region
    _
  $region9: #{_lambda_.28} parent=0 // pred_fallthru
    _
  // Predicated region
  $region10: #{_lambda_.28} parent=0 // pred_check
    _
  $region11: #{_lambda_.28} parent=0 // pred_check_branch
    %13 = sbr.rel (0) target = $region13
  $region12: #{_lambda_.28} parent=0 // pred_region
    _
  $region13: #{_lambda_.28} parent=0 // pred_fallthru
    _
  %v15 = vld [vmem:[%s0] sm:$0xff]
  %v16 = vld [vmem:[%s0 + $0x8] sm:$0xff]
  %v17 = vld [vmem:[%s0 + $0x10] sm:$0xff]
  %v18 = vld [vmem:[%s0 + $0x18] sm:$0xff]
  %v19 = vld [vmem:[%s0 + $0x20] sm:$0xff]
  %v20 = vld [vmem:[%s0 + $0x28] sm:$0xff]
  %v21 = vld [vmem:[%s0 + $0x30] sm:$0xff]
  %v22 = vld [vmem:[%s0 + $0x38] sm:$0xff]
  %v23 = vld [vmem:[%s0 + $0x40] sm:$0xff]
  %v24 = vld [vmem:[%s0 + $0x48] sm:$0xff]
  %v25 = vld [vmem:[%s0 + $0x50] sm:$0xff]
  %v26 = vld [vmem:[%s0 + $0x58] sm:$0xff]
  %v27 = vld [vmem:[%s0 + $0x60] sm:$0xff]
  %v28 = vld [vmem:[%s0 + $0x68] sm:$0xff]
  %v29 = vld [vmem:[%s0 + $0x70] sm:$0xff]
  %v30 = vld [vmem:[%s0 + $0x78] sm:$0xff]
  %v31 = vld [vmem:[%s1] sm:$0xf]
  %v32 = vld [vmem:[%s1 + $0x4] sm:$0xf]
  %v33 = vld [vmem:[%s1 + $0x8] sm:$0xf]
  %v34 = vld [vmem:[%s1 + $0xc] sm:$0xf]
  %v35 = vld [vmem:[%s1 + $0x10] sm:$0xf]
  %v36 = vld [vmem:[%s1 + $0x14] sm:$0xf]
  %v37 = vld [vmem:[%s1 + $0x18] sm:$0xf]
  %v38 = vld [vmem:[%s1 + $0x1c] sm:$0xf]
  %v39 = vld [vmem:[%s1 + $0x20] sm:$0xf]
  %v40 = vld [vmem:[%s1 + $0x24] sm:$0xf]
  %v41 = vld [vmem:[%s1 + $0x28] sm:$0xf]
  %v42 = vld [vmem:[%s1 + $0x2c] sm:$0xf]
  %v43 = vld [vmem:[%s1 + $0x30] sm:$0xf]
  %v44 = vld [vmem:[%s1 + $0x34] sm:$0xf]
  %v45 = vld [vmem:[%s1 + $0x38] sm:$0xf]
  %v46 = vld [vmem:[%s1 + $0x3c] sm:$0xf]
  %v47 = vld [vmem:[%s1 + $0x40] sm:$0xf]
  %v48 = vld [vmem:[%s1 + $0x44] sm:$0xf]
  %v49 = vld [vmem:[%s2] sm:$0x1]
  %v51 = vlaneseq
  %v52 = vshrl.u32 %v51, 7
  %v53 = vsub.s32 0, %v52
  %v54 = vrot.slane %v49, %v53
  %v72 = vunpack.c.l.b16 %v15
  %v73 = vunpack.c.h.b16 %v15
  %v74 = vunpack.c.l.b16 %v16
  %v75 = vunpack.c.h.b16 %v16
  %v76 = vunpack.c.l.b16 %v17
  %v77 = vunpack.c.h.b16 %v17
  %v78 = vunpack.c.l.b16 %v18
  %v79 = vunpack.c.h.b16 %v18
  %v80 = vunpack.c.l.b16 %v19
  %v81 = vunpack.c.h.b16 %v19
  %v82 = vunpack.c.l.b16 %v20
  %v83 = vunpack.c.h.b16 %v20
  %v84 = vunpack.c.l.b16 %v21
  %v85 = vunpack.c.h.b16 %v21
  %v86 = vunpack.c.l.b16 %v22
  %v87 = vunpack.c.h.b16 %v22
  %v88 = vunpack.c.l.b16 %v23
  %v89 = vunpack.c.h.b16 %v23
  %v90 = vunpack.c.l.b16 %v24
  %v91 = vunpack.c.h.b16 %v24
  %v92 = vunpack.c.l.b16 %v25
  %v93 = vunpack.c.h.b16 %v25
  %v94 = vunpack.c.l.b16 %v26
  %v95 = vunpack.c.h.b16 %v26
  %v96 = vunpack.c.l.b16 %v27
  %v97 = vunpack.c.h.b16 %v27
  %v98 = vunpack.c.l.b16 %v28
  %v99 = vunpack.c.h.b16 %v28
  %v100 = vunpack.c.l.b16 %v29
  %v101 = vunpack.c.h.b16 %v29
  %v102 = vunpack.c.l.b16 %v30
  %v103 = vunpack.c.h.b16 %v30
  %v104 = vpack.c.b16 %v74, %v72
  %v105 = vpack.c.b16 %v75, %v73
  %v106 = vpack.c.b16 %v78, %v76
  %v107 = vpack.c.b16 %v79, %v77
  %v108 = vpack.c.b16 %v82, %v80
  %v109 = vpack.c.b16 %v83, %v81
  %v110 = vpack.c.b16 %v86, %v84
  %v111 = vpack.c.b16 %v87, %v85
  %v112 = vpack.c.b16 %v90, %v88
  %v113 = vpack.c.b16 %v91, %v89
  %v114 = vpack.c.b16 %v94, %v92
  %v115 = vpack.c.b16 %v95, %v93
  %v116 = vpack.c.b16 %v98, %v96
  %v117 = vpack.c.b16 %v99, %v97
  %v118 = vpack.c.b16 %v102, %v100
  %v119 = vpack.c.b16 %v103, %v101
  %v146 = vunpack.c.l.b16 %v31
  %v147 = vunpack.c.l.b16 %v32
  %v148 = vunpack.c.l.b16 %v33
  %v149 = vunpack.c.l.b16 %v34
  %v150 = vunpack.c.l.b16 %v35
  %v151 = vunpack.c.l.b16 %v36
  %v152 = vunpack.c.l.b16 %v37
  %v153 = vunpack.c.l.b16 %v38
  %v154 = vunpack.c.l.b16 %v39
  %v155 = vunpack.c.l.b16 %v40
  %v156 = vunpack.c.l.b16 %v41
  %v157 = vunpack.c.l.b16 %v42
  %v158 = vunpack.c.l.b16 %v43
  %v159 = vunpack.c.l.b16 %v44
  %v160 = vunpack.c.l.b16 %v45
  %v161 = vunpack.c.l.b16 %v46
  %v162 = vunpack.c.l.b16 %v47
  %v163 = vunpack.c.l.b16 %v48
  %v164 = vpack.c.b16 %v147, %v146
  %v165 = vpack.c.b16 %v149, %v148
  %v166 = vpack.c.b16 %v151, %v150
  %v167 = vpack.c.b16 %v153, %v152
  %v168 = vpack.c.b16 %v155, %v154
  %v169 = vpack.c.b16 %v157, %v156
  %v170 = vpack.c.b16 %v159, %v158
  %v171 = vpack.c.b16 %v161, %v160
  %v172 = vpack.c.b16 %v163, %v162
  %vm182 = vcmask 130048
  %v184 = vsel %vm182, %v105, 0
  %v187 = vsel %vm182, %v107, 0
  %v190 = vsel %vm182, %v109, 0
  %v193 = vsel %vm182, %v111, 0
  %v196 = vsel %vm182, %v113, 0
  %v199 = vsel %vm182, %v115, 0
  %v202 = vsel %vm182, %v117, 0
  %v205 = vsel %vm182, %v119, 0
  %207 = vmatprep.subr.bf16.mxu0 0
  %208 = vmatpush1.bf16.msra.mxu0 %v164
  %209 = vmatprep.subr.bf16.mxu0 0
  %210 = vmatpush1.bf16.msra.mxu0 %v165
  %211 = vmatprep.subr.bf16.mxu0 0
  %212 = vmatpush1.bf16.msra.mxu0 %v166
  %213 = vmatprep.subr.bf16.mxu0 0
  %214 = vmatpush1.bf16.msra.mxu0 %v167
  %215 = vmatprep.subr.bf16.mxu0 0
  %216 = vmatpush1.bf16.msra.mxu0 %v168
  %217 = vmatprep.subr.bf16.mxu0 0
  %218 = vmatpush1.bf16.msra.mxu0 %v169
  %219 = vmatprep.subr.bf16.mxu0 0
  %220 = vmatpush1.bf16.msra.mxu0 %v170
  %221 = vmatprep.subr.bf16.mxu0 0
  %222 = vmatpush1.bf16.msra.mxu0 %v171
  %223 = vmatprep.subr.bf16.mxu0 0
  %224 = vmatpush1.bf16.msra.mxu0 %v172
  %225 = vmatprep.subr.bf16.mxu0 0
  %226 = vmatpush1.bf16.msra.mxu0 0
  %227 = vmatprep.subr.bf16.mxu0 0
  %228 = vmatpush1.bf16.msra.mxu0 0
  %229 = vmatprep.subr.bf16.mxu0 0
  %230 = vmatpush1.bf16.msra.mxu0 0
  %231 = vmatprep.subr.bf16.mxu0 0
  %232 = vmatpush1.bf16.msra.mxu0 0
  %233 = vmatprep.subr.bf16.mxu0 0
  %234 = vmatpush1.bf16.msra.mxu0 0
  %235 = vmatprep.subr.bf16.mxu0 0
  %236 = vmatpush1.bf16.msra.mxu0 0
  %237 = vmatprep.subr.bf16.mxu0 0
  %238 = vmatpush1.bf16.msra.mxu0 0
  %239 = vmatprep.mubr.bf16.mxu0 %v184
  %240 = vmatmul.mubr.bf16.gmra.mrb[0].mxu0 %v104
  %v241 = vpop.f32.mrb[0].mxu0
  %v242 = vadd.f32 %v54, %v241
  %v243 = vpop.f32.mrb[0].mxu0
  %v244 = vpop.f32.mrb[0].mxu0
  %v245 = vadd.f32 %v54, %v244
  %v246 = vpop.f32.mrb[0].mxu0
  %247 = vmatprep.mubr.bf16.mxu0 %v187
  %248 = vmatmul.mubr.bf16.gmra.mrb[0].mxu0 %v106
  %v249 = vpop.f32.mrb[0].mxu0
  %v250 = vadd.f32 %v54, %v249
  %v251 = vpop.f32.mrb[0].mxu0
  %v252 = vpop.f32.mrb[0].mxu0
  %v253 = vadd.f32 %v54, %v252
  %v254 = vpop.f32.mrb[0].mxu0
  %255 = vmatprep.mubr.bf16.mxu0 %v190
  %256 = vmatmul.mubr.bf16.gmra.mrb[0].mxu0 %v108
  %v257 = vpop.f32.mrb[0].mxu0
  %v258 = vadd.f32 %v54, %v257
  %v259 = vpop.f32.mrb[0].mxu0
  %v260 = vpop.f32.mrb[0].mxu0
  %v261 = vadd.f32 %v54, %v260
  %v262 = vpop.f32.mrb[0].mxu0
  %263 = vmatprep.mubr.bf16.mxu0 %v193
  %264 = vmatmul.mubr.bf16.gmra.mrb[0].mxu0 %v110
  %v265 = vpop.f32.mrb[0].mxu0
  %v266 = vadd.f32 %v54, %v265
  %v267 = vpop.f32.mrb[0].mxu0
  %v268 = vpop.f32.mrb[0].mxu0
  %v269 = vadd.f32 %v54, %v268
  %v270 = vpop.f32.mrb[0].mxu0
  %271 = vmatprep.mubr.bf16.mxu0 %v196
  %272 = vmatmul.mubr.bf16.gmra.mrb[0].mxu0 %v112
  %v273 = vpop.f32.mrb[0].mxu0
  %v274 = vadd.f32 %v54, %v273
  %v275 = vpop.f32.mrb[0].mxu0
  %v276 = vpop.f32.mrb[0].mxu0
  %v277 = vadd.f32 %v54, %v276
  %v278 = vpop.f32.mrb[0].mxu0
  %279 = vmatprep.mubr.bf16.mxu0 %v199
  %280 = vmatmul.mubr.bf16.gmra.mrb[0].mxu0 %v114
  %v281 = vpop.f32.mrb[0].mxu0
  %v282 = vadd.f32 %v54, %v281
  %v283 = vpop.f32.mrb[0].mxu0
  %v284 = vpop.f32.mrb[0].mxu0
  %v285 = vadd.f32 %v54, %v284
  %v286 = vpop.f32.mrb[0].mxu0
  %287 = vmatprep.mubr.bf16.mxu0 %v202
  %288 = vmatmul.mubr.bf16.gmra.mrb[0].mxu0 %v116
  %v289 = vpop.f32.mrb[0].mxu0
  %v290 = vadd.f32 %v54, %v289
  %v291 = vpop.f32.mrb[0].mxu0
  %v292 = vpop.f32.mrb[0].mxu0
  %v293 = vadd.f32 %v54, %v292
  %v294 = vpop.f32.mrb[0].mxu0
  %295 = vmatprep.mubr.bf16.mxu0 %v205
  %296 = vmatmul.mubr.bf16.gmra.mrb[0].mxu0 %v118
  %v297 = vpop.f32.mrb[0].mxu0
  %v298 = vadd.f32 %v54, %v297
  %v299 = vpop.f32.mrb[0].mxu0
  %v300 = vpop.f32.mrb[0].mxu0
  %v301 = vadd.f32 %v54, %v300
  %v302 = vpop.f32.mrb[0].mxu0
  %303 = vdwg.mxu0
  %v304 = vmax.f32 %v242, 0.0
  %v305 = vmax.f32 %v245, 0.0
  %v306 = vmax.f32 %v250, 0.0
  %v307 = vmax.f32 %v253, 0.0
  %v308 = vmax.f32 %v258, 0.0
  %v309 = vmax.f32 %v261, 0.0
  %v310 = vmax.f32 %v266, 0.0
  %v311 = vmax.f32 %v269, 0.0
  %v312 = vmax.f32 %v274, 0.0
  %v313 = vmax.f32 %v277, 0.0
  %v314 = vmax.f32 %v282, 0.0
  %v315 = vmax.f32 %v285, 0.0
  %v316 = vmax.f32 %v290, 0.0
  %v317 = vmax.f32 %v293, 0.0
  %v318 = vmax.f32 %v298, 0.0
  %v319 = vmax.f32 %v301, 0.0
  %vm320 = vcmask 261120
  %321 = vst.msk [vmem:[%s3] sm:$0xff] %vm320, %v304
  %322 = vst.msk [vmem:[%s3 + $0x8] sm:$0xff] %vm320, %v305
  %323 = vst.msk [vmem:[%s3 + $0x10] sm:$0xff] %vm320, %v306
  %324 = vst.msk [vmem:[%s3 + $0x18] sm:$0xff] %vm320, %v307
  %325 = vst.msk [vmem:[%s3 + $0x20] sm:$0xff] %vm320, %v308
  %326 = vst.msk [vmem:[%s3 + $0x28] sm:$0xff] %vm320, %v309
  %327 = vst.msk [vmem:[%s3 + $0x30] sm:$0xff] %vm320, %v310
  %328 = vst.msk [vmem:[%s3 + $0x38] sm:$0xff] %vm320, %v311
  %329 = vst.msk [vmem:[%s3 + $0x40] sm:$0xff] %vm320, %v312
  %330 = vst.msk [vmem:[%s3 + $0x48] sm:$0xff] %vm320, %v313
  %331 = vst.msk [vmem:[%s3 + $0x50] sm:$0xff] %vm320, %v314
  %332 = vst.msk [vmem:[%s3 + $0x58] sm:$0xff] %vm320, %v315
  %333 = vst.msk [vmem:[%s3 + $0x60] sm:$0xff] %vm320, %v316
  %334 = vst.msk [vmem:[%s3 + $0x68] sm:$0xff] %vm320, %v317
  %335 = vst.msk [vmem:[%s3 + $0x70] sm:$0xff] %vm320, %v318
  %336 = vst.msk [vmem:[%s3 + $0x78] sm:$0xff] %vm320, %v319
  // Predicated region
  $region14: #{_lambda_.28} parent=0 // pred_check
    _
  $region15: #{_lambda_.28} parent=0 // pred_check_branch
    %338 = sbr.rel (0) target = $region17
  $region16: #{_lambda_.28} parent=0 // pred_region
    _
  $region17: #{_lambda_.28} parent=0 // pred_fallthru
    _
  // Predicated region
  $region18: #{_lambda_.28} parent=0 // pred_check
    _
  $region19: #{_lambda_.28} parent=0 // pred_check_branch
    %340 = sbr.rel (0) target = $region21
  $region20: #{_lambda_.28} parent=0 // pred_region
    _
  $region21: #{_lambda_.28} parent=0 // pred_fallthru
    _

// kernel: _lambda_.29
$region0: #{_lambda_.29}
  #allocation0 [shape = 'u32[]', space=smem, size = 0x4, offset = 0x4, fixed_abs, tag = 'smem constant byte address 0x4 - core index']
  #allocation1 [shape = 'u32[144,128]{1,0:T(1,128)}', space=vmem, size = 0x12000, scoped, tag = 'internal scratch']
  %s0 = inlined_call_operand.vmem [shape: bf16[128,16], index: 0, kind: input, shape index: {}]
  %s1 = inlined_call_operand.vmem [shape: bf16[16,32], index: 1, kind: input, shape index: {}]
  %s2 = inlined_call_operand.vmem [shape: f32[1,32], index: 2, kind: input, shape index: {}]
  %s3 = inlined_call_operand.vmem [shape: f32[128,32], index: 3, kind: output, shape index: {}]
  %s4 = sld [smem:[#allocation0]]
  $region22: #{_lambda_.29} parent=0
    _
  %s6 = ssub.s32 1, %s4
  %s7 = scalar_select 0, %s6, %s4
  // Predicated region
  $region2: #{_lambda_.29} parent=0 // pred_check
    _
  $region3: #{_lambda_.29} parent=0 // pred_check_branch
    %9 = sbr.rel (0) target = $region5
  $region4: #{_lambda_.29} parent=0 // pred_region
    _
  $region5: #{_lambda_.29} parent=0 // pred_fallthru
    _
  // Predicated region
  $region6: #{_lambda_.29} parent=0 // pred_check
    _
  $region7: #{_lambda_.29} parent=0 // pred_check_branch
    %11 = sbr.rel (0) target = $region9
  $region8: #{_lambda_.29} parent=0 // pred_region
    _
  $region9: #{_lambda_.29} parent=0 // pred_fallthru
    _
  // Predicated region
  $region10: #{_lambda_.29} parent=0 // pred_check
    _
  $region11: #{_lambda_.29} parent=0 // pred_check_branch
    %13 = sbr.rel (0) target = $region13
  $region12: #{_lambda_.29} parent=0 // pred_region
    _
  $region13: #{_lambda_.29} parent=0 // pred_fallthru
    _
  %v15 = vld [vmem:[%s0] sm:$0xf]
  %v16 = vld [vmem:[%s0 + $0x4] sm:$0xf]
  %v17 = vld [vmem:[%s0 + $0x8] sm:$0xf]
  %v18 = vld [vmem:[%s0 + $0xc] sm:$0xf]
  %v19 = vld [vmem:[%s0 + $0x10] sm:$0xf]
  %v20 = vld [vmem:[%s0 + $0x14] sm:$0xf]
  %v21 = vld [vmem:[%s0 + $0x18] sm:$0xf]
  %v22 = vld [vmem:[%s0 + $0x1c] sm:$0xf]
  %v23 = vld [vmem:[%s0 + $0x20] sm:$0xf]
  %v24 = vld [vmem:[%s0 + $0x24] sm:$0xf]
  %v25 = vld [vmem:[%s0 + $0x28] sm:$0xf]
  %v26 = vld [vmem:[%s0 + $0x2c] sm:$0xf]
  %v27 = vld [vmem:[%s0 + $0x30] sm:$0xf]
  %v28 = vld [vmem:[%s0 + $0x34] sm:$0xf]
  %v29 = vld [vmem:[%s0 + $0x38] sm:$0xf]
  %v30 = vld [vmem:[%s0 + $0x3c] sm:$0xf]
  %v31 = vld [vmem:[%s1] sm:$0xf]
  %v32 = vld [vmem:[%s1 + $0x4] sm:$0xf]
  %v33 = vld [vmem:[%s2] sm:$0x1]
  %v35 = vlaneseq
  %v36 = vshrl.u32 %v35, 7
  %v37 = vsub.s32 0, %v36
  %v38 = vrot.slane %v33, %v37
  %v56 = vunpack.c.l.b16 %v15
  %v57 = vunpack.c.l.b16 %v16
  %v58 = vunpack.c.l.b16 %v17
  %v59 = vunpack.c.l.b16 %v18
  %v60 = vunpack.c.l.b16 %v19
  %v61 = vunpack.c.l.b16 %v20
  %v62 = vunpack.c.l.b16 %v21
  %v63 = vunpack.c.l.b16 %v22
  %v64 = vunpack.c.l.b16 %v23
  %v65 = vunpack.c.l.b16 %v24
  %v66 = vunpack.c.l.b16 %v25
  %v67 = vunpack.c.l.b16 %v26
  %v68 = vunpack.c.l.b16 %v27
  %v69 = vunpack.c.l.b16 %v28
  %v70 = vunpack.c.l.b16 %v29
  %v71 = vunpack.c.l.b16 %v30
  %v72 = vpack.c.b16 %v57, %v56
  %v73 = vpack.c.b16 %v59, %v58
  %v74 = vpack.c.b16 %v61, %v60
  %v75 = vpack.c.b16 %v63, %v62
  %v76 = vpack.c.b16 %v65, %v64
  %v77 = vpack.c.b16 %v67, %v66
  %v78 = vpack.c.b16 %v69, %v68
  %v79 = vpack.c.b16 %v71, %v70
  %v82 = vunpack.c.l.b16 %v31
  %v83 = vunpack.c.l.b16 %v32
  %v84 = vpack.c.b16 %v83, %v82
  %vm86 = vcmask 130048
  %v88 = vsel %vm86, %v72, 0
  %v91 = vsel %vm86, %v73, 0
  %v94 = vsel %vm86, %v74, 0
  %v97 = vsel %vm86, %v75, 0
  %v100 = vsel %vm86, %v76, 0
  %v103 = vsel %vm86, %v77, 0
  %v106 = vsel %vm86, %v78, 0
  %v109 = vsel %vm86, %v79, 0
  %111 = vmatprep.subr.bf16.mxu0 0
  %112 = vmatpush1.bf16.msra.mxu0 %v84
  %113 = vmatprep.subr.bf16.mxu0 0
  %114 = vmatpush1.bf16.msra.mxu0 0
  %115 = vmatprep.subr.bf16.mxu0 0
  %116 = vmatpush1.bf16.msra.mxu0 0
  %117 = vmatprep.subr.bf16.mxu0 0
  %118 = vmatpush1.bf16.msra.mxu0 0
  %119 = vmatprep.subr.bf16.mxu0 0
  %120 = vmatpush1.bf16.msra.mxu0 0
  %121 = vmatprep.subr.bf16.mxu0 0
  %122 = vmatpush1.bf16.msra.mxu0 0
  %123 = vmatprep.subr.bf16.mxu0 0
  %124 = vmatpush1.bf16.msra.mxu0 0
  %125 = vmatprep.subr.bf16.mxu0 0
  %126 = vmatpush1.bf16.msra.mxu0 0
  %127 = vmatprep.subr.bf16.mxu0 0
  %128 = vmatpush1.bf16.msra.mxu0 0
  %129 = vmatprep.subr.bf16.mxu0 0
  %130 = vmatpush1.bf16.msra.mxu0 0
  %131 = vmatprep.subr.bf16.mxu0 0
  %132 = vmatpush1.bf16.msra.mxu0 0
  %133 = vmatprep.subr.bf16.mxu0 0
  %134 = vmatpush1.bf16.msra.mxu0 0
  %135 = vmatprep.subr.bf16.mxu0 0
  %136 = vmatpush1.bf16.msra.mxu0 0
  %137 = vmatprep.subr.bf16.mxu0 0
  %138 = vmatpush1.bf16.msra.mxu0 0
  %139 = vmatprep.subr.bf16.mxu0 0
  %140 = vmatpush1.bf16.msra.mxu0 0
  %141 = vmatprep.subr.bf16.mxu0 0
  %142 = vmatpush1.bf16.msra.mxu0 0
  %143 = vmatprep.mubr.bf16.mxu0 0
  %144 = vmatmul.mubr.bf16.gmra.mrb[0].mxu0 %v88
  %v145 = vpop.f32.mrb[0].mxu0
  %v146 = vadd.f32 %v38, %v145
  %v147 = vpop.f32.mrb[0].mxu0
  %v148 = vpop.f32.mrb[0].mxu0
  %v149 = vadd.f32 %v38, %v148
  %v150 = vpop.f32.mrb[0].mxu0
  %151 = vmatprep.mubr.bf16.mxu0 0
  %152 = vmatmul.mubr.bf16.gmra.mrb[0].mxu0 %v91
  %v153 = vpop.f32.mrb[0].mxu0
  %v154 = vadd.f32 %v38, %v153
  %v155 = vpop.f32.mrb[0].mxu0
  %v156 = vpop.f32.mrb[0].mxu0
  %v157 = vadd.f32 %v38, %v156
  %v158 = vpop.f32.mrb[0].mxu0
  %159 = vmatprep.mubr.bf16.mxu0 0
  %160 = vmatmul.mubr.bf16.gmra.mrb[0].mxu0 %v94
  %v161 = vpop.f32.mrb[0].mxu0
  %v162 = vadd.f32 %v38, %v161
  %v163 = vpop.f32.mrb[0].mxu0
  %v164 = vpop.f32.mrb[0].mxu0
  %v165 = vadd.f32 %v38, %v164
  %v166 = vpop.f32.mrb[0].mxu0
  %167 = vmatprep.mubr.bf16.mxu0 0
  %168 = vmatmul.mubr.bf16.gmra.mrb[0].mxu0 %v97
  %v169 = vpop.f32.mrb[0].mxu0
  %v170 = vadd.f32 %v38, %v169
  %v171 = vpop.f32.mrb[0].mxu0
  %v172 = vpop.f32.mrb[0].mxu0
  %v173 = vadd.f32 %v38, %v172
  %v174 = vpop.f32.mrb[0].mxu0
  %175 = vmatprep.mubr.bf16.mxu0 0
  %176 = vmatmul.mubr.bf16.gmra.mrb[0].mxu0 %v100
  %v177 = vpop.f32.mrb[0].mxu0
  %v178 = vadd.f32 %v38, %v177
  %v179 = vpop.f32.mrb[0].mxu0
  %v180 = vpop.f32.mrb[0].mxu0
  %v181 = vadd.f32 %v38, %v180
  %v182 = vpop.f32.mrb[0].mxu0
  %183 = vmatprep.mubr.bf16.mxu0 0
  %184 = vmatmul.mubr.bf16.gmra.mrb[0].mxu0 %v103
  %v185 = vpop.f32.mrb[0].mxu0
  %v186 = vadd.f32 %v38, %v185
  %v187 = vpop.f32.mrb[0].mxu0
  %v188 = vpop.f32.mrb[0].mxu0
  %v189 = vadd.f32 %v38, %v188
  %v190 = vpop.f32.mrb[0].mxu0
  %191 = vmatprep.mubr.bf16.mxu0 0
  %192 = vmatmul.mubr.bf16.gmra.mrb[0].mxu0 %v106
  %v193 = vpop.f32.mrb[0].mxu0
  %v194 = vadd.f32 %v38, %v193
  %v195 = vpop.f32.mrb[0].mxu0
  %v196 = vpop.f32.mrb[0].mxu0
  %v197 = vadd.f32 %v38, %v196
  %v198 = vpop.f32.mrb[0].mxu0
  %199 = vmatprep.mubr.bf16.mxu0 0
  %200 = vmatmul.mubr.bf16.gmra.mrb[0].mxu0 %v109
  %v201 = vpop.f32.mrb[0].mxu0
  %v202 = vadd.f32 %v38, %v201
  %v203 = vpop.f32.mrb[0].mxu0
  %v204 = vpop.f32.mrb[0].mxu0
  %v205 = vadd.f32 %v38, %v204
  %v206 = vpop.f32.mrb[0].mxu0
  %207 = vdwg.mxu0
  %vm208 = vcmask 261120
  %209 = vst.msk [vmem:[%s3] sm:$0xff] %vm208, %v146
  %210 = vst.msk [vmem:[%s3 + $0x8] sm:$0xff] %vm208, %v149
  %211 = vst.msk [vmem:[%s3 + $0x10] sm:$0xff] %vm208, %v154
  %212 = vst.msk [vmem:[%s3 + $0x18] sm:$0xff] %vm208, %v157
  %213 = vst.msk [vmem:[%s3 + $0x20] sm:$0xff] %vm208, %v162
  %214 = vst.msk [vmem:[%s3 + $0x28] sm:$0xff] %vm208, %v165
  %215 = vst.msk [vmem:[%s3 + $0x30] sm:$0xff] %vm208, %v170
  %216 = vst.msk [vmem:[%s3 + $0x38] sm:$0xff] %vm208, %v173
  %217 = vst.msk [vmem:[%s3 + $0x40] sm:$0xff] %vm208, %v178
  %218 = vst.msk [vmem:[%s3 + $0x48] sm:$0xff] %vm208, %v181
  %219 = vst.msk [vmem:[%s3 + $0x50] sm:$0xff] %vm208, %v186
  %220 = vst.msk [vmem:[%s3 + $0x58] sm:$0xff] %vm208, %v189
  %221 = vst.msk [vmem:[%s3 + $0x60] sm:$0xff] %vm208, %v194
  %222 = vst.msk [vmem:[%s3 + $0x68] sm:$0xff] %vm208, %v197
  %223 = vst.msk [vmem:[%s3 + $0x70] sm:$0xff] %vm208, %v202
  %224 = vst.msk [vmem:[%s3 + $0x78] sm:$0xff] %vm208, %v205
  // Predicated region
  $region14: #{_lambda_.29} parent=0 // pred_check
    _
  $region15: #{_lambda_.29} parent=0 // pred_check_branch
    %226 = sbr.rel (0) target = $region17
  $region16: #{_lambda_.29} parent=0 // pred_region
    _
  $region17: #{_lambda_.29} parent=0 // pred_fallthru
    _
  // Predicated region
  $region18: #{_lambda_.29} parent=0 // pred_check
    _
  $region19: #{_lambda_.29} parent=0 // pred_check_branch
    %228 = sbr.rel (0) target = $region21
  $region20: #{_lambda_.29} parent=0 // pred_region
    _
  $region21: #{_lambda_.29} parent=0 // pred_fallthru
    _

// kernel: _lambda_.30
$region0: #{_lambda_.30}
  #allocation0 [shape = 'u32[]', space=smem, size = 0x4, offset = 0x4, fixed_abs, tag = 'smem constant byte address 0x4 - core index']
  #allocation1 [shape = 'u32[144,128]{1,0:T(1,128)}', space=vmem, size = 0x12000, scoped, tag = 'internal scratch']
  %s0 = inlined_call_operand.vmem [shape: bf16[128,288], index: 0, kind: input, shape index: {}]
  %s1 = inlined_call_operand.vmem [shape: bf16[288,32], index: 1, kind: input, shape index: {}]
  %s2 = inlined_call_operand.vmem [shape: f32[1,32], index: 2, kind: input, shape index: {}]
  %s3 = inlined_call_operand.vmem [shape: f32[128,32], index: 3, kind: input, shape index: {}]
  %s4 = inlined_call_operand.vmem [shape: f32[128,32], index: 4, kind: output, shape index: {}]
  %s5 = sld [smem:[#allocation0]]
  $region26: #{_lambda_.30} parent=0
    _
  %s7 = ssub.s32 1, %s5
  %s8 = scalar_select 0, %s7, %s5
  // Predicated region
  $region2: #{_lambda_.30} parent=0 // pred_check
    _
  $region3: #{_lambda_.30} parent=0 // pred_check_branch
    %10 = sbr.rel (0) target = $region5
  $region4: #{_lambda_.30} parent=0 // pred_region
    _
  $region5: #{_lambda_.30} parent=0 // pred_fallthru
    _
  // Predicated region
  $region6: #{_lambda_.30} parent=0 // pred_check
    _
  $region7: #{_lambda_.30} parent=0 // pred_check_branch
    %12 = sbr.rel (0) target = $region9
  $region8: #{_lambda_.30} parent=0 // pred_region
    _
  $region9: #{_lambda_.30} parent=0 // pred_fallthru
    _
  // Predicated region
  $region10: #{_lambda_.30} parent=0 // pred_check
    _
  $region11: #{_lambda_.30} parent=0 // pred_check_branch
    %14 = sbr.rel (0) target = $region13
  $region12: #{_lambda_.30} parent=0 // pred_region
    _
  $region13: #{_lambda_.30} parent=0 // pred_fallthru
    _
  // Predicated region
  $region14: #{_lambda_.30} parent=0 // pred_check
    _
  $region15: #{_lambda_.30} parent=0 // pred_check_branch
    %16 = sbr.rel (0) target = $region17
  $region16: #{_lambda_.30} parent=0 // pred_region
    _
  $region17: #{_lambda_.30} parent=0 // pred_fallthru
    _
  %v18 = vld [vmem:[%s0] sm:$0xff]
  %v19 = vld [vmem:[%s0 + $0x8] sm:$0xf]
  %v20 = vld [vmem:[%s0 + $0xc] sm:$0xff]
  %v21 = vld [vmem:[%s0 + $0x14] sm:$0xf]
  %v22 = vld [vmem:[%s0 + $0x18] sm:$0xff]
  %v23 = vld [vmem:[%s0 + $0x20] sm:$0xf]
  %v24 = vld [vmem:[%s0 + $0x24] sm:$0xff]
  %v25 = vld [vmem:[%s0 + $0x2c] sm:$0xf]
  %v26 = vld [vmem:[%s0 + $0x30] sm:$0xff]
  %v27 = vld [vmem:[%s0 + $0x38] sm:$0xf]
  %v28 = vld [vmem:[%s0 + $0x3c] sm:$0xff]
  %v29 = vld [vmem:[%s0 + $0x44] sm:$0xf]
  %v30 = vld [vmem:[%s0 + $0x48] sm:$0xff]
  %v31 = vld [vmem:[%s0 + $0x50] sm:$0xf]
  %v32 = vld [vmem:[%s0 + $0x54] sm:$0xff]
  %v33 = vld [vmem:[%s0 + $0x5c] sm:$0xf]
  %v34 = vld [vmem:[%s0 + $0x60] sm:$0xff]
  %v35 = vld [vmem:[%s0 + $0x68] sm:$0xf]
  %v36 = vld [vmem:[%s0 + $0x6c] sm:$0xff]
  %v37 = vld [vmem:[%s0 + $0x74] sm:$0xf]
  %v38 = vld [vmem:[%s0 + $0x78] sm:$0xff]
  %v39 = vld [vmem:[%s0 + $0x80] sm:$0xf]
  %v40 = vld [vmem:[%s0 + $0x84] sm:$0xff]
  %v41 = vld [vmem:[%s0 + $0x8c] sm:$0xf]
  %v42 = vld [vmem:[%s0 + $0x90] sm:$0xff]
  %v43 = vld [vmem:[%s0 + $0x98] sm:$0xf]
  %v44 = vld [vmem:[%s0 + $0x9c] sm:$0xff]
  %v45 = vld [vmem:[%s0 + $0xa4] sm:$0xf]
  %v46 = vld [vmem:[%s0 + $0xa8] sm:$0xff]
  %v47 = vld [vmem:[%s0 + $0xb0] sm:$0xf]
  %v48 = vld [vmem:[%s0 + $0xb4] sm:$0xff]
  %v49 = vld [vmem:[%s0 + $0xbc] sm:$0xf]
  %v50 = vld [vmem:[%s1] sm:$0xf]
  %v51 = vld [vmem:[%s1 + $0x4] sm:$0xf]
  %v52 = vld [vmem:[%s1 + $0x8] sm:$0xf]
  %v53 = vld [vmem:[%s1 + $0xc] sm:$0xf]
  %v54 = vld [vmem:[%s1 + $0x10] sm:$0xf]
  %v55 = vld [vmem:[%s1 + $0x14] sm:$0xf]
  %v56 = vld [vmem:[%s1 + $0x18] sm:$0xf]
  %v57 = vld [vmem:[%s1 + $0x1c] sm:$0xf]
  %v58 = vld [vmem:[%s1 + $0x20] sm:$0xf]
  %v59 = vld [vmem:[%s1 + $0x24] sm:$0xf]
  %v60 = vld [vmem:[%s1 + $0x28] sm:$0xf]
  %v61 = vld [vmem:[%s1 + $0x2c] sm:$0xf]
  %v62 = vld [vmem:[%s1 + $0x30] sm:$0xf]
  %v63 = vld [vmem:[%s1 + $0x34] sm:$0xf]
  %v64 = vld [vmem:[%s1 + $0x38] sm:$0xf]
  %v65 = vld [vmem:[%s1 + $0x3c] sm:$0xf]
  %v66 = vld [vmem:[%s1 + $0x40] sm:$0xf]
  %v67 = vld [vmem:[%s1 + $0x44] sm:$0xf]
  %v68 = vld [vmem:[%s1 + $0x48] sm:$0xf]
  %v69 = vld [vmem:[%s1 + $0x4c] sm:$0xf]
  %v70 = vld [vmem:[%s1 + $0x50] sm:$0xf]
  %v71 = vld [vmem:[%s1 + $0x54] sm:$0xf]
  %v72 = vld [vmem:[%s1 + $0x58] sm:$0xf]
  %v73 = vld [vmem:[%s1 + $0x5c] sm:$0xf]
  %v74 = vld [vmem:[%s1 + $0x60] sm:$0xf]
  %v75 = vld [vmem:[%s1 + $0x64] sm:$0xf]
  %v76 = vld [vmem:[%s1 + $0x68] sm:$0xf]
  %v77 = vld [vmem:[%s1 + $0x6c] sm:$0xf]
  %v78 = vld [vmem:[%s1 + $0x70] sm:$0xf]
  %v79 = vld [vmem:[%s1 + $0x74] sm:$0xf]
  %v80 = vld [vmem:[%s1 + $0x78] sm:$0xf]
  %v81 = vld [vmem:[%s1 + $0x7c] sm:$0xf]
  %v82 = vld [vmem:[%s1 + $0x80] sm:$0xf]
  %v83 = vld [vmem:[%s1 + $0x84] sm:$0xf]
  %v84 = vld [vmem:[%s1 + $0x88] sm:$0xf]
  %v85 = vld [vmem:[%s1 + $0x8c] sm:$0xf]
  %v86 = vld [vmem:[%s2] sm:$0x1]
  %v88 = vlaneseq
  %v89 = vshrl.u32 %v88, 7
  %v90 = vsub.s32 0, %v89
  %v91 = vrot.slane %v86, %v90
  %v125 = vunpack.c.l.b16 %v18
  %v126 = vunpack.c.h.b16 %v18
  %v127 = vunpack.c.l.b16 %v19
  %v128 = vunpack.c.l.b16 %v20
  %v129 = vunpack.c.h.b16 %v20
  %v130 = vunpack.c.l.b16 %v21
  %v131 = vunpack.c.l.b16 %v22
  %v132 = vunpack.c.h.b16 %v22
  %v133 = vunpack.c.l.b16 %v23
  %v134 = vunpack.c.l.b16 %v24
  %v135 = vunpack.c.h.b16 %v24
  %v136 = vunpack.c.l.b16 %v25
  %v137 = vunpack.c.l.b16 %v26
  %v138 = vunpack.c.h.b16 %v26
  %v139 = vunpack.c.l.b16 %v27
  %v140 = vunpack.c.l.b16 %v28
  %v141 = vunpack.c.h.b16 %v28
  %v142 = vunpack.c.l.b16 %v29
  %v143 = vunpack.c.l.b16 %v30
  %v144 = vunpack.c.h.b16 %v30
  %v145 = vunpack.c.l.b16 %v31
  %v146 = vunpack.c.l.b16 %v32
  %v147 = vunpack.c.h.b16 %v32
  %v148 = vunpack.c.l.b16 %v33
  %v149 = vunpack.c.l.b16 %v34
  %v150 = vunpack.c.h.b16 %v34
  %v151 = vunpack.c.l.b16 %v35
  %v152 = vunpack.c.l.b16 %v36
  %v153 = vunpack.c.h.b16 %v36
  %v154 = vunpack.c.l.b16 %v37
  %v155 = vunpack.c.l.b16 %v38
  %v156 = vunpack.c.h.b16 %v38
  %v157 = vunpack.c.l.b16 %v39
  %v158 = vunpack.c.l.b16 %v40
  %v159 = vunpack.c.h.b16 %v40
  %v160 = vunpack.c.l.b16 %v41
  %v161 = vunpack.c.l.b16 %v42
  %v162 = vunpack.c.h.b16 %v42
  %v163 = vunpack.c.l.b16 %v43
  %v164 = vunpack.c.l.b16 %v44
  %v165 = vunpack.c.h.b16 %v44
  %v166 = vunpack.c.l.b16 %v45
  %v167 = vunpack.c.l.b16 %v46
  %v168 = vunpack.c.h.b16 %v46
  %v169 = vunpack.c.l.b16 %v47
  %v170 = vunpack.c.l.b16 %v48
  %v171 = vunpack.c.h.b16 %v48
  %v172 = vunpack.c.l.b16 %v49
  %v173 = vpack.c.b16 %v128, %v125
  %v174 = vpack.c.b16 %v129, %v126
  %v175 = vpack.c.b16 %v130, %v127
  %v176 = vpack.c.b16 %v134, %v131
  %v177 = vpack.c.b16 %v135, %v132
  %v178 = vpack.c.b16 %v136, %v133
  %v179 = vpack.c.b16 %v140, %v137
  %v180 = vpack.c.b16 %v141, %v138
  %v181 = vpack.c.b16 %v142, %v139
  %v182 = vpack.c.b16 %v146, %v143
  %v183 = vpack.c.b16 %v147, %v144
  %v184 = vpack.c.b16 %v148, %v145
  %v185 = vpack.c.b16 %v152, %v149
  %v186 = vpack.c.b16 %v153, %v150
  %v187 = vpack.c.b16 %v154, %v151
  %v188 = vpack.c.b16 %v158, %v155
  %v189 = vpack.c.b16 %v159, %v156
  %v190 = vpack.c.b16 %v160, %v157
  %v191 = vpack.c.b16 %v164, %v161
  %v192 = vpack.c.b16 %v165, %v162
  %v193 = vpack.c.b16 %v166, %v163
  %v194 = vpack.c.b16 %v170, %v167
  %v195 = vpack.c.b16 %v171, %v168
  %v196 = vpack.c.b16 %v172, %v169
  %v249 = vunpack.c.l.b16 %v50
  %v250 = vunpack.c.l.b16 %v51
  %v251 = vunpack.c.l.b16 %v52
  %v252 = vunpack.c.l.b16 %v53
  %v253 = vunpack.c.l.b16 %v54
  %v254 = vunpack.c.l.b16 %v55
  %v255 = vunpack.c.l.b16 %v56
  %v256 = vunpack.c.l.b16 %v57
  %v257 = vunpack.c.l.b16 %v58
  %v258 = vunpack.c.l.b16 %v59
  %v259 = vunpack.c.l.b16 %v60
  %v260 = vunpack.c.l.b16 %v61
  %v261 = vunpack.c.l.b16 %v62
  %v262 = vunpack.c.l.b16 %v63
  %v263 = vunpack.c.l.b16 %v64
  %v264 = vunpack.c.l.b16 %v65
  %v265 = vunpack.c.l.b16 %v66
  %v266 = vunpack.c.l.b16 %v67
  %v267 = vunpack.c.l.b16 %v68
  %v268 = vunpack.c.l.b16 %v69
  %v269 = vunpack.c.l.b16 %v70
  %v270 = vunpack.c.l.b16 %v71
  %v271 = vunpack.c.l.b16 %v72
  %v272 = vunpack.c.l.b16 %v73
  %v273 = vunpack.c.l.b16 %v74
  %v274 = vunpack.c.l.b16 %v75
  %v275 = vunpack.c.l.b16 %v76
  %v276 = vunpack.c.l.b16 %v77
  %v277 = vunpack.c.l.b16 %v78
  %v278 = vunpack.c.l.b16 %v79
  %v279 = vunpack.c.l.b16 %v80
  %v280 = vunpack.c.l.b16 %v81
  %v281 = vunpack.c.l.b16 %v82
  %v282 = vunpack.c.l.b16 %v83
  %v283 = vunpack.c.l.b16 %v84
  %v284 = vunpack.c.l.b16 %v85
  %v285 = vpack.c.b16 %v250, %v249
  %v286 = vpack.c.b16 %v252, %v251
  %v287 = vpack.c.b16 %v254, %v253
  %v288 = vpack.c.b16 %v256, %v255
  %v289 = vpack.c.b16 %v258, %v257
  %v290 = vpack.c.b16 %v260, %v259
  %v291 = vpack.c.b16 %v262, %v261
  %v292 = vpack.c.b16 %v264, %v263
  %v293 = vpack.c.b16 %v266, %v265
  %v294 = vpack.c.b16 %v268, %v267
  %v295 = vpack.c.b16 %v270, %v269
  %v296 = vpack.c.b16 %v272, %v271
  %v297 = vpack.c.b16 %v274, %v273
  %v298 = vpack.c.b16 %v276, %v275
  %v299 = vpack.c.b16 %v278, %v277
  %v300 = vpack.c.b16 %v280, %v279
  %v301 = vpack.c.b16 %v282, %v281
  %v302 = vpack.c.b16 %v284, %v283
  %vm321 = vcmask 261120
  %v323 = vsel %vm321, %v175, 0
  %v326 = vsel %vm321, %v178, 0
  %v329 = vsel %vm321, %v181, 0
  %v332 = vsel %vm321, %v184, 0
  %v335 = vsel %vm321, %v187, 0
  %v338 = vsel %vm321, %v190, 0
  %v341 = vsel %vm321, %v193, 0
  %v344 = vsel %vm321, %v196, 0
  %346 = vmatprep.subr.bf16.mxu0 0
  %347 = vmatpush1.bf16.msra.mxu0 %v285
  %348 = vmatprep.subr.bf16.mxu0 0
  %349 = vmatpush1.bf16.msra.mxu0 %v286
  %350 = vmatprep.subr.bf16.mxu0 0
  %351 = vmatpush1.bf16.msra.mxu0 %v287
  %352 = vmatprep.subr.bf16.mxu0 0
  %353 = vmatpush1.bf16.msra.mxu0 %v288
  %354 = vmatprep.subr.bf16.mxu0 0
  %355 = vmatpush1.bf16.msra.mxu0 %v289
  %356 = vmatprep.subr.bf16.mxu0 0
  %357 = vmatpush1.bf16.msra.mxu0 %v290
  %358 = vmatprep.subr.bf16.mxu0 0
  %359 = vmatpush1.bf16.msra.mxu0 %v291
  %360 = vmatprep.subr.bf16.mxu0 0
  %361 = vmatpush1.bf16.msra.mxu0 %v292
  %362 = vmatprep.subr.bf16.mxu0 0
  %363 = vmatpush1.bf16.msra.mxu0 %v293
  %364 = vmatprep.subr.bf16.mxu0 0
  %365 = vmatpush1.bf16.msra.mxu0 %v294
  %366 = vmatprep.subr.bf16.mxu0 0
  %367 = vmatpush1.bf16.msra.mxu0 %v295
  %368 = vmatprep.subr.bf16.mxu0 0
  %369 = vmatpush1.bf16.msra.mxu0 %v296
  %370 = vmatprep.subr.bf16.mxu0 0
  %371 = vmatpush1.bf16.msra.mxu0 %v297
  %372 = vmatprep.subr.bf16.mxu0 0
  %373 = vmatpush1.bf16.msra.mxu0 %v298
  %374 = vmatprep.subr.bf16.mxu0 0
  %375 = vmatpush1.bf16.msra.mxu0 %v299
  %376 = vmatprep.subr.bf16.mxu0 0
  %377 = vmatpush1.bf16.msra.mxu0 %v300
  %378 = vmatprep.mubr.bf16.mxu0 %v174
  %379 = vmatmul.mubr.bf16.gmra.mrb[0].mxu0 %v173
  %v380 = vpop.f32.mrb[0].mxu0
  %v381 = vadd.f32 %v91, %v380
  %v382 = vpop.f32.mrb[0].mxu0
  %v383 = vpop.f32.mrb[0].mxu0
  %v384 = vadd.f32 %v91, %v383
  %v385 = vpop.f32.mrb[0].mxu0
  %386 = vmatprep.mubr.bf16.mxu0 %v177
  %387 = vmatmul.mubr.bf16.gmra.mrb[0].mxu0 %v176
  %v388 = vpop.f32.mrb[0].mxu0
  %v389 = vadd.f32 %v91, %v388
  %v390 = vpop.f32.mrb[0].mxu0
  %v391 = vpop.f32.mrb[0].mxu0
  %v392 = vadd.f32 %v91, %v391
  %v393 = vpop.f32.mrb[0].mxu0
  %394 = vmatprep.mubr.bf16.mxu0 %v180
  %395 = vmatmul.mubr.bf16.gmra.mrb[0].mxu0 %v179
  %v396 = vpop.f32.mrb[0].mxu0
  %v397 = vadd.f32 %v91, %v396
  %v398 = vpop.f32.mrb[0].mxu0
  %v399 = vpop.f32.mrb[0].mxu0
  %v400 = vadd.f32 %v91, %v399
  %v401 = vpop.f32.mrb[0].mxu0
  %402 = vmatprep.mubr.bf16.mxu0 %v183
  %403 = vmatmul.mubr.bf16.gmra.mrb[0].mxu0 %v182
  %v404 = vpop.f32.mrb[0].mxu0
  %v405 = vadd.f32 %v91, %v404
  %v406 = vpop.f32.mrb[0].mxu0
  %v407 = vpop.f32.mrb[0].mxu0
  %v408 = vadd.f32 %v91, %v407
  %v409 = vpop.f32.mrb[0].mxu0
  %410 = vmatprep.mubr.bf16.mxu0 %v186
  %411 = vmatmul.mubr.bf16.gmra.mrb[0].mxu0 %v185
  %v412 = vpop.f32.mrb[0].mxu0
  %v413 = vadd.f32 %v91, %v412
  %v414 = vpop.f32.mrb[0].mxu0
  %v415 = vpop.f32.mrb[0].mxu0
  %v416 = vadd.f32 %v91, %v415
  %v417 = vpop.f32.mrb[0].mxu0
  %418 = vmatprep.mubr.bf16.mxu0 %v189
  %419 = vmatmul.mubr.bf16.gmra.mrb[0].mxu0 %v188
  %v420 = vpop.f32.mrb[0].mxu0
  %v421 = vadd.f32 %v91, %v420
  %v422 = vpop.f32.mrb[0].mxu0
  %v423 = vpop.f32.mrb[0].mxu0
  %v424 = vadd.f32 %v91, %v423
  %v425 = vpop.f32.mrb[0].mxu0
  %426 = vmatprep.mubr.bf16.mxu0 %v192
  %427 = vmatmul.mubr.bf16.gmra.mrb[0].mxu0 %v191
  %v428 = vpop.f32.mrb[0].mxu0
  %v429 = vadd.f32 %v91, %v428
  %v430 = vpop.f32.mrb[0].mxu0
  %v431 = vpop.f32.mrb[0].mxu0
  %v432 = vadd.f32 %v91, %v431
  %v433 = vpop.f32.mrb[0].mxu0
  %434 = vmatprep.mubr.bf16.mxu0 %v195
  %435 = vmatmul.mubr.bf16.gmra.mrb[0].mxu0 %v194
  %v436 = vpop.f32.mrb[0].mxu0
  %v437 = vadd.f32 %v91, %v436
  %v438 = vpop.f32.mrb[0].mxu0
  %v439 = vpop.f32.mrb[0].mxu0
  %v440 = vadd.f32 %v91, %v439
  %v441 = vpop.f32.mrb[0].mxu0
  %442 = vdwg.mxu0
  %443 = vmatprep.subr.bf16.mxu0 0
  %444 = vmatpush1.bf16.msra.mxu0 %v301
  %445 = vmatprep.subr.bf16.mxu0 0
  %446 = vmatpush1.bf16.msra.mxu0 %v302
  %447 = vmatprep.subr.bf16.mxu0 0
  %448 = vmatpush1.bf16.msra.mxu0 0
  %449 = vmatprep.subr.bf16.mxu0 0
  %450 = vmatpush1.bf16.msra.mxu0 0
  %451 = vmatprep.subr.bf16.mxu0 0
  %452 = vmatpush1.bf16.msra.mxu0 0
  %453 = vmatprep.subr.bf16.mxu0 0
  %454 = vmatpush1.bf16.msra.mxu0 0
  %455 = vmatprep.subr.bf16.mxu0 0
  %456 = vmatpush1.bf16.msra.mxu0 0
  %457 = vmatprep.subr.bf16.mxu0 0
  %458 = vmatpush1.bf16.msra.mxu0 0
  %459 = vmatprep.subr.bf16.mxu0 0
  %460 = vmatpush1.bf16.msra.mxu0 0
  %461 = vmatprep.subr.bf16.mxu0 0
  %462 = vmatpush1.bf16.msra.mxu0 0
  %463 = vmatprep.subr.bf16.mxu0 0
  %464 = vmatpush1.bf16.msra.mxu0 0
  %465 = vmatprep.subr.bf16.mxu0 0
  %466 = vmatpush1.bf16.msra.mxu0 0
  %467 = vmatprep.subr.bf16.mxu0 0
  %468 = vmatpush1.bf16.msra.mxu0 0
  %469 = vmatprep.subr.bf16.mxu0 0
  %470 = vmatpush1.bf16.msra.mxu0 0
  %471 = vmatprep.subr.bf16.mxu0 0
  %472 = vmatpush1.bf16.msra.mxu0 0
  %473 = vmatprep.subr.bf16.mxu0 0
  %474 = vmatpush1.bf16.msra.mxu0 0
  %475 = vmatprep.mubr.bf16.mxu0 0
  %476 = vmatmul.mubr.bf16.gmra.mrb[0].mxu0 %v323
  %v477 = vpop.f32.mrb[0].mxu0
  %v478 = vadd.f32 %v381, %v477
  %v479 = vpop.f32.mrb[0].mxu0
  %v480 = vpop.f32.mrb[0].mxu0
  %v481 = vadd.f32 %v384, %v480
  %v482 = vpop.f32.mrb[0].mxu0
  %483 = vmatprep.mubr.bf16.mxu0 0
  %484 = vmatmul.mubr.bf16.gmra.mrb[0].mxu0 %v326
  %v485 = vpop.f32.mrb[0].mxu0
  %v486 = vadd.f32 %v389, %v485
  %v487 = vpop.f32.mrb[0].mxu0
  %v488 = vpop.f32.mrb[0].mxu0
  %v489 = vadd.f32 %v392, %v488
  %v490 = vpop.f32.mrb[0].mxu0
  %491 = vmatprep.mubr.bf16.mxu0 0
  %492 = vmatmul.mubr.bf16.gmra.mrb[0].mxu0 %v329
  %v493 = vpop.f32.mrb[0].mxu0
  %v494 = vadd.f32 %v397, %v493
  %v495 = vpop.f32.mrb[0].mxu0
  %v496 = vpop.f32.mrb[0].mxu0
  %v497 = vadd.f32 %v400, %v496
  %v498 = vpop.f32.mrb[0].mxu0
  %499 = vmatprep.mubr.bf16.mxu0 0
  %500 = vmatmul.mubr.bf16.gmra.mrb[0].mxu0 %v332
  %v501 = vpop.f32.mrb[0].mxu0
  %v502 = vadd.f32 %v405, %v501
  %v503 = vpop.f32.mrb[0].mxu0
  %v504 = vpop.f32.mrb[0].mxu0
  %v505 = vadd.f32 %v408, %v504
  %v506 = vpop.f32.mrb[0].mxu0
  %507 = vmatprep.mubr.bf16.mxu0 0
  %508 = vmatmul.mubr.bf16.gmra.mrb[0].mxu0 %v335
  %v509 = vpop.f32.mrb[0].mxu0
  %v510 = vadd.f32 %v413, %v509
  %v511 = vpop.f32.mrb[0].mxu0
  %v512 = vpop.f32.mrb[0].mxu0
  %v513 = vadd.f32 %v416, %v512
  %v514 = vpop.f32.mrb[0].mxu0
  %515 = vmatprep.mubr.bf16.mxu0 0
  %516 = vmatmul.mubr.bf16.gmra.mrb[0].mxu0 %v338
  %v517 = vpop.f32.mrb[0].mxu0
  %v518 = vadd.f32 %v421, %v517
  %v519 = vpop.f32.mrb[0].mxu0
  %v520 = vpop.f32.mrb[0].mxu0
  %v521 = vadd.f32 %v424, %v520
  %v522 = vpop.f32.mrb[0].mxu0
  %523 = vmatprep.mubr.bf16.mxu0 0
  %524 = vmatmul.mubr.bf16.gmra.mrb[0].mxu0 %v341
  %v525 = vpop.f32.mrb[0].mxu0
  %v526 = vadd.f32 %v429, %v525
  %v527 = vpop.f32.mrb[0].mxu0
  %v528 = vpop.f32.mrb[0].mxu0
  %v529 = vadd.f32 %v432, %v528
  %v530 = vpop.f32.mrb[0].mxu0
  %531 = vmatprep.mubr.bf16.mxu0 0
  %532 = vmatmul.mubr.bf16.gmra.mrb[0].mxu0 %v344
  %v533 = vpop.f32.mrb[0].mxu0
  %v534 = vadd.f32 %v437, %v533
  %v535 = vpop.f32.mrb[0].mxu0
  %v536 = vpop.f32.mrb[0].mxu0
  %v537 = vadd.f32 %v440, %v536
  %v538 = vpop.f32.mrb[0].mxu0
  %539 = vdwg.mxu0
  %v540 = vld [vmem:[%s3] sm:$0xff]
  %v541 = vld [vmem:[%s3 + $0x8] sm:$0xff]
  %v542 = vld [vmem:[%s3 + $0x10] sm:$0xff]
  %v543 = vld [vmem:[%s3 + $0x18] sm:$0xff]
  %v544 = vld [vmem:[%s3 + $0x20] sm:$0xff]
  %v545 = vld [vmem:[%s3 + $0x28] sm:$0xff]
  %v546 = vld [vmem:[%s3 + $0x30] sm:$0xff]
  %v547 = vld [vmem:[%s3 + $0x38] sm:$0xff]
  %v548 = vld [vmem:[%s3 + $0x40] sm:$0xff]
  %v549 = vld [vmem:[%s3 + $0x48] sm:$0xff]
  %v550 = vld [vmem:[%s3 + $0x50] sm:$0xff]
  %v551 = vld [vmem:[%s3 + $0x58] sm:$0xff]
  %v552 = vld [vmem:[%s3 + $0x60] sm:$0xff]
  %v553 = vld [vmem:[%s3 + $0x68] sm:$0xff]
  %v554 = vld [vmem:[%s3 + $0x70] sm:$0xff]
  %v555 = vld [vmem:[%s3 + $0x78] sm:$0xff]
  %v556 = vadd.f32 %v478, %v540
  %v557 = vadd.f32 %v481, %v541
  %v558 = vadd.f32 %v486, %v542
  %v559 = vadd.f32 %v489, %v543
  %v560 = vadd.f32 %v494, %v544
  %v561 = vadd.f32 %v497, %v545
  %v562 = vadd.f32 %v502, %v546
  %v563 = vadd.f32 %v505, %v547
  %v564 = vadd.f32 %v510, %v548
  %v565 = vadd.f32 %v513, %v549
  %v566 = vadd.f32 %v518, %v550
  %v567 = vadd.f32 %v521, %v551
  %v568 = vadd.f32 %v526, %v552
  %v569 = vadd.f32 %v529, %v553
  %v570 = vadd.f32 %v534, %v554
  %v571 = vadd.f32 %v537, %v555
  %v572 = vmax.f32 %v556, 0.0
  %v573 = vmax.f32 %v557, 0.0
  %v574 = vmax.f32 %v558, 0.0
  %v575 = vmax.f32 %v559, 0.0
  %v576 = vmax.f32 %v560, 0.0
  %v577 = vmax.f32 %v561, 0.0
  %v578 = vmax.f32 %v562, 0.0
  %v579 = vmax.f32 %v563, 0.0
  %v580 = vmax.f32 %v564, 0.0
  %v581 = vmax.f32 %v565, 0.0
  %v582 = vmax.f32 %v566, 0.0
  %v583 = vmax.f32 %v567, 0.0
  %v584 = vmax.f32 %v568, 0.0
  %v585 = vmax.f32 %v569, 0.0
  %v586 = vmax.f32 %v570, 0.0
  %v587 = vmax.f32 %v571, 0.0
  %588 = vst.msk [vmem:[%s4] sm:$0xff] %vm321, %v572
  %589 = vst.msk [vmem:[%s4 + $0x8] sm:$0xff] %vm321, %v573
  %590 = vst.msk [vmem:[%s4 + $0x10] sm:$0xff] %vm321, %v574
  %591 = vst.msk [vmem:[%s4 + $0x18] sm:$0xff] %vm321, %v575
  %592 = vst.msk [vmem:[%s4 + $0x20] sm:$0xff] %vm321, %v576
  %593 = vst.msk [vmem:[%s4 + $0x28] sm:$0xff] %vm321, %v577
  %594 = vst.msk [vmem:[%s4 + $0x30] sm:$0xff] %vm321, %v578
  %595 = vst.msk [vmem:[%s4 + $0x38] sm:$0xff] %vm321, %v579
  %596 = vst.msk [vmem:[%s4 + $0x40] sm:$0xff] %vm321, %v580
  %597 = vst.msk [vmem:[%s4 + $0x48] sm:$0xff] %vm321, %v581
  %598 = vst.msk [vmem:[%s4 + $0x50] sm:$0xff] %vm321, %v582
  %599 = vst.msk [vmem:[%s4 + $0x58] sm:$0xff] %vm321, %v583
  %600 = vst.msk [vmem:[%s4 + $0x60] sm:$0xff] %vm321, %v584
  %601 = vst.msk [vmem:[%s4 + $0x68] sm:$0xff] %vm321, %v585
  %602 = vst.msk [vmem:[%s4 + $0x70] sm:$0xff] %vm321, %v586
  %603 = vst.msk [vmem:[%s4 + $0x78] sm:$0xff] %vm321, %v587
  // Predicated region
  $region18: #{_lambda_.30} parent=0 // pred_check
    _
  $region19: #{_lambda_.30} parent=0 // pred_check_branch
    %605 = sbr.rel (0) target = $region21
  $region20: #{_lambda_.30} parent=0 // pred_region
    _
  $region21: #{_lambda_.30} parent=0 // pred_fallthru
    _
  // Predicated region
  $region22: #{_lambda_.30} parent=0 // pred_check
    _
  $region23: #{_lambda_.30} parent=0 // pred_check_branch
    %607 = sbr.rel (0) target = $region25
  $region24: #{_lambda_.30} parent=0 // pred_region
    _
  $region25: #{_lambda_.30} parent=0 // pred_fallthru
    _

// kernel: _lambda_.31
$region0: #{_lambda_.31}
  #allocation0 [shape = 'u32[]', space=smem, size = 0x4, offset = 0x4, fixed_abs, tag = 'smem constant byte address 0x4 - core index']
  #allocation1 [shape = 'u32[144,128]{1,0:T(1,128)}', space=vmem, size = 0x12000, scoped, tag = 'internal scratch']
  %s0 = inlined_call_operand.vmem [shape: bf16[128,288], index: 0, kind: input, shape index: {}]
  %s1 = inlined_call_operand.vmem [shape: bf16[288,32], index: 1, kind: input, shape index: {}]
  %s2 = inlined_call_operand.vmem [shape: f32[1,32], index: 2, kind: input, shape index: {}]
  %s3 = inlined_call_operand.vmem [shape: f32[128,32], index: 3, kind: output, shape index: {}]
  %s4 = sld [smem:[#allocation0]]
  $region22: #{_lambda_.31} parent=0
    _
  %s6 = ssub.s32 1, %s4
  %s7 = scalar_select 0, %s6, %s4
  // Predicated region
  $region2: #{_lambda_.31} parent=0 // pred_check
    _
  $region3: #{_lambda_.31} parent=0 // pred_check_branch
    %9 = sbr.rel (0) target = $region5
  $region4: #{_lambda_.31} parent=0 // pred_region
    _
  $region5: #{_lambda_.31} parent=0 // pred_fallthru
    _
  // Predicated region
  $region6: #{_lambda_.31} parent=0 // pred_check
    _
  $region7: #{_lambda_.31} parent=0 // pred_check_branch
    %11 = sbr.rel (0) target = $region9
  $region8: #{_lambda_.31} parent=0 // pred_region
    _
  $region9: #{_lambda_.31} parent=0 // pred_fallthru
    _
  // Predicated region
  $region10: #{_lambda_.31} parent=0 // pred_check
    _
  $region11: #{_lambda_.31} parent=0 // pred_check_branch
    %13 = sbr.rel (0) target = $region13
  $region12: #{_lambda_.31} parent=0 // pred_region
    _
  $region13: #{_lambda_.31} parent=0 // pred_fallthru
    _
  %v15 = vld [vmem:[%s0] sm:$0xff]
  %v16 = vld [vmem:[%s0 + $0x8] sm:$0xf]
  %v17 = vld [vmem:[%s0 + $0xc] sm:$0xff]
  %v18 = vld [vmem:[%s0 + $0x14] sm:$0xf]
  %v19 = vld [vmem:[%s0 + $0x18] sm:$0xff]
  %v20 = vld [vmem:[%s0 + $0x20] sm:$0xf]
  %v21 = vld [vmem:[%s0 + $0x24] sm:$0xff]
  %v22 = vld [vmem:[%s0 + $0x2c] sm:$0xf]
  %v23 = vld [vmem:[%s0 + $0x30] sm:$0xff]
  %v24 = vld [vmem:[%s0 + $0x38] sm:$0xf]
  %v25 = vld [vmem:[%s0 + $0x3c] sm:$0xff]
  %v26 = vld [vmem:[%s0 + $0x44] sm:$0xf]
  %v27 = vld [vmem:[%s0 + $0x48] sm:$0xff]
  %v28 = vld [vmem:[%s0 + $0x50] sm:$0xf]
  %v29 = vld [vmem:[%s0 + $0x54] sm:$0xff]
  %v30 = vld [vmem:[%s0 + $0x5c] sm:$0xf]
  %v31 = vld [vmem:[%s0 + $0x60] sm:$0xff]
  %v32 = vld [vmem:[%s0 + $0x68] sm:$0xf]
  %v33 = vld [vmem:[%s0 + $0x6c] sm:$0xff]
  %v34 = vld [vmem:[%s0 + $0x74] sm:$0xf]
  %v35 = vld [vmem:[%s0 + $0x78] sm:$0xff]
  %v36 = vld [vmem:[%s0 + $0x80] sm:$0xf]
  %v37 = vld [vmem:[%s0 + $0x84] sm:$0xff]
  %v38 = vld [vmem:[%s0 + $0x8c] sm:$0xf]
  %v39 = vld [vmem:[%s0 + $0x90] sm:$0xff]
  %v40 = vld [vmem:[%s0 + $0x98] sm:$0xf]
  %v41 = vld [vmem:[%s0 + $0x9c] sm:$0xff]
  %v42 = vld [vmem:[%s0 + $0xa4] sm:$0xf]
  %v43 = vld [vmem:[%s0 + $0xa8] sm:$0xff]
  %v44 = vld [vmem:[%s0 + $0xb0] sm:$0xf]
  %v45 = vld [vmem:[%s0 + $0xb4] sm:$0xff]
  %v46 = vld [vmem:[%s0 + $0xbc] sm:$0xf]
  %v47 = vld [vmem:[%s1] sm:$0xf]
  %v48 = vld [vmem:[%s1 + $0x4] sm:$0xf]
  %v49 = vld [vmem:[%s1 + $0x8] sm:$0xf]
  %v50 = vld [vmem:[%s1 + $0xc] sm:$0xf]
  %v51 = vld [vmem:[%s1 + $0x10] sm:$0xf]
  %v52 = vld [vmem:[%s1 + $0x14] sm:$0xf]
  %v53 = vld [vmem:[%s1 + $0x18] sm:$0xf]
  %v54 = vld [vmem:[%s1 + $0x1c] sm:$0xf]
  %v55 = vld [vmem:[%s1 + $0x20] sm:$0xf]
  %v56 = vld [vmem:[%s1 + $0x24] sm:$0xf]
  %v57 = vld [vmem:[%s1 + $0x28] sm:$0xf]
  %v58 = vld [vmem:[%s1 + $0x2c] sm:$0xf]
  %v59 = vld [vmem:[%s1 + $0x30] sm:$0xf]
  %v60 = vld [vmem:[%s1 + $0x34] sm:$0xf]
  %v61 = vld [vmem:[%s1 + $0x38] sm:$0xf]
  %v62 = vld [vmem:[%s1 + $0x3c] sm:$0xf]
  %v63 = vld [vmem:[%s1 + $0x40] sm:$0xf]
  %v64 = vld [vmem:[%s1 + $0x44] sm:$0xf]
  %v65 = vld [vmem:[%s1 + $0x48] sm:$0xf]
  %v66 = vld [vmem:[%s1 + $0x4c] sm:$0xf]
  %v67 = vld [vmem:[%s1 + $0x50] sm:$0xf]
  %v68 = vld [vmem:[%s1 + $0x54] sm:$0xf]
  %v69 = vld [vmem:[%s1 + $0x58] sm:$0xf]
  %v70 = vld [vmem:[%s1 + $0x5c] sm:$0xf]
  %v71 = vld [vmem:[%s1 + $0x60] sm:$0xf]
  %v72 = vld [vmem:[%s1 + $0x64] sm:$0xf]
  %v73 = vld [vmem:[%s1 + $0x68] sm:$0xf]
  %v74 = vld [vmem:[%s1 + $0x6c] sm:$0xf]
  %v75 = vld [vmem:[%s1 + $0x70] sm:$0xf]
  %v76 = vld [vmem:[%s1 + $0x74] sm:$0xf]
  %v77 = vld [vmem:[%s1 + $0x78] sm:$0xf]
  %v78 = vld [vmem:[%s1 + $0x7c] sm:$0xf]
  %v79 = vld [vmem:[%s1 + $0x80] sm:$0xf]
  %v80 = vld [vmem:[%s1 + $0x84] sm:$0xf]
  %v81 = vld [vmem:[%s1 + $0x88] sm:$0xf]
  %v82 = vld [vmem:[%s1 + $0x8c] sm:$0xf]
  %v83 = vld [vmem:[%s2] sm:$0x1]
  %v85 = vlaneseq
  %v86 = vshrl.u32 %v85, 7
  %v87 = vsub.s32 0, %v86
  %v88 = vrot.slane %v83, %v87
  %v122 = vunpack.c.l.b16 %v15
  %v123 = vunpack.c.h.b16 %v15
  %v124 = vunpack.c.l.b16 %v16
  %v125 = vunpack.c.l.b16 %v17
  %v126 = vunpack.c.h.b16 %v17
  %v127 = vunpack.c.l.b16 %v18
  %v128 = vunpack.c.l.b16 %v19
  %v129 = vunpack.c.h.b16 %v19
  %v130 = vunpack.c.l.b16 %v20
  %v131 = vunpack.c.l.b16 %v21
  %v132 = vunpack.c.h.b16 %v21
  %v133 = vunpack.c.l.b16 %v22
  %v134 = vunpack.c.l.b16 %v23
  %v135 = vunpack.c.h.b16 %v23
  %v136 = vunpack.c.l.b16 %v24
  %v137 = vunpack.c.l.b16 %v25
  %v138 = vunpack.c.h.b16 %v25
  %v139 = vunpack.c.l.b16 %v26
  %v140 = vunpack.c.l.b16 %v27
  %v141 = vunpack.c.h.b16 %v27
  %v142 = vunpack.c.l.b16 %v28
  %v143 = vunpack.c.l.b16 %v29
  %v144 = vunpack.c.h.b16 %v29
  %v145 = vunpack.c.l.b16 %v30
  %v146 = vunpack.c.l.b16 %v31
  %v147 = vunpack.c.h.b16 %v31
  %v148 = vunpack.c.l.b16 %v32
  %v149 = vunpack.c.l.b16 %v33
  %v150 = vunpack.c.h.b16 %v33
  %v151 = vunpack.c.l.b16 %v34
  %v152 = vunpack.c.l.b16 %v35
  %v153 = vunpack.c.h.b16 %v35
  %v154 = vunpack.c.l.b16 %v36
  %v155 = vunpack.c.l.b16 %v37
  %v156 = vunpack.c.h.b16 %v37
  %v157 = vunpack.c.l.b16 %v38
  %v158 = vunpack.c.l.b16 %v39
  %v159 = vunpack.c.h.b16 %v39
  %v160 = vunpack.c.l.b16 %v40
  %v161 = vunpack.c.l.b16 %v41
  %v162 = vunpack.c.h.b16 %v41
  %v163 = vunpack.c.l.b16 %v42
  %v164 = vunpack.c.l.b16 %v43
  %v165 = vunpack.c.h.b16 %v43
  %v166 = vunpack.c.l.b16 %v44
  %v167 = vunpack.c.l.b16 %v45
  %v168 = vunpack.c.h.b16 %v45
  %v169 = vunpack.c.l.b16 %v46
  %v170 = vpack.c.b16 %v125, %v122
  %v171 = vpack.c.b16 %v126, %v123
  %v172 = vpack.c.b16 %v127, %v124
  %v173 = vpack.c.b16 %v131, %v128
  %v174 = vpack.c.b16 %v132, %v129
  %v175 = vpack.c.b16 %v133, %v130
  %v176 = vpack.c.b16 %v137, %v134
  %v177 = vpack.c.b16 %v138, %v135
  %v178 = vpack.c.b16 %v139, %v136
  %v179 = vpack.c.b16 %v143, %v140
  %v180 = vpack.c.b16 %v144, %v141
  %v181 = vpack.c.b16 %v145, %v142
  %v182 = vpack.c.b16 %v149, %v146
  %v183 = vpack.c.b16 %v150, %v147
  %v184 = vpack.c.b16 %v151, %v148
  %v185 = vpack.c.b16 %v155, %v152
  %v186 = vpack.c.b16 %v156, %v153
  %v187 = vpack.c.b16 %v157, %v154
  %v188 = vpack.c.b16 %v161, %v158
  %v189 = vpack.c.b16 %v162, %v159
  %v190 = vpack.c.b16 %v163, %v160
  %v191 = vpack.c.b16 %v167, %v164
  %v192 = vpack.c.b16 %v168, %v165
  %v193 = vpack.c.b16 %v169, %v166
  %v246 = vunpack.c.l.b16 %v47
  %v247 = vunpack.c.l.b16 %v48
  %v248 = vunpack.c.l.b16 %v49
  %v249 = vunpack.c.l.b16 %v50
  %v250 = vunpack.c.l.b16 %v51
  %v251 = vunpack.c.l.b16 %v52
  %v252 = vunpack.c.l.b16 %v53
  %v253 = vunpack.c.l.b16 %v54
  %v254 = vunpack.c.l.b16 %v55
  %v255 = vunpack.c.l.b16 %v56
  %v256 = vunpack.c.l.b16 %v57
  %v257 = vunpack.c.l.b16 %v58
  %v258 = vunpack.c.l.b16 %v59
  %v259 = vunpack.c.l.b16 %v60
  %v260 = vunpack.c.l.b16 %v61
  %v261 = vunpack.c.l.b16 %v62
  %v262 = vunpack.c.l.b16 %v63
  %v263 = vunpack.c.l.b16 %v64
  %v264 = vunpack.c.l.b16 %v65
  %v265 = vunpack.c.l.b16 %v66
  %v266 = vunpack.c.l.b16 %v67
  %v267 = vunpack.c.l.b16 %v68
  %v268 = vunpack.c.l.b16 %v69
  %v269 = vunpack.c.l.b16 %v70
  %v270 = vunpack.c.l.b16 %v71
  %v271 = vunpack.c.l.b16 %v72
  %v272 = vunpack.c.l.b16 %v73
  %v273 = vunpack.c.l.b16 %v74
  %v274 = vunpack.c.l.b16 %v75
  %v275 = vunpack.c.l.b16 %v76
  %v276 = vunpack.c.l.b16 %v77
  %v277 = vunpack.c.l.b16 %v78
  %v278 = vunpack.c.l.b16 %v79
  %v279 = vunpack.c.l.b16 %v80
  %v280 = vunpack.c.l.b16 %v81
  %v281 = vunpack.c.l.b16 %v82
  %v282 = vpack.c.b16 %v247, %v246
  %v283 = vpack.c.b16 %v249, %v248
  %v284 = vpack.c.b16 %v251, %v250
  %v285 = vpack.c.b16 %v253, %v252
  %v286 = vpack.c.b16 %v255, %v254
  %v287 = vpack.c.b16 %v257, %v256
  %v288 = vpack.c.b16 %v259, %v258
  %v289 = vpack.c.b16 %v261, %v260
  %v290 = vpack.c.b16 %v263, %v262
  %v291 = vpack.c.b16 %v265, %v264
  %v292 = vpack.c.b16 %v267, %v266
  %v293 = vpack.c.b16 %v269, %v268
  %v294 = vpack.c.b16 %v271, %v270
  %v295 = vpack.c.b16 %v273, %v272
  %v296 = vpack.c.b16 %v275, %v274
  %v297 = vpack.c.b16 %v277, %v276
  %v298 = vpack.c.b16 %v279, %v278
  %v299 = vpack.c.b16 %v281, %v280
  %vm318 = vcmask 261120
  %v320 = vsel %vm318, %v172, 0
  %v323 = vsel %vm318, %v175, 0
  %v326 = vsel %vm318, %v178, 0
  %v329 = vsel %vm318, %v181, 0
  %v332 = vsel %vm318, %v184, 0
  %v335 = vsel %vm318, %v187, 0
  %v338 = vsel %vm318, %v190, 0
  %v341 = vsel %vm318, %v193, 0
  %343 = vmatprep.subr.bf16.mxu0 0
  %344 = vmatpush1.bf16.msra.mxu0 %v282
  %345 = vmatprep.subr.bf16.mxu0 0
  %346 = vmatpush1.bf16.msra.mxu0 %v283
  %347 = vmatprep.subr.bf16.mxu0 0
  %348 = vmatpush1.bf16.msra.mxu0 %v284
  %349 = vmatprep.subr.bf16.mxu0 0
  %350 = vmatpush1.bf16.msra.mxu0 %v285
  %351 = vmatprep.subr.bf16.mxu0 0
  %352 = vmatpush1.bf16.msra.mxu0 %v286
  %353 = vmatprep.subr.bf16.mxu0 0
  %354 = vmatpush1.bf16.msra.mxu0 %v287
  %355 = vmatprep.subr.bf16.mxu0 0
  %356 = vmatpush1.bf16.msra.mxu0 %v288
  %357 = vmatprep.subr.bf16.mxu0 0
  %358 = vmatpush1.bf16.msra.mxu0 %v289
  %359 = vmatprep.subr.bf16.mxu0 0
  %360 = vmatpush1.bf16.msra.mxu0 %v290
  %361 = vmatprep.subr.bf16.mxu0 0
  %362 = vmatpush1.bf16.msra.mxu0 %v291
  %363 = vmatprep.subr.bf16.mxu0 0
  %364 = vmatpush1.bf16.msra.mxu0 %v292
  %365 = vmatprep.subr.bf16.mxu0 0
  %366 = vmatpush1.bf16.msra.mxu0 %v293
  %367 = vmatprep.subr.bf16.mxu0 0
  %368 = vmatpush1.bf16.msra.mxu0 %v294
  %369 = vmatprep.subr.bf16.mxu0 0
  %370 = vmatpush1.bf16.msra.mxu0 %v295
  %371 = vmatprep.subr.bf16.mxu0 0
  %372 = vmatpush1.bf16.msra.mxu0 %v296
  %373 = vmatprep.subr.bf16.mxu0 0
  %374 = vmatpush1.bf16.msra.mxu0 %v297
  %375 = vmatprep.mubr.bf16.mxu0 %v171
  %376 = vmatmul.mubr.bf16.gmra.mrb[0].mxu0 %v170
  %v377 = vpop.f32.mrb[0].mxu0
  %v378 = vadd.f32 %v88, %v377
  %v379 = vpop.f32.mrb[0].mxu0
  %v380 = vpop.f32.mrb[0].mxu0
  %v381 = vadd.f32 %v88, %v380
  %v382 = vpop.f32.mrb[0].mxu0
  %383 = vmatprep.mubr.bf16.mxu0 %v174
  %384 = vmatmul.mubr.bf16.gmra.mrb[0].mxu0 %v173
  %v385 = vpop.f32.mrb[0].mxu0
  %v386 = vadd.f32 %v88, %v385
  %v387 = vpop.f32.mrb[0].mxu0
  %v388 = vpop.f32.mrb[0].mxu0
  %v389 = vadd.f32 %v88, %v388
  %v390 = vpop.f32.mrb[0].mxu0
  %391 = vmatprep.mubr.bf16.mxu0 %v177
  %392 = vmatmul.mubr.bf16.gmra.mrb[0].mxu0 %v176
  %v393 = vpop.f32.mrb[0].mxu0
  %v394 = vadd.f32 %v88, %v393
  %v395 = vpop.f32.mrb[0].mxu0
  %v396 = vpop.f32.mrb[0].mxu0
  %v397 = vadd.f32 %v88, %v396
  %v398 = vpop.f32.mrb[0].mxu0
  %399 = vmatprep.mubr.bf16.mxu0 %v180
  %400 = vmatmul.mubr.bf16.gmra.mrb[0].mxu0 %v179
  %v401 = vpop.f32.mrb[0].mxu0
  %v402 = vadd.f32 %v88, %v401
  %v403 = vpop.f32.mrb[0].mxu0
  %v404 = vpop.f32.mrb[0].mxu0
  %v405 = vadd.f32 %v88, %v404
  %v406 = vpop.f32.mrb[0].mxu0
  %407 = vmatprep.mubr.bf16.mxu0 %v183
  %408 = vmatmul.mubr.bf16.gmra.mrb[0].mxu0 %v182
  %v409 = vpop.f32.mrb[0].mxu0
  %v410 = vadd.f32 %v88, %v409
  %v411 = vpop.f32.mrb[0].mxu0
  %v412 = vpop.f32.mrb[0].mxu0
  %v413 = vadd.f32 %v88, %v412
  %v414 = vpop.f32.mrb[0].mxu0
  %415 = vmatprep.mubr.bf16.mxu0 %v186
  %416 = vmatmul.mubr.bf16.gmra.mrb[0].mxu0 %v185
  %v417 = vpop.f32.mrb[0].mxu0
  %v418 = vadd.f32 %v88, %v417
  %v419 = vpop.f32.mrb[0].mxu0
  %v420 = vpop.f32.mrb[0].mxu0
  %v421 = vadd.f32 %v88, %v420
  %v422 = vpop.f32.mrb[0].mxu0
  %423 = vmatprep.mubr.bf16.mxu0 %v189
  %424 = vmatmul.mubr.bf16.gmra.mrb[0].mxu0 %v188
  %v425 = vpop.f32.mrb[0].mxu0
  %v426 = vadd.f32 %v88, %v425
  %v427 = vpop.f32.mrb[0].mxu0
  %v428 = vpop.f32.mrb[0].mxu0
  %v429 = vadd.f32 %v88, %v428
  %v430 = vpop.f32.mrb[0].mxu0
  %431 = vmatprep.mubr.bf16.mxu0 %v192
  %432 = vmatmul.mubr.bf16.gmra.mrb[0].mxu0 %v191
  %v433 = vpop.f32.mrb[0].mxu0
  %v434 = vadd.f32 %v88, %v433
  %v435 = vpop.f32.mrb[0].mxu0
  %v436 = vpop.f32.mrb[0].mxu0
  %v437 = vadd.f32 %v88, %v436
  %v438 = vpop.f32.mrb[0].mxu0
  %439 = vdwg.mxu0
  %440 = vmatprep.subr.bf16.mxu0 0
  %441 = vmatpush1.bf16.msra.mxu0 %v298
  %442 = vmatprep.subr.bf16.mxu0 0
  %443 = vmatpush1.bf16.msra.mxu0 %v299
  %444 = vmatprep.subr.bf16.mxu0 0
  %445 = vmatpush1.bf16.msra.mxu0 0
  %446 = vmatprep.subr.bf16.mxu0 0
  %447 = vmatpush1.bf16.msra.mxu0 0
  %448 = vmatprep.subr.bf16.mxu0 0
  %449 = vmatpush1.bf16.msra.mxu0 0
  %450 = vmatprep.subr.bf16.mxu0 0
  %451 = vmatpush1.bf16.msra.mxu0 0
  %452 = vmatprep.subr.bf16.mxu0 0
  %453 = vmatpush1.bf16.msra.mxu0 0
  %454 = vmatprep.subr.bf16.mxu0 0
  %455 = vmatpush1.bf16.msra.mxu0 0
  %456 = vmatprep.subr.bf16.mxu0 0
  %457 = vmatpush1.bf16.msra.mxu0 0
  %458 = vmatprep.subr.bf16.mxu0 0
  %459 = vmatpush1.bf16.msra.mxu0 0
  %460 = vmatprep.subr.bf16.mxu0 0
  %461 = vmatpush1.bf16.msra.mxu0 0
  %462 = vmatprep.subr.bf16.mxu0 0
  %463 = vmatpush1.bf16.msra.mxu0 0
  %464 = vmatprep.subr.bf16.mxu0 0
  %465 = vmatpush1.bf16.msra.mxu0 0
  %466 = vmatprep.subr.bf16.mxu0 0
  %467 = vmatpush1.bf16.msra.mxu0 0
  %468 = vmatprep.subr.bf16.mxu0 0
  %469 = vmatpush1.bf16.msra.mxu0 0
  %470 = vmatprep.subr.bf16.mxu0 0
  %471 = vmatpush1.bf16.msra.mxu0 0
  %472 = vmatprep.mubr.bf16.mxu0 0
  %473 = vmatmul.mubr.bf16.gmra.mrb[0].mxu0 %v320
  %v474 = vpop.f32.mrb[0].mxu0
  %v475 = vadd.f32 %v378, %v474
  %v476 = vpop.f32.mrb[0].mxu0
  %v477 = vpop.f32.mrb[0].mxu0
  %v478 = vadd.f32 %v381, %v477
  %v479 = vpop.f32.mrb[0].mxu0
  %480 = vmatprep.mubr.bf16.mxu0 0
  %481 = vmatmul.mubr.bf16.gmra.mrb[0].mxu0 %v323
  %v482 = vpop.f32.mrb[0].mxu0
  %v483 = vadd.f32 %v386, %v482
  %v484 = vpop.f32.mrb[0].mxu0
  %v485 = vpop.f32.mrb[0].mxu0
  %v486 = vadd.f32 %v389, %v485
  %v487 = vpop.f32.mrb[0].mxu0
  %488 = vmatprep.mubr.bf16.mxu0 0
  %489 = vmatmul.mubr.bf16.gmra.mrb[0].mxu0 %v326
  %v490 = vpop.f32.mrb[0].mxu0
  %v491 = vadd.f32 %v394, %v490
  %v492 = vpop.f32.mrb[0].mxu0
  %v493 = vpop.f32.mrb[0].mxu0
  %v494 = vadd.f32 %v397, %v493
  %v495 = vpop.f32.mrb[0].mxu0
  %496 = vmatprep.mubr.bf16.mxu0 0
  %497 = vmatmul.mubr.bf16.gmra.mrb[0].mxu0 %v329
  %v498 = vpop.f32.mrb[0].mxu0
  %v499 = vadd.f32 %v402, %v498
  %v500 = vpop.f32.mrb[0].mxu0
  %v501 = vpop.f32.mrb[0].mxu0
  %v502 = vadd.f32 %v405, %v501
  %v503 = vpop.f32.mrb[0].mxu0
  %504 = vmatprep.mubr.bf16.mxu0 0
  %505 = vmatmul.mubr.bf16.gmra.mrb[0].mxu0 %v332
  %v506 = vpop.f32.mrb[0].mxu0
  %v507 = vadd.f32 %v410, %v506
  %v508 = vpop.f32.mrb[0].mxu0
  %v509 = vpop.f32.mrb[0].mxu0
  %v510 = vadd.f32 %v413, %v509
  %v511 = vpop.f32.mrb[0].mxu0
  %512 = vmatprep.mubr.bf16.mxu0 0
  %513 = vmatmul.mubr.bf16.gmra.mrb[0].mxu0 %v335
  %v514 = vpop.f32.mrb[0].mxu0
  %v515 = vadd.f32 %v418, %v514
  %v516 = vpop.f32.mrb[0].mxu0
  %v517 = vpop.f32.mrb[0].mxu0
  %v518 = vadd.f32 %v421, %v517
  %v519 = vpop.f32.mrb[0].mxu0
  %520 = vmatprep.mubr.bf16.mxu0 0
  %521 = vmatmul.mubr.bf16.gmra.mrb[0].mxu0 %v338
  %v522 = vpop.f32.mrb[0].mxu0
  %v523 = vadd.f32 %v426, %v522
  %v524 = vpop.f32.mrb[0].mxu0
  %v525 = vpop.f32.mrb[0].mxu0
  %v526 = vadd.f32 %v429, %v525
  %v527 = vpop.f32.mrb[0].mxu0
  %528 = vmatprep.mubr.bf16.mxu0 0
  %529 = vmatmul.mubr.bf16.gmra.mrb[0].mxu0 %v341
  %v530 = vpop.f32.mrb[0].mxu0
  %v531 = vadd.f32 %v434, %v530
  %v532 = vpop.f32.mrb[0].mxu0
  %v533 = vpop.f32.mrb[0].mxu0
  %v534 = vadd.f32 %v437, %v533
  %v535 = vpop.f32.mrb[0].mxu0
  %536 = vdwg.mxu0
  %v537 = vmax.f32 %v475, 0.0
  %v538 = vmax.f32 %v478, 0.0
  %v539 = vmax.f32 %v483, 0.0
  %v540 = vmax.f32 %v486, 0.0
  %v541 = vmax.f32 %v491, 0.0
  %v542 = vmax.f32 %v494, 0.0
  %v543 = vmax.f32 %v499, 0.0
  %v544 = vmax.f32 %v502, 0.0
  %v545 = vmax.f32 %v507, 0.0
  %v546 = vmax.f32 %v510, 0.0
  %v547 = vmax.f32 %v515, 0.0
  %v548 = vmax.f32 %v518, 0.0
  %v549 = vmax.f32 %v523, 0.0
  %v550 = vmax.f32 %v526, 0.0
  %v551 = vmax.f32 %v531, 0.0
  %v552 = vmax.f32 %v534, 0.0
  %553 = vst.msk [vmem:[%s3] sm:$0xff] %vm318, %v537
  %554 = vst.msk [vmem:[%s3 + $0x8] sm:$0xff] %vm318, %v538
  %555 = vst.msk [vmem:[%s3 + $0x10] sm:$0xff] %vm318, %v539
  %556 = vst.msk [vmem:[%s3 + $0x18] sm:$0xff] %vm318, %v540
  %557 = vst.msk [vmem:[%s3 + $0x20] sm:$0xff] %vm318, %v541
  %558 = vst.msk [vmem:[%s3 + $0x28] sm:$0xff] %vm318, %v542
  %559 = vst.msk [vmem:[%s3 + $0x30] sm:$0xff] %vm318, %v543
  %560 = vst.msk [vmem:[%s3 + $0x38] sm:$0xff] %vm318, %v544
  %561 = vst.msk [vmem:[%s3 + $0x40] sm:$0xff] %vm318, %v545
  %562 = vst.msk [vmem:[%s3 + $0x48] sm:$0xff] %vm318, %v546
  %563 = vst.msk [vmem:[%s3 + $0x50] sm:$0xff] %vm318, %v547
  %564 = vst.msk [vmem:[%s3 + $0x58] sm:$0xff] %vm318, %v548
  %565 = vst.msk [vmem:[%s3 + $0x60] sm:$0xff] %vm318, %v549
  %566 = vst.msk [vmem:[%s3 + $0x68] sm:$0xff] %vm318, %v550
  %567 = vst.msk [vmem:[%s3 + $0x70] sm:$0xff] %vm318, %v551
  %568 = vst.msk [vmem:[%s3 + $0x78] sm:$0xff] %vm318, %v552
  // Predicated region
  $region14: #{_lambda_.31} parent=0 // pred_check
    _
  $region15: #{_lambda_.31} parent=0 // pred_check_branch
    %570 = sbr.rel (0) target = $region17
  $region16: #{_lambda_.31} parent=0 // pred_region
    _
  $region17: #{_lambda_.31} parent=0 // pred_fallthru
    _
  // Predicated region
  $region18: #{_lambda_.31} parent=0 // pred_check
    _
  $region19: #{_lambda_.31} parent=0 // pred_check_branch
    %572 = sbr.rel (0) target = $region21
  $region20: #{_lambda_.31} parent=0 // pred_region
    _
  $region21: #{_lambda_.31} parent=0 // pred_fallthru
    _

// kernel: _lambda_.33
$region0: #{_lambda_.33}
  #allocation0 [shape = 'u32[]', space=smem, size = 0x4, offset = 0x4, fixed_abs, tag = 'smem constant byte address 0x4 - core index']
  #allocation1 [shape = 'u32[144,128]{1,0:T(1,128)}', space=vmem, size = 0x12000, scoped, tag = 'internal scratch']
  %s0 = inlined_call_operand.vmem [shape: bf16[32,288], index: 0, kind: input, shape index: {}]
  %s1 = inlined_call_operand.vmem [shape: bf16[288,64], index: 1, kind: input, shape index: {}]
  %s2 = inlined_call_operand.vmem [shape: f32[1,64], index: 2, kind: input, shape index: {}]
  %s3 = inlined_call_operand.vmem [shape: f32[32,64], index: 3, kind: output, shape index: {}]
  %s4 = sld [smem:[#allocation0]]
  $region22: #{_lambda_.33} parent=0
    _
  %s6 = ssub.s32 1, %s4
  %s7 = scalar_select 0, %s6, %s4
  // Predicated region
  $region2: #{_lambda_.33} parent=0 // pred_check
    _
  $region3: #{_lambda_.33} parent=0 // pred_check_branch
    %9 = sbr.rel (0) target = $region5
  $region4: #{_lambda_.33} parent=0 // pred_region
    _
  $region5: #{_lambda_.33} parent=0 // pred_fallthru
    _
  // Predicated region
  $region6: #{_lambda_.33} parent=0 // pred_check
    _
  $region7: #{_lambda_.33} parent=0 // pred_check_branch
    %11 = sbr.rel (0) target = $region9
  $region8: #{_lambda_.33} parent=0 // pred_region
    _
  $region9: #{_lambda_.33} parent=0 // pred_fallthru
    _
  // Predicated region
  $region10: #{_lambda_.33} parent=0 // pred_check
    _
  $region11: #{_lambda_.33} parent=0 // pred_check_branch
    %13 = sbr.rel (0) target = $region13
  $region12: #{_lambda_.33} parent=0 // pred_region
    _
  $region13: #{_lambda_.33} parent=0 // pred_fallthru
    _
  %v15 = vld [vmem:[%s0] sm:$0xff]
  %v16 = vld [vmem:[%s0 + $0x8] sm:$0xf]
  %v17 = vld [vmem:[%s0 + $0xc] sm:$0xff]
  %v18 = vld [vmem:[%s0 + $0x14] sm:$0xf]
  %v19 = vld [vmem:[%s0 + $0x18] sm:$0xff]
  %v20 = vld [vmem:[%s0 + $0x20] sm:$0xf]
  %v21 = vld [vmem:[%s0 + $0x24] sm:$0xff]
  %v22 = vld [vmem:[%s0 + $0x2c] sm:$0xf]
  %v23 = vld [vmem:[%s1] sm:$0xf]
  %v24 = vld [vmem:[%s1 + $0x4] sm:$0xf]
  %v25 = vld [vmem:[%s1 + $0x8] sm:$0xf]
  %v26 = vld [vmem:[%s1 + $0xc] sm:$0xf]
  %v27 = vld [vmem:[%s1 + $0x10] sm:$0xf]
  %v28 = vld [vmem:[%s1 + $0x14] sm:$0xf]
  %v29 = vld [vmem:[%s1 + $0x18] sm:$0xf]
  %v30 = vld [vmem:[%s1 + $0x1c] sm:$0xf]
  %v31 = vld [vmem:[%s1 + $0x20] sm:$0xf]
  %v32 = vld [vmem:[%s1 + $0x24] sm:$0xf]
  %v33 = vld [vmem:[%s1 + $0x28] sm:$0xf]
  %v34 = vld [vmem:[%s1 + $0x2c] sm:$0xf]
  %v35 = vld [vmem:[%s1 + $0x30] sm:$0xf]
  %v36 = vld [vmem:[%s1 + $0x34] sm:$0xf]
  %v37 = vld [vmem:[%s1 + $0x38] sm:$0xf]
  %v38 = vld [vmem:[%s1 + $0x3c] sm:$0xf]
  %v39 = vld [vmem:[%s1 + $0x40] sm:$0xf]
  %v40 = vld [vmem:[%s1 + $0x44] sm:$0xf]
  %v41 = vld [vmem:[%s1 + $0x48] sm:$0xf]
  %v42 = vld [vmem:[%s1 + $0x4c] sm:$0xf]
  %v43 = vld [vmem:[%s1 + $0x50] sm:$0xf]
  %v44 = vld [vmem:[%s1 + $0x54] sm:$0xf]
  %v45 = vld [vmem:[%s1 + $0x58] sm:$0xf]
  %v46 = vld [vmem:[%s1 + $0x5c] sm:$0xf]
  %v47 = vld [vmem:[%s1 + $0x60] sm:$0xf]
  %v48 = vld [vmem:[%s1 + $0x64] sm:$0xf]
  %v49 = vld [vmem:[%s1 + $0x68] sm:$0xf]
  %v50 = vld [vmem:[%s1 + $0x6c] sm:$0xf]
  %v51 = vld [vmem:[%s1 + $0x70] sm:$0xf]
  %v52 = vld [vmem:[%s1 + $0x74] sm:$0xf]
  %v53 = vld [vmem:[%s1 + $0x78] sm:$0xf]
  %v54 = vld [vmem:[%s1 + $0x7c] sm:$0xf]
  %v55 = vld [vmem:[%s1 + $0x80] sm:$0xf]
  %v56 = vld [vmem:[%s1 + $0x84] sm:$0xf]
  %v57 = vld [vmem:[%s1 + $0x88] sm:$0xf]
  %v58 = vld [vmem:[%s1 + $0x8c] sm:$0xf]
  %v59 = vld [vmem:[%s2] sm:$0x1]
  %v61 = vlaneseq
  %v62 = vshrl.u32 %v61, 7
  %v63 = vsub.s32 0, %v62
  %v64 = vrot.slane %v59, %v63
  %v74 = vunpack.c.l.b16 %v15
  %v75 = vunpack.c.h.b16 %v15
  %v76 = vunpack.c.l.b16 %v16
  %v77 = vunpack.c.l.b16 %v17
  %v78 = vunpack.c.h.b16 %v17
  %v79 = vunpack.c.l.b16 %v18
  %v80 = vunpack.c.l.b16 %v19
  %v81 = vunpack.c.h.b16 %v19
  %v82 = vunpack.c.l.b16 %v20
  %v83 = vunpack.c.l.b16 %v21
  %v84 = vunpack.c.h.b16 %v21
  %v85 = vunpack.c.l.b16 %v22
  %v86 = vpack.c.b16 %v77, %v74
  %v87 = vpack.c.b16 %v78, %v75
  %v88 = vpack.c.b16 %v79, %v76
  %v89 = vpack.c.b16 %v83, %v80
  %v90 = vpack.c.b16 %v84, %v81
  %v91 = vpack.c.b16 %v85, %v82
  %v132 = vunpack.c.l.b16 %v23
  %v133 = vunpack.c.l.b16 %v24
  %v134 = vunpack.c.l.b16 %v25
  %v135 = vunpack.c.l.b16 %v26
  %v136 = vunpack.c.l.b16 %v27
  %v137 = vunpack.c.l.b16 %v28
  %v138 = vunpack.c.l.b16 %v29
  %v139 = vunpack.c.l.b16 %v30
  %v140 = vunpack.c.l.b16 %v31
  %v141 = vunpack.c.l.b16 %v32
  %v142 = vunpack.c.l.b16 %v33
  %v143 = vunpack.c.l.b16 %v34
  %v144 = vunpack.c.l.b16 %v35
  %v145 = vunpack.c.l.b16 %v36
  %v146 = vunpack.c.l.b16 %v37
  %v147 = vunpack.c.l.b16 %v38
  %v148 = vunpack.c.l.b16 %v39
  %v149 = vunpack.c.l.b16 %v40
  %v150 = vunpack.c.l.b16 %v41
  %v151 = vunpack.c.l.b16 %v42
  %v152 = vunpack.c.l.b16 %v43
  %v153 = vunpack.c.l.b16 %v44
  %v154 = vunpack.c.l.b16 %v45
  %v155 = vunpack.c.l.b16 %v46
  %v156 = vunpack.c.l.b16 %v47
  %v157 = vunpack.c.l.b16 %v48
  %v158 = vunpack.c.l.b16 %v49
  %v159 = vunpack.c.l.b16 %v50
  %v160 = vunpack.c.l.b16 %v51
  %v161 = vunpack.c.l.b16 %v52
  %v162 = vunpack.c.l.b16 %v53
  %v163 = vunpack.c.l.b16 %v54
  %v164 = vunpack.c.l.b16 %v55
  %v165 = vunpack.c.l.b16 %v56
  %v166 = vunpack.c.l.b16 %v57
  %v167 = vunpack.c.l.b16 %v58
  %v168 = vpack.c.b16 %v133, %v132
  %v169 = vpack.c.b16 %v135, %v134
  %v170 = vpack.c.b16 %v137, %v136
  %v171 = vpack.c.b16 %v139, %v138
  %v172 = vpack.c.b16 %v141, %v140
  %v173 = vpack.c.b16 %v143, %v142
  %v174 = vpack.c.b16 %v145, %v144
  %v175 = vpack.c.b16 %v147, %v146
  %v176 = vpack.c.b16 %v149, %v148
  %v177 = vpack.c.b16 %v151, %v150
  %v178 = vpack.c.b16 %v153, %v152
  %v179 = vpack.c.b16 %v155, %v154
  %v180 = vpack.c.b16 %v157, %v156
  %v181 = vpack.c.b16 %v159, %v158
  %v182 = vpack.c.b16 %v161, %v160
  %v183 = vpack.c.b16 %v163, %v162
  %v184 = vpack.c.b16 %v165, %v164
  %v185 = vpack.c.b16 %v167, %v166
  %vm204 = vcmask 261120
  %v206 = vsel %vm204, %v88, 0
  %v209 = vsel %vm204, %v91, 0
  %211 = vmatprep.subr.bf16.mxu0 0
  %212 = vmatpush1.bf16.msra.mxu0 %v168
  %213 = vmatprep.subr.bf16.mxu0 0
  %214 = vmatpush1.bf16.msra.mxu0 %v169
  %215 = vmatprep.subr.bf16.mxu0 0
  %216 = vmatpush1.bf16.msra.mxu0 %v170
  %217 = vmatprep.subr.bf16.mxu0 0
  %218 = vmatpush1.bf16.msra.mxu0 %v171
  %219 = vmatprep.subr.bf16.mxu0 0
  %220 = vmatpush1.bf16.msra.mxu0 %v172
  %221 = vmatprep.subr.bf16.mxu0 0
  %222 = vmatpush1.bf16.msra.mxu0 %v173
  %223 = vmatprep.subr.bf16.mxu0 0
  %224 = vmatpush1.bf16.msra.mxu0 %v174
  %225 = vmatprep.subr.bf16.mxu0 0
  %226 = vmatpush1.bf16.msra.mxu0 %v175
  %227 = vmatprep.subr.bf16.mxu0 0
  %228 = vmatpush1.bf16.msra.mxu0 %v176
  %229 = vmatprep.subr.bf16.mxu0 0
  %230 = vmatpush1.bf16.msra.mxu0 %v177
  %231 = vmatprep.subr.bf16.mxu0 0
  %232 = vmatpush1.bf16.msra.mxu0 %v178
  %233 = vmatprep.subr.bf16.mxu0 0
  %234 = vmatpush1.bf16.msra.mxu0 %v179
  %235 = vmatprep.subr.bf16.mxu0 0
  %236 = vmatpush1.bf16.msra.mxu0 %v180
  %237 = vmatprep.subr.bf16.mxu0 0
  %238 = vmatpush1.bf16.msra.mxu0 %v181
  %239 = vmatprep.subr.bf16.mxu0 0
  %240 = vmatpush1.bf16.msra.mxu0 %v182
  %241 = vmatprep.subr.bf16.mxu0 0
  %242 = vmatpush1.bf16.msra.mxu0 %v183
  %243 = vmatprep.mubr.bf16.mxu0 %v87
  %244 = vmatmul.mubr.bf16.gmra.mrb[0].mxu0 %v86
  %v245 = vpop.f32.mrb[0].mxu0
  %v246 = vadd.f32 %v64, %v245
  %v247 = vpop.f32.mrb[0].mxu0
  %v248 = vpop.f32.mrb[0].mxu0
  %v249 = vadd.f32 %v64, %v248
  %v250 = vpop.f32.mrb[0].mxu0
  %251 = vmatprep.mubr.bf16.mxu0 %v90
  %252 = vmatmul.mubr.bf16.gmra.mrb[0].mxu0 %v89
  %v253 = vpop.f32.mrb[0].mxu0
  %v254 = vadd.f32 %v64, %v253
  %v255 = vpop.f32.mrb[0].mxu0
  %v256 = vpop.f32.mrb[0].mxu0
  %v257 = vadd.f32 %v64, %v256
  %v258 = vpop.f32.mrb[0].mxu0
  %259 = vdwg.mxu0
  %260 = vmatprep.subr.bf16.mxu0 0
  %261 = vmatpush1.bf16.msra.mxu0 %v184
  %262 = vmatprep.subr.bf16.mxu0 0
  %263 = vmatpush1.bf16.msra.mxu0 %v185
  %264 = vmatprep.subr.bf16.mxu0 0
  %265 = vmatpush1.bf16.msra.mxu0 0
  %266 = vmatprep.subr.bf16.mxu0 0
  %267 = vmatpush1.bf16.msra.mxu0 0
  %268 = vmatprep.subr.bf16.mxu0 0
  %269 = vmatpush1.bf16.msra.mxu0 0
  %270 = vmatprep.subr.bf16.mxu0 0
  %271 = vmatpush1.bf16.msra.mxu0 0
  %272 = vmatprep.subr.bf16.mxu0 0
  %273 = vmatpush1.bf16.msra.mxu0 0
  %274 = vmatprep.subr.bf16.mxu0 0
  %275 = vmatpush1.bf16.msra.mxu0 0
  %276 = vmatprep.subr.bf16.mxu0 0
  %277 = vmatpush1.bf16.msra.mxu0 0
  %278 = vmatprep.subr.bf16.mxu0 0
  %279 = vmatpush1.bf16.msra.mxu0 0
  %280 = vmatprep.subr.bf16.mxu0 0
  %281 = vmatpush1.bf16.msra.mxu0 0
  %282 = vmatprep.subr.bf16.mxu0 0
  %283 = vmatpush1.bf16.msra.mxu0 0
  %284 = vmatprep.subr.bf16.mxu0 0
  %285 = vmatpush1.bf16.msra.mxu0 0
  %286 = vmatprep.subr.bf16.mxu0 0
  %287 = vmatpush1.bf16.msra.mxu0 0
  %288 = vmatprep.subr.bf16.mxu0 0
  %289 = vmatpush1.bf16.msra.mxu0 0
  %290 = vmatprep.subr.bf16.mxu0 0
  %291 = vmatpush1.bf16.msra.mxu0 0
  %292 = vmatprep.mubr.bf16.mxu0 0
  %293 = vmatmul.mubr.bf16.gmra.mrb[0].mxu0 %v206
  %v294 = vpop.f32.mrb[0].mxu0
  %v295 = vadd.f32 %v246, %v294
  %v296 = vpop.f32.mrb[0].mxu0
  %v297 = vpop.f32.mrb[0].mxu0
  %v298 = vadd.f32 %v249, %v297
  %v299 = vpop.f32.mrb[0].mxu0
  %300 = vmatprep.mubr.bf16.mxu0 0
  %301 = vmatmul.mubr.bf16.gmra.mrb[0].mxu0 %v209
  %v302 = vpop.f32.mrb[0].mxu0
  %v303 = vadd.f32 %v254, %v302
  %v304 = vpop.f32.mrb[0].mxu0
  %v305 = vpop.f32.mrb[0].mxu0
  %v306 = vadd.f32 %v257, %v305
  %v307 = vpop.f32.mrb[0].mxu0
  %308 = vdwg.mxu0
  %v309 = vmax.f32 %v295, 0.0
  %v310 = vmax.f32 %v298, 0.0
  %v311 = vmax.f32 %v303, 0.0
  %v312 = vmax.f32 %v306, 0.0
  %vm313 = vcmask 523264
  %314 = vst.msk [vmem:[%s3] sm:$0xff] %vm313, %v309
  %315 = vst.msk [vmem:[%s3 + $0x8] sm:$0xff] %vm313, %v310
  %316 = vst.msk [vmem:[%s3 + $0x10] sm:$0xff] %vm313, %v311
  %317 = vst.msk [vmem:[%s3 + $0x18] sm:$0xff] %vm313, %v312
  // Predicated region
  $region14: #{_lambda_.33} parent=0 // pred_check
    _
  $region15: #{_lambda_.33} parent=0 // pred_check_branch
    %319 = sbr.rel (0) target = $region17
  $region16: #{_lambda_.33} parent=0 // pred_region
    _
  $region17: #{_lambda_.33} parent=0 // pred_fallthru
    _
  // Predicated region
  $region18: #{_lambda_.33} parent=0 // pred_check
    _
  $region19: #{_lambda_.33} parent=0 // pred_check_branch
    %321 = sbr.rel (0) target = $region21
  $region20: #{_lambda_.33} parent=0 // pred_region
    _
  $region21: #{_lambda_.33} parent=0 // pred_fallthru
    _

// kernel: _lambda_.34
$region0: #{_lambda_.34}
  #allocation0 [shape = 'u32[]', space=smem, size = 0x4, offset = 0x4, fixed_abs, tag = 'smem constant byte address 0x4 - core index']
  #allocation1 [shape = 'u32[144,128]{1,0:T(1,128)}', space=vmem, size = 0x12000, scoped, tag = 'internal scratch']
  %s0 = inlined_call_operand.vmem [shape: bf16[32,32], index: 0, kind: input, shape index: {}]
  %s1 = inlined_call_operand.vmem [shape: bf16[32,64], index: 1, kind: input, shape index: {}]
  %s2 = inlined_call_operand.vmem [shape: f32[1,64], index: 2, kind: input, shape index: {}]
  %s3 = inlined_call_operand.vmem [shape: f32[32,64], index: 3, kind: output, shape index: {}]
  %s4 = sld [smem:[#allocation0]]
  $region22: #{_lambda_.34} parent=0
    _
  %s6 = ssub.s32 1, %s4
  %s7 = scalar_select 0, %s6, %s4
  // Predicated region
  $region2: #{_lambda_.34} parent=0 // pred_check
    _
  $region3: #{_lambda_.34} parent=0 // pred_check_branch
    %9 = sbr.rel (0) target = $region5
  $region4: #{_lambda_.34} parent=0 // pred_region
    _
  $region5: #{_lambda_.34} parent=0 // pred_fallthru
    _
  // Predicated region
  $region6: #{_lambda_.34} parent=0 // pred_check
    _
  $region7: #{_lambda_.34} parent=0 // pred_check_branch
    %11 = sbr.rel (0) target = $region9
  $region8: #{_lambda_.34} parent=0 // pred_region
    _
  $region9: #{_lambda_.34} parent=0 // pred_fallthru
    _
  // Predicated region
  $region10: #{_lambda_.34} parent=0 // pred_check
    _
  $region11: #{_lambda_.34} parent=0 // pred_check_branch
    %13 = sbr.rel (0) target = $region13
  $region12: #{_lambda_.34} parent=0 // pred_region
    _
  $region13: #{_lambda_.34} parent=0 // pred_fallthru
    _
  %v15 = vld [vmem:[%s0] sm:$0xf]
  %v16 = vld [vmem:[%s0 + $0x4] sm:$0xf]
  %v17 = vld [vmem:[%s0 + $0x8] sm:$0xf]
  %v18 = vld [vmem:[%s0 + $0xc] sm:$0xf]
  %v19 = vld [vmem:[%s1] sm:$0xf]
  %v20 = vld [vmem:[%s1 + $0x4] sm:$0xf]
  %v21 = vld [vmem:[%s1 + $0x8] sm:$0xf]
  %v22 = vld [vmem:[%s1 + $0xc] sm:$0xf]
  %v23 = vld [vmem:[%s2] sm:$0x1]
  %v25 = vlaneseq
  %v26 = vshrl.u32 %v25, 7
  %v27 = vsub.s32 0, %v26
  %v28 = vrot.slane %v23, %v27
  %v34 = vunpack.c.l.b16 %v15
  %v35 = vunpack.c.l.b16 %v16
  %v36 = vunpack.c.l.b16 %v17
  %v37 = vunpack.c.l.b16 %v18
  %v38 = vpack.c.b16 %v35, %v34
  %v39 = vpack.c.b16 %v37, %v36
  %v44 = vunpack.c.l.b16 %v19
  %v45 = vunpack.c.l.b16 %v20
  %v46 = vunpack.c.l.b16 %v21
  %v47 = vunpack.c.l.b16 %v22
  %v48 = vpack.c.b16 %v45, %v44
  %v49 = vpack.c.b16 %v47, %v46
  %vm52 = vcmask 261120
  %v54 = vsel %vm52, %v38, 0
  %v57 = vsel %vm52, %v39, 0
  %59 = vmatprep.subr.bf16.mxu0 0
  %60 = vmatpush1.bf16.msra.mxu0 %v48
  %61 = vmatprep.subr.bf16.mxu0 0
  %62 = vmatpush1.bf16.msra.mxu0 %v49
  %63 = vmatprep.subr.bf16.mxu0 0
  %64 = vmatpush1.bf16.msra.mxu0 0
  %65 = vmatprep.subr.bf16.mxu0 0
  %66 = vmatpush1.bf16.msra.mxu0 0
  %67 = vmatprep.subr.bf16.mxu0 0
  %68 = vmatpush1.bf16.msra.mxu0 0
  %69 = vmatprep.subr.bf16.mxu0 0
  %70 = vmatpush1.bf16.msra.mxu0 0
  %71 = vmatprep.subr.bf16.mxu0 0
  %72 = vmatpush1.bf16.msra.mxu0 0
  %73 = vmatprep.subr.bf16.mxu0 0
  %74 = vmatpush1.bf16.msra.mxu0 0
  %75 = vmatprep.subr.bf16.mxu0 0
  %76 = vmatpush1.bf16.msra.mxu0 0
  %77 = vmatprep.subr.bf16.mxu0 0
  %78 = vmatpush1.bf16.msra.mxu0 0
  %79 = vmatprep.subr.bf16.mxu0 0
  %80 = vmatpush1.bf16.msra.mxu0 0
  %81 = vmatprep.subr.bf16.mxu0 0
  %82 = vmatpush1.bf16.msra.mxu0 0
  %83 = vmatprep.subr.bf16.mxu0 0
  %84 = vmatpush1.bf16.msra.mxu0 0
  %85 = vmatprep.subr.bf16.mxu0 0
  %86 = vmatpush1.bf16.msra.mxu0 0
  %87 = vmatprep.subr.bf16.mxu0 0
  %88 = vmatpush1.bf16.msra.mxu0 0
  %89 = vmatprep.subr.bf16.mxu0 0
  %90 = vmatpush1.bf16.msra.mxu0 0
  %91 = vmatprep.mubr.bf16.mxu0 0
  %92 = vmatmul.mubr.bf16.gmra.mrb[0].mxu0 %v54
  %v93 = vpop.f32.mrb[0].mxu0
  %v94 = vadd.f32 %v28, %v93
  %v95 = vpop.f32.mrb[0].mxu0
  %v96 = vpop.f32.mrb[0].mxu0
  %v97 = vadd.f32 %v28, %v96
  %v98 = vpop.f32.mrb[0].mxu0
  %99 = vmatprep.mubr.bf16.mxu0 0
  %100 = vmatmul.mubr.bf16.gmra.mrb[0].mxu0 %v57
  %v101 = vpop.f32.mrb[0].mxu0
  %v102 = vadd.f32 %v28, %v101
  %v103 = vpop.f32.mrb[0].mxu0
  %v104 = vpop.f32.mrb[0].mxu0
  %v105 = vadd.f32 %v28, %v104
  %v106 = vpop.f32.mrb[0].mxu0
  %107 = vdwg.mxu0
  %vm108 = vcmask 523264
  %109 = vst.msk [vmem:[%s3] sm:$0xff] %vm108, %v94
  %110 = vst.msk [vmem:[%s3 + $0x8] sm:$0xff] %vm108, %v97
  %111 = vst.msk [vmem:[%s3 + $0x10] sm:$0xff] %vm108, %v102
  %112 = vst.msk [vmem:[%s3 + $0x18] sm:$0xff] %vm108, %v105
  // Predicated region
  $region14: #{_lambda_.34} parent=0 // pred_check
    _
  $region15: #{_lambda_.34} parent=0 // pred_check_branch
    %114 = sbr.rel (0) target = $region17
  $region16: #{_lambda_.34} parent=0 // pred_region
    _
  $region17: #{_lambda_.34} parent=0 // pred_fallthru
    _
  // Predicated region
  $region18: #{_lambda_.34} parent=0 // pred_check
    _
  $region19: #{_lambda_.34} parent=0 // pred_check_branch
    %116 = sbr.rel (0) target = $region21
  $region20: #{_lambda_.34} parent=0 // pred_region
    _
  $region21: #{_lambda_.34} parent=0 // pred_fallthru
    _

// kernel: _lambda_.36
$region0: #{_lambda_.36}
  #allocation0 [shape = 'u32[]', space=smem, size = 0x4, offset = 0x4, fixed_abs, tag = 'smem constant byte address 0x4 - core index']
  #allocation1 [shape = 'u32[144,128]{1,0:T(1,128)}', space=vmem, size = 0x12000, scoped, tag = 'internal scratch']
  %s0 = inlined_call_operand.vmem [shape: bf16[32,576], index: 0, kind: input, shape index: {}]
  %s1 = inlined_call_operand.vmem [shape: bf16[576,64], index: 1, kind: input, shape index: {}]
  %s2 = inlined_call_operand.vmem [shape: f32[1,64], index: 2, kind: input, shape index: {}]
  %s3 = inlined_call_operand.vmem [shape: f32[32,64], index: 3, kind: output, shape index: {}]
  %s4 = sld [smem:[#allocation0]]
  $region22: #{_lambda_.36} parent=0
    _
  %s6 = ssub.s32 1, %s4
  %s7 = scalar_select 0, %s6, %s4
  // Predicated region
  $region2: #{_lambda_.36} parent=0 // pred_check
    _
  $region3: #{_lambda_.36} parent=0 // pred_check_branch
    %9 = sbr.rel (0) target = $region5
  $region4: #{_lambda_.36} parent=0 // pred_region
    _
  $region5: #{_lambda_.36} parent=0 // pred_fallthru
    _
  // Predicated region
  $region6: #{_lambda_.36} parent=0 // pred_check
    _
  $region7: #{_lambda_.36} parent=0 // pred_check_branch
    %11 = sbr.rel (0) target = $region9
  $region8: #{_lambda_.36} parent=0 // pred_region
    _
  $region9: #{_lambda_.36} parent=0 // pred_fallthru
    _
  // Predicated region
  $region10: #{_lambda_.36} parent=0 // pred_check
    _
  $region11: #{_lambda_.36} parent=0 // pred_check_branch
    %13 = sbr.rel (0) target = $region13
  $region12: #{_lambda_.36} parent=0 // pred_region
    _
  $region13: #{_lambda_.36} parent=0 // pred_fallthru
    _
  %v15 = vld [vmem:[%s0] sm:$0xff]
  %v16 = vld [vmem:[%s0 + $0x8] sm:$0xff]
  %v17 = vld [vmem:[%s0 + $0x10] sm:$0xf]
  %v18 = vld [vmem:[%s0 + $0x14] sm:$0xff]
  %v19 = vld [vmem:[%s0 + $0x1c] sm:$0xff]
  %v20 = vld [vmem:[%s0 + $0x24] sm:$0xf]
  %v21 = vld [vmem:[%s0 + $0x28] sm:$0xff]
  %v22 = vld [vmem:[%s0 + $0x30] sm:$0xff]
  %v23 = vld [vmem:[%s0 + $0x38] sm:$0xf]
  %v24 = vld [vmem:[%s0 + $0x3c] sm:$0xff]
  %v25 = vld [vmem:[%s0 + $0x44] sm:$0xff]
  %v26 = vld [vmem:[%s0 + $0x4c] sm:$0xf]
  %v27 = vld [vmem:[%s1] sm:$0xf]
  %v28 = vld [vmem:[%s1 + $0x4] sm:$0xf]
  %v29 = vld [vmem:[%s1 + $0x8] sm:$0xf]
  %v30 = vld [vmem:[%s1 + $0xc] sm:$0xf]
  %v31 = vld [vmem:[%s1 + $0x10] sm:$0xf]
  %v32 = vld [vmem:[%s1 + $0x14] sm:$0xf]
  %v33 = vld [vmem:[%s1 + $0x18] sm:$0xf]
  %v34 = vld [vmem:[%s1 + $0x1c] sm:$0xf]
  %v35 = vld [vmem:[%s1 + $0x20] sm:$0xf]
  %v36 = vld [vmem:[%s1 + $0x24] sm:$0xf]
  %v37 = vld [vmem:[%s1 + $0x28] sm:$0xf]
  %v38 = vld [vmem:[%s1 + $0x2c] sm:$0xf]
  %v39 = vld [vmem:[%s1 + $0x30] sm:$0xf]
  %v40 = vld [vmem:[%s1 + $0x34] sm:$0xf]
  %v41 = vld [vmem:[%s1 + $0x38] sm:$0xf]
  %v42 = vld [vmem:[%s1 + $0x3c] sm:$0xf]
  %v43 = vld [vmem:[%s1 + $0x40] sm:$0xf]
  %v44 = vld [vmem:[%s1 + $0x44] sm:$0xf]
  %v45 = vld [vmem:[%s1 + $0x48] sm:$0xf]
  %v46 = vld [vmem:[%s1 + $0x4c] sm:$0xf]
  %v47 = vld [vmem:[%s1 + $0x50] sm:$0xf]
  %v48 = vld [vmem:[%s1 + $0x54] sm:$0xf]
  %v49 = vld [vmem:[%s1 + $0x58] sm:$0xf]
  %v50 = vld [vmem:[%s1 + $0x5c] sm:$0xf]
  %v51 = vld [vmem:[%s1 + $0x60] sm:$0xf]
  %v52 = vld [vmem:[%s1 + $0x64] sm:$0xf]
  %v53 = vld [vmem:[%s1 + $0x68] sm:$0xf]
  %v54 = vld [vmem:[%s1 + $0x6c] sm:$0xf]
  %v55 = vld [vmem:[%s1 + $0x70] sm:$0xf]
  %v56 = vld [vmem:[%s1 + $0x74] sm:$0xf]
  %v57 = vld [vmem:[%s1 + $0x78] sm:$0xf]
  %v58 = vld [vmem:[%s1 + $0x7c] sm:$0xf]
  %v59 = vld [vmem:[%s1 + $0x80] sm:$0xf]
  %v60 = vld [vmem:[%s1 + $0x84] sm:$0xf]
  %v61 = vld [vmem:[%s1 + $0x88] sm:$0xf]
  %v62 = vld [vmem:[%s1 + $0x8c] sm:$0xf]
  %v63 = vld [vmem:[%s1 + $0x90] sm:$0xf]
  %v64 = vld [vmem:[%s1 + $0x94] sm:$0xf]
  %v65 = vld [vmem:[%s1 + $0x98] sm:$0xf]
  %v66 = vld [vmem:[%s1 + $0x9c] sm:$0xf]
  %v67 = vld [vmem:[%s1 + $0xa0] sm:$0xf]
  %v68 = vld [vmem:[%s1 + $0xa4] sm:$0xf]
  %v69 = vld [vmem:[%s1 + $0xa8] sm:$0xf]
  %v70 = vld [vmem:[%s1 + $0xac] sm:$0xf]
  %v71 = vld [vmem:[%s1 + $0xb0] sm:$0xf]
  %v72 = vld [vmem:[%s1 + $0xb4] sm:$0xf]
  %v73 = vld [vmem:[%s1 + $0xb8] sm:$0xf]
  %v74 = vld [vmem:[%s1 + $0xbc] sm:$0xf]
  %v75 = vld [vmem:[%s1 + $0xc0] sm:$0xf]
  %v76 = vld [vmem:[%s1 + $0xc4] sm:$0xf]
  %v77 = vld [vmem:[%s1 + $0xc8] sm:$0xf]
  %v78 = vld [vmem:[%s1 + $0xcc] sm:$0xf]
  %v79 = vld [vmem:[%s1 + $0xd0] sm:$0xf]
  %v80 = vld [vmem:[%s1 + $0xd4] sm:$0xf]
  %v81 = vld [vmem:[%s1 + $0xd8] sm:$0xf]
  %v82 = vld [vmem:[%s1 + $0xdc] sm:$0xf]
  %v83 = vld [vmem:[%s1 + $0xe0] sm:$0xf]
  %v84 = vld [vmem:[%s1 + $0xe4] sm:$0xf]
  %v85 = vld [vmem:[%s1 + $0xe8] sm:$0xf]
  %v86 = vld [vmem:[%s1 + $0xec] sm:$0xf]
  %v87 = vld [vmem:[%s1 + $0xf0] sm:$0xf]
  %v88 = vld [vmem:[%s1 + $0xf4] sm:$0xf]
  %v89 = vld [vmem:[%s1 + $0xf8] sm:$0xf]
  %v90 = vld [vmem:[%s1 + $0xfc] sm:$0xf]
  %v91 = vld [vmem:[%s1 + $0x100] sm:$0xf]
  %v92 = vld [vmem:[%s1 + $0x104] sm:$0xf]
  %v93 = vld [vmem:[%s1 + $0x108] sm:$0xf]
  %v94 = vld [vmem:[%s1 + $0x10c] sm:$0xf]
  %v95 = vld [vmem:[%s1 + $0x110] sm:$0xf]
  %v96 = vld [vmem:[%s1 + $0x114] sm:$0xf]
  %v97 = vld [vmem:[%s1 + $0x118] sm:$0xf]
  %v98 = vld [vmem:[%s1 + $0x11c] sm:$0xf]
  %v99 = vld [vmem:[%s2] sm:$0x1]
  %v101 = vlaneseq
  %v102 = vshrl.u32 %v101, 7
  %v103 = vsub.s32 0, %v102
  %v104 = vrot.slane %v99, %v103
  %v118 = vunpack.c.l.b16 %v15
  %v119 = vunpack.c.h.b16 %v15
  %v120 = vunpack.c.l.b16 %v16
  %v121 = vunpack.c.h.b16 %v16
  %v122 = vunpack.c.l.b16 %v17
  %v123 = vunpack.c.l.b16 %v18
  %v124 = vunpack.c.h.b16 %v18
  %v125 = vunpack.c.l.b16 %v19
  %v126 = vunpack.c.h.b16 %v19
  %v127 = vunpack.c.l.b16 %v20
  %v128 = vunpack.c.l.b16 %v21
  %v129 = vunpack.c.h.b16 %v21
  %v130 = vunpack.c.l.b16 %v22
  %v131 = vunpack.c.h.b16 %v22
  %v132 = vunpack.c.l.b16 %v23
  %v133 = vunpack.c.l.b16 %v24
  %v134 = vunpack.c.h.b16 %v24
  %v135 = vunpack.c.l.b16 %v25
  %v136 = vunpack.c.h.b16 %v25
  %v137 = vunpack.c.l.b16 %v26
  %v138 = vpack.c.b16 %v123, %v118
  %v139 = vpack.c.b16 %v124, %v119
  %v140 = vpack.c.b16 %v125, %v120
  %v141 = vpack.c.b16 %v126, %v121
  %v142 = vpack.c.b16 %v127, %v122
  %v143 = vpack.c.b16 %v133, %v128
  %v144 = vpack.c.b16 %v134, %v129
  %v145 = vpack.c.b16 %v135, %v130
  %v146 = vpack.c.b16 %v136, %v131
  %v147 = vpack.c.b16 %v137, %v132
  %v228 = vunpack.c.l.b16 %v27
  %v229 = vunpack.c.l.b16 %v28
  %v230 = vunpack.c.l.b16 %v29
  %v231 = vunpack.c.l.b16 %v30
  %v232 = vunpack.c.l.b16 %v31
  %v233 = vunpack.c.l.b16 %v32
  %v234 = vunpack.c.l.b16 %v33
  %v235 = vunpack.c.l.b16 %v34
  %v236 = vunpack.c.l.b16 %v35
  %v237 = vunpack.c.l.b16 %v36
  %v238 = vunpack.c.l.b16 %v37
  %v239 = vunpack.c.l.b16 %v38
  %v240 = vunpack.c.l.b16 %v39
  %v241 = vunpack.c.l.b16 %v40
  %v242 = vunpack.c.l.b16 %v41
  %v243 = vunpack.c.l.b16 %v42
  %v244 = vunpack.c.l.b16 %v43
  %v245 = vunpack.c.l.b16 %v44
  %v246 = vunpack.c.l.b16 %v45
  %v247 = vunpack.c.l.b16 %v46
  %v248 = vunpack.c.l.b16 %v47
  %v249 = vunpack.c.l.b16 %v48
  %v250 = vunpack.c.l.b16 %v49
  %v251 = vunpack.c.l.b16 %v50
  %v252 = vunpack.c.l.b16 %v51
  %v253 = vunpack.c.l.b16 %v52
  %v254 = vunpack.c.l.b16 %v53
  %v255 = vunpack.c.l.b16 %v54
  %v256 = vunpack.c.l.b16 %v55
  %v257 = vunpack.c.l.b16 %v56
  %v258 = vunpack.c.l.b16 %v57
  %v259 = vunpack.c.l.b16 %v58
  %v260 = vunpack.c.l.b16 %v59
  %v261 = vunpack.c.l.b16 %v60
  %v262 = vunpack.c.l.b16 %v61
  %v263 = vunpack.c.l.b16 %v62
  %v264 = vunpack.c.l.b16 %v63
  %v265 = vunpack.c.l.b16 %v64
  %v266 = vunpack.c.l.b16 %v65
  %v267 = vunpack.c.l.b16 %v66
  %v268 = vunpack.c.l.b16 %v67
  %v269 = vunpack.c.l.b16 %v68
  %v270 = vunpack.c.l.b16 %v69
  %v271 = vunpack.c.l.b16 %v70
  %v272 = vunpack.c.l.b16 %v71
  %v273 = vunpack.c.l.b16 %v72
  %v274 = vunpack.c.l.b16 %v73
  %v275 = vunpack.c.l.b16 %v74
  %v276 = vunpack.c.l.b16 %v75
  %v277 = vunpack.c.l.b16 %v76
  %v278 = vunpack.c.l.b16 %v77
  %v279 = vunpack.c.l.b16 %v78
  %v280 = vunpack.c.l.b16 %v79
  %v281 = vunpack.c.l.b16 %v80
  %v282 = vunpack.c.l.b16 %v81
  %v283 = vunpack.c.l.b16 %v82
  %v284 = vunpack.c.l.b16 %v83
  %v285 = vunpack.c.l.b16 %v84
  %v286 = vunpack.c.l.b16 %v85
  %v287 = vunpack.c.l.b16 %v86
  %v288 = vunpack.c.l.b16 %v87
  %v289 = vunpack.c.l.b16 %v88
  %v290 = vunpack.c.l.b16 %v89
  %v291 = vunpack.c.l.b16 %v90
  %v292 = vunpack.c.l.b16 %v91
  %v293 = vunpack.c.l.b16 %v92
  %v294 = vunpack.c.l.b16 %v93
  %v295 = vunpack.c.l.b16 %v94
  %v296 = vunpack.c.l.b16 %v95
  %v297 = vunpack.c.l.b16 %v96
  %v298 = vunpack.c.l.b16 %v97
  %v299 = vunpack.c.l.b16 %v98
  %v300 = vpack.c.b16 %v229, %v228
  %v301 = vpack.c.b16 %v231, %v230
  %v302 = vpack.c.b16 %v233, %v232
  %v303 = vpack.c.b16 %v235, %v234
  %v304 = vpack.c.b16 %v237, %v236
  %v305 = vpack.c.b16 %v239, %v238
  %v306 = vpack.c.b16 %v241, %v240
  %v307 = vpack.c.b16 %v243, %v242
  %v308 = vpack.c.b16 %v245, %v244
  %v309 = vpack.c.b16 %v247, %v246
  %v310 = vpack.c.b16 %v249, %v248
  %v311 = vpack.c.b16 %v251, %v250
  %v312 = vpack.c.b16 %v253, %v252
  %v313 = vpack.c.b16 %v255, %v254
  %v314 = vpack.c.b16 %v257, %v256
  %v315 = vpack.c.b16 %v259, %v258
  %v316 = vpack.c.b16 %v261, %v260
  %v317 = vpack.c.b16 %v263, %v262
  %v318 = vpack.c.b16 %v265, %v264
  %v319 = vpack.c.b16 %v267, %v266
  %v320 = vpack.c.b16 %v269, %v268
  %v321 = vpack.c.b16 %v271, %v270
  %v322 = vpack.c.b16 %v273, %v272
  %v323 = vpack.c.b16 %v275, %v274
  %v324 = vpack.c.b16 %v277, %v276
  %v325 = vpack.c.b16 %v279, %v278
  %v326 = vpack.c.b16 %v281, %v280
  %v327 = vpack.c.b16 %v283, %v282
  %v328 = vpack.c.b16 %v285, %v284
  %v329 = vpack.c.b16 %v287, %v286
  %v330 = vpack.c.b16 %v289, %v288
  %v331 = vpack.c.b16 %v291, %v290
  %v332 = vpack.c.b16 %v293, %v292
  %v333 = vpack.c.b16 %v295, %v294
  %v334 = vpack.c.b16 %v297, %v296
  %v335 = vpack.c.b16 %v299, %v298
  %vm372 = vcmask 523264
  %v374 = vsel %vm372, %v142, 0
  %v377 = vsel %vm372, %v147, 0
  %379 = vmatprep.subr.bf16.mxu0 0
  %380 = vmatpush1.bf16.msra.mxu0 %v300
  %381 = vmatprep.subr.bf16.mxu0 0
  %382 = vmatpush1.bf16.msra.mxu0 %v301
  %383 = vmatprep.subr.bf16.mxu0 0
  %384 = vmatpush1.bf16.msra.mxu0 %v302
  %385 = vmatprep.subr.bf16.mxu0 0
  %386 = vmatpush1.bf16.msra.mxu0 %v303
  %387 = vmatprep.subr.bf16.mxu0 0
  %388 = vmatpush1.bf16.msra.mxu0 %v304
  %389 = vmatprep.subr.bf16.mxu0 0
  %390 = vmatpush1.bf16.msra.mxu0 %v305
  %391 = vmatprep.subr.bf16.mxu0 0
  %392 = vmatpush1.bf16.msra.mxu0 %v306
  %393 = vmatprep.subr.bf16.mxu0 0
  %394 = vmatpush1.bf16.msra.mxu0 %v307
  %395 = vmatprep.subr.bf16.mxu0 0
  %396 = vmatpush1.bf16.msra.mxu0 %v308
  %397 = vmatprep.subr.bf16.mxu0 0
  %398 = vmatpush1.bf16.msra.mxu0 %v309
  %399 = vmatprep.subr.bf16.mxu0 0
  %400 = vmatpush1.bf16.msra.mxu0 %v310
  %401 = vmatprep.subr.bf16.mxu0 0
  %402 = vmatpush1.bf16.msra.mxu0 %v311
  %403 = vmatprep.subr.bf16.mxu0 0
  %404 = vmatpush1.bf16.msra.mxu0 %v312
  %405 = vmatprep.subr.bf16.mxu0 0
  %406 = vmatpush1.bf16.msra.mxu0 %v313
  %407 = vmatprep.subr.bf16.mxu0 0
  %408 = vmatpush1.bf16.msra.mxu0 %v314
  %409 = vmatprep.subr.bf16.mxu0 0
  %410 = vmatpush1.bf16.msra.mxu0 %v315
  %411 = vmatprep.mubr.bf16.mxu0 %v139
  %412 = vmatmul.mubr.bf16.gmra.mrb[0].mxu0 %v138
  %v413 = vpop.f32.mrb[0].mxu0
  %v414 = vadd.f32 %v104, %v413
  %v415 = vpop.f32.mrb[0].mxu0
  %v416 = vpop.f32.mrb[0].mxu0
  %v417 = vadd.f32 %v104, %v416
  %v418 = vpop.f32.mrb[0].mxu0
  %419 = vmatprep.mubr.bf16.mxu0 %v144
  %420 = vmatmul.mubr.bf16.gmra.mrb[0].mxu0 %v143
  %v421 = vpop.f32.mrb[0].mxu0
  %v422 = vadd.f32 %v104, %v421
  %v423 = vpop.f32.mrb[0].mxu0
  %v424 = vpop.f32.mrb[0].mxu0
  %v425 = vadd.f32 %v104, %v424
  %v426 = vpop.f32.mrb[0].mxu0
  %427 = vdwg.mxu0
  %428 = vmatprep.subr.bf16.mxu0 0
  %429 = vmatpush1.bf16.msra.mxu0 %v316
  %430 = vmatprep.subr.bf16.mxu0 0
  %431 = vmatpush1.bf16.msra.mxu0 %v317
  %432 = vmatprep.subr.bf16.mxu0 0
  %433 = vmatpush1.bf16.msra.mxu0 %v318
  %434 = vmatprep.subr.bf16.mxu0 0
  %435 = vmatpush1.bf16.msra.mxu0 %v319
  %436 = vmatprep.subr.bf16.mxu0 0
  %437 = vmatpush1.bf16.msra.mxu0 %v320
  %438 = vmatprep.subr.bf16.mxu0 0
  %439 = vmatpush1.bf16.msra.mxu0 %v321
  %440 = vmatprep.subr.bf16.mxu0 0
  %441 = vmatpush1.bf16.msra.mxu0 %v322
  %442 = vmatprep.subr.bf16.mxu0 0
  %443 = vmatpush1.bf16.msra.mxu0 %v323
  %444 = vmatprep.subr.bf16.mxu0 0
  %445 = vmatpush1.bf16.msra.mxu0 %v324
  %446 = vmatprep.subr.bf16.mxu0 0
  %447 = vmatpush1.bf16.msra.mxu0 %v325
  %448 = vmatprep.subr.bf16.mxu0 0
  %449 = vmatpush1.bf16.msra.mxu0 %v326
  %450 = vmatprep.subr.bf16.mxu0 0
  %451 = vmatpush1.bf16.msra.mxu0 %v327
  %452 = vmatprep.subr.bf16.mxu0 0
  %453 = vmatpush1.bf16.msra.mxu0 %v328
  %454 = vmatprep.subr.bf16.mxu0 0
  %455 = vmatpush1.bf16.msra.mxu0 %v329
  %456 = vmatprep.subr.bf16.mxu0 0
  %457 = vmatpush1.bf16.msra.mxu0 %v330
  %458 = vmatprep.subr.bf16.mxu0 0
  %459 = vmatpush1.bf16.msra.mxu0 %v331
  %460 = vmatprep.mubr.bf16.mxu0 %v141
  %461 = vmatmul.mubr.bf16.gmra.mrb[0].mxu0 %v140
  %v462 = vpop.f32.mrb[0].mxu0
  %v463 = vadd.f32 %v414, %v462
  %v464 = vpop.f32.mrb[0].mxu0
  %v465 = vpop.f32.mrb[0].mxu0
  %v466 = vadd.f32 %v417, %v465
  %v467 = vpop.f32.mrb[0].mxu0
  %468 = vmatprep.mubr.bf16.mxu0 %v146
  %469 = vmatmul.mubr.bf16.gmra.mrb[0].mxu0 %v145
  %v470 = vpop.f32.mrb[0].mxu0
  %v471 = vadd.f32 %v422, %v470
  %v472 = vpop.f32.mrb[0].mxu0
  %v473 = vpop.f32.mrb[0].mxu0
  %v474 = vadd.f32 %v425, %v473
  %v475 = vpop.f32.mrb[0].mxu0
  %476 = vdwg.mxu0
  %477 = vmatprep.subr.bf16.mxu0 0
  %478 = vmatpush1.bf16.msra.mxu0 %v332
  %479 = vmatprep.subr.bf16.mxu0 0
  %480 = vmatpush1.bf16.msra.mxu0 %v333
  %481 = vmatprep.subr.bf16.mxu0 0
  %482 = vmatpush1.bf16.msra.mxu0 %v334
  %483 = vmatprep.subr.bf16.mxu0 0
  %484 = vmatpush1.bf16.msra.mxu0 %v335
  %485 = vmatprep.subr.bf16.mxu0 0
  %486 = vmatpush1.bf16.msra.mxu0 0
  %487 = vmatprep.subr.bf16.mxu0 0
  %488 = vmatpush1.bf16.msra.mxu0 0
  %489 = vmatprep.subr.bf16.mxu0 0
  %490 = vmatpush1.bf16.msra.mxu0 0
  %491 = vmatprep.subr.bf16.mxu0 0
  %492 = vmatpush1.bf16.msra.mxu0 0
  %493 = vmatprep.subr.bf16.mxu0 0
  %494 = vmatpush1.bf16.msra.mxu0 0
  %495 = vmatprep.subr.bf16.mxu0 0
  %496 = vmatpush1.bf16.msra.mxu0 0
  %497 = vmatprep.subr.bf16.mxu0 0
  %498 = vmatpush1.bf16.msra.mxu0 0
  %499 = vmatprep.subr.bf16.mxu0 0
  %500 = vmatpush1.bf16.msra.mxu0 0
  %501 = vmatprep.subr.bf16.mxu0 0
  %502 = vmatpush1.bf16.msra.mxu0 0
  %503 = vmatprep.subr.bf16.mxu0 0
  %504 = vmatpush1.bf16.msra.mxu0 0
  %505 = vmatprep.subr.bf16.mxu0 0
  %506 = vmatpush1.bf16.msra.mxu0 0
  %507 = vmatprep.subr.bf16.mxu0 0
  %508 = vmatpush1.bf16.msra.mxu0 0
  %509 = vmatprep.mubr.bf16.mxu0 0
  %510 = vmatmul.mubr.bf16.gmra.mrb[0].mxu0 %v374
  %v511 = vpop.f32.mrb[0].mxu0
  %v512 = vadd.f32 %v463, %v511
  %v513 = vpop.f32.mrb[0].mxu0
  %v514 = vpop.f32.mrb[0].mxu0
  %v515 = vadd.f32 %v466, %v514
  %v516 = vpop.f32.mrb[0].mxu0
  %517 = vmatprep.mubr.bf16.mxu0 0
  %518 = vmatmul.mubr.bf16.gmra.mrb[0].mxu0 %v377
  %v519 = vpop.f32.mrb[0].mxu0
  %v520 = vadd.f32 %v471, %v519
  %v521 = vpop.f32.mrb[0].mxu0
  %v522 = vpop.f32.mrb[0].mxu0
  %v523 = vadd.f32 %v474, %v522
  %v524 = vpop.f32.mrb[0].mxu0
  %525 = vdwg.mxu0
  %v526 = vmax.f32 %v512, 0.0
  %v527 = vmax.f32 %v515, 0.0
  %v528 = vmax.f32 %v520, 0.0
  %v529 = vmax.f32 %v523, 0.0
  %530 = vst.msk [vmem:[%s3] sm:$0xff] %vm372, %v526
  %531 = vst.msk [vmem:[%s3 + $0x8] sm:$0xff] %vm372, %v527
  %532 = vst.msk [vmem:[%s3 + $0x10] sm:$0xff] %vm372, %v528
  %533 = vst.msk [vmem:[%s3 + $0x18] sm:$0xff] %vm372, %v529
  // Predicated region
  $region14: #{_lambda_.36} parent=0 // pred_check
    _
  $region15: #{_lambda_.36} parent=0 // pred_check_branch
    %535 = sbr.rel (0) target = $region17
  $region16: #{_lambda_.36} parent=0 // pred_region
    _
  $region17: #{_lambda_.36} parent=0 // pred_fallthru
    _
  // Predicated region
  $region18: #{_lambda_.36} parent=0 // pred_check
    _
  $region19: #{_lambda_.36} parent=0 // pred_check_branch
    %537 = sbr.rel (0) target = $region21
  $region20: #{_lambda_.36} parent=0 // pred_region
    _
  $region21: #{_lambda_.36} parent=0 // pred_fallthru
    _

// kernel: _lambda_.35
$region0: #{_lambda_.35}
  #allocation0 [shape = 'u32[]', space=smem, size = 0x4, offset = 0x4, fixed_abs, tag = 'smem constant byte address 0x4 - core index']
  #allocation1 [shape = 'u32[144,128]{1,0:T(1,128)}', space=vmem, size = 0x12000, scoped, tag = 'internal scratch']
  %s0 = inlined_call_operand.vmem [shape: bf16[32,576], index: 0, kind: input, shape index: {}]
  %s1 = inlined_call_operand.vmem [shape: bf16[576,64], index: 1, kind: input, shape index: {}]
  %s2 = inlined_call_operand.vmem [shape: f32[1,64], index: 2, kind: input, shape index: {}]
  %s3 = inlined_call_operand.vmem [shape: f32[32,64], index: 3, kind: input, shape index: {}]
  %s4 = inlined_call_operand.vmem [shape: f32[32,64], index: 4, kind: output, shape index: {}]
  %s5 = sld [smem:[#allocation0]]
  $region26: #{_lambda_.35} parent=0
    _
  %s7 = ssub.s32 1, %s5
  %s8 = scalar_select 0, %s7, %s5
  // Predicated region
  $region2: #{_lambda_.35} parent=0 // pred_check
    _
  $region3: #{_lambda_.35} parent=0 // pred_check_branch
    %10 = sbr.rel (0) target = $region5
  $region4: #{_lambda_.35} parent=0 // pred_region
    _
  $region5: #{_lambda_.35} parent=0 // pred_fallthru
    _
  // Predicated region
  $region6: #{_lambda_.35} parent=0 // pred_check
    _
  $region7: #{_lambda_.35} parent=0 // pred_check_branch
    %12 = sbr.rel (0) target = $region9
  $region8: #{_lambda_.35} parent=0 // pred_region
    _
  $region9: #{_lambda_.35} parent=0 // pred_fallthru
    _
  // Predicated region
  $region10: #{_lambda_.35} parent=0 // pred_check
    _
  $region11: #{_lambda_.35} parent=0 // pred_check_branch
    %14 = sbr.rel (0) target = $region13
  $region12: #{_lambda_.35} parent=0 // pred_region
    _
  $region13: #{_lambda_.35} parent=0 // pred_fallthru
    _
  // Predicated region
  $region14: #{_lambda_.35} parent=0 // pred_check
    _
  $region15: #{_lambda_.35} parent=0 // pred_check_branch
    %16 = sbr.rel (0) target = $region17
  $region16: #{_lambda_.35} parent=0 // pred_region
    _
  $region17: #{_lambda_.35} parent=0 // pred_fallthru
    _
  %v18 = vld [vmem:[%s0] sm:$0xff]
  %v19 = vld [vmem:[%s0 + $0x8] sm:$0xff]
  %v20 = vld [vmem:[%s0 + $0x10] sm:$0xf]
  %v21 = vld [vmem:[%s0 + $0x14] sm:$0xff]
  %v22 = vld [vmem:[%s0 + $0x1c] sm:$0xff]
  %v23 = vld [vmem:[%s0 + $0x24] sm:$0xf]
  %v24 = vld [vmem:[%s0 + $0x28] sm:$0xff]
  %v25 = vld [vmem:[%s0 + $0x30] sm:$0xff]
  %v26 = vld [vmem:[%s0 + $0x38] sm:$0xf]
  %v27 = vld [vmem:[%s0 + $0x3c] sm:$0xff]
  %v28 = vld [vmem:[%s0 + $0x44] sm:$0xff]
  %v29 = vld [vmem:[%s0 + $0x4c] sm:$0xf]
  %v30 = vld [vmem:[%s1] sm:$0xf]
  %v31 = vld [vmem:[%s1 + $0x4] sm:$0xf]
  %v32 = vld [vmem:[%s1 + $0x8] sm:$0xf]
  %v33 = vld [vmem:[%s1 + $0xc] sm:$0xf]
  %v34 = vld [vmem:[%s1 + $0x10] sm:$0xf]
  %v35 = vld [vmem:[%s1 + $0x14] sm:$0xf]
  %v36 = vld [vmem:[%s1 + $0x18] sm:$0xf]
  %v37 = vld [vmem:[%s1 + $0x1c] sm:$0xf]
  %v38 = vld [vmem:[%s1 + $0x20] sm:$0xf]
  %v39 = vld [vmem:[%s1 + $0x24] sm:$0xf]
  %v40 = vld [vmem:[%s1 + $0x28] sm:$0xf]
  %v41 = vld [vmem:[%s1 + $0x2c] sm:$0xf]
  %v42 = vld [vmem:[%s1 + $0x30] sm:$0xf]
  %v43 = vld [vmem:[%s1 + $0x34] sm:$0xf]
  %v44 = vld [vmem:[%s1 + $0x38] sm:$0xf]
  %v45 = vld [vmem:[%s1 + $0x3c] sm:$0xf]
  %v46 = vld [vmem:[%s1 + $0x40] sm:$0xf]
  %v47 = vld [vmem:[%s1 + $0x44] sm:$0xf]
  %v48 = vld [vmem:[%s1 + $0x48] sm:$0xf]
  %v49 = vld [vmem:[%s1 + $0x4c] sm:$0xf]
  %v50 = vld [vmem:[%s1 + $0x50] sm:$0xf]
  %v51 = vld [vmem:[%s1 + $0x54] sm:$0xf]
  %v52 = vld [vmem:[%s1 + $0x58] sm:$0xf]
  %v53 = vld [vmem:[%s1 + $0x5c] sm:$0xf]
  %v54 = vld [vmem:[%s1 + $0x60] sm:$0xf]
  %v55 = vld [vmem:[%s1 + $0x64] sm:$0xf]
  %v56 = vld [vmem:[%s1 + $0x68] sm:$0xf]
  %v57 = vld [vmem:[%s1 + $0x6c] sm:$0xf]
  %v58 = vld [vmem:[%s1 + $0x70] sm:$0xf]
  %v59 = vld [vmem:[%s1 + $0x74] sm:$0xf]
  %v60 = vld [vmem:[%s1 + $0x78] sm:$0xf]
  %v61 = vld [vmem:[%s1 + $0x7c] sm:$0xf]
  %v62 = vld [vmem:[%s1 + $0x80] sm:$0xf]
  %v63 = vld [vmem:[%s1 + $0x84] sm:$0xf]
  %v64 = vld [vmem:[%s1 + $0x88] sm:$0xf]
  %v65 = vld [vmem:[%s1 + $0x8c] sm:$0xf]
  %v66 = vld [vmem:[%s1 + $0x90] sm:$0xf]
  %v67 = vld [vmem:[%s1 + $0x94] sm:$0xf]
  %v68 = vld [vmem:[%s1 + $0x98] sm:$0xf]
  %v69 = vld [vmem:[%s1 + $0x9c] sm:$0xf]
  %v70 = vld [vmem:[%s1 + $0xa0] sm:$0xf]
  %v71 = vld [vmem:[%s1 + $0xa4] sm:$0xf]
  %v72 = vld [vmem:[%s1 + $0xa8] sm:$0xf]
  %v73 = vld [vmem:[%s1 + $0xac] sm:$0xf]
  %v74 = vld [vmem:[%s1 + $0xb0] sm:$0xf]
  %v75 = vld [vmem:[%s1 + $0xb4] sm:$0xf]
  %v76 = vld [vmem:[%s1 + $0xb8] sm:$0xf]
  %v77 = vld [vmem:[%s1 + $0xbc] sm:$0xf]
  %v78 = vld [vmem:[%s1 + $0xc0] sm:$0xf]
  %v79 = vld [vmem:[%s1 + $0xc4] sm:$0xf]
  %v80 = vld [vmem:[%s1 + $0xc8] sm:$0xf]
  %v81 = vld [vmem:[%s1 + $0xcc] sm:$0xf]
  %v82 = vld [vmem:[%s1 + $0xd0] sm:$0xf]
  %v83 = vld [vmem:[%s1 + $0xd4] sm:$0xf]
  %v84 = vld [vmem:[%s1 + $0xd8] sm:$0xf]
  %v85 = vld [vmem:[%s1 + $0xdc] sm:$0xf]
  %v86 = vld [vmem:[%s1 + $0xe0] sm:$0xf]
  %v87 = vld [vmem:[%s1 + $0xe4] sm:$0xf]
  %v88 = vld [vmem:[%s1 + $0xe8] sm:$0xf]
  %v89 = vld [vmem:[%s1 + $0xec] sm:$0xf]
  %v90 = vld [vmem:[%s1 + $0xf0] sm:$0xf]
  %v91 = vld [vmem:[%s1 + $0xf4] sm:$0xf]
  %v92 = vld [vmem:[%s1 + $0xf8] sm:$0xf]
  %v93 = vld [vmem:[%s1 + $0xfc] sm:$0xf]
  %v94 = vld [vmem:[%s1 + $0x100] sm:$0xf]
  %v95 = vld [vmem:[%s1 + $0x104] sm:$0xf]
  %v96 = vld [vmem:[%s1 + $0x108] sm:$0xf]
  %v97 = vld [vmem:[%s1 + $0x10c] sm:$0xf]
  %v98 = vld [vmem:[%s1 + $0x110] sm:$0xf]
  %v99 = vld [vmem:[%s1 + $0x114] sm:$0xf]
  %v100 = vld [vmem:[%s1 + $0x118] sm:$0xf]
  %v101 = vld [vmem:[%s1 + $0x11c] sm:$0xf]
  %v102 = vld [vmem:[%s2] sm:$0x1]
  %v104 = vlaneseq
  %v105 = vshrl.u32 %v104, 7
  %v106 = vsub.s32 0, %v105
  %v107 = vrot.slane %v102, %v106
  %v121 = vunpack.c.l.b16 %v18
  %v122 = vunpack.c.h.b16 %v18
  %v123 = vunpack.c.l.b16 %v19
  %v124 = vunpack.c.h.b16 %v19
  %v125 = vunpack.c.l.b16 %v20
  %v126 = vunpack.c.l.b16 %v21
  %v127 = vunpack.c.h.b16 %v21
  %v128 = vunpack.c.l.b16 %v22
  %v129 = vunpack.c.h.b16 %v22
  %v130 = vunpack.c.l.b16 %v23
  %v131 = vunpack.c.l.b16 %v24
  %v132 = vunpack.c.h.b16 %v24
  %v133 = vunpack.c.l.b16 %v25
  %v134 = vunpack.c.h.b16 %v25
  %v135 = vunpack.c.l.b16 %v26
  %v136 = vunpack.c.l.b16 %v27
  %v137 = vunpack.c.h.b16 %v27
  %v138 = vunpack.c.l.b16 %v28
  %v139 = vunpack.c.h.b16 %v28
  %v140 = vunpack.c.l.b16 %v29
  %v141 = vpack.c.b16 %v126, %v121
  %v142 = vpack.c.b16 %v127, %v122
  %v143 = vpack.c.b16 %v128, %v123
  %v144 = vpack.c.b16 %v129, %v124
  %v145 = vpack.c.b16 %v130, %v125
  %v146 = vpack.c.b16 %v136, %v131
  %v147 = vpack.c.b16 %v137, %v132
  %v148 = vpack.c.b16 %v138, %v133
  %v149 = vpack.c.b16 %v139, %v134
  %v150 = vpack.c.b16 %v140, %v135
  %v231 = vunpack.c.l.b16 %v30
  %v232 = vunpack.c.l.b16 %v31
  %v233 = vunpack.c.l.b16 %v32
  %v234 = vunpack.c.l.b16 %v33
  %v235 = vunpack.c.l.b16 %v34
  %v236 = vunpack.c.l.b16 %v35
  %v237 = vunpack.c.l.b16 %v36
  %v238 = vunpack.c.l.b16 %v37
  %v239 = vunpack.c.l.b16 %v38
  %v240 = vunpack.c.l.b16 %v39
  %v241 = vunpack.c.l.b16 %v40
  %v242 = vunpack.c.l.b16 %v41
  %v243 = vunpack.c.l.b16 %v42
  %v244 = vunpack.c.l.b16 %v43
  %v245 = vunpack.c.l.b16 %v44
  %v246 = vunpack.c.l.b16 %v45
  %v247 = vunpack.c.l.b16 %v46
  %v248 = vunpack.c.l.b16 %v47
  %v249 = vunpack.c.l.b16 %v48
  %v250 = vunpack.c.l.b16 %v49
  %v251 = vunpack.c.l.b16 %v50
  %v252 = vunpack.c.l.b16 %v51
  %v253 = vunpack.c.l.b16 %v52
  %v254 = vunpack.c.l.b16 %v53
  %v255 = vunpack.c.l.b16 %v54
  %v256 = vunpack.c.l.b16 %v55
  %v257 = vunpack.c.l.b16 %v56
  %v258 = vunpack.c.l.b16 %v57
  %v259 = vunpack.c.l.b16 %v58
  %v260 = vunpack.c.l.b16 %v59
  %v261 = vunpack.c.l.b16 %v60
  %v262 = vunpack.c.l.b16 %v61
  %v263 = vunpack.c.l.b16 %v62
  %v264 = vunpack.c.l.b16 %v63
  %v265 = vunpack.c.l.b16 %v64
  %v266 = vunpack.c.l.b16 %v65
  %v267 = vunpack.c.l.b16 %v66
  %v268 = vunpack.c.l.b16 %v67
  %v269 = vunpack.c.l.b16 %v68
  %v270 = vunpack.c.l.b16 %v69
  %v271 = vunpack.c.l.b16 %v70
  %v272 = vunpack.c.l.b16 %v71
  %v273 = vunpack.c.l.b16 %v72
  %v274 = vunpack.c.l.b16 %v73
  %v275 = vunpack.c.l.b16 %v74
  %v276 = vunpack.c.l.b16 %v75
  %v277 = vunpack.c.l.b16 %v76
  %v278 = vunpack.c.l.b16 %v77
  %v279 = vunpack.c.l.b16 %v78
  %v280 = vunpack.c.l.b16 %v79
  %v281 = vunpack.c.l.b16 %v80
  %v282 = vunpack.c.l.b16 %v81
  %v283 = vunpack.c.l.b16 %v82
  %v284 = vunpack.c.l.b16 %v83
  %v285 = vunpack.c.l.b16 %v84
  %v286 = vunpack.c.l.b16 %v85
  %v287 = vunpack.c.l.b16 %v86
  %v288 = vunpack.c.l.b16 %v87
  %v289 = vunpack.c.l.b16 %v88
  %v290 = vunpack.c.l.b16 %v89
  %v291 = vunpack.c.l.b16 %v90
  %v292 = vunpack.c.l.b16 %v91
  %v293 = vunpack.c.l.b16 %v92
  %v294 = vunpack.c.l.b16 %v93
  %v295 = vunpack.c.l.b16 %v94
  %v296 = vunpack.c.l.b16 %v95
  %v297 = vunpack.c.l.b16 %v96
  %v298 = vunpack.c.l.b16 %v97
  %v299 = vunpack.c.l.b16 %v98
  %v300 = vunpack.c.l.b16 %v99
  %v301 = vunpack.c.l.b16 %v100
  %v302 = vunpack.c.l.b16 %v101
  %v303 = vpack.c.b16 %v232, %v231
  %v304 = vpack.c.b16 %v234, %v233
  %v305 = vpack.c.b16 %v236, %v235
  %v306 = vpack.c.b16 %v238, %v237
  %v307 = vpack.c.b16 %v240, %v239
  %v308 = vpack.c.b16 %v242, %v241
  %v309 = vpack.c.b16 %v244, %v243
  %v310 = vpack.c.b16 %v246, %v245
  %v311 = vpack.c.b16 %v248, %v247
  %v312 = vpack.c.b16 %v250, %v249
  %v313 = vpack.c.b16 %v252, %v251
  %v314 = vpack.c.b16 %v254, %v253
  %v315 = vpack.c.b16 %v256, %v255
  %v316 = vpack.c.b16 %v258, %v257
  %v317 = vpack.c.b16 %v260, %v259
  %v318 = vpack.c.b16 %v262, %v261
  %v319 = vpack.c.b16 %v264, %v263
  %v320 = vpack.c.b16 %v266, %v265
  %v321 = vpack.c.b16 %v268, %v267
  %v322 = vpack.c.b16 %v270, %v269
  %v323 = vpack.c.b16 %v272, %v271
  %v324 = vpack.c.b16 %v274, %v273
  %v325 = vpack.c.b16 %v276, %v275
  %v326 = vpack.c.b16 %v278, %v277
  %v327 = vpack.c.b16 %v280, %v279
  %v328 = vpack.c.b16 %v282, %v281
  %v329 = vpack.c.b16 %v284, %v283
  %v330 = vpack.c.b16 %v286, %v285
  %v331 = vpack.c.b16 %v288, %v287
  %v332 = vpack.c.b16 %v290, %v289
  %v333 = vpack.c.b16 %v292, %v291
  %v334 = vpack.c.b16 %v294, %v293
  %v335 = vpack.c.b16 %v296, %v295
  %v336 = vpack.c.b16 %v298, %v297
  %v337 = vpack.c.b16 %v300, %v299
  %v338 = vpack.c.b16 %v302, %v301
  %vm375 = vcmask 523264
  %v377 = vsel %vm375, %v145, 0
  %v380 = vsel %vm375, %v150, 0
  %382 = vmatprep.subr.bf16.mxu0 0
  %383 = vmatpush1.bf16.msra.mxu0 %v303
  %384 = vmatprep.subr.bf16.mxu0 0
  %385 = vmatpush1.bf16.msra.mxu0 %v304
  %386 = vmatprep.subr.bf16.mxu0 0
  %387 = vmatpush1.bf16.msra.mxu0 %v305
  %388 = vmatprep.subr.bf16.mxu0 0
  %389 = vmatpush1.bf16.msra.mxu0 %v306
  %390 = vmatprep.subr.bf16.mxu0 0
  %391 = vmatpush1.bf16.msra.mxu0 %v307
  %392 = vmatprep.subr.bf16.mxu0 0
  %393 = vmatpush1.bf16.msra.mxu0 %v308
  %394 = vmatprep.subr.bf16.mxu0 0
  %395 = vmatpush1.bf16.msra.mxu0 %v309
  %396 = vmatprep.subr.bf16.mxu0 0
  %397 = vmatpush1.bf16.msra.mxu0 %v310
  %398 = vmatprep.subr.bf16.mxu0 0
  %399 = vmatpush1.bf16.msra.mxu0 %v311
  %400 = vmatprep.subr.bf16.mxu0 0
  %401 = vmatpush1.bf16.msra.mxu0 %v312
  %402 = vmatprep.subr.bf16.mxu0 0
  %403 = vmatpush1.bf16.msra.mxu0 %v313
  %404 = vmatprep.subr.bf16.mxu0 0
  %405 = vmatpush1.bf16.msra.mxu0 %v314
  %406 = vmatprep.subr.bf16.mxu0 0
  %407 = vmatpush1.bf16.msra.mxu0 %v315
  %408 = vmatprep.subr.bf16.mxu0 0
  %409 = vmatpush1.bf16.msra.mxu0 %v316
  %410 = vmatprep.subr.bf16.mxu0 0
  %411 = vmatpush1.bf16.msra.mxu0 %v317
  %412 = vmatprep.subr.bf16.mxu0 0
  %413 = vmatpush1.bf16.msra.mxu0 %v318
  %414 = vmatprep.mubr.bf16.mxu0 %v142
  %415 = vmatmul.mubr.bf16.gmra.mrb[0].mxu0 %v141
  %v416 = vpop.f32.mrb[0].mxu0
  %v417 = vadd.f32 %v107, %v416
  %v418 = vpop.f32.mrb[0].mxu0
  %v419 = vpop.f32.mrb[0].mxu0
  %v420 = vadd.f32 %v107, %v419
  %v421 = vpop.f32.mrb[0].mxu0
  %422 = vmatprep.mubr.bf16.mxu0 %v147
  %423 = vmatmul.mubr.bf16.gmra.mrb[0].mxu0 %v146
  %v424 = vpop.f32.mrb[0].mxu0
  %v425 = vadd.f32 %v107, %v424
  %v426 = vpop.f32.mrb[0].mxu0
  %v427 = vpop.f32.mrb[0].mxu0
  %v428 = vadd.f32 %v107, %v427
  %v429 = vpop.f32.mrb[0].mxu0
  %430 = vdwg.mxu0
  %431 = vmatprep.subr.bf16.mxu0 0
  %432 = vmatpush1.bf16.msra.mxu0 %v319
  %433 = vmatprep.subr.bf16.mxu0 0
  %434 = vmatpush1.bf16.msra.mxu0 %v320
  %435 = vmatprep.subr.bf16.mxu0 0
  %436 = vmatpush1.bf16.msra.mxu0 %v321
  %437 = vmatprep.subr.bf16.mxu0 0
  %438 = vmatpush1.bf16.msra.mxu0 %v322
  %439 = vmatprep.subr.bf16.mxu0 0
  %440 = vmatpush1.bf16.msra.mxu0 %v323
  %441 = vmatprep.subr.bf16.mxu0 0
  %442 = vmatpush1.bf16.msra.mxu0 %v324
  %443 = vmatprep.subr.bf16.mxu0 0
  %444 = vmatpush1.bf16.msra.mxu0 %v325
  %445 = vmatprep.subr.bf16.mxu0 0
  %446 = vmatpush1.bf16.msra.mxu0 %v326
  %447 = vmatprep.subr.bf16.mxu0 0
  %448 = vmatpush1.bf16.msra.mxu0 %v327
  %449 = vmatprep.subr.bf16.mxu0 0
  %450 = vmatpush1.bf16.msra.mxu0 %v328
  %451 = vmatprep.subr.bf16.mxu0 0
  %452 = vmatpush1.bf16.msra.mxu0 %v329
  %453 = vmatprep.subr.bf16.mxu0 0
  %454 = vmatpush1.bf16.msra.mxu0 %v330
  %455 = vmatprep.subr.bf16.mxu0 0
  %456 = vmatpush1.bf16.msra.mxu0 %v331
  %457 = vmatprep.subr.bf16.mxu0 0
  %458 = vmatpush1.bf16.msra.mxu0 %v332
  %459 = vmatprep.subr.bf16.mxu0 0
  %460 = vmatpush1.bf16.msra.mxu0 %v333
  %461 = vmatprep.subr.bf16.mxu0 0
  %462 = vmatpush1.bf16.msra.mxu0 %v334
  %463 = vmatprep.mubr.bf16.mxu0 %v144
  %464 = vmatmul.mubr.bf16.gmra.mrb[0].mxu0 %v143
  %v465 = vpop.f32.mrb[0].mxu0
  %v466 = vadd.f32 %v417, %v465
  %v467 = vpop.f32.mrb[0].mxu0
  %v468 = vpop.f32.mrb[0].mxu0
  %v469 = vadd.f32 %v420, %v468
  %v470 = vpop.f32.mrb[0].mxu0
  %471 = vmatprep.mubr.bf16.mxu0 %v149
  %472 = vmatmul.mubr.bf16.gmra.mrb[0].mxu0 %v148
  %v473 = vpop.f32.mrb[0].mxu0
  %v474 = vadd.f32 %v425, %v473
  %v475 = vpop.f32.mrb[0].mxu0
  %v476 = vpop.f32.mrb[0].mxu0
  %v477 = vadd.f32 %v428, %v476
  %v478 = vpop.f32.mrb[0].mxu0
  %479 = vdwg.mxu0
  %480 = vmatprep.subr.bf16.mxu0 0
  %481 = vmatpush1.bf16.msra.mxu0 %v335
  %482 = vmatprep.subr.bf16.mxu0 0
  %483 = vmatpush1.bf16.msra.mxu0 %v336
  %484 = vmatprep.subr.bf16.mxu0 0
  %485 = vmatpush1.bf16.msra.mxu0 %v337
  %486 = vmatprep.subr.bf16.mxu0 0
  %487 = vmatpush1.bf16.msra.mxu0 %v338
  %488 = vmatprep.subr.bf16.mxu0 0
  %489 = vmatpush1.bf16.msra.mxu0 0
  %490 = vmatprep.subr.bf16.mxu0 0
  %491 = vmatpush1.bf16.msra.mxu0 0
  %492 = vmatprep.subr.bf16.mxu0 0
  %493 = vmatpush1.bf16.msra.mxu0 0
  %494 = vmatprep.subr.bf16.mxu0 0
  %495 = vmatpush1.bf16.msra.mxu0 0
  %496 = vmatprep.subr.bf16.mxu0 0
  %497 = vmatpush1.bf16.msra.mxu0 0
  %498 = vmatprep.subr.bf16.mxu0 0
  %499 = vmatpush1.bf16.msra.mxu0 0
  %500 = vmatprep.subr.bf16.mxu0 0
  %501 = vmatpush1.bf16.msra.mxu0 0
  %502 = vmatprep.subr.bf16.mxu0 0
  %503 = vmatpush1.bf16.msra.mxu0 0
  %504 = vmatprep.subr.bf16.mxu0 0
  %505 = vmatpush1.bf16.msra.mxu0 0
  %506 = vmatprep.subr.bf16.mxu0 0
  %507 = vmatpush1.bf16.msra.mxu0 0
  %508 = vmatprep.subr.bf16.mxu0 0
  %509 = vmatpush1.bf16.msra.mxu0 0
  %510 = vmatprep.subr.bf16.mxu0 0
  %511 = vmatpush1.bf16.msra.mxu0 0
  %512 = vmatprep.mubr.bf16.mxu0 0
  %513 = vmatmul.mubr.bf16.gmra.mrb[0].mxu0 %v377
  %v514 = vpop.f32.mrb[0].mxu0
  %v515 = vadd.f32 %v466, %v514
  %v516 = vpop.f32.mrb[0].mxu0
  %v517 = vpop.f32.mrb[0].mxu0
  %v518 = vadd.f32 %v469, %v517
  %v519 = vpop.f32.mrb[0].mxu0
  %520 = vmatprep.mubr.bf16.mxu0 0
  %521 = vmatmul.mubr.bf16.gmra.mrb[0].mxu0 %v380
  %v522 = vpop.f32.mrb[0].mxu0
  %v523 = vadd.f32 %v474, %v522
  %v524 = vpop.f32.mrb[0].mxu0
  %v525 = vpop.f32.mrb[0].mxu0
  %v526 = vadd.f32 %v477, %v525
  %v527 = vpop.f32.mrb[0].mxu0
  %528 = vdwg.mxu0
  %v529 = vld [vmem:[%s3] sm:$0xff]
  %v530 = vld [vmem:[%s3 + $0x8] sm:$0xff]
  %v531 = vld [vmem:[%s3 + $0x10] sm:$0xff]
  %v532 = vld [vmem:[%s3 + $0x18] sm:$0xff]
  %v533 = vadd.f32 %v515, %v529
  %v534 = vadd.f32 %v518, %v530
  %v535 = vadd.f32 %v523, %v531
  %v536 = vadd.f32 %v526, %v532
  %v537 = vmax.f32 %v533, 0.0
  %v538 = vmax.f32 %v534, 0.0
  %v539 = vmax.f32 %v535, 0.0
  %v540 = vmax.f32 %v536, 0.0
  %541 = vst.msk [vmem:[%s4] sm:$0xff] %vm375, %v537
  %542 = vst.msk [vmem:[%s4 + $0x8] sm:$0xff] %vm375, %v538
  %543 = vst.msk [vmem:[%s4 + $0x10] sm:$0xff] %vm375, %v539
  %544 = vst.msk [vmem:[%s4 + $0x18] sm:$0xff] %vm375, %v540
  // Predicated region
  $region18: #{_lambda_.35} parent=0 // pred_check
    _
  $region19: #{_lambda_.35} parent=0 // pred_check_branch
    %546 = sbr.rel (0) target = $region21
  $region20: #{_lambda_.35} parent=0 // pred_region
    _
  $region21: #{_lambda_.35} parent=0 // pred_fallthru
    _
  // Predicated region
  $region22: #{_lambda_.35} parent=0 // pred_check
    _
  $region23: #{_lambda_.35} parent=0 // pred_check_branch
    %548 = sbr.rel (0) target = $region25
  $region24: #{_lambda_.35} parent=0 // pred_region
    _
  $region25: #{_lambda_.35} parent=0 // pred_fallthru
    _

// kernel: _lambda_.39
$region0: #{_lambda_.39}
  #allocation0 [shape = 'u32[]', space=smem, size = 0x4, offset = 0x4, fixed_abs, tag = 'smem constant byte address 0x4 - core index']
  #allocation1 [shape = 'u32[144,128]{1,0:T(1,128)}', space=vmem, size = 0x12000, scoped, tag = 'internal scratch']
  %s0 = inlined_call_operand.vmem [shape: bf16[8,64], index: 0, kind: input, shape index: {}]
  %s1 = inlined_call_operand.vmem [shape: bf16[64,128], index: 1, kind: input, shape index: {}]
  %s2 = inlined_call_operand.vmem [shape: f32[1,128], index: 2, kind: input, shape index: {}]
  %s3 = inlined_call_operand.vmem [shape: f32[8,128], index: 3, kind: output, shape index: {}]
  %s4 = sld [smem:[#allocation0]]
  $region22: #{_lambda_.39} parent=0
    _
  %s6 = ssub.s32 1, %s4
  %s7 = scalar_select 0, %s6, %s4
  // Predicated region
  $region2: #{_lambda_.39} parent=0 // pred_check
    _
  $region3: #{_lambda_.39} parent=0 // pred_check_branch
    %9 = sbr.rel (0) target = $region5
  $region4: #{_lambda_.39} parent=0 // pred_region
    _
  $region5: #{_lambda_.39} parent=0 // pred_fallthru
    _
  // Predicated region
  $region6: #{_lambda_.39} parent=0 // pred_check
    _
  $region7: #{_lambda_.39} parent=0 // pred_check_branch
    %11 = sbr.rel (0) target = $region9
  $region8: #{_lambda_.39} parent=0 // pred_region
    _
  $region9: #{_lambda_.39} parent=0 // pred_fallthru
    _
  // Predicated region
  $region10: #{_lambda_.39} parent=0 // pred_check
    _
  $region11: #{_lambda_.39} parent=0 // pred_check_branch
    %13 = sbr.rel (0) target = $region13
  $region12: #{_lambda_.39} parent=0 // pred_region
    _
  $region13: #{_lambda_.39} parent=0 // pred_fallthru
    _
  %v15 = vld [vmem:[%s0] sm:$0xf]
  %v16 = vld [vmem:[%s1] sm:$0xf]
  %v17 = vld [vmem:[%s1 + $0x4] sm:$0xf]
  %v18 = vld [vmem:[%s1 + $0x8] sm:$0xf]
  %v19 = vld [vmem:[%s1 + $0xc] sm:$0xf]
  %v20 = vld [vmem:[%s1 + $0x10] sm:$0xf]
  %v21 = vld [vmem:[%s1 + $0x14] sm:$0xf]
  %v22 = vld [vmem:[%s1 + $0x18] sm:$0xf]
  %v23 = vld [vmem:[%s1 + $0x1c] sm:$0xf]
  %v24 = vld [vmem:[%s2] sm:$0x1]
  %v26 = vlaneseq
  %v27 = vshrl.u32 %v26, 7
  %v28 = vsub.s32 0, %v27
  %v29 = vrot.slane %v24, %v28
  %v39 = vunpack.c.l.b16 %v16
  %v40 = vunpack.c.l.b16 %v17
  %v41 = vunpack.c.l.b16 %v18
  %v42 = vunpack.c.l.b16 %v19
  %v43 = vunpack.c.l.b16 %v20
  %v44 = vunpack.c.l.b16 %v21
  %v45 = vunpack.c.l.b16 %v22
  %v46 = vunpack.c.l.b16 %v23
  %v47 = vpack.c.b16 %v40, %v39
  %v48 = vpack.c.b16 %v42, %v41
  %v49 = vpack.c.b16 %v44, %v43
  %v50 = vpack.c.b16 %v46, %v45
  %vm55 = vcmask 523264
  %v57 = vsel %vm55, %v15, 0
  %59 = vmatprep.subr.bf16.mxu0 0
  %60 = vmatpush1.bf16.msra.mxu0 %v47
  %61 = vmatprep.subr.bf16.mxu0 0
  %62 = vmatpush1.bf16.msra.mxu0 %v48
  %63 = vmatprep.subr.bf16.mxu0 0
  %64 = vmatpush1.bf16.msra.mxu0 %v49
  %65 = vmatprep.subr.bf16.mxu0 0
  %66 = vmatpush1.bf16.msra.mxu0 %v50
  %67 = vmatprep.subr.bf16.mxu0 0
  %68 = vmatpush1.bf16.msra.mxu0 0
  %69 = vmatprep.subr.bf16.mxu0 0
  %70 = vmatpush1.bf16.msra.mxu0 0
  %71 = vmatprep.subr.bf16.mxu0 0
  %72 = vmatpush1.bf16.msra.mxu0 0
  %73 = vmatprep.subr.bf16.mxu0 0
  %74 = vmatpush1.bf16.msra.mxu0 0
  %75 = vmatprep.subr.bf16.mxu0 0
  %76 = vmatpush1.bf16.msra.mxu0 0
  %77 = vmatprep.subr.bf16.mxu0 0
  %78 = vmatpush1.bf16.msra.mxu0 0
  %79 = vmatprep.subr.bf16.mxu0 0
  %80 = vmatpush1.bf16.msra.mxu0 0
  %81 = vmatprep.subr.bf16.mxu0 0
  %82 = vmatpush1.bf16.msra.mxu0 0
  %83 = vmatprep.subr.bf16.mxu0 0
  %84 = vmatpush1.bf16.msra.mxu0 0
  %85 = vmatprep.subr.bf16.mxu0 0
  %86 = vmatpush1.bf16.msra.mxu0 0
  %87 = vmatprep.subr.bf16.mxu0 0
  %88 = vmatpush1.bf16.msra.mxu0 0
  %89 = vmatprep.subr.bf16.mxu0 0
  %90 = vmatpush1.bf16.msra.mxu0 0
  %91 = vmatprep.mubr.bf16.mxu0 0
  %92 = vmatmul.mubr.bf16.gmra.mrb[0].mxu0 %v57
  %v93 = vpop.f32.mrb[0].mxu0
  %v94 = vadd.f32 %v29, %v93
  %v95 = vpop.f32.mrb[0].mxu0
  %v96 = vpop.f32.mrb[0].mxu0
  %v97 = vpop.f32.mrb[0].mxu0
  %98 = vdwg.mxu0
  %99 = vst [vmem:[%s3] sm:$0xff] %v94
  // Predicated region
  $region14: #{_lambda_.39} parent=0 // pred_check
    _
  $region15: #{_lambda_.39} parent=0 // pred_check_branch
    %101 = sbr.rel (0) target = $region17
  $region16: #{_lambda_.39} parent=0 // pred_region
    _
  $region17: #{_lambda_.39} parent=0 // pred_fallthru
    _
  // Predicated region
  $region18: #{_lambda_.39} parent=0 // pred_check
    _
  $region19: #{_lambda_.39} parent=0 // pred_check_branch
    %103 = sbr.rel (0) target = $region21
  $region20: #{_lambda_.39} parent=0 // pred_region
    _
  $region21: #{_lambda_.39} parent=0 // pred_fallthru
    _

// kernel: _lambda_.38
$region0: #{_lambda_.38}
  #allocation0 [shape = 'u32[]', space=smem, size = 0x4, offset = 0x4, fixed_abs, tag = 'smem constant byte address 0x4 - core index']
  #allocation1 [shape = 'u32[144,128]{1,0:T(1,128)}', space=vmem, size = 0x12000, scoped, tag = 'internal scratch']
  %s0 = inlined_call_operand.vmem [shape: bf16[8,576], index: 0, kind: input, shape index: {}]
  %s1 = inlined_call_operand.vmem [shape: bf16[576,128], index: 1, kind: input, shape index: {}]
  %s2 = inlined_call_operand.vmem [shape: f32[1,128], index: 2, kind: input, shape index: {}]
  %s3 = inlined_call_operand.vmem [shape: f32[8,128], index: 3, kind: output, shape index: {}]
  %s4 = sld [smem:[#allocation0]]
  $region22: #{_lambda_.38} parent=0
    _
  %s6 = ssub.s32 1, %s4
  %s7 = scalar_select 0, %s6, %s4
  // Predicated region
  $region2: #{_lambda_.38} parent=0 // pred_check
    _
  $region3: #{_lambda_.38} parent=0 // pred_check_branch
    %9 = sbr.rel (0) target = $region5
  $region4: #{_lambda_.38} parent=0 // pred_region
    _
  $region5: #{_lambda_.38} parent=0 // pred_fallthru
    _
  // Predicated region
  $region6: #{_lambda_.38} parent=0 // pred_check
    _
  $region7: #{_lambda_.38} parent=0 // pred_check_branch
    %11 = sbr.rel (0) target = $region9
  $region8: #{_lambda_.38} parent=0 // pred_region
    _
  $region9: #{_lambda_.38} parent=0 // pred_fallthru
    _
  // Predicated region
  $region10: #{_lambda_.38} parent=0 // pred_check
    _
  $region11: #{_lambda_.38} parent=0 // pred_check_branch
    %13 = sbr.rel (0) target = $region13
  $region12: #{_lambda_.38} parent=0 // pred_region
    _
  $region13: #{_lambda_.38} parent=0 // pred_fallthru
    _
  %v15 = vld [vmem:[%s0] sm:$0xff]
  %v16 = vld [vmem:[%s0 + $0x8] sm:$0xff]
  %v17 = vld [vmem:[%s0 + $0x10] sm:$0xf]
  %v18 = vld [vmem:[%s1] sm:$0xf]
  %v19 = vld [vmem:[%s1 + $0x4] sm:$0xf]
  %v20 = vld [vmem:[%s1 + $0x8] sm:$0xf]
  %v21 = vld [vmem:[%s1 + $0xc] sm:$0xf]
  %v22 = vld [vmem:[%s1 + $0x10] sm:$0xf]
  %v23 = vld [vmem:[%s1 + $0x14] sm:$0xf]
  %v24 = vld [vmem:[%s1 + $0x18] sm:$0xf]
  %v25 = vld [vmem:[%s1 + $0x1c] sm:$0xf]
  %v26 = vld [vmem:[%s1 + $0x20] sm:$0xf]
  %v27 = vld [vmem:[%s1 + $0x24] sm:$0xf]
  %v28 = vld [vmem:[%s1 + $0x28] sm:$0xf]
  %v29 = vld [vmem:[%s1 + $0x2c] sm:$0xf]
  %v30 = vld [vmem:[%s1 + $0x30] sm:$0xf]
  %v31 = vld [vmem:[%s1 + $0x34] sm:$0xf]
  %v32 = vld [vmem:[%s1 + $0x38] sm:$0xf]
  %v33 = vld [vmem:[%s1 + $0x3c] sm:$0xf]
  %v34 = vld [vmem:[%s1 + $0x40] sm:$0xf]
  %v35 = vld [vmem:[%s1 + $0x44] sm:$0xf]
  %v36 = vld [vmem:[%s1 + $0x48] sm:$0xf]
  %v37 = vld [vmem:[%s1 + $0x4c] sm:$0xf]
  %v38 = vld [vmem:[%s1 + $0x50] sm:$0xf]
  %v39 = vld [vmem:[%s1 + $0x54] sm:$0xf]
  %v40 = vld [vmem:[%s1 + $0x58] sm:$0xf]
  %v41 = vld [vmem:[%s1 + $0x5c] sm:$0xf]
  %v42 = vld [vmem:[%s1 + $0x60] sm:$0xf]
  %v43 = vld [vmem:[%s1 + $0x64] sm:$0xf]
  %v44 = vld [vmem:[%s1 + $0x68] sm:$0xf]
  %v45 = vld [vmem:[%s1 + $0x6c] sm:$0xf]
  %v46 = vld [vmem:[%s1 + $0x70] sm:$0xf]
  %v47 = vld [vmem:[%s1 + $0x74] sm:$0xf]
  %v48 = vld [vmem:[%s1 + $0x78] sm:$0xf]
  %v49 = vld [vmem:[%s1 + $0x7c] sm:$0xf]
  %v50 = vld [vmem:[%s1 + $0x80] sm:$0xf]
  %v51 = vld [vmem:[%s1 + $0x84] sm:$0xf]
  %v52 = vld [vmem:[%s1 + $0x88] sm:$0xf]
  %v53 = vld [vmem:[%s1 + $0x8c] sm:$0xf]
  %v54 = vld [vmem:[%s1 + $0x90] sm:$0xf]
  %v55 = vld [vmem:[%s1 + $0x94] sm:$0xf]
  %v56 = vld [vmem:[%s1 + $0x98] sm:$0xf]
  %v57 = vld [vmem:[%s1 + $0x9c] sm:$0xf]
  %v58 = vld [vmem:[%s1 + $0xa0] sm:$0xf]
  %v59 = vld [vmem:[%s1 + $0xa4] sm:$0xf]
  %v60 = vld [vmem:[%s1 + $0xa8] sm:$0xf]
  %v61 = vld [vmem:[%s1 + $0xac] sm:$0xf]
  %v62 = vld [vmem:[%s1 + $0xb0] sm:$0xf]
  %v63 = vld [vmem:[%s1 + $0xb4] sm:$0xf]
  %v64 = vld [vmem:[%s1 + $0xb8] sm:$0xf]
  %v65 = vld [vmem:[%s1 + $0xbc] sm:$0xf]
  %v66 = vld [vmem:[%s1 + $0xc0] sm:$0xf]
  %v67 = vld [vmem:[%s1 + $0xc4] sm:$0xf]
  %v68 = vld [vmem:[%s1 + $0xc8] sm:$0xf]
  %v69 = vld [vmem:[%s1 + $0xcc] sm:$0xf]
  %v70 = vld [vmem:[%s1 + $0xd0] sm:$0xf]
  %v71 = vld [vmem:[%s1 + $0xd4] sm:$0xf]
  %v72 = vld [vmem:[%s1 + $0xd8] sm:$0xf]
  %v73 = vld [vmem:[%s1 + $0xdc] sm:$0xf]
  %v74 = vld [vmem:[%s1 + $0xe0] sm:$0xf]
  %v75 = vld [vmem:[%s1 + $0xe4] sm:$0xf]
  %v76 = vld [vmem:[%s1 + $0xe8] sm:$0xf]
  %v77 = vld [vmem:[%s1 + $0xec] sm:$0xf]
  %v78 = vld [vmem:[%s1 + $0xf0] sm:$0xf]
  %v79 = vld [vmem:[%s1 + $0xf4] sm:$0xf]
  %v80 = vld [vmem:[%s1 + $0xf8] sm:$0xf]
  %v81 = vld [vmem:[%s1 + $0xfc] sm:$0xf]
  %v82 = vld [vmem:[%s1 + $0x100] sm:$0xf]
  %v83 = vld [vmem:[%s1 + $0x104] sm:$0xf]
  %v84 = vld [vmem:[%s1 + $0x108] sm:$0xf]
  %v85 = vld [vmem:[%s1 + $0x10c] sm:$0xf]
  %v86 = vld [vmem:[%s1 + $0x110] sm:$0xf]
  %v87 = vld [vmem:[%s1 + $0x114] sm:$0xf]
  %v88 = vld [vmem:[%s1 + $0x118] sm:$0xf]
  %v89 = vld [vmem:[%s1 + $0x11c] sm:$0xf]
  %v90 = vld [vmem:[%s2] sm:$0x1]
  %v92 = vlaneseq
  %v93 = vshrl.u32 %v92, 7
  %v94 = vsub.s32 0, %v93
  %v95 = vrot.slane %v90, %v94
  %v100 = vunpack.c.l.b16 %v15
  %v101 = vunpack.c.h.b16 %v15
  %v102 = vunpack.c.l.b16 %v16
  %v103 = vunpack.c.h.b16 %v16
  %v104 = vunpack.c.l.b16 %v17
  %v105 = vpack.c.b16 %v100, %v100
  %v106 = vpack.c.b16 %v101, %v101
  %v107 = vpack.c.b16 %v102, %v102
  %v108 = vpack.c.b16 %v103, %v103
  %v109 = vpack.c.b16 %v104, %v104
  %v186 = vunpack.c.l.b16 %v18
  %v187 = vunpack.c.l.b16 %v19
  %v188 = vunpack.c.l.b16 %v20
  %v189 = vunpack.c.l.b16 %v21
  %v190 = vunpack.c.l.b16 %v22
  %v191 = vunpack.c.l.b16 %v23
  %v192 = vunpack.c.l.b16 %v24
  %v193 = vunpack.c.l.b16 %v25
  %v194 = vunpack.c.l.b16 %v26
  %v195 = vunpack.c.l.b16 %v27
  %v196 = vunpack.c.l.b16 %v28
  %v197 = vunpack.c.l.b16 %v29
  %v198 = vunpack.c.l.b16 %v30
  %v199 = vunpack.c.l.b16 %v31
  %v200 = vunpack.c.l.b16 %v32
  %v201 = vunpack.c.l.b16 %v33
  %v202 = vunpack.c.l.b16 %v34
  %v203 = vunpack.c.l.b16 %v35
  %v204 = vunpack.c.l.b16 %v36
  %v205 = vunpack.c.l.b16 %v37
  %v206 = vunpack.c.l.b16 %v38
  %v207 = vunpack.c.l.b16 %v39
  %v208 = vunpack.c.l.b16 %v40
  %v209 = vunpack.c.l.b16 %v41
  %v210 = vunpack.c.l.b16 %v42
  %v211 = vunpack.c.l.b16 %v43
  %v212 = vunpack.c.l.b16 %v44
  %v213 = vunpack.c.l.b16 %v45
  %v214 = vunpack.c.l.b16 %v46
  %v215 = vunpack.c.l.b16 %v47
  %v216 = vunpack.c.l.b16 %v48
  %v217 = vunpack.c.l.b16 %v49
  %v218 = vunpack.c.l.b16 %v50
  %v219 = vunpack.c.l.b16 %v51
  %v220 = vunpack.c.l.b16 %v52
  %v221 = vunpack.c.l.b16 %v53
  %v222 = vunpack.c.l.b16 %v54
  %v223 = vunpack.c.l.b16 %v55
  %v224 = vunpack.c.l.b16 %v56
  %v225 = vunpack.c.l.b16 %v57
  %v226 = vunpack.c.l.b16 %v58
  %v227 = vunpack.c.l.b16 %v59
  %v228 = vunpack.c.l.b16 %v60
  %v229 = vunpack.c.l.b16 %v61
  %v230 = vunpack.c.l.b16 %v62
  %v231 = vunpack.c.l.b16 %v63
  %v232 = vunpack.c.l.b16 %v64
  %v233 = vunpack.c.l.b16 %v65
  %v234 = vunpack.c.l.b16 %v66
  %v235 = vunpack.c.l.b16 %v67
  %v236 = vunpack.c.l.b16 %v68
  %v237 = vunpack.c.l.b16 %v69
  %v238 = vunpack.c.l.b16 %v70
  %v239 = vunpack.c.l.b16 %v71
  %v240 = vunpack.c.l.b16 %v72
  %v241 = vunpack.c.l.b16 %v73
  %v242 = vunpack.c.l.b16 %v74
  %v243 = vunpack.c.l.b16 %v75
  %v244 = vunpack.c.l.b16 %v76
  %v245 = vunpack.c.l.b16 %v77
  %v246 = vunpack.c.l.b16 %v78
  %v247 = vunpack.c.l.b16 %v79
  %v248 = vunpack.c.l.b16 %v80
  %v249 = vunpack.c.l.b16 %v81
  %v250 = vunpack.c.l.b16 %v82
  %v251 = vunpack.c.l.b16 %v83
  %v252 = vunpack.c.l.b16 %v84
  %v253 = vunpack.c.l.b16 %v85
  %v254 = vunpack.c.l.b16 %v86
  %v255 = vunpack.c.l.b16 %v87
  %v256 = vunpack.c.l.b16 %v88
  %v257 = vunpack.c.l.b16 %v89
  %v258 = vpack.c.b16 %v187, %v186
  %v259 = vpack.c.b16 %v189, %v188
  %v260 = vpack.c.b16 %v191, %v190
  %v261 = vpack.c.b16 %v193, %v192
  %v262 = vpack.c.b16 %v195, %v194
  %v263 = vpack.c.b16 %v197, %v196
  %v264 = vpack.c.b16 %v199, %v198
  %v265 = vpack.c.b16 %v201, %v200
  %v266 = vpack.c.b16 %v203, %v202
  %v267 = vpack.c.b16 %v205, %v204
  %v268 = vpack.c.b16 %v207, %v206
  %v269 = vpack.c.b16 %v209, %v208
  %v270 = vpack.c.b16 %v211, %v210
  %v271 = vpack.c.b16 %v213, %v212
  %v272 = vpack.c.b16 %v215, %v214
  %v273 = vpack.c.b16 %v217, %v216
  %v274 = vpack.c.b16 %v219, %v218
  %v275 = vpack.c.b16 %v221, %v220
  %v276 = vpack.c.b16 %v223, %v222
  %v277 = vpack.c.b16 %v225, %v224
  %v278 = vpack.c.b16 %v227, %v226
  %v279 = vpack.c.b16 %v229, %v228
  %v280 = vpack.c.b16 %v231, %v230
  %v281 = vpack.c.b16 %v233, %v232
  %v282 = vpack.c.b16 %v235, %v234
  %v283 = vpack.c.b16 %v237, %v236
  %v284 = vpack.c.b16 %v239, %v238
  %v285 = vpack.c.b16 %v241, %v240
  %v286 = vpack.c.b16 %v243, %v242
  %v287 = vpack.c.b16 %v245, %v244
  %v288 = vpack.c.b16 %v247, %v246
  %v289 = vpack.c.b16 %v249, %v248
  %v290 = vpack.c.b16 %v251, %v250
  %v291 = vpack.c.b16 %v253, %v252
  %v292 = vpack.c.b16 %v255, %v254
  %v293 = vpack.c.b16 %v257, %v256
  %vm330 = vcmask 523264
  %v332 = vsel %vm330, %v109, 0
  %334 = vmatprep.subr.bf16.mxu0 0
  %335 = vmatpush1.bf16.msra.mxu0 %v258
  %336 = vmatprep.subr.bf16.mxu0 0
  %337 = vmatpush1.bf16.msra.mxu0 %v259
  %338 = vmatprep.subr.bf16.mxu0 0
  %339 = vmatpush1.bf16.msra.mxu0 %v260
  %340 = vmatprep.subr.bf16.mxu0 0
  %341 = vmatpush1.bf16.msra.mxu0 %v261
  %342 = vmatprep.subr.bf16.mxu0 0
  %343 = vmatpush1.bf16.msra.mxu0 %v262
  %344 = vmatprep.subr.bf16.mxu0 0
  %345 = vmatpush1.bf16.msra.mxu0 %v263
  %346 = vmatprep.subr.bf16.mxu0 0
  %347 = vmatpush1.bf16.msra.mxu0 %v264
  %348 = vmatprep.subr.bf16.mxu0 0
  %349 = vmatpush1.bf16.msra.mxu0 %v265
  %350 = vmatprep.subr.bf16.mxu0 0
  %351 = vmatpush1.bf16.msra.mxu0 %v266
  %352 = vmatprep.subr.bf16.mxu0 0
  %353 = vmatpush1.bf16.msra.mxu0 %v267
  %354 = vmatprep.subr.bf16.mxu0 0
  %355 = vmatpush1.bf16.msra.mxu0 %v268
  %356 = vmatprep.subr.bf16.mxu0 0
  %357 = vmatpush1.bf16.msra.mxu0 %v269
  %358 = vmatprep.subr.bf16.mxu0 0
  %359 = vmatpush1.bf16.msra.mxu0 %v270
  %360 = vmatprep.subr.bf16.mxu0 0
  %361 = vmatpush1.bf16.msra.mxu0 %v271
  %362 = vmatprep.subr.bf16.mxu0 0
  %363 = vmatpush1.bf16.msra.mxu0 %v272
  %364 = vmatprep.subr.bf16.mxu0 0
  %365 = vmatpush1.bf16.msra.mxu0 %v273
  %366 = vmatprep.mubr.bf16.mxu0 %v106
  %367 = vmatmul.mubr.bf16.gmra.mrb[0].mxu0 %v105
  %v368 = vpop.f32.mrb[0].mxu0
  %v369 = vadd.f32 %v95, %v368
  %v370 = vpop.f32.mrb[0].mxu0
  %v371 = vpop.f32.mrb[0].mxu0
  %v372 = vpop.f32.mrb[0].mxu0
  %373 = vdwg.mxu0
  %374 = vmatprep.subr.bf16.mxu0 0
  %375 = vmatpush1.bf16.msra.mxu0 %v274
  %376 = vmatprep.subr.bf16.mxu0 0
  %377 = vmatpush1.bf16.msra.mxu0 %v275
  %378 = vmatprep.subr.bf16.mxu0 0
  %379 = vmatpush1.bf16.msra.mxu0 %v276
  %380 = vmatprep.subr.bf16.mxu0 0
  %381 = vmatpush1.bf16.msra.mxu0 %v277
  %382 = vmatprep.subr.bf16.mxu0 0
  %383 = vmatpush1.bf16.msra.mxu0 %v278
  %384 = vmatprep.subr.bf16.mxu0 0
  %385 = vmatpush1.bf16.msra.mxu0 %v279
  %386 = vmatprep.subr.bf16.mxu0 0
  %387 = vmatpush1.bf16.msra.mxu0 %v280
  %388 = vmatprep.subr.bf16.mxu0 0
  %389 = vmatpush1.bf16.msra.mxu0 %v281
  %390 = vmatprep.subr.bf16.mxu0 0
  %391 = vmatpush1.bf16.msra.mxu0 %v282
  %392 = vmatprep.subr.bf16.mxu0 0
  %393 = vmatpush1.bf16.msra.mxu0 %v283
  %394 = vmatprep.subr.bf16.mxu0 0
  %395 = vmatpush1.bf16.msra.mxu0 %v284
  %396 = vmatprep.subr.bf16.mxu0 0
  %397 = vmatpush1.bf16.msra.mxu0 %v285
  %398 = vmatprep.subr.bf16.mxu0 0
  %399 = vmatpush1.bf16.msra.mxu0 %v286
  %400 = vmatprep.subr.bf16.mxu0 0
  %401 = vmatpush1.bf16.msra.mxu0 %v287
  %402 = vmatprep.subr.bf16.mxu0 0
  %403 = vmatpush1.bf16.msra.mxu0 %v288
  %404 = vmatprep.subr.bf16.mxu0 0
  %405 = vmatpush1.bf16.msra.mxu0 %v289
  %406 = vmatprep.mubr.bf16.mxu0 %v108
  %407 = vmatmul.mubr.bf16.gmra.mrb[0].mxu0 %v107
  %v408 = vpop.f32.mrb[0].mxu0
  %v409 = vadd.f32 %v369, %v408
  %v410 = vpop.f32.mrb[0].mxu0
  %v411 = vpop.f32.mrb[0].mxu0
  %v412 = vpop.f32.mrb[0].mxu0
  %413 = vdwg.mxu0
  %414 = vmatprep.subr.bf16.mxu0 0
  %415 = vmatpush1.bf16.msra.mxu0 %v290
  %416 = vmatprep.subr.bf16.mxu0 0
  %417 = vmatpush1.bf16.msra.mxu0 %v291
  %418 = vmatprep.subr.bf16.mxu0 0
  %419 = vmatpush1.bf16.msra.mxu0 %v292
  %420 = vmatprep.subr.bf16.mxu0 0
  %421 = vmatpush1.bf16.msra.mxu0 %v293
  %422 = vmatprep.subr.bf16.mxu0 0
  %423 = vmatpush1.bf16.msra.mxu0 0
  %424 = vmatprep.subr.bf16.mxu0 0
  %425 = vmatpush1.bf16.msra.mxu0 0
  %426 = vmatprep.subr.bf16.mxu0 0
  %427 = vmatpush1.bf16.msra.mxu0 0
  %428 = vmatprep.subr.bf16.mxu0 0
  %429 = vmatpush1.bf16.msra.mxu0 0
  %430 = vmatprep.subr.bf16.mxu0 0
  %431 = vmatpush1.bf16.msra.mxu0 0
  %432 = vmatprep.subr.bf16.mxu0 0
  %433 = vmatpush1.bf16.msra.mxu0 0
  %434 = vmatprep.subr.bf16.mxu0 0
  %435 = vmatpush1.bf16.msra.mxu0 0
  %436 = vmatprep.subr.bf16.mxu0 0
  %437 = vmatpush1.bf16.msra.mxu0 0
  %438 = vmatprep.subr.bf16.mxu0 0
  %439 = vmatpush1.bf16.msra.mxu0 0
  %440 = vmatprep.subr.bf16.mxu0 0
  %441 = vmatpush1.bf16.msra.mxu0 0
  %442 = vmatprep.subr.bf16.mxu0 0
  %443 = vmatpush1.bf16.msra.mxu0 0
  %444 = vmatprep.subr.bf16.mxu0 0
  %445 = vmatpush1.bf16.msra.mxu0 0
  %446 = vmatprep.mubr.bf16.mxu0 0
  %447 = vmatmul.mubr.bf16.gmra.mrb[0].mxu0 %v332
  %v448 = vpop.f32.mrb[0].mxu0
  %v449 = vadd.f32 %v409, %v448
  %v450 = vpop.f32.mrb[0].mxu0
  %v451 = vpop.f32.mrb[0].mxu0
  %v452 = vpop.f32.mrb[0].mxu0
  %453 = vdwg.mxu0
  %v454 = vmax.f32 %v449, 0.0
  %455 = vst [vmem:[%s3] sm:$0xff] %v454
  // Predicated region
  $region14: #{_lambda_.38} parent=0 // pred_check
    _
  $region15: #{_lambda_.38} parent=0 // pred_check_branch
    %457 = sbr.rel (0) target = $region17
  $region16: #{_lambda_.38} parent=0 // pred_region
    _
  $region17: #{_lambda_.38} parent=0 // pred_fallthru
    _
  // Predicated region
  $region18: #{_lambda_.38} parent=0 // pred_check
    _
  $region19: #{_lambda_.38} parent=0 // pred_check_branch
    %459 = sbr.rel (0) target = $region21
  $region20: #{_lambda_.38} parent=0 // pred_region
    _
  $region21: #{_lambda_.38} parent=0 // pred_fallthru
    _

// kernel: _lambda_.40
$region0: #{_lambda_.40}
  #allocation0 [shape = 'u32[]', space=smem, size = 0x4, offset = 0x4, fixed_abs, tag = 'smem constant byte address 0x4 - core index']
  #allocation1 [shape = 'u32[144,128]{1,0:T(1,128)}', space=vmem, size = 0x12000, scoped, tag = 'internal scratch']
  %s0 = inlined_call_operand.vmem [shape: bf16[8,1152], index: 0, kind: input, shape index: {}]
  %s1 = inlined_call_operand.vmem [shape: bf16[1152,128], index: 1, kind: input, shape index: {}]
  %s2 = inlined_call_operand.vmem [shape: f32[1,128], index: 2, kind: input, shape index: {}]
  %s3 = inlined_call_operand.vmem [shape: f32[8,128], index: 3, kind: input, shape index: {}]
  %s4 = inlined_call_operand.vmem [shape: f32[8,128], index: 4, kind: output, shape index: {}]
  %s5 = sld [smem:[#allocation0]]
  $region26: #{_lambda_.40} parent=0
    _
  %s7 = ssub.s32 1, %s5
  %s8 = scalar_select 0, %s7, %s5
  // Predicated region
  $region2: #{_lambda_.40} parent=0 // pred_check
    _
  $region3: #{_lambda_.40} parent=0 // pred_check_branch
    %10 = sbr.rel (0) target = $region5
  $region4: #{_lambda_.40} parent=0 // pred_region
    _
  $region5: #{_lambda_.40} parent=0 // pred_fallthru
    _
  // Predicated region
  $region6: #{_lambda_.40} parent=0 // pred_check
    _
  $region7: #{_lambda_.40} parent=0 // pred_check_branch
    %12 = sbr.rel (0) target = $region9
  $region8: #{_lambda_.40} parent=0 // pred_region
    _
  $region9: #{_lambda_.40} parent=0 // pred_fallthru
    _
  // Predicated region
  $region10: #{_lambda_.40} parent=0 // pred_check
    _
  $region11: #{_lambda_.40} parent=0 // pred_check_branch
    %14 = sbr.rel (0) target = $region13
  $region12: #{_lambda_.40} parent=0 // pred_region
    _
  $region13: #{_lambda_.40} parent=0 // pred_fallthru
    _
  // Predicated region
  $region14: #{_lambda_.40} parent=0 // pred_check
    _
  $region15: #{_lambda_.40} parent=0 // pred_check_branch
    %16 = sbr.rel (0) target = $region17
  $region16: #{_lambda_.40} parent=0 // pred_region
    _
  $region17: #{_lambda_.40} parent=0 // pred_fallthru
    _
  %v18 = vld [vmem:[%s0] sm:$0xff]
  %v19 = vld [vmem:[%s0 + $0x8] sm:$0xff]
  %v20 = vld [vmem:[%s0 + $0x10] sm:$0xff]
  %v21 = vld [vmem:[%s0 + $0x18] sm:$0xff]
  %v22 = vld [vmem:[%s0 + $0x20] sm:$0xf]
  %v23 = vld [vmem:[%s1] sm:$0xf]
  %v24 = vld [vmem:[%s1 + $0x4] sm:$0xf]
  %v25 = vld [vmem:[%s1 + $0x8] sm:$0xf]
  %v26 = vld [vmem:[%s1 + $0xc] sm:$0xf]
  %v27 = vld [vmem:[%s1 + $0x10] sm:$0xf]
  %v28 = vld [vmem:[%s1 + $0x14] sm:$0xf]
  %v29 = vld [vmem:[%s1 + $0x18] sm:$0xf]
  %v30 = vld [vmem:[%s1 + $0x1c] sm:$0xf]
  %v31 = vld [vmem:[%s1 + $0x20] sm:$0xf]
  %v32 = vld [vmem:[%s1 + $0x24] sm:$0xf]
  %v33 = vld [vmem:[%s1 + $0x28] sm:$0xf]
  %v34 = vld [vmem:[%s1 + $0x2c] sm:$0xf]
  %v35 = vld [vmem:[%s1 + $0x30] sm:$0xf]
  %v36 = vld [vmem:[%s1 + $0x34] sm:$0xf]
  %v37 = vld [vmem:[%s1 + $0x38] sm:$0xf]
  %v38 = vld [vmem:[%s1 + $0x3c] sm:$0xf]
  %v39 = vld [vmem:[%s1 + $0x40] sm:$0xf]
  %v40 = vld [vmem:[%s1 + $0x44] sm:$0xf]
  %v41 = vld [vmem:[%s1 + $0x48] sm:$0xf]
  %v42 = vld [vmem:[%s1 + $0x4c] sm:$0xf]
  %v43 = vld [vmem:[%s1 + $0x50] sm:$0xf]
  %v44 = vld [vmem:[%s1 + $0x54] sm:$0xf]
  %v45 = vld [vmem:[%s1 + $0x58] sm:$0xf]
  %v46 = vld [vmem:[%s1 + $0x5c] sm:$0xf]
  %v47 = vld [vmem:[%s1 + $0x60] sm:$0xf]
  %v48 = vld [vmem:[%s1 + $0x64] sm:$0xf]
  %v49 = vld [vmem:[%s1 + $0x68] sm:$0xf]
  %v50 = vld [vmem:[%s1 + $0x6c] sm:$0xf]
  %v51 = vld [vmem:[%s1 + $0x70] sm:$0xf]
  %v52 = vld [vmem:[%s1 + $0x74] sm:$0xf]
  %v53 = vld [vmem:[%s1 + $0x78] sm:$0xf]
  %v54 = vld [vmem:[%s1 + $0x7c] sm:$0xf]
  %v55 = vld [vmem:[%s1 + $0x80] sm:$0xf]
  %v56 = vld [vmem:[%s1 + $0x84] sm:$0xf]
  %v57 = vld [vmem:[%s1 + $0x88] sm:$0xf]
  %v58 = vld [vmem:[%s1 + $0x8c] sm:$0xf]
  %v59 = vld [vmem:[%s1 + $0x90] sm:$0xf]
  %v60 = vld [vmem:[%s1 + $0x94] sm:$0xf]
  %v61 = vld [vmem:[%s1 + $0x98] sm:$0xf]
  %v62 = vld [vmem:[%s1 + $0x9c] sm:$0xf]
  %v63 = vld [vmem:[%s1 + $0xa0] sm:$0xf]
  %v64 = vld [vmem:[%s1 + $0xa4] sm:$0xf]
  %v65 = vld [vmem:[%s1 + $0xa8] sm:$0xf]
  %v66 = vld [vmem:[%s1 + $0xac] sm:$0xf]
  %v67 = vld [vmem:[%s1 + $0xb0] sm:$0xf]
  %v68 = vld [vmem:[%s1 + $0xb4] sm:$0xf]
  %v69 = vld [vmem:[%s1 + $0xb8] sm:$0xf]
  %v70 = vld [vmem:[%s1 + $0xbc] sm:$0xf]
  %v71 = vld [vmem:[%s1 + $0xc0] sm:$0xf]
  %v72 = vld [vmem:[%s1 + $0xc4] sm:$0xf]
  %v73 = vld [vmem:[%s1 + $0xc8] sm:$0xf]
  %v74 = vld [vmem:[%s1 + $0xcc] sm:$0xf]
  %v75 = vld [vmem:[%s1 + $0xd0] sm:$0xf]
  %v76 = vld [vmem:[%s1 + $0xd4] sm:$0xf]
  %v77 = vld [vmem:[%s1 + $0xd8] sm:$0xf]
  %v78 = vld [vmem:[%s1 + $0xdc] sm:$0xf]
  %v79 = vld [vmem:[%s1 + $0xe0] sm:$0xf]
  %v80 = vld [vmem:[%s1 + $0xe4] sm:$0xf]
  %v81 = vld [vmem:[%s1 + $0xe8] sm:$0xf]
  %v82 = vld [vmem:[%s1 + $0xec] sm:$0xf]
  %v83 = vld [vmem:[%s1 + $0xf0] sm:$0xf]
  %v84 = vld [vmem:[%s1 + $0xf4] sm:$0xf]
  %v85 = vld [vmem:[%s1 + $0xf8] sm:$0xf]
  %v86 = vld [vmem:[%s1 + $0xfc] sm:$0xf]
  %v87 = vld [vmem:[%s1 + $0x100] sm:$0xf]
  %v88 = vld [vmem:[%s1 + $0x104] sm:$0xf]
  %v89 = vld [vmem:[%s1 + $0x108] sm:$0xf]
  %v90 = vld [vmem:[%s1 + $0x10c] sm:$0xf]
  %v91 = vld [vmem:[%s1 + $0x110] sm:$0xf]
  %v92 = vld [vmem:[%s1 + $0x114] sm:$0xf]
  %v93 = vld [vmem:[%s1 + $0x118] sm:$0xf]
  %v94 = vld [vmem:[%s1 + $0x11c] sm:$0xf]
  %v95 = vld [vmem:[%s1 + $0x120] sm:$0xf]
  %v96 = vld [vmem:[%s1 + $0x124] sm:$0xf]
  %v97 = vld [vmem:[%s1 + $0x128] sm:$0xf]
  %v98 = vld [vmem:[%s1 + $0x12c] sm:$0xf]
  %v99 = vld [vmem:[%s1 + $0x130] sm:$0xf]
  %v100 = vld [vmem:[%s1 + $0x134] sm:$0xf]
  %v101 = vld [vmem:[%s1 + $0x138] sm:$0xf]
  %v102 = vld [vmem:[%s1 + $0x13c] sm:$0xf]
  %v103 = vld [vmem:[%s1 + $0x140] sm:$0xf]
  %v104 = vld [vmem:[%s1 + $0x144] sm:$0xf]
  %v105 = vld [vmem:[%s1 + $0x148] sm:$0xf]
  %v106 = vld [vmem:[%s1 + $0x14c] sm:$0xf]
  %v107 = vld [vmem:[%s1 + $0x150] sm:$0xf]
  %v108 = vld [vmem:[%s1 + $0x154] sm:$0xf]
  %v109 = vld [vmem:[%s1 + $0x158] sm:$0xf]
  %v110 = vld [vmem:[%s1 + $0x15c] sm:$0xf]
  %v111 = vld [vmem:[%s1 + $0x160] sm:$0xf]
  %v112 = vld [vmem:[%s1 + $0x164] sm:$0xf]
  %v113 = vld [vmem:[%s1 + $0x168] sm:$0xf]
  %v114 = vld [vmem:[%s1 + $0x16c] sm:$0xf]
  %v115 = vld [vmem:[%s1 + $0x170] sm:$0xf]
  %v116 = vld [vmem:[%s1 + $0x174] sm:$0xf]
  %v117 = vld [vmem:[%s1 + $0x178] sm:$0xf]
  %v118 = vld [vmem:[%s1 + $0x17c] sm:$0xf]
  %v119 = vld [vmem:[%s1 + $0x180] sm:$0xf]
  %v120 = vld [vmem:[%s1 + $0x184] sm:$0xf]
  %v121 = vld [vmem:[%s1 + $0x188] sm:$0xf]
  %v122 = vld [vmem:[%s1 + $0x18c] sm:$0xf]
  %v123 = vld [vmem:[%s1 + $0x190] sm:$0xf]
  %v124 = vld [vmem:[%s1 + $0x194] sm:$0xf]
  %v125 = vld [vmem:[%s1 + $0x198] sm:$0xf]
  %v126 = vld [vmem:[%s1 + $0x19c] sm:$0xf]
  %v127 = vld [vmem:[%s1 + $0x1a0] sm:$0xf]
  %v128 = vld [vmem:[%s1 + $0x1a4] sm:$0xf]
  %v129 = vld [vmem:[%s1 + $0x1a8] sm:$0xf]
  %v130 = vld [vmem:[%s1 + $0x1ac] sm:$0xf]
  %v131 = vld [vmem:[%s1 + $0x1b0] sm:$0xf]
  %v132 = vld [vmem:[%s1 + $0x1b4] sm:$0xf]
  %v133 = vld [vmem:[%s1 + $0x1b8] sm:$0xf]
  %v134 = vld [vmem:[%s1 + $0x1bc] sm:$0xf]
  %v135 = vld [vmem:[%s1 + $0x1c0] sm:$0xf]
  %v136 = vld [vmem:[%s1 + $0x1c4] sm:$0xf]
  %v137 = vld [vmem:[%s1 + $0x1c8] sm:$0xf]
  %v138 = vld [vmem:[%s1 + $0x1cc] sm:$0xf]
  %v139 = vld [vmem:[%s1 + $0x1d0] sm:$0xf]
  %v140 = vld [vmem:[%s1 + $0x1d4] sm:$0xf]
  %v141 = vld [vmem:[%s1 + $0x1d8] sm:$0xf]
  %v142 = vld [vmem:[%s1 + $0x1dc] sm:$0xf]
  %v143 = vld [vmem:[%s1 + $0x1e0] sm:$0xf]
  %v144 = vld [vmem:[%s1 + $0x1e4] sm:$0xf]
  %v145 = vld [vmem:[%s1 + $0x1e8] sm:$0xf]
  %v146 = vld [vmem:[%s1 + $0x1ec] sm:$0xf]
  %v147 = vld [vmem:[%s1 + $0x1f0] sm:$0xf]
  %v148 = vld [vmem:[%s1 + $0x1f4] sm:$0xf]
  %v149 = vld [vmem:[%s1 + $0x1f8] sm:$0xf]
  %v150 = vld [vmem:[%s1 + $0x1fc] sm:$0xf]
  %v151 = vld [vmem:[%s1 + $0x200] sm:$0xf]
  %v152 = vld [vmem:[%s1 + $0x204] sm:$0xf]
  %v153 = vld [vmem:[%s1 + $0x208] sm:$0xf]
  %v154 = vld [vmem:[%s1 + $0x20c] sm:$0xf]
  %v155 = vld [vmem:[%s1 + $0x210] sm:$0xf]
  %v156 = vld [vmem:[%s1 + $0x214] sm:$0xf]
  %v157 = vld [vmem:[%s1 + $0x218] sm:$0xf]
  %v158 = vld [vmem:[%s1 + $0x21c] sm:$0xf]
  %v159 = vld [vmem:[%s1 + $0x220] sm:$0xf]
  %v160 = vld [vmem:[%s1 + $0x224] sm:$0xf]
  %v161 = vld [vmem:[%s1 + $0x228] sm:$0xf]
  %v162 = vld [vmem:[%s1 + $0x22c] sm:$0xf]
  %v163 = vld [vmem:[%s1 + $0x230] sm:$0xf]
  %v164 = vld [vmem:[%s1 + $0x234] sm:$0xf]
  %v165 = vld [vmem:[%s1 + $0x238] sm:$0xf]
  %v166 = vld [vmem:[%s1 + $0x23c] sm:$0xf]
  %v167 = vld [vmem:[%s2] sm:$0x1]
  %v169 = vlaneseq
  %v170 = vshrl.u32 %v169, 7
  %v171 = vsub.s32 0, %v170
  %v172 = vrot.slane %v167, %v171
  %v179 = vunpack.c.l.b16 %v18
  %v180 = vunpack.c.h.b16 %v18
  %v181 = vunpack.c.l.b16 %v19
  %v182 = vunpack.c.h.b16 %v19
  %v183 = vunpack.c.l.b16 %v20
  %v184 = vunpack.c.h.b16 %v20
  %v185 = vunpack.c.l.b16 %v21
  %v186 = vunpack.c.h.b16 %v21
  %v187 = vunpack.c.l.b16 %v22
  %v188 = vpack.c.b16 %v179, %v179
  %v189 = vpack.c.b16 %v180, %v180
  %v190 = vpack.c.b16 %v181, %v181
  %v191 = vpack.c.b16 %v182, %v182
  %v192 = vpack.c.b16 %v183, %v183
  %v193 = vpack.c.b16 %v184, %v184
  %v194 = vpack.c.b16 %v185, %v185
  %v195 = vpack.c.b16 %v186, %v186
  %v196 = vpack.c.b16 %v187, %v187
  %v350 = vunpack.c.l.b16 %v23
  %v351 = vunpack.c.l.b16 %v24
  %v352 = vunpack.c.l.b16 %v25
  %v353 = vunpack.c.l.b16 %v26
  %v354 = vunpack.c.l.b16 %v27
  %v355 = vunpack.c.l.b16 %v28
  %v356 = vunpack.c.l.b16 %v29
  %v357 = vunpack.c.l.b16 %v30
  %v358 = vunpack.c.l.b16 %v31
  %v359 = vunpack.c.l.b16 %v32
  %v360 = vunpack.c.l.b16 %v33
  %v361 = vunpack.c.l.b16 %v34
  %v362 = vunpack.c.l.b16 %v35
  %v363 = vunpack.c.l.b16 %v36
  %v364 = vunpack.c.l.b16 %v37
  %v365 = vunpack.c.l.b16 %v38
  %v366 = vunpack.c.l.b16 %v39
  %v367 = vunpack.c.l.b16 %v40
  %v368 = vunpack.c.l.b16 %v41
  %v369 = vunpack.c.l.b16 %v42
  %v370 = vunpack.c.l.b16 %v43
  %v371 = vunpack.c.l.b16 %v44
  %v372 = vunpack.c.l.b16 %v45
  %v373 = vunpack.c.l.b16 %v46
  %v374 = vunpack.c.l.b16 %v47
  %v375 = vunpack.c.l.b16 %v48
  %v376 = vunpack.c.l.b16 %v49
  %v377 = vunpack.c.l.b16 %v50
  %v378 = vunpack.c.l.b16 %v51
  %v379 = vunpack.c.l.b16 %v52
  %v380 = vunpack.c.l.b16 %v53
  %v381 = vunpack.c.l.b16 %v54
  %v382 = vunpack.c.l.b16 %v55
  %v383 = vunpack.c.l.b16 %v56
  %v384 = vunpack.c.l.b16 %v57
  %v385 = vunpack.c.l.b16 %v58
  %v386 = vunpack.c.l.b16 %v59
  %v387 = vunpack.c.l.b16 %v60
  %v388 = vunpack.c.l.b16 %v61
  %v389 = vunpack.c.l.b16 %v62
  %v390 = vunpack.c.l.b16 %v63
  %v391 = vunpack.c.l.b16 %v64
  %v392 = vunpack.c.l.b16 %v65
  %v393 = vunpack.c.l.b16 %v66
  %v394 = vunpack.c.l.b16 %v67
  %v395 = vunpack.c.l.b16 %v68
  %v396 = vunpack.c.l.b16 %v69
  %v397 = vunpack.c.l.b16 %v70
  %v398 = vunpack.c.l.b16 %v71
  %v399 = vunpack.c.l.b16 %v72
  %v400 = vunpack.c.l.b16 %v73
  %v401 = vunpack.c.l.b16 %v74
  %v402 = vunpack.c.l.b16 %v75
  %v403 = vunpack.c.l.b16 %v76
  %v404 = vunpack.c.l.b16 %v77
  %v405 = vunpack.c.l.b16 %v78
  %v406 = vunpack.c.l.b16 %v79
  %v407 = vunpack.c.l.b16 %v80
  %v408 = vunpack.c.l.b16 %v81
  %v409 = vunpack.c.l.b16 %v82
  %v410 = vunpack.c.l.b16 %v83
  %v411 = vunpack.c.l.b16 %v84
  %v412 = vunpack.c.l.b16 %v85
  %v413 = vunpack.c.l.b16 %v86
  %v414 = vunpack.c.l.b16 %v87
  %v415 = vunpack.c.l.b16 %v88
  %v416 = vunpack.c.l.b16 %v89
  %v417 = vunpack.c.l.b16 %v90
  %v418 = vunpack.c.l.b16 %v91
  %v419 = vunpack.c.l.b16 %v92
  %v420 = vunpack.c.l.b16 %v93
  %v421 = vunpack.c.l.b16 %v94
  %v422 = vunpack.c.l.b16 %v95
  %v423 = vunpack.c.l.b16 %v96
  %v424 = vunpack.c.l.b16 %v97
  %v425 = vunpack.c.l.b16 %v98
  %v426 = vunpack.c.l.b16 %v99
  %v427 = vunpack.c.l.b16 %v100
  %v428 = vunpack.c.l.b16 %v101
  %v429 = vunpack.c.l.b16 %v102
  %v430 = vunpack.c.l.b16 %v103
  %v431 = vunpack.c.l.b16 %v104
  %v432 = vunpack.c.l.b16 %v105
  %v433 = vunpack.c.l.b16 %v106
  %v434 = vunpack.c.l.b16 %v107
  %v435 = vunpack.c.l.b16 %v108
  %v436 = vunpack.c.l.b16 %v109
  %v437 = vunpack.c.l.b16 %v110
  %v438 = vunpack.c.l.b16 %v111
  %v439 = vunpack.c.l.b16 %v112
  %v440 = vunpack.c.l.b16 %v113
  %v441 = vunpack.c.l.b16 %v114
  %v442 = vunpack.c.l.b16 %v115
  %v443 = vunpack.c.l.b16 %v116
  %v444 = vunpack.c.l.b16 %v117
  %v445 = vunpack.c.l.b16 %v118
  %v446 = vunpack.c.l.b16 %v119
  %v447 = vunpack.c.l.b16 %v120
  %v448 = vunpack.c.l.b16 %v121
  %v449 = vunpack.c.l.b16 %v122
  %v450 = vunpack.c.l.b16 %v123
  %v451 = vunpack.c.l.b16 %v124
  %v452 = vunpack.c.l.b16 %v125
  %v453 = vunpack.c.l.b16 %v126
  %v454 = vunpack.c.l.b16 %v127
  %v455 = vunpack.c.l.b16 %v128
  %v456 = vunpack.c.l.b16 %v129
  %v457 = vunpack.c.l.b16 %v130
  %v458 = vunpack.c.l.b16 %v131
  %v459 = vunpack.c.l.b16 %v132
  %v460 = vunpack.c.l.b16 %v133
  %v461 = vunpack.c.l.b16 %v134
  %v462 = vunpack.c.l.b16 %v135
  %v463 = vunpack.c.l.b16 %v136
  %v464 = vunpack.c.l.b16 %v137
  %v465 = vunpack.c.l.b16 %v138
  %v466 = vunpack.c.l.b16 %v139
  %v467 = vunpack.c.l.b16 %v140
  %v468 = vunpack.c.l.b16 %v141
  %v469 = vunpack.c.l.b16 %v142
  %v470 = vunpack.c.l.b16 %v143
  %v471 = vunpack.c.l.b16 %v144
  %v472 = vunpack.c.l.b16 %v145
  %v473 = vunpack.c.l.b16 %v146
  %v474 = vunpack.c.l.b16 %v147
  %v475 = vunpack.c.l.b16 %v148
  %v476 = vunpack.c.l.b16 %v149
  %v477 = vunpack.c.l.b16 %v150
  %v478 = vunpack.c.l.b16 %v151
  %v479 = vunpack.c.l.b16 %v152
  %v480 = vunpack.c.l.b16 %v153
  %v481 = vunpack.c.l.b16 %v154
  %v482 = vunpack.c.l.b16 %v155
  %v483 = vunpack.c.l.b16 %v156
  %v484 = vunpack.c.l.b16 %v157
  %v485 = vunpack.c.l.b16 %v158
  %v486 = vunpack.c.l.b16 %v159
  %v487 = vunpack.c.l.b16 %v160
  %v488 = vunpack.c.l.b16 %v161
  %v489 = vunpack.c.l.b16 %v162
  %v490 = vunpack.c.l.b16 %v163
  %v491 = vunpack.c.l.b16 %v164
  %v492 = vunpack.c.l.b16 %v165
  %v493 = vunpack.c.l.b16 %v166
  %v494 = vpack.c.b16 %v351, %v350
  %v495 = vpack.c.b16 %v353, %v352
  %v496 = vpack.c.b16 %v355, %v354
  %v497 = vpack.c.b16 %v357, %v356
  %v498 = vpack.c.b16 %v359, %v358
  %v499 = vpack.c.b16 %v361, %v360
  %v500 = vpack.c.b16 %v363, %v362
  %v501 = vpack.c.b16 %v365, %v364
  %v502 = vpack.c.b16 %v367, %v366
  %v503 = vpack.c.b16 %v369, %v368
  %v504 = vpack.c.b16 %v371, %v370
  %v505 = vpack.c.b16 %v373, %v372
  %v506 = vpack.c.b16 %v375, %v374
  %v507 = vpack.c.b16 %v377, %v376
  %v508 = vpack.c.b16 %v379, %v378
  %v509 = vpack.c.b16 %v381, %v380
  %v510 = vpack.c.b16 %v383, %v382
  %v511 = vpack.c.b16 %v385, %v384
  %v512 = vpack.c.b16 %v387, %v386
  %v513 = vpack.c.b16 %v389, %v388
  %v514 = vpack.c.b16 %v391, %v390
  %v515 = vpack.c.b16 %v393, %v392
  %v516 = vpack.c.b16 %v395, %v394
  %v517 = vpack.c.b16 %v397, %v396
  %v518 = vpack.c.b16 %v399, %v398
  %v519 = vpack.c.b16 %v401, %v400
  %v520 = vpack.c.b16 %v403, %v402
  %v521 = vpack.c.b16 %v405, %v404
  %v522 = vpack.c.b16 %v407, %v406
  %v523 = vpack.c.b16 %v409, %v408
  %v524 = vpack.c.b16 %v411, %v410
  %v525 = vpack.c.b16 %v413, %v412
  %v526 = vpack.c.b16 %v415, %v414
  %v527 = vpack.c.b16 %v417, %v416
  %v528 = vpack.c.b16 %v419, %v418
  %v529 = vpack.c.b16 %v421, %v420
  %v530 = vpack.c.b16 %v423, %v422
  %v531 = vpack.c.b16 %v425, %v424
  %v532 = vpack.c.b16 %v427, %v426
  %v533 = vpack.c.b16 %v429, %v428
  %v534 = vpack.c.b16 %v431, %v430
  %v535 = vpack.c.b16 %v433, %v432
  %v536 = vpack.c.b16 %v435, %v434
  %v537 = vpack.c.b16 %v437, %v436
  %v538 = vpack.c.b16 %v439, %v438
  %v539 = vpack.c.b16 %v441, %v440
  %v540 = vpack.c.b16 %v443, %v442
  %v541 = vpack.c.b16 %v445, %v444
  %v542 = vpack.c.b16 %v447, %v446
  %v543 = vpack.c.b16 %v449, %v448
  %v544 = vpack.c.b16 %v451, %v450
  %v545 = vpack.c.b16 %v453, %v452
  %v546 = vpack.c.b16 %v455, %v454
  %v547 = vpack.c.b16 %v457, %v456
  %v548 = vpack.c.b16 %v459, %v458
  %v549 = vpack.c.b16 %v461, %v460
  %v550 = vpack.c.b16 %v463, %v462
  %v551 = vpack.c.b16 %v465, %v464
  %v552 = vpack.c.b16 %v467, %v466
  %v553 = vpack.c.b16 %v469, %v468
  %v554 = vpack.c.b16 %v471, %v470
  %v555 = vpack.c.b16 %v473, %v472
  %v556 = vpack.c.b16 %v475, %v474
  %v557 = vpack.c.b16 %v477, %v476
  %v558 = vpack.c.b16 %v479, %v478
  %v559 = vpack.c.b16 %v481, %v480
  %v560 = vpack.c.b16 %v483, %v482
  %v561 = vpack.c.b16 %v485, %v484
  %v562 = vpack.c.b16 %v487, %v486
  %v563 = vpack.c.b16 %v489, %v488
  %v564 = vpack.c.b16 %v491, %v490
  %v565 = vpack.c.b16 %v493, %v492
  %638 = vmatprep.subr.bf16.mxu0 0
  %639 = vmatpush1.bf16.msra.mxu0 %v494
  %640 = vmatprep.subr.bf16.mxu0 0
  %641 = vmatpush1.bf16.msra.mxu0 %v495
  %642 = vmatprep.subr.bf16.mxu0 0
  %643 = vmatpush1.bf16.msra.mxu0 %v496
  %644 = vmatprep.subr.bf16.mxu0 0
  %645 = vmatpush1.bf16.msra.mxu0 %v497
  %646 = vmatprep.subr.bf16.mxu0 0
  %647 = vmatpush1.bf16.msra.mxu0 %v498
  %648 = vmatprep.subr.bf16.mxu0 0
  %649 = vmatpush1.bf16.msra.mxu0 %v499
  %650 = vmatprep.subr.bf16.mxu0 0
  %651 = vmatpush1.bf16.msra.mxu0 %v500
  %652 = vmatprep.subr.bf16.mxu0 0
  %653 = vmatpush1.bf16.msra.mxu0 %v501
  %654 = vmatprep.subr.bf16.mxu0 0
  %655 = vmatpush1.bf16.msra.mxu0 %v502
  %656 = vmatprep.subr.bf16.mxu0 0
  %657 = vmatpush1.bf16.msra.mxu0 %v503
  %658 = vmatprep.subr.bf16.mxu0 0
  %659 = vmatpush1.bf16.msra.mxu0 %v504
  %660 = vmatprep.subr.bf16.mxu0 0
  %661 = vmatpush1.bf16.msra.mxu0 %v505
  %662 = vmatprep.subr.bf16.mxu0 0
  %663 = vmatpush1.bf16.msra.mxu0 %v506
  %664 = vmatprep.subr.bf16.mxu0 0
  %665 = vmatpush1.bf16.msra.mxu0 %v507
  %666 = vmatprep.subr.bf16.mxu0 0
  %667 = vmatpush1.bf16.msra.mxu0 %v508
  %668 = vmatprep.subr.bf16.mxu0 0
  %669 = vmatpush1.bf16.msra.mxu0 %v509
  %670 = vmatprep.mubr.bf16.mxu0 %v189
  %671 = vmatmul.mubr.bf16.gmra.mrb[0].mxu0 %v188
  %v672 = vpop.f32.mrb[0].mxu0
  %v673 = vadd.f32 %v172, %v672
  %v674 = vpop.f32.mrb[0].mxu0
  %v675 = vpop.f32.mrb[0].mxu0
  %v676 = vpop.f32.mrb[0].mxu0
  %677 = vdwg.mxu0
  %678 = vmatprep.subr.bf16.mxu0 0
  %679 = vmatpush1.bf16.msra.mxu0 %v510
  %680 = vmatprep.subr.bf16.mxu0 0
  %681 = vmatpush1.bf16.msra.mxu0 %v511
  %682 = vmatprep.subr.bf16.mxu0 0
  %683 = vmatpush1.bf16.msra.mxu0 %v512
  %684 = vmatprep.subr.bf16.mxu0 0
  %685 = vmatpush1.bf16.msra.mxu0 %v513
  %686 = vmatprep.subr.bf16.mxu0 0
  %687 = vmatpush1.bf16.msra.mxu0 %v514
  %688 = vmatprep.subr.bf16.mxu0 0
  %689 = vmatpush1.bf16.msra.mxu0 %v515
  %690 = vmatprep.subr.bf16.mxu0 0
  %691 = vmatpush1.bf16.msra.mxu0 %v516
  %692 = vmatprep.subr.bf16.mxu0 0
  %693 = vmatpush1.bf16.msra.mxu0 %v517
  %694 = vmatprep.subr.bf16.mxu0 0
  %695 = vmatpush1.bf16.msra.mxu0 %v518
  %696 = vmatprep.subr.bf16.mxu0 0
  %697 = vmatpush1.bf16.msra.mxu0 %v519
  %698 = vmatprep.subr.bf16.mxu0 0
  %699 = vmatpush1.bf16.msra.mxu0 %v520
  %700 = vmatprep.subr.bf16.mxu0 0
  %701 = vmatpush1.bf16.msra.mxu0 %v521
  %702 = vmatprep.subr.bf16.mxu0 0
  %703 = vmatpush1.bf16.msra.mxu0 %v522
  %704 = vmatprep.subr.bf16.mxu0 0
  %705 = vmatpush1.bf16.msra.mxu0 %v523
  %706 = vmatprep.subr.bf16.mxu0 0
  %707 = vmatpush1.bf16.msra.mxu0 %v524
  %708 = vmatprep.subr.bf16.mxu0 0
  %709 = vmatpush1.bf16.msra.mxu0 %v525
  %710 = vmatprep.mubr.bf16.mxu0 %v191
  %711 = vmatmul.mubr.bf16.gmra.mrb[0].mxu0 %v190
  %v712 = vpop.f32.mrb[0].mxu0
  %v713 = vadd.f32 %v673, %v712
  %v714 = vpop.f32.mrb[0].mxu0
  %v715 = vpop.f32.mrb[0].mxu0
  %v716 = vpop.f32.mrb[0].mxu0
  %717 = vdwg.mxu0
  %718 = vmatprep.subr.bf16.mxu0 0
  %719 = vmatpush1.bf16.msra.mxu0 %v526
  %720 = vmatprep.subr.bf16.mxu0 0
  %721 = vmatpush1.bf16.msra.mxu0 %v527
  %722 = vmatprep.subr.bf16.mxu0 0
  %723 = vmatpush1.bf16.msra.mxu0 %v528
  %724 = vmatprep.subr.bf16.mxu0 0
  %725 = vmatpush1.bf16.msra.mxu0 %v529
  %726 = vmatprep.subr.bf16.mxu0 0
  %727 = vmatpush1.bf16.msra.mxu0 %v530
  %728 = vmatprep.subr.bf16.mxu0 0
  %729 = vmatpush1.bf16.msra.mxu0 %v531
  %730 = vmatprep.subr.bf16.mxu0 0
  %731 = vmatpush1.bf16.msra.mxu0 %v532
  %732 = vmatprep.subr.bf16.mxu0 0
  %733 = vmatpush1.bf16.msra.mxu0 %v533
  %734 = vmatprep.subr.bf16.mxu0 0
  %735 = vmatpush1.bf16.msra.mxu0 %v534
  %736 = vmatprep.subr.bf16.mxu0 0
  %737 = vmatpush1.bf16.msra.mxu0 %v535
  %738 = vmatprep.subr.bf16.mxu0 0
  %739 = vmatpush1.bf16.msra.mxu0 %v536
  %740 = vmatprep.subr.bf16.mxu0 0
  %741 = vmatpush1.bf16.msra.mxu0 %v537
  %742 = vmatprep.subr.bf16.mxu0 0
  %743 = vmatpush1.bf16.msra.mxu0 %v538
  %744 = vmatprep.subr.bf16.mxu0 0
  %745 = vmatpush1.bf16.msra.mxu0 %v539
  %746 = vmatprep.subr.bf16.mxu0 0
  %747 = vmatpush1.bf16.msra.mxu0 %v540
  %748 = vmatprep.subr.bf16.mxu0 0
  %749 = vmatpush1.bf16.msra.mxu0 %v541
  %750 = vmatprep.mubr.bf16.mxu0 %v193
  %751 = vmatmul.mubr.bf16.gmra.mrb[0].mxu0 %v192
  %v752 = vpop.f32.mrb[0].mxu0
  %v753 = vadd.f32 %v713, %v752
  %v754 = vpop.f32.mrb[0].mxu0
  %v755 = vpop.f32.mrb[0].mxu0
  %v756 = vpop.f32.mrb[0].mxu0
  %757 = vdwg.mxu0
  %758 = vmatprep.subr.bf16.mxu0 0
  %759 = vmatpush1.bf16.msra.mxu0 %v542
  %760 = vmatprep.subr.bf16.mxu0 0
  %761 = vmatpush1.bf16.msra.mxu0 %v543
  %762 = vmatprep.subr.bf16.mxu0 0
  %763 = vmatpush1.bf16.msra.mxu0 %v544
  %764 = vmatprep.subr.bf16.mxu0 0
  %765 = vmatpush1.bf16.msra.mxu0 %v545
  %766 = vmatprep.subr.bf16.mxu0 0
  %767 = vmatpush1.bf16.msra.mxu0 %v546
  %768 = vmatprep.subr.bf16.mxu0 0
  %769 = vmatpush1.bf16.msra.mxu0 %v547
  %770 = vmatprep.subr.bf16.mxu0 0
  %771 = vmatpush1.bf16.msra.mxu0 %v548
  %772 = vmatprep.subr.bf16.mxu0 0
  %773 = vmatpush1.bf16.msra.mxu0 %v549
  %774 = vmatprep.subr.bf16.mxu0 0
  %775 = vmatpush1.bf16.msra.mxu0 %v550
  %776 = vmatprep.subr.bf16.mxu0 0
  %777 = vmatpush1.bf16.msra.mxu0 %v551
  %778 = vmatprep.subr.bf16.mxu0 0
  %779 = vmatpush1.bf16.msra.mxu0 %v552
  %780 = vmatprep.subr.bf16.mxu0 0
  %781 = vmatpush1.bf16.msra.mxu0 %v553
  %782 = vmatprep.subr.bf16.mxu0 0
  %783 = vmatpush1.bf16.msra.mxu0 %v554
  %784 = vmatprep.subr.bf16.mxu0 0
  %785 = vmatpush1.bf16.msra.mxu0 %v555
  %786 = vmatprep.subr.bf16.mxu0 0
  %787 = vmatpush1.bf16.msra.mxu0 %v556
  %788 = vmatprep.subr.bf16.mxu0 0
  %789 = vmatpush1.bf16.msra.mxu0 %v557
  %790 = vmatprep.mubr.bf16.mxu0 %v195
  %791 = vmatmul.mubr.bf16.gmra.mrb[0].mxu0 %v194
  %v792 = vpop.f32.mrb[0].mxu0
  %v793 = vadd.f32 %v753, %v792
  %v794 = vpop.f32.mrb[0].mxu0
  %v795 = vpop.f32.mrb[0].mxu0
  %v796 = vpop.f32.mrb[0].mxu0
  %797 = vdwg.mxu0
  %798 = vmatprep.subr.bf16.mxu0 0
  %799 = vmatpush1.bf16.msra.mxu0 %v558
  %800 = vmatprep.subr.bf16.mxu0 0
  %801 = vmatpush1.bf16.msra.mxu0 %v559
  %802 = vmatprep.subr.bf16.mxu0 0
  %803 = vmatpush1.bf16.msra.mxu0 %v560
  %804 = vmatprep.subr.bf16.mxu0 0
  %805 = vmatpush1.bf16.msra.mxu0 %v561
  %806 = vmatprep.subr.bf16.mxu0 0
  %807 = vmatpush1.bf16.msra.mxu0 %v562
  %808 = vmatprep.subr.bf16.mxu0 0
  %809 = vmatpush1.bf16.msra.mxu0 %v563
  %810 = vmatprep.subr.bf16.mxu0 0
  %811 = vmatpush1.bf16.msra.mxu0 %v564
  %812 = vmatprep.subr.bf16.mxu0 0
  %813 = vmatpush1.bf16.msra.mxu0 %v565
  %814 = vmatprep.subr.bf16.mxu0 0
  %815 = vmatpush1.bf16.msra.mxu0 0
  %816 = vmatprep.subr.bf16.mxu0 0
  %817 = vmatpush1.bf16.msra.mxu0 0
  %818 = vmatprep.subr.bf16.mxu0 0
  %819 = vmatpush1.bf16.msra.mxu0 0
  %820 = vmatprep.subr.bf16.mxu0 0
  %821 = vmatpush1.bf16.msra.mxu0 0
  %822 = vmatprep.subr.bf16.mxu0 0
  %823 = vmatpush1.bf16.msra.mxu0 0
  %824 = vmatprep.subr.bf16.mxu0 0
  %825 = vmatpush1.bf16.msra.mxu0 0
  %826 = vmatprep.subr.bf16.mxu0 0
  %827 = vmatpush1.bf16.msra.mxu0 0
  %828 = vmatprep.subr.bf16.mxu0 0
  %829 = vmatpush1.bf16.msra.mxu0 0
  %830 = vmatprep.mubr.bf16.mxu0 0
  %831 = vmatmul.mubr.bf16.gmra.mrb[0].mxu0 %v196
  %v832 = vpop.f32.mrb[0].mxu0
  %v833 = vadd.f32 %v793, %v832
  %v834 = vpop.f32.mrb[0].mxu0
  %v835 = vpop.f32.mrb[0].mxu0
  %v836 = vpop.f32.mrb[0].mxu0
  %837 = vdwg.mxu0
  %v838 = vld [vmem:[%s3] sm:$0xff]
  %v839 = vadd.f32 %v833, %v838
  %v840 = vmax.f32 %v839, 0.0
  %841 = vst [vmem:[%s4] sm:$0xff] %v840
  // Predicated region
  $region18: #{_lambda_.40} parent=0 // pred_check
    _
  $region19: #{_lambda_.40} parent=0 // pred_check_branch
    %843 = sbr.rel (0) target = $region21
  $region20: #{_lambda_.40} parent=0 // pred_region
    _
  $region21: #{_lambda_.40} parent=0 // pred_fallthru
    _
  // Predicated region
  $region22: #{_lambda_.40} parent=0 // pred_check
    _
  $region23: #{_lambda_.40} parent=0 // pred_check_branch
    %845 = sbr.rel (0) target = $region25
  $region24: #{_lambda_.40} parent=0 // pred_region
    _
  $region25: #{_lambda_.40} parent=0 // pred_fallthru
    _

// kernel: _lambda_.43
$region0: #{_lambda_.43}
  #allocation0 [shape = 'u32[]', space=smem, size = 0x4, offset = 0x4, fixed_abs, tag = 'smem constant byte address 0x4 - core index']
  #allocation1 [shape = 'u32[144,128]{1,0:T(1,128)}', space=vmem, size = 0x12000, scoped, tag = 'internal scratch']
  %s0 = inlined_call_operand.vmem [shape: f32[2,4,128], index: 0, kind: input, shape index: {}]
  %s1 = inlined_call_operand.vmem [shape: bf16[128,64], index: 1, kind: input, shape index: {}]
  %s2 = inlined_call_operand.vmem [shape: f32[1,64], index: 2, kind: input, shape index: {}]
  %s3 = inlined_call_operand.vmem [shape: bf16[64,10], index: 3, kind: input, shape index: {}]
  %s4 = inlined_call_operand.vmem [shape: f32[1,10], index: 4, kind: input, shape index: {}]
  %s5 = inlined_call_operand.hbm [shape: f32[2,64], index: 5, kind: output, shape index: {0}]
  %s6 = inlined_call_operand.hbm [shape: f32[2,10], index: 6, kind: output, shape index: {1}]
  %7 = xla_tuple %s5, %s6
  %s8 = sld [smem:[#allocation0]]
  $region38: #{_lambda_.43} parent=0
    _
  %s10 = ssub.s32 1, %s8
  %s11 = scalar_select 0, %s10, %s8
  $region1: #{_lambda_.43} parent=0
    #allocation2 [shape = 'u8[1024]{0}', space=vmem, size = 0x400, scoped, tag = 'output window, operand 0, single buffered']
    #allocation3 [shape = 's32[1]{0}', space=sflag, size = 0x4, scoped, tag = 'scoped memory for _lambda_.43']
    #allocation4 [shape = 'u8[1024]{0}', space=vmem, size = 0x400, scoped, tag = 'output window, operand 1, single buffered']
    #allocation5 [shape = 's32[1]{0}', space=sflag, size = 0x4, scoped, tag = 'scoped memory for _lambda_.43']
    %12 = vsyncpa [#allocation3], 0
    %13 = vsyncpa [#allocation5], 0
    // Predicated region
    $region2: #{_lambda_.43} parent=1 // pred_check
      _
    $region3: #{_lambda_.43} parent=1 // pred_check_branch
      %15 = sbr.rel (0) target = $region5
    $region4: #{_lambda_.43} parent=1 // pred_region
      _
    $region5: #{_lambda_.43} parent=1 // pred_fallthru
      _
    // Predicated region
    $region6: #{_lambda_.43} parent=1 // pred_check
      _
    $region7: #{_lambda_.43} parent=1 // pred_check_branch
      %17 = sbr.rel (0) target = $region9
    $region8: #{_lambda_.43} parent=1 // pred_region
      _
    $region9: #{_lambda_.43} parent=1 // pred_fallthru
      _
    // Predicated region
    $region10: #{_lambda_.43} parent=1 // pred_check
      _
    $region11: #{_lambda_.43} parent=1 // pred_check_branch
      %19 = sbr.rel (0) target = $region13
    $region12: #{_lambda_.43} parent=1 // pred_region
      _
    $region13: #{_lambda_.43} parent=1 // pred_fallthru
      _
    // Predicated region
    $region14: #{_lambda_.43} parent=1 // pred_check
      _
    $region15: #{_lambda_.43} parent=1 // pred_check_branch
      %21 = sbr.rel (0) target = $region17
    $region16: #{_lambda_.43} parent=1 // pred_region
      _
    $region17: #{_lambda_.43} parent=1 // pred_fallthru
      _
    // Predicated region
    $region18: #{_lambda_.43} parent=1 // pred_check
      _
    $region19: #{_lambda_.43} parent=1 // pred_check_branch
      %23 = sbr.rel (0) target = $region21
    $region20: #{_lambda_.43} parent=1 // pred_region
      _
    $region21: #{_lambda_.43} parent=1 // pred_fallthru
      _
    %v25 = vld [vmem:[%s0] sm:$0xf]
    %v26 = vld [vmem:[%s0 + $0x4] sm:$0xf]
    %vm27 = vcmask 1043456
    %v28 = vsel %vm27, %v25, 0.0
    %v29 = vrot.slane %v28, 4
    %v30 = vadd.f32 %v28, %v29
    %v31 = vrot.slane %v30, 2
    %v32 = vadd.f32 %v30, %v31
    %v33 = vrot.slane %v32, 1
    %v34 = vadd.f32 %v32, %v33
    %v35 = vsel %vm27, %v26, 0.0
    %v36 = vrot.slane %v35, 4
    %v37 = vadd.f32 %v35, %v36
    %v38 = vrot.slane %v37, 2
    %v39 = vadd.f32 %v37, %v38
    %v40 = vrot.slane %v39, 1
    %v41 = vadd.f32 %v39, %v40
    %v42 = vrcp.pop 4.0
    %v43 = vmul.f32 %v34, %v42
    %v44 = vmul.f32 %v41, %v42
    %v45 = vpack.c.bf16 %v43, %v43
    %v46 = vpack.c.bf16 %v44, %v44
    %v47 = vld [vmem:[%s1] sm:$0xf]
    %v48 = vld [vmem:[%s1 + $0x4] sm:$0xf]
    %v49 = vld [vmem:[%s1 + $0x8] sm:$0xf]
    %v50 = vld [vmem:[%s1 + $0xc] sm:$0xf]
    %v51 = vld [vmem:[%s1 + $0x10] sm:$0xf]
    %v52 = vld [vmem:[%s1 + $0x14] sm:$0xf]
    %v53 = vld [vmem:[%s1 + $0x18] sm:$0xf]
    %v54 = vld [vmem:[%s1 + $0x1c] sm:$0xf]
    %v55 = vld [vmem:[%s1 + $0x20] sm:$0xf]
    %v56 = vld [vmem:[%s1 + $0x24] sm:$0xf]
    %v57 = vld [vmem:[%s1 + $0x28] sm:$0xf]
    %v58 = vld [vmem:[%s1 + $0x2c] sm:$0xf]
    %v59 = vld [vmem:[%s1 + $0x30] sm:$0xf]
    %v60 = vld [vmem:[%s1 + $0x34] sm:$0xf]
    %v61 = vld [vmem:[%s1 + $0x38] sm:$0xf]
    %v62 = vld [vmem:[%s1 + $0x3c] sm:$0xf]
    %v63 = vld [vmem:[%s2] sm:$0x1]
    %v65 = vlaneseq
    %v66 = vshrl.u32 %v65, 7
    %v67 = vsub.s32 0, %v66
    %v68 = vrot.slane %v63, %v67
    %v72 = vunpack.c.l.b16 %v45
    %v73 = vunpack.c.l.b16 %v46
    %vm74 = vcmask 1041409
    %v75 = vsel %vm74, %v73, %v72
    %v76 = vpack.c.b16 %v75, %v75
    %v94 = vunpack.c.l.b16 %v47
    %v95 = vunpack.c.l.b16 %v48
    %v96 = vunpack.c.l.b16 %v49
    %v97 = vunpack.c.l.b16 %v50
    %v98 = vunpack.c.l.b16 %v51
    %v99 = vunpack.c.l.b16 %v52
    %v100 = vunpack.c.l.b16 %v53
    %v101 = vunpack.c.l.b16 %v54
    %v102 = vunpack.c.l.b16 %v55
    %v103 = vunpack.c.l.b16 %v56
    %v104 = vunpack.c.l.b16 %v57
    %v105 = vunpack.c.l.b16 %v58
    %v106 = vunpack.c.l.b16 %v59
    %v107 = vunpack.c.l.b16 %v60
    %v108 = vunpack.c.l.b16 %v61
    %v109 = vunpack.c.l.b16 %v62
    %v110 = vpack.c.b16 %v95, %v94
    %v111 = vpack.c.b16 %v97, %v96
    %v112 = vpack.c.b16 %v99, %v98
    %v113 = vpack.c.b16 %v101, %v100
    %v114 = vpack.c.b16 %v103, %v102
    %v115 = vpack.c.b16 %v105, %v104
    %v116 = vpack.c.b16 %v107, %v106
    %v117 = vpack.c.b16 %v109, %v108
    %126 = vmatprep.subr.bf16.mxu0 0
    %127 = vmatpush1.bf16.msra.mxu0 %v110
    %128 = vmatprep.subr.bf16.mxu0 0
    %129 = vmatpush1.bf16.msra.mxu0 %v111
    %130 = vmatprep.subr.bf16.mxu0 0
    %131 = vmatpush1.bf16.msra.mxu0 %v112
    %132 = vmatprep.subr.bf16.mxu0 0
    %133 = vmatpush1.bf16.msra.mxu0 %v113
    %134 = vmatprep.subr.bf16.mxu0 0
    %135 = vmatpush1.bf16.msra.mxu0 %v114
    %136 = vmatprep.subr.bf16.mxu0 0
    %137 = vmatpush1.bf16.msra.mxu0 %v115
    %138 = vmatprep.subr.bf16.mxu0 0
    %139 = vmatpush1.bf16.msra.mxu0 %v116
    %140 = vmatprep.subr.bf16.mxu0 0
    %141 = vmatpush1.bf16.msra.mxu0 %v117
    %142 = vmatprep.subr.bf16.mxu0 0
    %143 = vmatpush1.bf16.msra.mxu0 0
    %144 = vmatprep.subr.bf16.mxu0 0
    %145 = vmatpush1.bf16.msra.mxu0 0
    %146 = vmatprep.subr.bf16.mxu0 0
    %147 = vmatpush1.bf16.msra.mxu0 0
    %148 = vmatprep.subr.bf16.mxu0 0
    %149 = vmatpush1.bf16.msra.mxu0 0
    %150 = vmatprep.subr.bf16.mxu0 0
    %151 = vmatpush1.bf16.msra.mxu0 0
    %152 = vmatprep.subr.bf16.mxu0 0
    %153 = vmatpush1.bf16.msra.mxu0 0
    %154 = vmatprep.subr.bf16.mxu0 0
    %155 = vmatpush1.bf16.msra.mxu0 0
    %156 = vmatprep.subr.bf16.mxu0 0
    %157 = vmatpush1.bf16.msra.mxu0 0
    %158 = vmatprep.mubr.bf16.mxu0 0
    %159 = vmatmul.mubr.bf16.gmra.mrb[0].mxu0 %v76
    %v160 = vpop.f32.mrb[0].mxu0
    %v161 = vadd.f32 %v68, %v160
    %v162 = vpop.f32.mrb[0].mxu0
    %v163 = vpop.f32.mrb[0].mxu0
    %v164 = vpop.f32.mrb[0].mxu0
    %165 = vdwg.mxu0
    %v166 = vpack.c.bf16 %v161, %v161
    %v167 = vld [vmem:[%s3] sm:$0xf]
    %v168 = vld [vmem:[%s3 + $0x4] sm:$0xf]
    %v169 = vld [vmem:[%s3 + $0x8] sm:$0xf]
    %v170 = vld [vmem:[%s3 + $0xc] sm:$0xf]
    %v171 = vld [vmem:[%s3 + $0x10] sm:$0xf]
    %v172 = vld [vmem:[%s3 + $0x14] sm:$0xf]
    %v173 = vld [vmem:[%s3 + $0x18] sm:$0xf]
    %v174 = vld [vmem:[%s3 + $0x1c] sm:$0xf]
    %v175 = vld [vmem:[%s4] sm:$0x1]
    %v177 = vlaneseq
    %v178 = vshrl.u32 %v177, 7
    %v179 = vsub.s32 0, %v178
    %v180 = vrot.slane %v175, %v179
    %v190 = vunpack.c.l.b16 %v167
    %v191 = vunpack.c.l.b16 %v168
    %v192 = vunpack.c.l.b16 %v169
    %v193 = vunpack.c.l.b16 %v170
    %v194 = vunpack.c.l.b16 %v171
    %v195 = vunpack.c.l.b16 %v172
    %v196 = vunpack.c.l.b16 %v173
    %v197 = vunpack.c.l.b16 %v174
    %v198 = vpack.c.b16 %v191, %v190
    %v199 = vpack.c.b16 %v193, %v192
    %v200 = vpack.c.b16 %v195, %v194
    %v201 = vpack.c.b16 %v197, %v196
    %vm206 = vcmask 523264
    %v208 = vsel %vm206, %v166, 0
    %210 = vmatprep.subr.bf16.mxu0 0
    %211 = vmatpush1.bf16.msra.mxu0 %v198
    %212 = vmatprep.subr.bf16.mxu0 0
    %213 = vmatpush1.bf16.msra.mxu0 %v199
    %214 = vmatprep.subr.bf16.mxu0 0
    %215 = vmatpush1.bf16.msra.mxu0 %v200
    %216 = vmatprep.subr.bf16.mxu0 0
    %217 = vmatpush1.bf16.msra.mxu0 %v201
    %218 = vmatprep.subr.bf16.mxu0 0
    %219 = vmatpush1.bf16.msra.mxu0 0
    %220 = vmatprep.subr.bf16.mxu0 0
    %221 = vmatpush1.bf16.msra.mxu0 0
    %222 = vmatprep.subr.bf16.mxu0 0
    %223 = vmatpush1.bf16.msra.mxu0 0
    %224 = vmatprep.subr.bf16.mxu0 0
    %225 = vmatpush1.bf16.msra.mxu0 0
    %226 = vmatprep.subr.bf16.mxu0 0
    %227 = vmatpush1.bf16.msra.mxu0 0
    %228 = vmatprep.subr.bf16.mxu0 0
    %229 = vmatpush1.bf16.msra.mxu0 0
    %230 = vmatprep.subr.bf16.mxu0 0
    %231 = vmatpush1.bf16.msra.mxu0 0
    %232 = vmatprep.subr.bf16.mxu0 0
    %233 = vmatpush1.bf16.msra.mxu0 0
    %234 = vmatprep.subr.bf16.mxu0 0
    %235 = vmatpush1.bf16.msra.mxu0 0
    %236 = vmatprep.subr.bf16.mxu0 0
    %237 = vmatpush1.bf16.msra.mxu0 0
    %238 = vmatprep.subr.bf16.mxu0 0
    %239 = vmatpush1.bf16.msra.mxu0 0
    %240 = vmatprep.subr.bf16.mxu0 0
    %241 = vmatpush1.bf16.msra.mxu0 0
    %242 = vmatprep.mubr.bf16.mxu0 0
    %243 = vmatmul.mubr.bf16.gmra.mrb[0].mxu0 %v208
    %v244 = vpop.f32.mrb[0].mxu0
    %v245 = vadd.f32 %v180, %v244
    %v246 = vpop.f32.mrb[0].mxu0
    %v247 = vpop.f32.mrb[0].mxu0
    %v248 = vpop.f32.mrb[0].mxu0
    %249 = vdwg.mxu0
    %vm250 = vcmask 517120
    %251 = vst.msk [vmem:[#allocation2] sm:$0x3] %vm250, %v161
    %vm252 = vcmask 74752
    %253 = vst.msk [vmem:[#allocation4] sm:$0x3] %vm252, %v245
    // Predicated region
    $region22: #{_lambda_.43} parent=1 // pred_check
      _
    $region23: #{_lambda_.43} parent=1 // pred_check_branch
      %255 = sbr.rel (0) target = $region25
    $region24: #{_lambda_.43} parent=1 // pred_region
      %s257 = ssub.s32 32, 32
      %258 = vsyncadd [#allocation3], %s257
      %s260 = sshll.u32 [#allocation2], 4
      %s261 = int_to_ptr.vmem [resolvable:$true] %s260
      %263 = dma.vmem_to_hbm [thread:$0]  %s261, 32, %s5, [#allocation3]
    $region25: #{_lambda_.43} parent=1 // pred_fallthru
      _
    // Predicated region
    $region26: #{_lambda_.43} parent=1 // pred_check
      _
    $region27: #{_lambda_.43} parent=1 // pred_check_branch
      %265 = sbr.rel (0) target = $region29
    $region28: #{_lambda_.43} parent=1 // pred_region
      %s267 = ssub.s32 32, 32
      %268 = vsyncadd [#allocation5], %s267
      %s270 = sshll.u32 [#allocation4], 4
      %s271 = int_to_ptr.vmem [resolvable:$true] %s270
      %273 = dma.vmem_to_hbm [thread:$0]  %s271, 32, %s6, [#allocation5]
    $region29: #{_lambda_.43} parent=1 // pred_fallthru
      _
    // Predicated region
    $region30: #{_lambda_.43} parent=1 // pred_check
      _
    $region31: #{_lambda_.43} parent=1 // pred_check_branch
      %275 = sbr.rel (0) target = $region33
    $region32: #{_lambda_.43} parent=1 // pred_region
      %276 = dma.done [#allocation3], 32
    $region33: #{_lambda_.43} parent=1 // pred_fallthru
      _
    // Predicated region
    $region34: #{_lambda_.43} parent=1 // pred_check
      _
    $region35: #{_lambda_.43} parent=1 // pred_check_branch
      %278 = sbr.rel (0) target = $region37
    $region36: #{_lambda_.43} parent=1 // pred_region
      %279 = dma.done [#allocation5], 32
    $region37: #{_lambda_.43} parent=1 // pred_fallthru
      _
    %280 = vsyncpa [#allocation3], 1
    %281 = vsyncpa [#allocation5], 1

// kernel: _lambda_.41
$region0: #{_lambda_.41}
  #allocation0 [shape = 'u32[]', space=smem, size = 0x4, offset = 0x4, fixed_abs, tag = 'smem constant byte address 0x4 - core index']
  #allocation1 [shape = 'u32[144,128]{1,0:T(1,128)}', space=vmem, size = 0x12000, scoped, tag = 'internal scratch']
  %s0 = inlined_call_operand.vmem [shape: bf16[8,1152], index: 0, kind: input, shape index: {}]
  %s1 = inlined_call_operand.vmem [shape: bf16[1152,128], index: 1, kind: input, shape index: {}]
  %s2 = inlined_call_operand.vmem [shape: f32[1,128], index: 2, kind: input, shape index: {}]
  %s3 = inlined_call_operand.vmem [shape: f32[8,128], index: 3, kind: output, shape index: {}]
  %s4 = sld [smem:[#allocation0]]
  $region22: #{_lambda_.41} parent=0
    _
  %s6 = ssub.s32 1, %s4
  %s7 = scalar_select 0, %s6, %s4
  // Predicated region
  $region2: #{_lambda_.41} parent=0 // pred_check
    _
  $region3: #{_lambda_.41} parent=0 // pred_check_branch
    %9 = sbr.rel (0) target = $region5
  $region4: #{_lambda_.41} parent=0 // pred_region
    _
  $region5: #{_lambda_.41} parent=0 // pred_fallthru
    _
  // Predicated region
  $region6: #{_lambda_.41} parent=0 // pred_check
    _
  $region7: #{_lambda_.41} parent=0 // pred_check_branch
    %11 = sbr.rel (0) target = $region9
  $region8: #{_lambda_.41} parent=0 // pred_region
    _
  $region9: #{_lambda_.41} parent=0 // pred_fallthru
    _
  // Predicated region
  $region10: #{_lambda_.41} parent=0 // pred_check
    _
  $region11: #{_lambda_.41} parent=0 // pred_check_branch
    %13 = sbr.rel (0) target = $region13
  $region12: #{_lambda_.41} parent=0 // pred_region
    _
  $region13: #{_lambda_.41} parent=0 // pred_fallthru
    _
  %v15 = vld [vmem:[%s0] sm:$0xff]
  %v16 = vld [vmem:[%s0 + $0x8] sm:$0xff]
  %v17 = vld [vmem:[%s0 + $0x10] sm:$0xff]
  %v18 = vld [vmem:[%s0 + $0x18] sm:$0xff]
  %v19 = vld [vmem:[%s0 + $0x20] sm:$0xf]
  %v20 = vld [vmem:[%s1] sm:$0xf]
  %v21 = vld [vmem:[%s1 + $0x4] sm:$0xf]
  %v22 = vld [vmem:[%s1 + $0x8] sm:$0xf]
  %v23 = vld [vmem:[%s1 + $0xc] sm:$0xf]
  %v24 = vld [vmem:[%s1 + $0x10] sm:$0xf]
  %v25 = vld [vmem:[%s1 + $0x14] sm:$0xf]
  %v26 = vld [vmem:[%s1 + $0x18] sm:$0xf]
  %v27 = vld [vmem:[%s1 + $0x1c] sm:$0xf]
  %v28 = vld [vmem:[%s1 + $0x20] sm:$0xf]
  %v29 = vld [vmem:[%s1 + $0x24] sm:$0xf]
  %v30 = vld [vmem:[%s1 + $0x28] sm:$0xf]
  %v31 = vld [vmem:[%s1 + $0x2c] sm:$0xf]
  %v32 = vld [vmem:[%s1 + $0x30] sm:$0xf]
  %v33 = vld [vmem:[%s1 + $0x34] sm:$0xf]
  %v34 = vld [vmem:[%s1 + $0x38] sm:$0xf]
  %v35 = vld [vmem:[%s1 + $0x3c] sm:$0xf]
  %v36 = vld [vmem:[%s1 + $0x40] sm:$0xf]
  %v37 = vld [vmem:[%s1 + $0x44] sm:$0xf]
  %v38 = vld [vmem:[%s1 + $0x48] sm:$0xf]
  %v39 = vld [vmem:[%s1 + $0x4c] sm:$0xf]
  %v40 = vld [vmem:[%s1 + $0x50] sm:$0xf]
  %v41 = vld [vmem:[%s1 + $0x54] sm:$0xf]
  %v42 = vld [vmem:[%s1 + $0x58] sm:$0xf]
  %v43 = vld [vmem:[%s1 + $0x5c] sm:$0xf]
  %v44 = vld [vmem:[%s1 + $0x60] sm:$0xf]
  %v45 = vld [vmem:[%s1 + $0x64] sm:$0xf]
  %v46 = vld [vmem:[%s1 + $0x68] sm:$0xf]
  %v47 = vld [vmem:[%s1 + $0x6c] sm:$0xf]
  %v48 = vld [vmem:[%s1 + $0x70] sm:$0xf]
  %v49 = vld [vmem:[%s1 + $0x74] sm:$0xf]
  %v50 = vld [vmem:[%s1 + $0x78] sm:$0xf]
  %v51 = vld [vmem:[%s1 + $0x7c] sm:$0xf]
  %v52 = vld [vmem:[%s1 + $0x80] sm:$0xf]
  %v53 = vld [vmem:[%s1 + $0x84] sm:$0xf]
  %v54 = vld [vmem:[%s1 + $0x88] sm:$0xf]
  %v55 = vld [vmem:[%s1 + $0x8c] sm:$0xf]
  %v56 = vld [vmem:[%s1 + $0x90] sm:$0xf]
  %v57 = vld [vmem:[%s1 + $0x94] sm:$0xf]
  %v58 = vld [vmem:[%s1 + $0x98] sm:$0xf]
  %v59 = vld [vmem:[%s1 + $0x9c] sm:$0xf]
  %v60 = vld [vmem:[%s1 + $0xa0] sm:$0xf]
  %v61 = vld [vmem:[%s1 + $0xa4] sm:$0xf]
  %v62 = vld [vmem:[%s1 + $0xa8] sm:$0xf]
  %v63 = vld [vmem:[%s1 + $0xac] sm:$0xf]
  %v64 = vld [vmem:[%s1 + $0xb0] sm:$0xf]
  %v65 = vld [vmem:[%s1 + $0xb4] sm:$0xf]
  %v66 = vld [vmem:[%s1 + $0xb8] sm:$0xf]
  %v67 = vld [vmem:[%s1 + $0xbc] sm:$0xf]
  %v68 = vld [vmem:[%s1 + $0xc0] sm:$0xf]
  %v69 = vld [vmem:[%s1 + $0xc4] sm:$0xf]
  %v70 = vld [vmem:[%s1 + $0xc8] sm:$0xf]
  %v71 = vld [vmem:[%s1 + $0xcc] sm:$0xf]
  %v72 = vld [vmem:[%s1 + $0xd0] sm:$0xf]
  %v73 = vld [vmem:[%s1 + $0xd4] sm:$0xf]
  %v74 = vld [vmem:[%s1 + $0xd8] sm:$0xf]
  %v75 = vld [vmem:[%s1 + $0xdc] sm:$0xf]
  %v76 = vld [vmem:[%s1 + $0xe0] sm:$0xf]
  %v77 = vld [vmem:[%s1 + $0xe4] sm:$0xf]
  %v78 = vld [vmem:[%s1 + $0xe8] sm:$0xf]
  %v79 = vld [vmem:[%s1 + $0xec] sm:$0xf]
  %v80 = vld [vmem:[%s1 + $0xf0] sm:$0xf]
  %v81 = vld [vmem:[%s1 + $0xf4] sm:$0xf]
  %v82 = vld [vmem:[%s1 + $0xf8] sm:$0xf]
  %v83 = vld [vmem:[%s1 + $0xfc] sm:$0xf]
  %v84 = vld [vmem:[%s1 + $0x100] sm:$0xf]
  %v85 = vld [vmem:[%s1 + $0x104] sm:$0xf]
  %v86 = vld [vmem:[%s1 + $0x108] sm:$0xf]
  %v87 = vld [vmem:[%s1 + $0x10c] sm:$0xf]
  %v88 = vld [vmem:[%s1 + $0x110] sm:$0xf]
  %v89 = vld [vmem:[%s1 + $0x114] sm:$0xf]
  %v90 = vld [vmem:[%s1 + $0x118] sm:$0xf]
  %v91 = vld [vmem:[%s1 + $0x11c] sm:$0xf]
  %v92 = vld [vmem:[%s1 + $0x120] sm:$0xf]
  %v93 = vld [vmem:[%s1 + $0x124] sm:$0xf]
  %v94 = vld [vmem:[%s1 + $0x128] sm:$0xf]
  %v95 = vld [vmem:[%s1 + $0x12c] sm:$0xf]
  %v96 = vld [vmem:[%s1 + $0x130] sm:$0xf]
  %v97 = vld [vmem:[%s1 + $0x134] sm:$0xf]
  %v98 = vld [vmem:[%s1 + $0x138] sm:$0xf]
  %v99 = vld [vmem:[%s1 + $0x13c] sm:$0xf]
  %v100 = vld [vmem:[%s1 + $0x140] sm:$0xf]
  %v101 = vld [vmem:[%s1 + $0x144] sm:$0xf]
  %v102 = vld [vmem:[%s1 + $0x148] sm:$0xf]
  %v103 = vld [vmem:[%s1 + $0x14c] sm:$0xf]
  %v104 = vld [vmem:[%s1 + $0x150] sm:$0xf]
  %v105 = vld [vmem:[%s1 + $0x154] sm:$0xf]
  %v106 = vld [vmem:[%s1 + $0x158] sm:$0xf]
  %v107 = vld [vmem:[%s1 + $0x15c] sm:$0xf]
  %v108 = vld [vmem:[%s1 + $0x160] sm:$0xf]
  %v109 = vld [vmem:[%s1 + $0x164] sm:$0xf]
  %v110 = vld [vmem:[%s1 + $0x168] sm:$0xf]
  %v111 = vld [vmem:[%s1 + $0x16c] sm:$0xf]
  %v112 = vld [vmem:[%s1 + $0x170] sm:$0xf]
  %v113 = vld [vmem:[%s1 + $0x174] sm:$0xf]
  %v114 = vld [vmem:[%s1 + $0x178] sm:$0xf]
  %v115 = vld [vmem:[%s1 + $0x17c] sm:$0xf]
  %v116 = vld [vmem:[%s1 + $0x180] sm:$0xf]
  %v117 = vld [vmem:[%s1 + $0x184] sm:$0xf]
  %v118 = vld [vmem:[%s1 + $0x188] sm:$0xf]
  %v119 = vld [vmem:[%s1 + $0x18c] sm:$0xf]
  %v120 = vld [vmem:[%s1 + $0x190] sm:$0xf]
  %v121 = vld [vmem:[%s1 + $0x194] sm:$0xf]
  %v122 = vld [vmem:[%s1 + $0x198] sm:$0xf]
  %v123 = vld [vmem:[%s1 + $0x19c] sm:$0xf]
  %v124 = vld [vmem:[%s1 + $0x1a0] sm:$0xf]
  %v125 = vld [vmem:[%s1 + $0x1a4] sm:$0xf]
  %v126 = vld [vmem:[%s1 + $0x1a8] sm:$0xf]
  %v127 = vld [vmem:[%s1 + $0x1ac] sm:$0xf]
  %v128 = vld [vmem:[%s1 + $0x1b0] sm:$0xf]
  %v129 = vld [vmem:[%s1 + $0x1b4] sm:$0xf]
  %v130 = vld [vmem:[%s1 + $0x1b8] sm:$0xf]
  %v131 = vld [vmem:[%s1 + $0x1bc] sm:$0xf]
  %v132 = vld [vmem:[%s1 + $0x1c0] sm:$0xf]
  %v133 = vld [vmem:[%s1 + $0x1c4] sm:$0xf]
  %v134 = vld [vmem:[%s1 + $0x1c8] sm:$0xf]
  %v135 = vld [vmem:[%s1 + $0x1cc] sm:$0xf]
  %v136 = vld [vmem:[%s1 + $0x1d0] sm:$0xf]
  %v137 = vld [vmem:[%s1 + $0x1d4] sm:$0xf]
  %v138 = vld [vmem:[%s1 + $0x1d8] sm:$0xf]
  %v139 = vld [vmem:[%s1 + $0x1dc] sm:$0xf]
  %v140 = vld [vmem:[%s1 + $0x1e0] sm:$0xf]
  %v141 = vld [vmem:[%s1 + $0x1e4] sm:$0xf]
  %v142 = vld [vmem:[%s1 + $0x1e8] sm:$0xf]
  %v143 = vld [vmem:[%s1 + $0x1ec] sm:$0xf]
  %v144 = vld [vmem:[%s1 + $0x1f0] sm:$0xf]
  %v145 = vld [vmem:[%s1 + $0x1f4] sm:$0xf]
  %v146 = vld [vmem:[%s1 + $0x1f8] sm:$0xf]
  %v147 = vld [vmem:[%s1 + $0x1fc] sm:$0xf]
  %v148 = vld [vmem:[%s1 + $0x200] sm:$0xf]
  %v149 = vld [vmem:[%s1 + $0x204] sm:$0xf]
  %v150 = vld [vmem:[%s1 + $0x208] sm:$0xf]
  %v151 = vld [vmem:[%s1 + $0x20c] sm:$0xf]
  %v152 = vld [vmem:[%s1 + $0x210] sm:$0xf]
  %v153 = vld [vmem:[%s1 + $0x214] sm:$0xf]
  %v154 = vld [vmem:[%s1 + $0x218] sm:$0xf]
  %v155 = vld [vmem:[%s1 + $0x21c] sm:$0xf]
  %v156 = vld [vmem:[%s1 + $0x220] sm:$0xf]
  %v157 = vld [vmem:[%s1 + $0x224] sm:$0xf]
  %v158 = vld [vmem:[%s1 + $0x228] sm:$0xf]
  %v159 = vld [vmem:[%s1 + $0x22c] sm:$0xf]
  %v160 = vld [vmem:[%s1 + $0x230] sm:$0xf]
  %v161 = vld [vmem:[%s1 + $0x234] sm:$0xf]
  %v162 = vld [vmem:[%s1 + $0x238] sm:$0xf]
  %v163 = vld [vmem:[%s1 + $0x23c] sm:$0xf]
  %v164 = vld [vmem:[%s2] sm:$0x1]
  %v166 = vlaneseq
  %v167 = vshrl.u32 %v166, 7
  %v168 = vsub.s32 0, %v167
  %v169 = vrot.slane %v164, %v168
  %v176 = vunpack.c.l.b16 %v15
  %v177 = vunpack.c.h.b16 %v15
  %v178 = vunpack.c.l.b16 %v16
  %v179 = vunpack.c.h.b16 %v16
  %v180 = vunpack.c.l.b16 %v17
  %v181 = vunpack.c.h.b16 %v17
  %v182 = vunpack.c.l.b16 %v18
  %v183 = vunpack.c.h.b16 %v18
  %v184 = vunpack.c.l.b16 %v19
  %v185 = vpack.c.b16 %v176, %v176
  %v186 = vpack.c.b16 %v177, %v177
  %v187 = vpack.c.b16 %v178, %v178
  %v188 = vpack.c.b16 %v179, %v179
  %v189 = vpack.c.b16 %v180, %v180
  %v190 = vpack.c.b16 %v181, %v181
  %v191 = vpack.c.b16 %v182, %v182
  %v192 = vpack.c.b16 %v183, %v183
  %v193 = vpack.c.b16 %v184, %v184
  %v347 = vunpack.c.l.b16 %v20
  %v348 = vunpack.c.l.b16 %v21
  %v349 = vunpack.c.l.b16 %v22
  %v350 = vunpack.c.l.b16 %v23
  %v351 = vunpack.c.l.b16 %v24
  %v352 = vunpack.c.l.b16 %v25
  %v353 = vunpack.c.l.b16 %v26
  %v354 = vunpack.c.l.b16 %v27
  %v355 = vunpack.c.l.b16 %v28
  %v356 = vunpack.c.l.b16 %v29
  %v357 = vunpack.c.l.b16 %v30
  %v358 = vunpack.c.l.b16 %v31
  %v359 = vunpack.c.l.b16 %v32
  %v360 = vunpack.c.l.b16 %v33
  %v361 = vunpack.c.l.b16 %v34
  %v362 = vunpack.c.l.b16 %v35
  %v363 = vunpack.c.l.b16 %v36
  %v364 = vunpack.c.l.b16 %v37
  %v365 = vunpack.c.l.b16 %v38
  %v366 = vunpack.c.l.b16 %v39
  %v367 = vunpack.c.l.b16 %v40
  %v368 = vunpack.c.l.b16 %v41
  %v369 = vunpack.c.l.b16 %v42
  %v370 = vunpack.c.l.b16 %v43
  %v371 = vunpack.c.l.b16 %v44
  %v372 = vunpack.c.l.b16 %v45
  %v373 = vunpack.c.l.b16 %v46
  %v374 = vunpack.c.l.b16 %v47
  %v375 = vunpack.c.l.b16 %v48
  %v376 = vunpack.c.l.b16 %v49
  %v377 = vunpack.c.l.b16 %v50
  %v378 = vunpack.c.l.b16 %v51
  %v379 = vunpack.c.l.b16 %v52
  %v380 = vunpack.c.l.b16 %v53
  %v381 = vunpack.c.l.b16 %v54
  %v382 = vunpack.c.l.b16 %v55
  %v383 = vunpack.c.l.b16 %v56
  %v384 = vunpack.c.l.b16 %v57
  %v385 = vunpack.c.l.b16 %v58
  %v386 = vunpack.c.l.b16 %v59
  %v387 = vunpack.c.l.b16 %v60
  %v388 = vunpack.c.l.b16 %v61
  %v389 = vunpack.c.l.b16 %v62
  %v390 = vunpack.c.l.b16 %v63
  %v391 = vunpack.c.l.b16 %v64
  %v392 = vunpack.c.l.b16 %v65
  %v393 = vunpack.c.l.b16 %v66
  %v394 = vunpack.c.l.b16 %v67
  %v395 = vunpack.c.l.b16 %v68
  %v396 = vunpack.c.l.b16 %v69
  %v397 = vunpack.c.l.b16 %v70
  %v398 = vunpack.c.l.b16 %v71
  %v399 = vunpack.c.l.b16 %v72
  %v400 = vunpack.c.l.b16 %v73
  %v401 = vunpack.c.l.b16 %v74
  %v402 = vunpack.c.l.b16 %v75
  %v403 = vunpack.c.l.b16 %v76
  %v404 = vunpack.c.l.b16 %v77
  %v405 = vunpack.c.l.b16 %v78
  %v406 = vunpack.c.l.b16 %v79
  %v407 = vunpack.c.l.b16 %v80
  %v408 = vunpack.c.l.b16 %v81
  %v409 = vunpack.c.l.b16 %v82
  %v410 = vunpack.c.l.b16 %v83
  %v411 = vunpack.c.l.b16 %v84
  %v412 = vunpack.c.l.b16 %v85
  %v413 = vunpack.c.l.b16 %v86
  %v414 = vunpack.c.l.b16 %v87
  %v415 = vunpack.c.l.b16 %v88
  %v416 = vunpack.c.l.b16 %v89
  %v417 = vunpack.c.l.b16 %v90
  %v418 = vunpack.c.l.b16 %v91
  %v419 = vunpack.c.l.b16 %v92
  %v420 = vunpack.c.l.b16 %v93
  %v421 = vunpack.c.l.b16 %v94
  %v422 = vunpack.c.l.b16 %v95
  %v423 = vunpack.c.l.b16 %v96
  %v424 = vunpack.c.l.b16 %v97
  %v425 = vunpack.c.l.b16 %v98
  %v426 = vunpack.c.l.b16 %v99
  %v427 = vunpack.c.l.b16 %v100
  %v428 = vunpack.c.l.b16 %v101
  %v429 = vunpack.c.l.b16 %v102
  %v430 = vunpack.c.l.b16 %v103
  %v431 = vunpack.c.l.b16 %v104
  %v432 = vunpack.c.l.b16 %v105
  %v433 = vunpack.c.l.b16 %v106
  %v434 = vunpack.c.l.b16 %v107
  %v435 = vunpack.c.l.b16 %v108
  %v436 = vunpack.c.l.b16 %v109
  %v437 = vunpack.c.l.b16 %v110
  %v438 = vunpack.c.l.b16 %v111
  %v439 = vunpack.c.l.b16 %v112
  %v440 = vunpack.c.l.b16 %v113
  %v441 = vunpack.c.l.b16 %v114
  %v442 = vunpack.c.l.b16 %v115
  %v443 = vunpack.c.l.b16 %v116
  %v444 = vunpack.c.l.b16 %v117
  %v445 = vunpack.c.l.b16 %v118
  %v446 = vunpack.c.l.b16 %v119
  %v447 = vunpack.c.l.b16 %v120
  %v448 = vunpack.c.l.b16 %v121
  %v449 = vunpack.c.l.b16 %v122
  %v450 = vunpack.c.l.b16 %v123
  %v451 = vunpack.c.l.b16 %v124
  %v452 = vunpack.c.l.b16 %v125
  %v453 = vunpack.c.l.b16 %v126
  %v454 = vunpack.c.l.b16 %v127
  %v455 = vunpack.c.l.b16 %v128
  %v456 = vunpack.c.l.b16 %v129
  %v457 = vunpack.c.l.b16 %v130
  %v458 = vunpack.c.l.b16 %v131
  %v459 = vunpack.c.l.b16 %v132
  %v460 = vunpack.c.l.b16 %v133
  %v461 = vunpack.c.l.b16 %v134
  %v462 = vunpack.c.l.b16 %v135
  %v463 = vunpack.c.l.b16 %v136
  %v464 = vunpack.c.l.b16 %v137
  %v465 = vunpack.c.l.b16 %v138
  %v466 = vunpack.c.l.b16 %v139
  %v467 = vunpack.c.l.b16 %v140
  %v468 = vunpack.c.l.b16 %v141
  %v469 = vunpack.c.l.b16 %v142
  %v470 = vunpack.c.l.b16 %v143
  %v471 = vunpack.c.l.b16 %v144
  %v472 = vunpack.c.l.b16 %v145
  %v473 = vunpack.c.l.b16 %v146
  %v474 = vunpack.c.l.b16 %v147
  %v475 = vunpack.c.l.b16 %v148
  %v476 = vunpack.c.l.b16 %v149
  %v477 = vunpack.c.l.b16 %v150
  %v478 = vunpack.c.l.b16 %v151
  %v479 = vunpack.c.l.b16 %v152
  %v480 = vunpack.c.l.b16 %v153
  %v481 = vunpack.c.l.b16 %v154
  %v482 = vunpack.c.l.b16 %v155
  %v483 = vunpack.c.l.b16 %v156
  %v484 = vunpack.c.l.b16 %v157
  %v485 = vunpack.c.l.b16 %v158
  %v486 = vunpack.c.l.b16 %v159
  %v487 = vunpack.c.l.b16 %v160
  %v488 = vunpack.c.l.b16 %v161
  %v489 = vunpack.c.l.b16 %v162
  %v490 = vunpack.c.l.b16 %v163
  %v491 = vpack.c.b16 %v348, %v347
  %v492 = vpack.c.b16 %v350, %v349
  %v493 = vpack.c.b16 %v352, %v351
  %v494 = vpack.c.b16 %v354, %v353
  %v495 = vpack.c.b16 %v356, %v355
  %v496 = vpack.c.b16 %v358, %v357
  %v497 = vpack.c.b16 %v360, %v359
  %v498 = vpack.c.b16 %v362, %v361
  %v499 = vpack.c.b16 %v364, %v363
  %v500 = vpack.c.b16 %v366, %v365
  %v501 = vpack.c.b16 %v368, %v367
  %v502 = vpack.c.b16 %v370, %v369
  %v503 = vpack.c.b16 %v372, %v371
  %v504 = vpack.c.b16 %v374, %v373
  %v505 = vpack.c.b16 %v376, %v375
  %v506 = vpack.c.b16 %v378, %v377
  %v507 = vpack.c.b16 %v380, %v379
  %v508 = vpack.c.b16 %v382, %v381
  %v509 = vpack.c.b16 %v384, %v383
  %v510 = vpack.c.b16 %v386, %v385
  %v511 = vpack.c.b16 %v388, %v387
  %v512 = vpack.c.b16 %v390, %v389
  %v513 = vpack.c.b16 %v392, %v391
  %v514 = vpack.c.b16 %v394, %v393
  %v515 = vpack.c.b16 %v396, %v395
  %v516 = vpack.c.b16 %v398, %v397
  %v517 = vpack.c.b16 %v400, %v399
  %v518 = vpack.c.b16 %v402, %v401
  %v519 = vpack.c.b16 %v404, %v403
  %v520 = vpack.c.b16 %v406, %v405
  %v521 = vpack.c.b16 %v408, %v407
  %v522 = vpack.c.b16 %v410, %v409
  %v523 = vpack.c.b16 %v412, %v411
  %v524 = vpack.c.b16 %v414, %v413
  %v525 = vpack.c.b16 %v416, %v415
  %v526 = vpack.c.b16 %v418, %v417
  %v527 = vpack.c.b16 %v420, %v419
  %v528 = vpack.c.b16 %v422, %v421
  %v529 = vpack.c.b16 %v424, %v423
  %v530 = vpack.c.b16 %v426, %v425
  %v531 = vpack.c.b16 %v428, %v427
  %v532 = vpack.c.b16 %v430, %v429
  %v533 = vpack.c.b16 %v432, %v431
  %v534 = vpack.c.b16 %v434, %v433
  %v535 = vpack.c.b16 %v436, %v435
  %v536 = vpack.c.b16 %v438, %v437
  %v537 = vpack.c.b16 %v440, %v439
  %v538 = vpack.c.b16 %v442, %v441
  %v539 = vpack.c.b16 %v444, %v443
  %v540 = vpack.c.b16 %v446, %v445
  %v541 = vpack.c.b16 %v448, %v447
  %v542 = vpack.c.b16 %v450, %v449
  %v543 = vpack.c.b16 %v452, %v451
  %v544 = vpack.c.b16 %v454, %v453
  %v545 = vpack.c.b16 %v456, %v455
  %v546 = vpack.c.b16 %v458, %v457
  %v547 = vpack.c.b16 %v460, %v459
  %v548 = vpack.c.b16 %v462, %v461
  %v549 = vpack.c.b16 %v464, %v463
  %v550 = vpack.c.b16 %v466, %v465
  %v551 = vpack.c.b16 %v468, %v467
  %v552 = vpack.c.b16 %v470, %v469
  %v553 = vpack.c.b16 %v472, %v471
  %v554 = vpack.c.b16 %v474, %v473
  %v555 = vpack.c.b16 %v476, %v475
  %v556 = vpack.c.b16 %v478, %v477
  %v557 = vpack.c.b16 %v480, %v479
  %v558 = vpack.c.b16 %v482, %v481
  %v559 = vpack.c.b16 %v484, %v483
  %v560 = vpack.c.b16 %v486, %v485
  %v561 = vpack.c.b16 %v488, %v487
  %v562 = vpack.c.b16 %v490, %v489
  %635 = vmatprep.subr.bf16.mxu0 0
  %636 = vmatpush1.bf16.msra.mxu0 %v491
  %637 = vmatprep.subr.bf16.mxu0 0
  %638 = vmatpush1.bf16.msra.mxu0 %v492
  %639 = vmatprep.subr.bf16.mxu0 0
  %640 = vmatpush1.bf16.msra.mxu0 %v493
  %641 = vmatprep.subr.bf16.mxu0 0
  %642 = vmatpush1.bf16.msra.mxu0 %v494
  %643 = vmatprep.subr.bf16.mxu0 0
  %644 = vmatpush1.bf16.msra.mxu0 %v495
  %645 = vmatprep.subr.bf16.mxu0 0
  %646 = vmatpush1.bf16.msra.mxu0 %v496
  %647 = vmatprep.subr.bf16.mxu0 0
  %648 = vmatpush1.bf16.msra.mxu0 %v497
  %649 = vmatprep.subr.bf16.mxu0 0
  %650 = vmatpush1.bf16.msra.mxu0 %v498
  %651 = vmatprep.subr.bf16.mxu0 0
  %652 = vmatpush1.bf16.msra.mxu0 %v499
  %653 = vmatprep.subr.bf16.mxu0 0
  %654 = vmatpush1.bf16.msra.mxu0 %v500
  %655 = vmatprep.subr.bf16.mxu0 0
  %656 = vmatpush1.bf16.msra.mxu0 %v501
  %657 = vmatprep.subr.bf16.mxu0 0
  %658 = vmatpush1.bf16.msra.mxu0 %v502
  %659 = vmatprep.subr.bf16.mxu0 0
  %660 = vmatpush1.bf16.msra.mxu0 %v503
  %661 = vmatprep.subr.bf16.mxu0 0
  %662 = vmatpush1.bf16.msra.mxu0 %v504
  %663 = vmatprep.subr.bf16.mxu0 0
  %664 = vmatpush1.bf16.msra.mxu0 %v505
  %665 = vmatprep.subr.bf16.mxu0 0
  %666 = vmatpush1.bf16.msra.mxu0 %v506
  %667 = vmatprep.mubr.bf16.mxu0 %v186
  %668 = vmatmul.mubr.bf16.gmra.mrb[0].mxu0 %v185
  %v669 = vpop.f32.mrb[0].mxu0
  %v670 = vadd.f32 %v169, %v669
  %v671 = vpop.f32.mrb[0].mxu0
  %v672 = vpop.f32.mrb[0].mxu0
  %v673 = vpop.f32.mrb[0].mxu0
  %674 = vdwg.mxu0
  %675 = vmatprep.subr.bf16.mxu0 0
  %676 = vmatpush1.bf16.msra.mxu0 %v507
  %677 = vmatprep.subr.bf16.mxu0 0
  %678 = vmatpush1.bf16.msra.mxu0 %v508
  %679 = vmatprep.subr.bf16.mxu0 0
  %680 = vmatpush1.bf16.msra.mxu0 %v509
  %681 = vmatprep.subr.bf16.mxu0 0
  %682 = vmatpush1.bf16.msra.mxu0 %v510
  %683 = vmatprep.subr.bf16.mxu0 0
  %684 = vmatpush1.bf16.msra.mxu0 %v511
  %685 = vmatprep.subr.bf16.mxu0 0
  %686 = vmatpush1.bf16.msra.mxu0 %v512
  %687 = vmatprep.subr.bf16.mxu0 0
  %688 = vmatpush1.bf16.msra.mxu0 %v513
  %689 = vmatprep.subr.bf16.mxu0 0
  %690 = vmatpush1.bf16.msra.mxu0 %v514
  %691 = vmatprep.subr.bf16.mxu0 0
  %692 = vmatpush1.bf16.msra.mxu0 %v515
  %693 = vmatprep.subr.bf16.mxu0 0
  %694 = vmatpush1.bf16.msra.mxu0 %v516
  %695 = vmatprep.subr.bf16.mxu0 0
  %696 = vmatpush1.bf16.msra.mxu0 %v517
  %697 = vmatprep.subr.bf16.mxu0 0
  %698 = vmatpush1.bf16.msra.mxu0 %v518
  %699 = vmatprep.subr.bf16.mxu0 0
  %700 = vmatpush1.bf16.msra.mxu0 %v519
  %701 = vmatprep.subr.bf16.mxu0 0
  %702 = vmatpush1.bf16.msra.mxu0 %v520
  %703 = vmatprep.subr.bf16.mxu0 0
  %704 = vmatpush1.bf16.msra.mxu0 %v521
  %705 = vmatprep.subr.bf16.mxu0 0
  %706 = vmatpush1.bf16.msra.mxu0 %v522
  %707 = vmatprep.mubr.bf16.mxu0 %v188
  %708 = vmatmul.mubr.bf16.gmra.mrb[0].mxu0 %v187
  %v709 = vpop.f32.mrb[0].mxu0
  %v710 = vadd.f32 %v670, %v709
  %v711 = vpop.f32.mrb[0].mxu0
  %v712 = vpop.f32.mrb[0].mxu0
  %v713 = vpop.f32.mrb[0].mxu0
  %714 = vdwg.mxu0
  %715 = vmatprep.subr.bf16.mxu0 0
  %716 = vmatpush1.bf16.msra.mxu0 %v523
  %717 = vmatprep.subr.bf16.mxu0 0
  %718 = vmatpush1.bf16.msra.mxu0 %v524
  %719 = vmatprep.subr.bf16.mxu0 0
  %720 = vmatpush1.bf16.msra.mxu0 %v525
  %721 = vmatprep.subr.bf16.mxu0 0
  %722 = vmatpush1.bf16.msra.mxu0 %v526
  %723 = vmatprep.subr.bf16.mxu0 0
  %724 = vmatpush1.bf16.msra.mxu0 %v527
  %725 = vmatprep.subr.bf16.mxu0 0
  %726 = vmatpush1.bf16.msra.mxu0 %v528
  %727 = vmatprep.subr.bf16.mxu0 0
  %728 = vmatpush1.bf16.msra.mxu0 %v529
  %729 = vmatprep.subr.bf16.mxu0 0
  %730 = vmatpush1.bf16.msra.mxu0 %v530
  %731 = vmatprep.subr.bf16.mxu0 0
  %732 = vmatpush1.bf16.msra.mxu0 %v531
  %733 = vmatprep.subr.bf16.mxu0 0
  %734 = vmatpush1.bf16.msra.mxu0 %v532
  %735 = vmatprep.subr.bf16.mxu0 0
  %736 = vmatpush1.bf16.msra.mxu0 %v533
  %737 = vmatprep.subr.bf16.mxu0 0
  %738 = vmatpush1.bf16.msra.mxu0 %v534
  %739 = vmatprep.subr.bf16.mxu0 0
  %740 = vmatpush1.bf16.msra.mxu0 %v535
  %741 = vmatprep.subr.bf16.mxu0 0
  %742 = vmatpush1.bf16.msra.mxu0 %v536
  %743 = vmatprep.subr.bf16.mxu0 0
  %744 = vmatpush1.bf16.msra.mxu0 %v537
  %745 = vmatprep.subr.bf16.mxu0 0
  %746 = vmatpush1.bf16.msra.mxu0 %v538
  %747 = vmatprep.mubr.bf16.mxu0 %v190
  %748 = vmatmul.mubr.bf16.gmra.mrb[0].mxu0 %v189
  %v749 = vpop.f32.mrb[0].mxu0
  %v750 = vadd.f32 %v710, %v749
  %v751 = vpop.f32.mrb[0].mxu0
  %v752 = vpop.f32.mrb[0].mxu0
  %v753 = vpop.f32.mrb[0].mxu0
  %754 = vdwg.mxu0
  %755 = vmatprep.subr.bf16.mxu0 0
  %756 = vmatpush1.bf16.msra.mxu0 %v539
  %757 = vmatprep.subr.bf16.mxu0 0
  %758 = vmatpush1.bf16.msra.mxu0 %v540
  %759 = vmatprep.subr.bf16.mxu0 0
  %760 = vmatpush1.bf16.msra.mxu0 %v541
  %761 = vmatprep.subr.bf16.mxu0 0
  %762 = vmatpush1.bf16.msra.mxu0 %v542
  %763 = vmatprep.subr.bf16.mxu0 0
  %764 = vmatpush1.bf16.msra.mxu0 %v543
  %765 = vmatprep.subr.bf16.mxu0 0
  %766 = vmatpush1.bf16.msra.mxu0 %v544
  %767 = vmatprep.subr.bf16.mxu0 0
  %768 = vmatpush1.bf16.msra.mxu0 %v545
  %769 = vmatprep.subr.bf16.mxu0 0
  %770 = vmatpush1.bf16.msra.mxu0 %v546
  %771 = vmatprep.subr.bf16.mxu0 0
  %772 = vmatpush1.bf16.msra.mxu0 %v547
  %773 = vmatprep.subr.bf16.mxu0 0
  %774 = vmatpush1.bf16.msra.mxu0 %v548
  %775 = vmatprep.subr.bf16.mxu0 0
  %776 = vmatpush1.bf16.msra.mxu0 %v549
  %777 = vmatprep.subr.bf16.mxu0 0
  %778 = vmatpush1.bf16.msra.mxu0 %v550
  %779 = vmatprep.subr.bf16.mxu0 0
  %780 = vmatpush1.bf16.msra.mxu0 %v551
  %781 = vmatprep.subr.bf16.mxu0 0
  %782 = vmatpush1.bf16.msra.mxu0 %v552
  %783 = vmatprep.subr.bf16.mxu0 0
  %784 = vmatpush1.bf16.msra.mxu0 %v553
  %785 = vmatprep.subr.bf16.mxu0 0
  %786 = vmatpush1.bf16.msra.mxu0 %v554
  %787 = vmatprep.mubr.bf16.mxu0 %v192
  %788 = vmatmul.mubr.bf16.gmra.mrb[0].mxu0 %v191
  %v789 = vpop.f32.mrb[0].mxu0
  %v790 = vadd.f32 %v750, %v789
  %v791 = vpop.f32.mrb[0].mxu0
  %v792 = vpop.f32.mrb[0].mxu0
  %v793 = vpop.f32.mrb[0].mxu0
  %794 = vdwg.mxu0
  %795 = vmatprep.subr.bf16.mxu0 0
  %796 = vmatpush1.bf16.msra.mxu0 %v555
  %797 = vmatprep.subr.bf16.mxu0 0
  %798 = vmatpush1.bf16.msra.mxu0 %v556
  %799 = vmatprep.subr.bf16.mxu0 0
  %800 = vmatpush1.bf16.msra.mxu0 %v557
  %801 = vmatprep.subr.bf16.mxu0 0
  %802 = vmatpush1.bf16.msra.mxu0 %v558
  %803 = vmatprep.subr.bf16.mxu0 0
  %804 = vmatpush1.bf16.msra.mxu0 %v559
  %805 = vmatprep.subr.bf16.mxu0 0
  %806 = vmatpush1.bf16.msra.mxu0 %v560
  %807 = vmatprep.subr.bf16.mxu0 0
  %808 = vmatpush1.bf16.msra.mxu0 %v561
  %809 = vmatprep.subr.bf16.mxu0 0
  %810 = vmatpush1.bf16.msra.mxu0 %v562
  %811 = vmatprep.subr.bf16.mxu0 0
  %812 = vmatpush1.bf16.msra.mxu0 0
  %813 = vmatprep.subr.bf16.mxu0 0
  %814 = vmatpush1.bf16.msra.mxu0 0
  %815 = vmatprep.subr.bf16.mxu0 0
  %816 = vmatpush1.bf16.msra.mxu0 0
  %817 = vmatprep.subr.bf16.mxu0 0
  %818 = vmatpush1.bf16.msra.mxu0 0
  %819 = vmatprep.subr.bf16.mxu0 0
  %820 = vmatpush1.bf16.msra.mxu0 0
  %821 = vmatprep.subr.bf16.mxu0 0
  %822 = vmatpush1.bf16.msra.mxu0 0
  %823 = vmatprep.subr.bf16.mxu0 0
  %824 = vmatpush1.bf16.msra.mxu0 0
  %825 = vmatprep.subr.bf16.mxu0 0
  %826 = vmatpush1.bf16.msra.mxu0 0
  %827 = vmatprep.mubr.bf16.mxu0 0
  %828 = vmatmul.mubr.bf16.gmra.mrb[0].mxu0 %v193
  %v829 = vpop.f32.mrb[0].mxu0
  %v830 = vadd.f32 %v790, %v829
  %v831 = vpop.f32.mrb[0].mxu0
  %v832 = vpop.f32.mrb[0].mxu0
  %v833 = vpop.f32.mrb[0].mxu0
  %834 = vdwg.mxu0
  %v835 = vmax.f32 %v830, 0.0
  %836 = vst [vmem:[%s3] sm:$0xff] %v835
  // Predicated region
  $region14: #{_lambda_.41} parent=0 // pred_check
    _
  $region15: #{_lambda_.41} parent=0 // pred_check_branch
    %838 = sbr.rel (0) target = $region17
  $region16: #{_lambda_.41} parent=0 // pred_region
    _
  $region17: #{_lambda_.41} parent=0 // pred_fallthru
    _
  // Predicated region
  $region18: #{_lambda_.41} parent=0 // pred_check
    _
  $region19: #{_lambda_.41} parent=0 // pred_check_branch
    %840 = sbr.rel (0) target = $region21
  $region20: #{_lambda_.41} parent=0 // pred_region
    _
  $region21: #{_lambda_.41} parent=0 // pred_fallthru
    _

</llo_original>
